<compile_context>
chip_gen: v6e
topology: v6e:2x2x1
jax: 0.10.0
libtpu: 0.0.40
codegen_flags: <defaults>
</compile_context>

<pallas_src>
import functools
import math

import numpy as np
import jax
import jax.numpy as jnp
from jax import lax
from jax.experimental import pallas as pl
from jax.experimental.pallas import tpu as pltpu

# ----------------------------- configuration --------------------------------
B = 2                  # batch
NTUP = (4, 5)          # per-branch input feature dims
NXC = 6                # scalar-context feature dim
NH = 32                # hidden dim (even, as required by getPos)
T = 91                 # fixed by getPos (pos = arange(91) - 45)
LTUP = (T, T)          # segment lengths for the final mean pooling
N = len(NTUP) * T + 1  # true sequence length (= num_days used by the attention scale)

# Padded, sublane-aligned in-kernel layout of the assembled sequence xIn.
NPAD_FEAT = 8                        # tiny feature dims zero-padded to 8
SEG_R = 96                           # 91 rounded up to a multiple of 8
CTX_R = 16                           # context row replicated to a full bf16 sublane tile
BSTRIDE = 2 * SEG_R + CTX_R          # 208 rows per batch element (multiple of 16)
ORIG2PAD = np.concatenate(
    [np.arange(T), SEG_R + np.arange(T), [2 * SEG_R]]).astype(np.int32)


# --------------------- Pallas kernel: whole forward pass ---------------------
def _final_kernel(xenc_ref, pos_ref, amask_ref, segw_ref,
                  we1_ref, benc_ref, we2_ref, wqkv_ref,
                  wf1a_ref, wf1b_ref, wf2a_ref, bvec_ref,
                  o_ref, xin_ref, qkv_ref, *, batch):
    f32 = jnp.float32
    bf16 = jnp.bfloat16

    def bvec(i):                       # lazy (1, NH) ref slice -> load at point of use
        return bvec_ref[i:i + 1, :]

    def layer_norm(z, gi, bi):
        mu = jnp.mean(z, axis=-1, keepdims=True)
        var = jnp.mean((z - mu) ** 2, axis=-1, keepdims=True)
        return (z - mu) * lax.rsqrt(var + 1e-5) * bvec(gi) + bvec(bi)

    # ---- encoder: both branch MLPs + context MLP for both batch rows as ONE
    #      block-diagonal 2-layer MLP (weights packed block-diagonally host-side).
    h0 = (jnp.dot(xenc_ref[...], we1_ref[...], preferred_element_type=f32)
          + benc_ref[0:1, :])
    enc = (jnp.dot(jnp.maximum(h0, 0.0), we2_ref[...], preferred_element_type=f32)
           + benc_ref[1:2, :])                                   # (batch*112, 96)

    pos = pos_ref[...]                                           # (SEG_R, NH), rows>=91 are 0
    for b in range(batch):                                       # tiny unrolled loop
        base = b * BSTRIDE
        eb = b * SEG_R
        cb = batch * SEG_R + b * CTX_R
        xin_ref[base:base + SEG_R, :] = enc[eb:eb + SEG_R, 0:NH] + pos
        xin_ref[base + SEG_R:base + 2 * SEG_R, :] = enc[eb:eb + SEG_R, NH:2 * NH] + pos
        xin_ref[base + 2 * SEG_R:base + BSTRIDE, :] = enc[cb:cb + CTX_R, 2 * NH:3 * NH]

    # ---- fused QKV projection for the whole batch stack (bf16 MXU operands;
    #      1/sqrt(num_days) already folded into Wq, W_o into W_v at pack time).
    qkv_ref[...] = jnp.dot(xin_ref[...].astype(bf16), wqkv_ref[...],
                           preferred_element_type=f32).astype(bf16)

    # ---- per-batch attention + AddNorm/FFN stack + folded segment-mean pooling
    for b in range(batch):
        base = b * BSTRIDE
        q = qkv_ref[base:base + BSTRIDE, 0:NH]                   # bf16 (BSTRIDE, NH)
        k = qkv_ref[base:base + BSTRIDE, NH:2 * NH]
        score = lax.dot_general(q, k, (((1,), (1,)), ((), ())),
                                preferred_element_type=f32)      # (BSTRIDE, BSTRIDE) f32
        score = score + amask_ref[b:b + 1, :]                    # additive 0 / -1e30 mask
        smax = jnp.max(score, axis=-1, keepdims=True)
        e = jnp.exp(score - smax)
        inv = pl.reciprocal(jnp.sum(e, axis=-1, keepdims=True), approx=True)
        attn = (e * inv).astype(bf16)
        v = qkv_ref[base:base + BSTRIDE, 2 * NH:3 * NH]
        out = jnp.dot(attn, v, preferred_element_type=f32)       # W_o already folded into v

        y1 = layer_norm(out + xin_ref[base:base + BSTRIDE, :], 0, 1)      # AddNorm1
        h1 = jnp.maximum(
            jnp.dot(y1, wf1a_ref[...], preferred_element_type=f32) + bvec(2), 0.0)
        y2 = jnp.dot(h1, wf1b_ref[...], preferred_element_type=f32) + bvec(3)
        y3 = layer_norm(y2 + xin_ref[base:base + BSTRIDE, :], 4, 5)       # AddNorm2
        h2 = jnp.maximum(
            jnp.dot(y3, wf2a_ref[...], preferred_element_type=f32) + bvec(6), 0.0)

        # segment-mean pooling folded in front of the final 32->1 projection:
        # pooled_h = segw^T @ relu(y3 @ f2w1 + f2b1); the 32->1 dot and the
        # sum(segw)*f2b2 bias finish outside so the output stays lane-dense.
        o_ref[b:b + 1, :] = jnp.dot(segw_ref[...], h2, preferred_element_type=f32)


# ------------------------------ JAX glue -------------------------------------
def get_pos(nh):
    """Positional encoding matching InputFeature.getPos (length fixed to 91)."""
    pos = (jnp.arange(T) - 45).astype(jnp.float32)
    i = jnp.arange(nh // 2).astype(jnp.float32)
    angle = pos[:, None] / (i[None, :] + 1.0) * jnp.pi
    pmat = jnp.zeros((T, nh), jnp.float32)
    pmat = pmat.at[:, 0::2].set(jnp.sin(angle))
    pmat = pmat.at[:, 1::2].set(jnp.cos(angle))
    return pmat


def _segment_weights(ltup, n_orig):
    """Per-position pooling weights (1/seg_len) scattered into the padded layout."""
    w = np.zeros((n_orig,), np.float32)
    k = 0
    for seg in ltup:
        w[k:k + seg] = 1.0 / seg
        k += seg
    rem = n_orig - k
    if rem > 0:
        w[k:] = 1.0 / rem
    segw = np.zeros((1, BSTRIDE), np.float32)
    segw[0, ORIG2PAD] = w
    return jnp.asarray(segw), float(w.sum())


def _pack_params(p, n_days):
    """One-time packing: block-diagonal encoder, fused (scaled-Wq | Wk | Wv@Wo)."""
    f32 = jnp.float32
    b0w1, b0b1, b0w2, b0b2 = p["branch"][0]
    b1w1, b1b1, b1w2, b1b2 = p["branch"][1]
    cw1, cb1, cw2, cb2 = p["xc"]

    we1 = jnp.zeros((3 * NPAD_FEAT, 3 * NH), f32)
    we1 = we1.at[0:NTUP[0], 0:NH].set(b0w1)
    we1 = we1.at[NPAD_FEAT:NPAD_FEAT + NTUP[1], NH:2 * NH].set(b1w1)
    we1 = we1.at[2 * NPAD_FEAT:2 * NPAD_FEAT + NXC, 2 * NH:3 * NH].set(cw1)
    we2 = jnp.zeros((3 * NH, 3 * NH), f32)
    we2 = we2.at[0:NH, 0:NH].set(b0w2)
    we2 = we2.at[NH:2 * NH, NH:2 * NH].set(b1w2)
    we2 = we2.at[2 * NH:3 * NH, 2 * NH:3 * NH].set(cw2)
    benc = jnp.stack([jnp.concatenate([b0b1, b1b1, cb1]),
                      jnp.concatenate([b0b2, b1b2, cb2])], axis=0)          # (2, 96)

    wqkv = jnp.concatenate(
        [p["Wq"] * (1.0 / math.sqrt(n_days)), p["Wk"], p["Wv"] @ p["Wo"]],
        axis=1).astype(jnp.bfloat16)                                        # (NH, 3*NH)

    bvec = jnp.stack([p["g1"], p["be1"], p["f1b1"], p["f1b2"],
                      p["g2"], p["be2"], p["f2b1"]], axis=0)                # (7, NH)
    return we1, benc, we2, wqkv, bvec


def _build_encoder_input(x_tup, xc):
    """Batch-stacked, feature-padded encoder input for the block-diagonal MLP."""
    b = xc.shape[0]
    f32 = jnp.float32

    def pad_branch(x):
        return jnp.pad(x.astype(f32),
                       ((0, 0), (0, SEG_R - T), (0, NPAD_FEAT - x.shape[-1])))

    x0 = pad_branch(x_tup[0])                                    # (b, 96, 8)
    x1 = pad_branch(x_tup[1])                                    # (b, 96, 8)
    xbr = jnp.concatenate([x0, x1, jnp.zeros((b, SEG_R, NPAD_FEAT), f32)], axis=-1)
    xbr = xbr.reshape(b * SEG_R, 3 * NPAD_FEAT)                  # (b*96, 24)
    xcp = jnp.pad(xc.astype(f32), ((0, 0), (0, NPAD_FEAT - xc.shape[-1])))   # (b, 8)
    xct = jnp.concatenate(
        [jnp.zeros((b, CTX_R, 2 * NPAD_FEAT), f32),
         jnp.broadcast_to(xcp[:, None, :], (b, CTX_R, NPAD_FEAT))], axis=-1)
    xct = xct.reshape(b * CTX_R, 3 * NPAD_FEAT)                  # (b*16, 24)
    return jnp.concatenate([xbr, xct], axis=0)                   # (b*112, 24)


def final_model_forward(x_tup, xc, ltup, mask, p):
    b = xc.shape[0]
    n_orig = mask.shape[1]                        # num_days used by the attention scale

    xenc = _build_encoder_input(x_tup, xc)
    pos96 = jnp.pad(get_pos(NH), ((0, SEG_R - T), (0, 0)))        # (96, NH)
    segw, segw_sum = _segment_weights(ltup, n_orig)
    we1, benc, we2, wqkv, bvec = _pack_params(p, n_orig)

    # additive attention mask (0 keep / -1e30 drop) scattered into the padded layout
    amask_valid = jnp.where(mask != 0.0, 0.0, -1e30).astype(jnp.float32)
    amask = jnp.full((b, BSTRIDE), -1e30, jnp.float32).at[:, ORIG2PAD].set(amask_valid)

    enc_rows = b * (SEG_R + CTX_R)
    kernel = functools.partial(_final_kernel, batch=b)

    pooled = pl.pallas_call(
        kernel,
        out_shape=jax.ShapeDtypeStruct((b, NH), jnp.float32),
        grid=(1,),                               # single step: no per-batch grid overhead
        in_specs=[
            pl.BlockSpec((enc_rows, 3 * NPAD_FEAT), lambda i: (0, 0)),   # encoder input
            pl.BlockSpec((SEG_R, NH), lambda i: (0, 0)),                 # positional enc
            pl.BlockSpec((b, BSTRIDE), lambda i: (0, 0)),                # additive mask
            pl.BlockSpec((1, BSTRIDE), lambda i: (0, 0)),                # pooling weights
            pl.BlockSpec((3 * NPAD_FEAT, 3 * NH), lambda i: (0, 0)),     # encoder W1 (blockdiag)
            pl.BlockSpec((2, 3 * NH), lambda i: (0, 0)),                 # encoder biases
            pl.BlockSpec((3 * NH, 3 * NH), lambda i: (0, 0)),            # encoder W2 (blockdiag)
            pl.BlockSpec((NH, 3 * NH), lambda i: (0, 0)),                # Wq*s | Wk | Wv@Wo
            pl.BlockSpec((NH, NH), lambda i: (0, 0)),                    # ffn1 dense1
            pl.BlockSpec((NH, NH), lambda i: (0, 0)),                    # ffn1 dense2
            pl.BlockSpec((NH, NH), lambda i: (0, 0)),                    # ffn2 dense1
            pl.BlockSpec((7, NH), lambda i: (0, 0)),                     # LN / bias rows
        ],
        out_specs=pl.BlockSpec((b, NH), lambda i: (0, 0)),
        scratch_shapes=[pltpu.VMEM((b * BSTRIDE, NH), jnp.float32),      # assembled xIn
                        pltpu.VMEM((b * BSTRIDE, 3 * NH), jnp.bfloat16)],  # fused q|k|v
        compiler_params=pltpu.CompilerParams(dimension_semantics=("arbitrary",)),
    )(xenc, pos96, amask, segw, we1, benc, we2, wqkv,
      p["f1w1"], p["f1w2"], p["f2w1"], bvec)

    # final 32->1 projection + (#segments)*bias finish outside the kernel
    out = pooled @ p["f2w2"] + segw_sum * p["f2b2"]
    return out[:, 0]


# --------------------------- parameter construction --------------------------
def _xavier(key, shape):
    fan_in, fan_out = shape
    lim = math.sqrt(6.0 / (fan_in + fan_out))
    return jax.random.uniform(key, shape, jnp.float32, -lim, lim)


def init_params(key):
    ks = iter(jax.random.split(key, 64))
    p = {}
    p["branch"] = []
    for n in NTUP:
        p["branch"].append((
            _xavier(next(ks), (n, NH)), jnp.zeros((NH,), jnp.float32),
            _xavier(next(ks), (NH, NH)), jnp.zeros((NH,), jnp.float32),
        ))
    p["xc"] = (
        _xavier(next(ks), (NXC, NH)), jnp.zeros((NH,), jnp.float32),
        _xavier(next(ks), (NH, NH)), jnp.zeros((NH,), jnp.float32),
    )
    for name in ("Wq", "Wk", "Wv", "Wo"):
        p[name] = _xavier(next(ks), (NH, NH))
    p["g1"] = jnp.ones((NH,), jnp.float32); p["be1"] = jnp.zeros((NH,), jnp.float32)
    p["g2"] = jnp.ones((NH,), jnp.float32); p["be2"] = jnp.zeros((NH,), jnp.float32)
    p["f1w1"] = _xavier(next(ks), (NH, NH)); p["f1b1"] = jnp.zeros((NH,), jnp.float32)
    p["f1w2"] = _xavier(next(ks), (NH, NH)); p["f1b2"] = jnp.zeros((NH,), jnp.float32)
    p["f2w1"] = _xavier(next(ks), (NH, NH)); p["f2b1"] = jnp.zeros((NH,), jnp.float32)
    p["f2w2"] = _xavier(next(ks), (NH, 1));  p["f2b2"] = jnp.zeros((1,), jnp.float32)
    return p


# ------------------------- pure-JAX reference (check) ------------------------
def reference_forward(x_tup, xc, ltup, mask, p):
    pos = get_pos(NH)
    outs = []
    for k, xk in enumerate(x_tup):
        w1, b1, w2, b2 = p["branch"][k]
        outs.append(jnp.maximum(xk @ w1 + b1, 0.0) @ w2 + b2 + pos[None])
    w1, b1, w2, b2 = p["xc"]
    out_c = jnp.maximum(xc @ w1 + b1, 0.0) @ w2 + b2
    x_in = jnp.concatenate(outs + [out_c[:, None, :]], axis=1)
    q, k_, v = x_in @ p["Wq"], x_in @ p["Wk"], x_in @ p["Wv"]
    n = x_in.shape[1]
    score = jnp.einsum("bqh,bkh->bqk", q, k_) / math.sqrt(n)
    score = jnp.where(mask[:, None, :] != 0.0, score, -jnp.inf)
    attn = jax.nn.softmax(score, axis=-1)
    out = jnp.einsum("bqk,bkh->bqh", attn, v) @ p["Wo"]

    def ln(z, g, b):
        mu = z.mean(-1, keepdims=True)
        var = ((z - mu) ** 2).mean(-1, keepdims=True)
        return (z - mu) / jnp.sqrt(var + 1e-5) * g + b

    y1 = ln(out + x_in, p["g1"], p["be1"])
    y2 = jnp.maximum(y1 @ p["f1w1"] + p["f1b1"], 0.0) @ p["f1w2"] + p["f1b2"]
    y3 = ln(y2 + x_in, p["g2"], p["be2"])
    z = (jnp.maximum(y3 @ p["f2w1"] + p["f2b1"], 0.0) @ p["f2w2"] + p["f2b2"])[..., 0]
    temp = jnp.zeros((z.shape[0],), jnp.float32)
    k0 = 0
    for seg_len in ltup:
        temp = temp + z[:, k0:k0 + seg_len].mean(-1)
        k0 += seg_len
    temp = temp + z[:, k0:].mean(-1)
    return temp


# ----------------------------------- main ------------------------------------
if __name__ == "__main__":
    key = jax.random.PRNGKey(0)
    k_par, k_x0, k_x1, k_xc = jax.random.split(key, 4)
    params = init_params(k_par)

    x_tup = (
        jax.random.normal(k_x0, (B, T, NTUP[0]), jnp.float32),
        jax.random.normal(k_x1, (B, T, NTUP[1]), jnp.float32),
    )
    xc = jax.random.normal(k_xc, (B, NXC), jnp.float32)
    mask = jnp.ones((B, N), jnp.float32)
    mask = mask.at[:, 50:60].set(0.0)        # mask out some key columns

    out = final_model_forward(x_tup, xc, LTUP, mask, params)
    out = jax.block_until_ready(out)

    ref = jax.block_until_ready(reference_forward(x_tup, xc, LTUP, mask, params))
    assert out.shape == (B,)
    # tolerance covers the bf16 MXU operands + approx softmax reciprocal
    assert jnp.allclose(out, ref, rtol=5e-2, atol=5e-2), (out, ref)

    print("KERNEL_OK")
</pallas_src>

<mosaic_0001>
module attributes {stable_mosaic.version = 11 : i64} {
  func.func @_final_kernel(%arg0: i32, %arg1: memref<224x24xf32, #tpu.memory_space<vmem>>, %arg2: memref<96x32xf32, #tpu.memory_space<vmem>>, %arg3: memref<2x208xf32, #tpu.memory_space<vmem>>, %arg4: memref<1x208xf32, #tpu.memory_space<vmem>>, %arg5: memref<24x96xf32, #tpu.memory_space<vmem>>, %arg6: memref<2x96xf32, #tpu.memory_space<vmem>>, %arg7: memref<96x96xf32, #tpu.memory_space<vmem>>, %arg8: memref<32x96xbf16, #tpu.memory_space<vmem>>, %arg9: memref<32x32xf32, #tpu.memory_space<vmem>>, %arg10: memref<32x32xf32, #tpu.memory_space<vmem>>, %arg11: memref<32x32xf32, #tpu.memory_space<vmem>>, %arg12: memref<7x32xf32, #tpu.memory_space<vmem>>, %arg13: memref<2x32xf32, #tpu.memory_space<vmem>>, %arg14: memref<416x32xf32, #tpu.memory_space<vmem>>, %arg15: memref<416x96xbf16, #tpu.memory_space<vmem>>) attributes {dimension_semantics = [#tpu.dimension_semantics<arbitrary>], iteration_bounds = array<i64: 1>, scalar_prefetch = 0 : i64, scratch_operands = 2 : i64, tpu.core_type = #tpu.core_type<tc>, window_params = [{pipeline_mode = #tpu.pipeline_mode<synchronous>, transform_indices = @transform_0, window_bounds = array<i64: 224, 24>}, {pipeline_mode = #tpu.pipeline_mode<synchronous>, transform_indices = @transform_1, window_bounds = array<i64: 96, 32>}, {pipeline_mode = #tpu.pipeline_mode<synchronous>, transform_indices = @transform_2, window_bounds = array<i64: 2, 208>}, {pipeline_mode = #tpu.pipeline_mode<synchronous>, transform_indices = @transform_3, window_bounds = array<i64: 1, 208>}, {pipeline_mode = #tpu.pipeline_mode<synchronous>, transform_indices = @transform_4, window_bounds = array<i64: 24, 96>}, {pipeline_mode = #tpu.pipeline_mode<synchronous>, transform_indices = @transform_5, window_bounds = array<i64: 2, 96>}, {pipeline_mode = #tpu.pipeline_mode<synchronous>, transform_indices = @transform_6, window_bounds = array<i64: 96, 96>}, {pipeline_mode = #tpu.pipeline_mode<synchronous>, transform_indices = @transform_7, window_bounds = array<i64: 32, 96>}, {pipeline_mode = #tpu.pipeline_mode<synchronous>, transform_indices = @transform_8, window_bounds = array<i64: 32, 32>}, {pipeline_mode = #tpu.pipeline_mode<synchronous>, transform_indices = @transform_9, window_bounds = array<i64: 32, 32>}, {pipeline_mode = #tpu.pipeline_mode<synchronous>, transform_indices = @transform_10, window_bounds = array<i64: 32, 32>}, {pipeline_mode = #tpu.pipeline_mode<synchronous>, transform_indices = @transform_11, window_bounds = array<i64: 7, 32>}, {pipeline_mode = #tpu.pipeline_mode<synchronous>, transform_indices = @transform_12, window_bounds = array<i64: 2, 32>}]} {
    %c0 = arith.constant 0 : index
    %c0_0 = arith.constant 0 : index
    %0 = vector.load %arg1[%c0, %c0_0] : memref<224x24xf32, #tpu.memory_space<vmem>>, vector<224x24xf32>
    %c0_1 = arith.constant 0 : index
    %c0_2 = arith.constant 0 : index
    %1 = vector.load %arg5[%c0_1, %c0_2] : memref<24x96xf32, #tpu.memory_space<vmem>>, vector<24x96xf32>
    %cst = arith.constant dense<0.000000e+00> : vector<224x96xf32>
    %2 = tpu.matmul %0, %1, %cst {dimension_numbers = #tpu.dot_dimension_numbers<[1], [0], [0], [1], [0, 0, 1, 1], [], []>} : vector<224x24xf32>, vector<24x96xf32>, vector<224x96xf32> -> vector<224x96xf32>
    %c0_3 = arith.constant 0 : index
    %c0_4 = arith.constant 0 : index
    %3 = vector.load %arg6[%c0_3, %c0_4] : memref<2x96xf32, #tpu.memory_space<vmem>>, vector<1x96xf32>
    %4 = vector.broadcast %3 : vector<1x96xf32> to vector<224x96xf32>
    %5 = arith.addf %2, %4 : vector<224x96xf32>
    %cst_5 = arith.constant 0.000000e+00 : f32
    %6 = vector.broadcast %cst_5 : f32 to vector<224x96xf32>
    %7 = arith.maximumf %5, %6 : vector<224x96xf32>
    %c0_6 = arith.constant 0 : index
    %c0_7 = arith.constant 0 : index
    %8 = vector.load %arg7[%c0_6, %c0_7] : memref<96x96xf32, #tpu.memory_space<vmem>>, vector<96x96xf32>
    %cst_8 = arith.constant dense<0.000000e+00> : vector<224x96xf32>
    %9 = tpu.matmul %7, %8, %cst_8 {dimension_numbers = #tpu.dot_dimension_numbers<[1], [0], [0], [1], [0, 0, 1, 1], [], []>} : vector<224x96xf32>, vector<96x96xf32>, vector<224x96xf32> -> vector<224x96xf32>
    %c1 = arith.constant 1 : index
    %c0_9 = arith.constant 0 : index
    %10 = vector.load %arg6[%c1, %c0_9] : memref<2x96xf32, #tpu.memory_space<vmem>>, vector<1x96xf32>
    %11 = vector.broadcast %10 : vector<1x96xf32> to vector<224x96xf32>
    %12 = arith.addf %9, %11 : vector<224x96xf32>
    %c0_10 = arith.constant 0 : index
    %c0_11 = arith.constant 0 : index
    %13 = vector.load %arg2[%c0_10, %c0_11] : memref<96x32xf32, #tpu.memory_space<vmem>>, vector<96x32xf32>
    %14 = vector.extract_strided_slice %12 {offsets = [0, 0], sizes = [96, 32], strides = [1, 1]} : vector<224x96xf32> to vector<96x32xf32>
    %15 = arith.addf %14, %13 : vector<96x32xf32>
    %c0_12 = arith.constant 0 : index
    %c0_13 = arith.constant 0 : index
    %16 = vector.load %arg14[%c0_12, %c0_13] : memref<416x32xf32, #tpu.memory_space<vmem>>, vector<96x32xf32>
    tpu.vector_store %arg14[%c0_12, %c0_13], %15 {strides = array<i32>} : memref<416x32xf32, #tpu.memory_space<vmem>>, vector<96x32xf32>,
    %17 = vector.extract_strided_slice %12 {offsets = [0, 32], sizes = [96, 32], strides = [1, 1]} : vector<224x96xf32> to vector<96x32xf32>
    %18 = arith.addf %17, %13 : vector<96x32xf32>
    %c96 = arith.constant 96 : index
    %c0_14 = arith.constant 0 : index
    %19 = vector.load %arg14[%c96, %c0_14] : memref<416x32xf32, #tpu.memory_space<vmem>>, vector<96x32xf32>
    tpu.vector_store %arg14[%c96, %c0_14], %18 {strides = array<i32>} : memref<416x32xf32, #tpu.memory_space<vmem>>, vector<96x32xf32>,
    %20 = vector.extract_strided_slice %12 {offsets = [192, 64], sizes = [16, 32], strides = [1, 1]} : vector<224x96xf32> to vector<16x32xf32>
    %c192 = arith.constant 192 : index
    %c0_15 = arith.constant 0 : index
    %21 = vector.load %arg14[%c192, %c0_15] : memref<416x32xf32, #tpu.memory_space<vmem>>, vector<16x32xf32>
    tpu.vector_store %arg14[%c192, %c0_15], %20 {strides = array<i32>} : memref<416x32xf32, #tpu.memory_space<vmem>>, vector<16x32xf32>,
    %22 = vector.extract_strided_slice %12 {offsets = [96, 0], sizes = [96, 32], strides = [1, 1]} : vector<224x96xf32> to vector<96x32xf32>
    %23 = arith.addf %22, %13 : vector<96x32xf32>
    %c208 = arith.constant 208 : index
    %c0_16 = arith.constant 0 : index
    %24 = vector.load %arg14[%c208, %c0_16] : memref<416x32xf32, #tpu.memory_space<vmem>>, vector<96x32xf32>
    tpu.vector_store %arg14[%c208, %c0_16], %23 {strides = array<i32>} : memref<416x32xf32, #tpu.memory_space<vmem>>, vector<96x32xf32>,
    %25 = vector.extract_strided_slice %12 {offsets = [96, 32], sizes = [96, 32], strides = [1, 1]} : vector<224x96xf32> to vector<96x32xf32>
    %26 = arith.addf %25, %13 : vector<96x32xf32>
    %c304 = arith.constant 304 : index
    %c0_17 = arith.constant 0 : index
    %27 = vector.load %arg14[%c304, %c0_17] : memref<416x32xf32, #tpu.memory_space<vmem>>, vector<96x32xf32>
    tpu.vector_store %arg14[%c304, %c0_17], %26 {strides = array<i32>} : memref<416x32xf32, #tpu.memory_space<vmem>>, vector<96x32xf32>,
    %28 = vector.extract_strided_slice %12 {offsets = [208, 64], sizes = [16, 32], strides = [1, 1]} : vector<224x96xf32> to vector<16x32xf32>
    %c400 = arith.constant 400 : index
    %c0_18 = arith.constant 0 : index
    %29 = vector.load %arg14[%c400, %c0_18] : memref<416x32xf32, #tpu.memory_space<vmem>>, vector<16x32xf32>
    tpu.vector_store %arg14[%c400, %c0_18], %28 {strides = array<i32>} : memref<416x32xf32, #tpu.memory_space<vmem>>, vector<16x32xf32>,
    %c0_19 = arith.constant 0 : index
    %c0_20 = arith.constant 0 : index
    %30 = vector.load %arg14[%c0_19, %c0_20] : memref<416x32xf32, #tpu.memory_space<vmem>>, vector<416x32xf32>
    %31 = arith.truncf %30 : vector<416x32xf32> to vector<416x32xbf16>
    %c0_21 = arith.constant 0 : index
    %c0_22 = arith.constant 0 : index
    %32 = vector.load %arg8[%c0_21, %c0_22] : memref<32x96xbf16, #tpu.memory_space<vmem>>, vector<32x96xbf16>
    %cst_23 = arith.constant dense<0.000000e+00> : vector<416x96xf32>
    %33 = tpu.matmul %31, %32, %cst_23 {dimension_numbers = #tpu.dot_dimension_numbers<[1], [0], [0], [1], [0, 0, 1, 1], [], []>} : vector<416x32xbf16>, vector<32x96xbf16>, vector<416x96xf32> -> vector<416x96xf32>
    %34 = arith.truncf %33 : vector<416x96xf32> to vector<416x96xbf16>
    %c0_24 = arith.constant 0 : index
    %c0_25 = arith.constant 0 : index
    %35 = vector.load %arg15[%c0_24, %c0_25] : memref<416x96xbf16, #tpu.memory_space<vmem>>, vector<416x96xbf16>
    tpu.vector_store %arg15[%c0_24, %c0_25], %34 {strides = array<i32>} : memref<416x96xbf16, #tpu.memory_space<vmem>>, vector<416x96xbf16>,
    %c0_26 = arith.constant 0 : index
    %c0_27 = arith.constant 0 : index
    %36 = vector.load %arg15[%c0_26, %c0_27] : memref<416x96xbf16, #tpu.memory_space<vmem>>, vector<208x32xbf16>
    %c0_28 = arith.constant 0 : index
    %c32 = arith.constant 32 : index
    %37 = vector.load %arg15[%c0_28, %c32] : memref<416x96xbf16, #tpu.memory_space<vmem>>, vector<208x32xbf16>
    %cst_29 = arith.constant dense<0.000000e+00> : vector<208x208xf32>
    %38 = tpu.matmul %36, %37, %cst_29 {dimension_numbers = #tpu.dot_dimension_numbers<[1], [1], [0], [0], [0, 0, 1, 0], [], []>} : vector<208x32xbf16>, vector<208x32xbf16>, vector<208x208xf32> -> vector<208x208xf32>
    %c0_30 = arith.constant 0 : index
    %c0_31 = arith.constant 0 : index
    %39 = vector.load %arg3[%c0_30, %c0_31] : memref<2x208xf32, #tpu.memory_space<vmem>>, vector<1x208xf32>
    %40 = vector.broadcast %39 : vector<1x208xf32> to vector<208x208xf32>
    %41 = arith.addf %38, %40 : vector<208x208xf32>
    %cst_32 = arith.constant dense<0xFF800000> : vector<208xf32>
    %42 = vector.multi_reduction <maximumf>, %41, %cst_32 [1] : vector<208x208xf32> to vector<208xf32>
    %43 = vector.shape_cast %42 : vector<208xf32> to vector<208x1xf32>
    %44 = vector.broadcast %43 : vector<208x1xf32> to vector<208x208xf32>
    %45 = arith.subf %41, %44 : vector<208x208xf32>
    %46 = math.exp %45 : vector<208x208xf32>
    %cst_33 = arith.constant dense<0.000000e+00> : vector<208xf32>
    %47 = vector.multi_reduction <add>, %46, %cst_33 [1] : vector<208x208xf32> to vector<208xf32>
    %48 = vector.shape_cast %47 : vector<208xf32> to vector<208x1xf32>
    %49 = tpu.reciprocal %48 {approx = true} : vector<208x1xf32> -> vector<208x1xf32>
    %50 = vector.broadcast %49 : vector<208x1xf32> to vector<208x208xf32>
    %51 = arith.mulf %46, %50 : vector<208x208xf32>
    %52 = arith.truncf %51 : vector<208x208xf32> to vector<208x208xbf16>
    %c0_34 = arith.constant 0 : index
    %c64 = arith.constant 64 : index
    %53 = vector.load %arg15[%c0_34, %c64] : memref<416x96xbf16, #tpu.memory_space<vmem>>, vector<208x32xbf16>
    %cst_35 = arith.constant dense<0.000000e+00> : vector<208x32xf32>
    %54 = tpu.matmul %52, %53, %cst_35 {dimension_numbers = #tpu.dot_dimension_numbers<[1], [0], [0], [1], [0, 0, 1, 1], [], []>} : vector<208x208xbf16>, vector<208x32xbf16>, vector<208x32xf32> -> vector<208x32xf32>
    %c0_36 = arith.constant 0 : index
    %c0_37 = arith.constant 0 : index
    %55 = vector.load %arg14[%c0_36, %c0_37] : memref<416x32xf32, #tpu.memory_space<vmem>>, vector<208x32xf32>
    %56 = arith.addf %54, %55 : vector<208x32xf32>
    %cst_38 = arith.constant dense<0.000000e+00> : vector<208xf32>
    %57 = vector.multi_reduction <add>, %56, %cst_38 [1] : vector<208x32xf32> to vector<208xf32>
    %58 = vector.shape_cast %57 : vector<208xf32> to vector<208x1xf32>
    %cst_39 = arith.constant 3.200000e+01 : f32
    %59 = vector.broadcast %cst_39 : f32 to vector<208x1xf32>
    %60 = arith.divf %58, %59 : vector<208x1xf32>
    %61 = vector.broadcast %60 : vector<208x1xf32> to vector<208x32xf32>
    %62 = arith.subf %56, %61 : vector<208x32xf32>
    %63 = arith.mulf %62, %62 : vector<208x32xf32>
    %cst_40 = arith.constant dense<0.000000e+00> : vector<208xf32>
    %64 = vector.multi_reduction <add>, %63, %cst_40 [1] : vector<208x32xf32> to vector<208xf32>
    %65 = vector.shape_cast %64 : vector<208xf32> to vector<208x1xf32>
    %cst_41 = arith.constant 3.200000e+01 : f32
    %66 = vector.broadcast %cst_41 : f32 to vector<208x1xf32>
    %67 = arith.divf %65, %66 : vector<208x1xf32>
    %68 = vector.broadcast %60 : vector<208x1xf32> to vector<208x32xf32>
    %69 = arith.subf %56, %68 : vector<208x32xf32>
    %cst_42 = arith.constant 9.99999974E-6 : f32
    %70 = vector.broadcast %cst_42 : f32 to vector<208x1xf32>
    %71 = arith.addf %67, %70 : vector<208x1xf32>
    %72 = math.rsqrt %71 : vector<208x1xf32>
    %73 = vector.broadcast %72 : vector<208x1xf32> to vector<208x32xf32>
    %74 = arith.mulf %69, %73 : vector<208x32xf32>
    %c0_43 = arith.constant 0 : index
    %c0_44 = arith.constant 0 : index
    %75 = vector.load %arg12[%c0_43, %c0_44] : memref<7x32xf32, #tpu.memory_space<vmem>>, vector<1x32xf32>
    %76 = vector.broadcast %75 : vector<1x32xf32> to vector<208x32xf32>
    %77 = arith.mulf %74, %76 : vector<208x32xf32>
    %c1_45 = arith.constant 1 : index
    %c0_46 = arith.constant 0 : index
    %78 = vector.load %arg12[%c1_45, %c0_46] : memref<7x32xf32, #tpu.memory_space<vmem>>, vector<1x32xf32>
    %79 = vector.broadcast %78 : vector<1x32xf32> to vector<208x32xf32>
    %80 = arith.addf %77, %79 : vector<208x32xf32>
    %c0_47 = arith.constant 0 : index
    %c0_48 = arith.constant 0 : index
    %81 = vector.load %arg9[%c0_47, %c0_48] : memref<32x32xf32, #tpu.memory_space<vmem>>, vector<32x32xf32>
    %cst_49 = arith.constant dense<0.000000e+00> : vector<208x32xf32>
    %82 = tpu.matmul %80, %81, %cst_49 {dimension_numbers = #tpu.dot_dimension_numbers<[1], [0], [0], [1], [0, 0, 1, 1], [], []>} : vector<208x32xf32>, vector<32x32xf32>, vector<208x32xf32> -> vector<208x32xf32>
    %c2 = arith.constant 2 : index
    %c0_50 = arith.constant 0 : index
    %83 = vector.load %arg12[%c2, %c0_50] : memref<7x32xf32, #tpu.memory_space<vmem>>, vector<1x32xf32>
    %84 = vector.broadcast %83 : vector<1x32xf32> to vector<208x32xf32>
    %85 = arith.addf %82, %84 : vector<208x32xf32>
    %cst_51 = arith.constant 0.000000e+00 : f32
    %86 = vector.broadcast %cst_51 : f32 to vector<208x32xf32>
    %87 = arith.maximumf %85, %86 : vector<208x32xf32>
    %c0_52 = arith.constant 0 : index
    %c0_53 = arith.constant 0 : index
    %88 = vector.load %arg10[%c0_52, %c0_53] : memref<32x32xf32, #tpu.memory_space<vmem>>, vector<32x32xf32>
    %cst_54 = arith.constant dense<0.000000e+00> : vector<208x32xf32>
    %89 = tpu.matmul %87, %88, %cst_54 {dimension_numbers = #tpu.dot_dimension_numbers<[1], [0], [0], [1], [0, 0, 1, 1], [], []>} : vector<208x32xf32>, vector<32x32xf32>, vector<208x32xf32> -> vector<208x32xf32>
    %c3 = arith.constant 3 : index
    %c0_55 = arith.constant 0 : index
    %90 = vector.load %arg12[%c3, %c0_55] : memref<7x32xf32, #tpu.memory_space<vmem>>, vector<1x32xf32>
    %91 = vector.broadcast %90 : vector<1x32xf32> to vector<208x32xf32>
    %92 = arith.addf %89, %91 : vector<208x32xf32>
    %c0_56 = arith.constant 0 : index
    %c0_57 = arith.constant 0 : index
    %93 = vector.load %arg14[%c0_56, %c0_57] : memref<416x32xf32, #tpu.memory_space<vmem>>, vector<208x32xf32>
    %94 = arith.addf %92, %93 : vector<208x32xf32>
    %cst_58 = arith.constant dense<0.000000e+00> : vector<208xf32>
    %95 = vector.multi_reduction <add>, %94, %cst_58 [1] : vector<208x32xf32> to vector<208xf32>
    %96 = vector.shape_cast %95 : vector<208xf32> to vector<208x1xf32>
    %cst_59 = arith.constant 3.200000e+01 : f32
    %97 = vector.broadcast %cst_59 : f32 to vector<208x1xf32>
    %98 = arith.divf %96, %97 : vector<208x1xf32>
    %99 = vector.broadcast %98 : vector<208x1xf32> to vector<208x32xf32>
    %100 = arith.subf %94, %99 : vector<208x32xf32>
    %101 = arith.mulf %100, %100 : vector<208x32xf32>
    %cst_60 = arith.constant dense<0.000000e+00> : vector<208xf32>
    %102 = vector.multi_reduction <add>, %101, %cst_60 [1] : vector<208x32xf32> to vector<208xf32>
    %103 = vector.shape_cast %102 : vector<208xf32> to vector<208x1xf32>
    %cst_61 = arith.constant 3.200000e+01 : f32
    %104 = vector.broadcast %cst_61 : f32 to vector<208x1xf32>
    %105 = arith.divf %103, %104 : vector<208x1xf32>
    %106 = vector.broadcast %98 : vector<208x1xf32> to vector<208x32xf32>
    %107 = arith.subf %94, %106 : vector<208x32xf32>
    %cst_62 = arith.constant 9.99999974E-6 : f32
    %108 = vector.broadcast %cst_62 : f32 to vector<208x1xf32>
    %109 = arith.addf %105, %108 : vector<208x1xf32>
    %110 = math.rsqrt %109 : vector<208x1xf32>
    %111 = vector.broadcast %110 : vector<208x1xf32> to vector<208x32xf32>
    %112 = arith.mulf %107, %111 : vector<208x32xf32>
    %c4 = arith.constant 4 : index
    %c0_63 = arith.constant 0 : index
    %113 = vector.load %arg12[%c4, %c0_63] : memref<7x32xf32, #tpu.memory_space<vmem>>, vector<1x32xf32>
    %114 = vector.broadcast %113 : vector<1x32xf32> to vector<208x32xf32>
    %115 = arith.mulf %112, %114 : vector<208x32xf32>
    %c5 = arith.constant 5 : index
    %c0_64 = arith.constant 0 : index
    %116 = vector.load %arg12[%c5, %c0_64] : memref<7x32xf32, #tpu.memory_space<vmem>>, vector<1x32xf32>
    %117 = vector.broadcast %116 : vector<1x32xf32> to vector<208x32xf32>
    %118 = arith.addf %115, %117 : vector<208x32xf32>
    %c0_65 = arith.constant 0 : index
    %c0_66 = arith.constant 0 : index
    %119 = vector.load %arg11[%c0_65, %c0_66] : memref<32x32xf32, #tpu.memory_space<vmem>>, vector<32x32xf32>
    %cst_67 = arith.constant dense<0.000000e+00> : vector<208x32xf32>
    %120 = tpu.matmul %118, %119, %cst_67 {dimension_numbers = #tpu.dot_dimension_numbers<[1], [0], [0], [1], [0, 0, 1, 1], [], []>} : vector<208x32xf32>, vector<32x32xf32>, vector<208x32xf32> -> vector<208x32xf32>
    %c6 = arith.constant 6 : index
    %c0_68 = arith.constant 0 : index
    %121 = vector.load %arg12[%c6, %c0_68] : memref<7x32xf32, #tpu.memory_space<vmem>>, vector<1x32xf32>
    %122 = vector.broadcast %121 : vector<1x32xf32> to vector<208x32xf32>
    %123 = arith.addf %120, %122 : vector<208x32xf32>
    %cst_69 = arith.constant 0.000000e+00 : f32
    %124 = vector.broadcast %cst_69 : f32 to vector<208x32xf32>
    %125 = arith.maximumf %123, %124 : vector<208x32xf32>
    %c0_70 = arith.constant 0 : index
    %c0_71 = arith.constant 0 : index
    %126 = vector.load %arg4[%c0_70, %c0_71] : memref<1x208xf32, #tpu.memory_space<vmem>>, vector<1x208xf32>
    %cst_72 = arith.constant dense<0.000000e+00> : vector<1x32xf32>
    %127 = tpu.matmul %126, %125, %cst_72 {dimension_numbers = #tpu.dot_dimension_numbers<[1], [0], [0], [1], [0, 0, 1, 1], [], []>} : vector<1x208xf32>, vector<208x32xf32>, vector<1x32xf32> -> vector<1x32xf32>
    %c0_73 = arith.constant 0 : index
    %c0_74 = arith.constant 0 : index
    %128 = vector.load %arg13[%c0_73, %c0_74] : memref<2x32xf32, #tpu.memory_space<vmem>>, vector<1x32xf32>
    tpu.vector_store %arg13[%c0_73, %c0_74], %127 {strides = array<i32>} : memref<2x32xf32, #tpu.memory_space<vmem>>, vector<1x32xf32>,
    %c208_75 = arith.constant 208 : index
    %c0_76 = arith.constant 0 : index
    %129 = vector.load %arg15[%c208_75, %c0_76] : memref<416x96xbf16, #tpu.memory_space<vmem>>, vector<208x32xbf16>
    %c208_77 = arith.constant 208 : index
    %c32_78 = arith.constant 32 : index
    %130 = vector.load %arg15[%c208_77, %c32_78] : memref<416x96xbf16, #tpu.memory_space<vmem>>, vector<208x32xbf16>
    %cst_79 = arith.constant dense<0.000000e+00> : vector<208x208xf32>
    %131 = tpu.matmul %129, %130, %cst_79 {dimension_numbers = #tpu.dot_dimension_numbers<[1], [1], [0], [0], [0, 0, 1, 0], [], []>} : vector<208x32xbf16>, vector<208x32xbf16>, vector<208x208xf32> -> vector<208x208xf32>
    %c1_80 = arith.constant 1 : index
    %c0_81 = arith.constant 0 : index
    %132 = vector.load %arg3[%c1_80, %c0_81] : memref<2x208xf32, #tpu.memory_space<vmem>>, vector<1x208xf32>
    %133 = vector.broadcast %132 : vector<1x208xf32> to vector<208x208xf32>
    %134 = arith.addf %131, %133 : vector<208x208xf32>
    %cst_82 = arith.constant dense<0xFF800000> : vector<208xf32>
    %135 = vector.multi_reduction <maximumf>, %134, %cst_82 [1] : vector<208x208xf32> to vector<208xf32>
    %136 = vector.shape_cast %135 : vector<208xf32> to vector<208x1xf32>
    %137 = vector.broadcast %136 : vector<208x1xf32> to vector<208x208xf32>
    %138 = arith.subf %134, %137 : vector<208x208xf32>
    %139 = math.exp %138 : vector<208x208xf32>
    %cst_83 = arith.constant dense<0.000000e+00> : vector<208xf32>
    %140 = vector.multi_reduction <add>, %139, %cst_83 [1] : vector<208x208xf32> to vector<208xf32>
    %141 = vector.shape_cast %140 : vector<208xf32> to vector<208x1xf32>
    %142 = tpu.reciprocal %141 {approx = true} : vector<208x1xf32> -> vector<208x1xf32>
    %143 = vector.broadcast %142 : vector<208x1xf32> to vector<208x208xf32>
    %144 = arith.mulf %139, %143 : vector<208x208xf32>
    %145 = arith.truncf %144 : vector<208x208xf32> to vector<208x208xbf16>
    %c208_84 = arith.constant 208 : index
    %c64_85 = arith.constant 64 : index
    %146 = vector.load %arg15[%c208_84, %c64_85] : memref<416x96xbf16, #tpu.memory_space<vmem>>, vector<208x32xbf16>
    %cst_86 = arith.constant dense<0.000000e+00> : vector<208x32xf32>
    %147 = tpu.matmul %145, %146, %cst_86 {dimension_numbers = #tpu.dot_dimension_numbers<[1], [0], [0], [1], [0, 0, 1, 1], [], []>} : vector<208x208xbf16>, vector<208x32xbf16>, vector<208x32xf32> -> vector<208x32xf32>
    %c208_87 = arith.constant 208 : index
    %c0_88 = arith.constant 0 : index
    %148 = vector.load %arg14[%c208_87, %c0_88] : memref<416x32xf32, #tpu.memory_space<vmem>>, vector<208x32xf32>
    %149 = arith.addf %147, %148 : vector<208x32xf32>
    %cst_89 = arith.constant dense<0.000000e+00> : vector<208xf32>
    %150 = vector.multi_reduction <add>, %149, %cst_89 [1] : vector<208x32xf32> to vector<208xf32>
    %151 = vector.shape_cast %150 : vector<208xf32> to vector<208x1xf32>
    %cst_90 = arith.constant 3.200000e+01 : f32
    %152 = vector.broadcast %cst_90 : f32 to vector<208x1xf32>
    %153 = arith.divf %151, %152 : vector<208x1xf32>
    %154 = vector.broadcast %153 : vector<208x1xf32> to vector<208x32xf32>
    %155 = arith.subf %149, %154 : vector<208x32xf32>
    %156 = arith.mulf %155, %155 : vector<208x32xf32>
    %cst_91 = arith.constant dense<0.000000e+00> : vector<208xf32>
    %157 = vector.multi_reduction <add>, %156, %cst_91 [1] : vector<208x32xf32> to vector<208xf32>
    %158 = vector.shape_cast %157 : vector<208xf32> to vector<208x1xf32>
    %cst_92 = arith.constant 3.200000e+01 : f32
    %159 = vector.broadcast %cst_92 : f32 to vector<208x1xf32>
    %160 = arith.divf %158, %159 : vector<208x1xf32>
    %161 = vector.broadcast %153 : vector<208x1xf32> to vector<208x32xf32>
    %162 = arith.subf %149, %161 : vector<208x32xf32>
    %cst_93 = arith.constant 9.99999974E-6 : f32
    %163 = vector.broadcast %cst_93 : f32 to vector<208x1xf32>
    %164 = arith.addf %160, %163 : vector<208x1xf32>
    %165 = math.rsqrt %164 : vector<208x1xf32>
    %166 = vector.broadcast %165 : vector<208x1xf32> to vector<208x32xf32>
    %167 = arith.mulf %162, %166 : vector<208x32xf32>
    %c0_94 = arith.constant 0 : index
    %c0_95 = arith.constant 0 : index
    %168 = vector.load %arg12[%c0_94, %c0_95] : memref<7x32xf32, #tpu.memory_space<vmem>>, vector<1x32xf32>
    %169 = vector.broadcast %168 : vector<1x32xf32> to vector<208x32xf32>
    %170 = arith.mulf %167, %169 : vector<208x32xf32>
    %c1_96 = arith.constant 1 : index
    %c0_97 = arith.constant 0 : index
    %171 = vector.load %arg12[%c1_96, %c0_97] : memref<7x32xf32, #tpu.memory_space<vmem>>, vector<1x32xf32>
    %172 = vector.broadcast %171 : vector<1x32xf32> to vector<208x32xf32>
    %173 = arith.addf %170, %172 : vector<208x32xf32>
    %c0_98 = arith.constant 0 : index
    %c0_99 = arith.constant 0 : index
    %174 = vector.load %arg9[%c0_98, %c0_99] : memref<32x32xf32, #tpu.memory_space<vmem>>, vector<32x32xf32>
    %cst_100 = arith.constant dense<0.000000e+00> : vector<208x32xf32>
    %175 = tpu.matmul %173, %174, %cst_100 {dimension_numbers = #tpu.dot_dimension_numbers<[1], [0], [0], [1], [0, 0, 1, 1], [], []>} : vector<208x32xf32>, vector<32x32xf32>, vector<208x32xf32> -> vector<208x32xf32>
    %c2_101 = arith.constant 2 : index
    %c0_102 = arith.constant 0 : index
    %176 = vector.load %arg12[%c2_101, %c0_102] : memref<7x32xf32, #tpu.memory_space<vmem>>, vector<1x32xf32>
    %177 = vector.broadcast %176 : vector<1x32xf32> to vector<208x32xf32>
    %178 = arith.addf %175, %177 : vector<208x32xf32>
    %cst_103 = arith.constant 0.000000e+00 : f32
    %179 = vector.broadcast %cst_103 : f32 to vector<208x32xf32>
    %180 = arith.maximumf %178, %179 : vector<208x32xf32>
    %c0_104 = arith.constant 0 : index
    %c0_105 = arith.constant 0 : index
    %181 = vector.load %arg10[%c0_104, %c0_105] : memref<32x32xf32, #tpu.memory_space<vmem>>, vector<32x32xf32>
    %cst_106 = arith.constant dense<0.000000e+00> : vector<208x32xf32>
    %182 = tpu.matmul %180, %181, %cst_106 {dimension_numbers = #tpu.dot_dimension_numbers<[1], [0], [0], [1], [0, 0, 1, 1], [], []>} : vector<208x32xf32>, vector<32x32xf32>, vector<208x32xf32> -> vector<208x32xf32>
    %c3_107 = arith.constant 3 : index
    %c0_108 = arith.constant 0 : index
    %183 = vector.load %arg12[%c3_107, %c0_108] : memref<7x32xf32, #tpu.memory_space<vmem>>, vector<1x32xf32>
    %184 = vector.broadcast %183 : vector<1x32xf32> to vector<208x32xf32>
    %185 = arith.addf %182, %184 : vector<208x32xf32>
    %c208_109 = arith.constant 208 : index
    %c0_110 = arith.constant 0 : index
    %186 = vector.load %arg14[%c208_109, %c0_110] : memref<416x32xf32, #tpu.memory_space<vmem>>, vector<208x32xf32>
    %187 = arith.addf %185, %186 : vector<208x32xf32>
    %cst_111 = arith.constant dense<0.000000e+00> : vector<208xf32>
    %188 = vector.multi_reduction <add>, %187, %cst_111 [1] : vector<208x32xf32> to vector<208xf32>
    %189 = vector.shape_cast %188 : vector<208xf32> to vector<208x1xf32>
    %cst_112 = arith.constant 3.200000e+01 : f32
    %190 = vector.broadcast %cst_112 : f32 to vector<208x1xf32>
    %191 = arith.divf %189, %190 : vector<208x1xf32>
    %192 = vector.broadcast %191 : vector<208x1xf32> to vector<208x32xf32>
    %193 = arith.subf %187, %192 : vector<208x32xf32>
    %194 = arith.mulf %193, %193 : vector<208x32xf32>
    %cst_113 = arith.constant dense<0.000000e+00> : vector<208xf32>
    %195 = vector.multi_reduction <add>, %194, %cst_113 [1] : vector<208x32xf32> to vector<208xf32>
    %196 = vector.shape_cast %195 : vector<208xf32> to vector<208x1xf32>
    %cst_114 = arith.constant 3.200000e+01 : f32
    %197 = vector.broadcast %cst_114 : f32 to vector<208x1xf32>
    %198 = arith.divf %196, %197 : vector<208x1xf32>
    %199 = vector.broadcast %191 : vector<208x1xf32> to vector<208x32xf32>
    %200 = arith.subf %187, %199 : vector<208x32xf32>
    %cst_115 = arith.constant 9.99999974E-6 : f32
    %201 = vector.broadcast %cst_115 : f32 to vector<208x1xf32>
    %202 = arith.addf %198, %201 : vector<208x1xf32>
    %203 = math.rsqrt %202 : vector<208x1xf32>
    %204 = vector.broadcast %203 : vector<208x1xf32> to vector<208x32xf32>
    %205 = arith.mulf %200, %204 : vector<208x32xf32>
    %c4_116 = arith.constant 4 : index
    %c0_117 = arith.constant 0 : index
    %206 = vector.load %arg12[%c4_116, %c0_117] : memref<7x32xf32, #tpu.memory_space<vmem>>, vector<1x32xf32>
    %207 = vector.broadcast %206 : vector<1x32xf32> to vector<208x32xf32>
    %208 = arith.mulf %205, %207 : vector<208x32xf32>
    %c5_118 = arith.constant 5 : index
    %c0_119 = arith.constant 0 : index
    %209 = vector.load %arg12[%c5_118, %c0_119] : memref<7x32xf32, #tpu.memory_space<vmem>>, vector<1x32xf32>
    %210 = vector.broadcast %209 : vector<1x32xf32> to vector<208x32xf32>
    %211 = arith.addf %208, %210 : vector<208x32xf32>
    %c0_120 = arith.constant 0 : index
    %c0_121 = arith.constant 0 : index
    %212 = vector.load %arg11[%c0_120, %c0_121] : memref<32x32xf32, #tpu.memory_space<vmem>>, vector<32x32xf32>
    %cst_122 = arith.constant dense<0.000000e+00> : vector<208x32xf32>
    %213 = tpu.matmul %211, %212, %cst_122 {dimension_numbers = #tpu.dot_dimension_numbers<[1], [0], [0], [1], [0, 0, 1, 1], [], []>} : vector<208x32xf32>, vector<32x32xf32>, vector<208x32xf32> -> vector<208x32xf32>
    %c6_123 = arith.constant 6 : index
    %c0_124 = arith.constant 0 : index
    %214 = vector.load %arg12[%c6_123, %c0_124] : memref<7x32xf32, #tpu.memory_space<vmem>>, vector<1x32xf32>
    %215 = vector.broadcast %214 : vector<1x32xf32> to vector<208x32xf32>
    %216 = arith.addf %213, %215 : vector<208x32xf32>
    %cst_125 = arith.constant 0.000000e+00 : f32
    %217 = vector.broadcast %cst_125 : f32 to vector<208x32xf32>
    %218 = arith.maximumf %216, %217 : vector<208x32xf32>
    %c0_126 = arith.constant 0 : index
    %c0_127 = arith.constant 0 : index
    %219 = vector.load %arg4[%c0_126, %c0_127] : memref<1x208xf32, #tpu.memory_space<vmem>>, vector<1x208xf32>
    %cst_128 = arith.constant dense<0.000000e+00> : vector<1x32xf32>
    %220 = tpu.matmul %219, %218, %cst_128 {dimension_numbers = #tpu.dot_dimension_numbers<[1], [0], [0], [1], [0, 0, 1, 1], [], []>} : vector<1x208xf32>, vector<208x32xf32>, vector<1x32xf32> -> vector<1x32xf32>
    %c1_129 = arith.constant 1 : index
    %c0_130 = arith.constant 0 : index
    %221 = vector.load %arg13[%c1_129, %c0_130] : memref<2x32xf32, #tpu.memory_space<vmem>>, vector<1x32xf32>
    tpu.vector_store %arg13[%c1_129, %c0_130], %220 {strides = array<i32>} : memref<2x32xf32, #tpu.memory_space<vmem>>, vector<1x32xf32>,
    return
  }
  func.func @transform_0(%arg0: i32) -> (i32, i32) {
    %c0_i32 = arith.constant 0 : i32
    %c0_i32_0 = arith.constant 0 : i32
    %c0_i32_1 = arith.constant 0 : i32
    return %c0_i32, %c0_i32_0 : i32, i32
  }
  func.func @transform_1(%arg0: i32) -> (i32, i32) {
    %c0_i32 = arith.constant 0 : i32
    %c0_i32_0 = arith.constant 0 : i32
    %c0_i32_1 = arith.constant 0 : i32
    return %c0_i32, %c0_i32_0 : i32, i32
  }
  func.func @transform_2(%arg0: i32) -> (i32, i32) {
    %c0_i32 = arith.constant 0 : i32
    %c0_i32_0 = arith.constant 0 : i32
    %c0_i32_1 = arith.constant 0 : i32
    return %c0_i32, %c0_i32_0 : i32, i32
  }
  func.func @transform_3(%arg0: i32) -> (i32, i32) {
    %c0_i32 = arith.constant 0 : i32
    %c0_i32_0 = arith.constant 0 : i32
    %c0_i32_1 = arith.constant 0 : i32
    return %c0_i32, %c0_i32_0 : i32, i32
  }
  func.func @transform_4(%arg0: i32) -> (i32, i32) {
    %c0_i32 = arith.constant 0 : i32
    %c0_i32_0 = arith.constant 0 : i32
    %c0_i32_1 = arith.constant 0 : i32
    return %c0_i32, %c0_i32_0 : i32, i32
  }
  func.func @transform_5(%arg0: i32) -> (i32, i32) {
    %c0_i32 = arith.constant 0 : i32
    %c0_i32_0 = arith.constant 0 : i32
    %c0_i32_1 = arith.constant 0 : i32
    return %c0_i32, %c0_i32_0 : i32, i32
  }
  func.func @transform_6(%arg0: i32) -> (i32, i32) {
    %c0_i32 = arith.constant 0 : i32
    %c0_i32_0 = arith.constant 0 : i32
    %c0_i32_1 = arith.constant 0 : i32
    return %c0_i32, %c0_i32_0 : i32, i32
  }
  func.func @transform_7(%arg0: i32) -> (i32, i32) {
    %c0_i32 = arith.constant 0 : i32
    %c0_i32_0 = arith.constant 0 : i32
    %c0_i32_1 = arith.constant 0 : i32
    return %c0_i32, %c0_i32_0 : i32, i32
  }
  func.func @transform_8(%arg0: i32) -> (i32, i32) {
    %c0_i32 = arith.constant 0 : i32
    %c0_i32_0 = arith.constant 0 : i32
    %c0_i32_1 = arith.constant 0 : i32
    return %c0_i32, %c0_i32_0 : i32, i32
  }
  func.func @transform_9(%arg0: i32) -> (i32, i32) {
    %c0_i32 = arith.constant 0 : i32
    %c0_i32_0 = arith.constant 0 : i32
    %c0_i32_1 = arith.constant 0 : i32
    return %c0_i32, %c0_i32_0 : i32, i32
  }
  func.func @transform_10(%arg0: i32) -> (i32, i32) {
    %c0_i32 = arith.constant 0 : i32
    %c0_i32_0 = arith.constant 0 : i32
    %c0_i32_1 = arith.constant 0 : i32
    return %c0_i32, %c0_i32_0 : i32, i32
  }
  func.func @transform_11(%arg0: i32) -> (i32, i32) {
    %c0_i32 = arith.constant 0 : i32
    %c0_i32_0 = arith.constant 0 : i32
    %c0_i32_1 = arith.constant 0 : i32
    return %c0_i32, %c0_i32_0 : i32, i32
  }
  func.func @transform_12(%arg0: i32) -> (i32, i32) {
    %c0_i32 = arith.constant 0 : i32
    %c0_i32_0 = arith.constant 0 : i32
    %c0_i32_1 = arith.constant 0 : i32
    return %c0_i32, %c0_i32_0 : i32, i32
  }
}

</mosaic_0001>

<llo_original>
// kernel: tpu_custom_call.1
$region0: #{tpu_custom_call.1}
  #allocation0 [shape = 'u32[]', space=smem, size = 0x4, offset = 0x4, fixed_abs, tag = 'smem constant byte address 0x4 - core index']
  #allocation1 [shape = 'u32[144,128]{1,0:T(1,128)}', space=vmem, size = 0x12000, scoped, tag = 'internal scratch']
  #allocation2 [shape = 'f32[416,32]{1,0:T(8,128)}', space=vmem, size = 0x34000, scoped, tag = 'scratch operand']
  #allocation3 [shape = 'bf16[416,96]{1,0:T(8,128)(2,1)}', space=vmem, size = 0x1a000, scoped, tag = 'scratch operand']
  %s0 = inlined_call_operand.vmem [shape: f32[224,24], index: 0, kind: input, shape index: {}]
  %s1 = inlined_call_operand.vmem [shape: f32[96,32], index: 1, kind: input, shape index: {}]
  %s2 = inlined_call_operand.vmem [shape: f32[2,208], index: 2, kind: input, shape index: {}]
  %s3 = inlined_call_operand.vmem [shape: f32[1,208], index: 3, kind: input, shape index: {}]
  %s4 = inlined_call_operand.vmem [shape: f32[24,96], index: 4, kind: input, shape index: {}]
  %s5 = inlined_call_operand.vmem [shape: f32[2,96], index: 5, kind: input, shape index: {}]
  %s6 = inlined_call_operand.vmem [shape: f32[96,96], index: 6, kind: input, shape index: {}]
  %s7 = inlined_call_operand.vmem [shape: bf16[32,96], index: 7, kind: input, shape index: {}]
  %s8 = inlined_call_operand.vmem [shape: f32[32,32], index: 8, kind: input, shape index: {}]
  %s9 = inlined_call_operand.vmem [shape: f32[32,32], index: 9, kind: input, shape index: {}]
  %s10 = inlined_call_operand.vmem [shape: f32[32,32], index: 10, kind: input, shape index: {}]
  %s11 = inlined_call_operand.vmem [shape: f32[7,32], index: 11, kind: input, shape index: {}]
  %s12 = inlined_call_operand.hbm [shape: f32[2,32], index: 12, kind: output, shape index: {}]
  %s13 = sld [smem:[#allocation0]]
  $region58: #{tpu_custom_call.1} parent=0
    _
  %s15 = ssub.s32 1, %s13
  %s16 = scalar_select 0, %s15, %s13
  $region1: #{tpu_custom_call.1} parent=0
    #allocation4 [shape = 'u8[1024]{0}', space=vmem, size = 0x400, scoped, tag = 'output window, operand 0, single buffered']
    #allocation5 [shape = 's32[1]{0}', space=sflag, size = 0x4, scoped, tag = 'scoped memory for tpu_custom_call.1']
    %17 = vsyncpa [#allocation5], 0
    // Predicated region
    $region2: #{tpu_custom_call.1} parent=1 // pred_check
      _
    $region3: #{tpu_custom_call.1} parent=1 // pred_check_branch
      %19 = sbr.rel (0) target = $region5
    $region4: #{tpu_custom_call.1} parent=1 // pred_region
      _
    $region5: #{tpu_custom_call.1} parent=1 // pred_fallthru
      _
    // Predicated region
    $region6: #{tpu_custom_call.1} parent=1 // pred_check
      _
    $region7: #{tpu_custom_call.1} parent=1 // pred_check_branch
      %21 = sbr.rel (0) target = $region9
    $region8: #{tpu_custom_call.1} parent=1 // pred_region
      _
    $region9: #{tpu_custom_call.1} parent=1 // pred_fallthru
      _
    // Predicated region
    $region10: #{tpu_custom_call.1} parent=1 // pred_check
      _
    $region11: #{tpu_custom_call.1} parent=1 // pred_check_branch
      %23 = sbr.rel (0) target = $region13
    $region12: #{tpu_custom_call.1} parent=1 // pred_region
      _
    $region13: #{tpu_custom_call.1} parent=1 // pred_fallthru
      _
    // Predicated region
    $region14: #{tpu_custom_call.1} parent=1 // pred_check
      _
    $region15: #{tpu_custom_call.1} parent=1 // pred_check_branch
      %25 = sbr.rel (0) target = $region17
    $region16: #{tpu_custom_call.1} parent=1 // pred_region
      _
    $region17: #{tpu_custom_call.1} parent=1 // pred_fallthru
      _
    // Predicated region
    $region18: #{tpu_custom_call.1} parent=1 // pred_check
      _
    $region19: #{tpu_custom_call.1} parent=1 // pred_check_branch
      %27 = sbr.rel (0) target = $region21
    $region20: #{tpu_custom_call.1} parent=1 // pred_region
      _
    $region21: #{tpu_custom_call.1} parent=1 // pred_fallthru
      _
    // Predicated region
    $region22: #{tpu_custom_call.1} parent=1 // pred_check
      _
    $region23: #{tpu_custom_call.1} parent=1 // pred_check_branch
      %29 = sbr.rel (0) target = $region25
    $region24: #{tpu_custom_call.1} parent=1 // pred_region
      _
    $region25: #{tpu_custom_call.1} parent=1 // pred_fallthru
      _
    // Predicated region
    $region26: #{tpu_custom_call.1} parent=1 // pred_check
      _
    $region27: #{tpu_custom_call.1} parent=1 // pred_check_branch
      %31 = sbr.rel (0) target = $region29
    $region28: #{tpu_custom_call.1} parent=1 // pred_region
      _
    $region29: #{tpu_custom_call.1} parent=1 // pred_fallthru
      _
    // Predicated region
    $region30: #{tpu_custom_call.1} parent=1 // pred_check
      _
    $region31: #{tpu_custom_call.1} parent=1 // pred_check_branch
      %33 = sbr.rel (0) target = $region33
    $region32: #{tpu_custom_call.1} parent=1 // pred_region
      _
    $region33: #{tpu_custom_call.1} parent=1 // pred_fallthru
      _
    // Predicated region
    $region34: #{tpu_custom_call.1} parent=1 // pred_check
      _
    $region35: #{tpu_custom_call.1} parent=1 // pred_check_branch
      %35 = sbr.rel (0) target = $region37
    $region36: #{tpu_custom_call.1} parent=1 // pred_region
      _
    $region37: #{tpu_custom_call.1} parent=1 // pred_fallthru
      _
    // Predicated region
    $region38: #{tpu_custom_call.1} parent=1 // pred_check
      _
    $region39: #{tpu_custom_call.1} parent=1 // pred_check_branch
      %37 = sbr.rel (0) target = $region41
    $region40: #{tpu_custom_call.1} parent=1 // pred_region
      _
    $region41: #{tpu_custom_call.1} parent=1 // pred_fallthru
      _
    // Predicated region
    $region42: #{tpu_custom_call.1} parent=1 // pred_check
      _
    $region43: #{tpu_custom_call.1} parent=1 // pred_check_branch
      %39 = sbr.rel (0) target = $region45
    $region44: #{tpu_custom_call.1} parent=1 // pred_region
      _
    $region45: #{tpu_custom_call.1} parent=1 // pred_fallthru
      _
    // Predicated region
    $region46: #{tpu_custom_call.1} parent=1 // pred_check
      _
    $region47: #{tpu_custom_call.1} parent=1 // pred_check_branch
      %41 = sbr.rel (0) target = $region49
    $region48: #{tpu_custom_call.1} parent=1 // pred_region
      _
    $region49: #{tpu_custom_call.1} parent=1 // pred_fallthru
      _
    %v43 = vld [vmem:[%s0] sm:$0xff]
    %v44 = vld [vmem:[%s0 + $0x8] sm:$0xff]
    %v45 = vld [vmem:[%s0 + $0x10] sm:$0xff]
    %v46 = vld [vmem:[%s0 + $0x18] sm:$0xff]
    %v47 = vld [vmem:[%s0 + $0x20] sm:$0xff]
    %v48 = vld [vmem:[%s0 + $0x28] sm:$0xff]
    %v49 = vld [vmem:[%s0 + $0x30] sm:$0xff]
    %v50 = vld [vmem:[%s0 + $0x38] sm:$0xff]
    %v51 = vld [vmem:[%s0 + $0x40] sm:$0xff]
    %v52 = vld [vmem:[%s0 + $0x48] sm:$0xff]
    %v53 = vld [vmem:[%s0 + $0x50] sm:$0xff]
    %v54 = vld [vmem:[%s0 + $0x58] sm:$0xff]
    %v55 = vld [vmem:[%s0 + $0x60] sm:$0xff]
    %v56 = vld [vmem:[%s0 + $0x68] sm:$0xff]
    %v57 = vld [vmem:[%s0 + $0x70] sm:$0xff]
    %v58 = vld [vmem:[%s0 + $0x78] sm:$0xff]
    %v59 = vld [vmem:[%s0 + $0x80] sm:$0xff]
    %v60 = vld [vmem:[%s0 + $0x88] sm:$0xff]
    %v61 = vld [vmem:[%s0 + $0x90] sm:$0xff]
    %v62 = vld [vmem:[%s0 + $0x98] sm:$0xff]
    %v63 = vld [vmem:[%s0 + $0xa0] sm:$0xff]
    %v64 = vld [vmem:[%s0 + $0xa8] sm:$0xff]
    %v65 = vld [vmem:[%s0 + $0xb0] sm:$0xff]
    %v66 = vld [vmem:[%s0 + $0xb8] sm:$0xff]
    %v67 = vld [vmem:[%s0 + $0xc0] sm:$0xff]
    %v68 = vld [vmem:[%s0 + $0xc8] sm:$0xff]
    %v69 = vld [vmem:[%s0 + $0xd0] sm:$0xff]
    %v70 = vld [vmem:[%s0 + $0xd8] sm:$0xff]
    %v71 = vld [vmem:[%s4] sm:$0xff]
    %v72 = vld [vmem:[%s4 + $0x8] sm:$0xff]
    %v73 = vld [vmem:[%s4 + $0x10] sm:$0xff]
    %v74 = vld [vmem:[%s5] sm:$0x1]
    %v75 = vlaneseq
    %v76 = vshrl.u32 %v75, 7
    %v77 = vsub.s32 0, %v76
    %v78 = vrot.slane %v74, %v77
    %vm79 = vcmask 195584
    %v81 = vsel %vm79, %v43, 0
    %v84 = vsel %vm79, %v44, 0
    %v87 = vsel %vm79, %v45, 0
    %v90 = vsel %vm79, %v46, 0
    %v93 = vsel %vm79, %v47, 0
    %v96 = vsel %vm79, %v48, 0
    %v99 = vsel %vm79, %v49, 0
    %v102 = vsel %vm79, %v50, 0
    %v105 = vsel %vm79, %v51, 0
    %v108 = vsel %vm79, %v52, 0
    %v111 = vsel %vm79, %v53, 0
    %v114 = vsel %vm79, %v54, 0
    %v117 = vsel %vm79, %v55, 0
    %v120 = vsel %vm79, %v56, 0
    %v123 = vsel %vm79, %v57, 0
    %v126 = vsel %vm79, %v58, 0
    %v129 = vsel %vm79, %v59, 0
    %v132 = vsel %vm79, %v60, 0
    %v135 = vsel %vm79, %v61, 0
    %v138 = vsel %vm79, %v62, 0
    %v141 = vsel %vm79, %v63, 0
    %v144 = vsel %vm79, %v64, 0
    %v147 = vsel %vm79, %v65, 0
    %v150 = vsel %vm79, %v66, 0
    %v153 = vsel %vm79, %v67, 0
    %v156 = vsel %vm79, %v68, 0
    %v159 = vsel %vm79, %v69, 0
    %v162 = vsel %vm79, %v70, 0
    %164 = vmatprep.subr.mxu0 0.0
    %165 = vmatpush1.msra.mxu0 0.0
    %166 = vmatprep.subr.mxu0 0.0
    %167 = vmatpush1.msra.mxu0 0.0
    %168 = vmatprep.subr.mxu0 0.0
    %169 = vmatpush1.msra.mxu0 0.0
    %170 = vmatprep.subr.mxu0 0.0
    %171 = vmatpush1.msra.mxu0 0.0
    %172 = vmatprep.subr.mxu0 0.0
    %173 = vmatpush1.msra.mxu0 0.0
    %174 = vmatprep.subr.mxu0 0.0
    %175 = vmatpush1.msra.mxu0 0.0
    %176 = vmatprep.subr.mxu0 0.0
    %177 = vmatpush1.msra.mxu0 0.0
    %178 = vmatprep.subr.mxu0 0.0
    %179 = vmatpush1.msra.mxu0 0.0
    %180 = vmatprep.subr.mxu0 0.0
    %181 = vmatpush1.msra.mxu0 0.0
    %182 = vmatprep.subr.mxu0 0.0
    %183 = vmatpush1.msra.mxu0 0.0
    %184 = vmatprep.subr.mxu0 0.0
    %185 = vmatpush1.msra.mxu0 0.0
    %186 = vmatprep.subr.mxu0 0.0
    %187 = vmatpush1.msra.mxu0 0.0
    %188 = vmatprep.subr.mxu0 0.0
    %189 = vmatpush1.msra.mxu0 0.0
    %190 = vmatprep.subr.mxu0 0.0
    %191 = vmatpush1.msra.mxu0 %v73
    %192 = vmatprep.subr.mxu0 0.0
    %193 = vmatpush1.msra.mxu0 %v72
    %194 = vmatprep.subr.mxu0 0.0
    %195 = vmatpush1.msra.mxu0 %v71
    %196 = vmatprep.subr.mxu0 0.0
    %197 = vmatpush2.msra.mxu0 0.0
    %198 = vmatprep.subr.mxu0 0.0
    %199 = vmatpush2.msra.mxu0 0.0
    %200 = vmatprep.subr.mxu0 0.0
    %201 = vmatpush2.msra.mxu0 0.0
    %202 = vmatprep.subr.mxu0 0.0
    %203 = vmatpush2.msra.mxu0 0.0
    %204 = vmatprep.subr.mxu0 0.0
    %205 = vmatpush2.msra.mxu0 0.0
    %206 = vmatprep.subr.mxu0 0.0
    %207 = vmatpush2.msra.mxu0 0.0
    %208 = vmatprep.subr.mxu0 0.0
    %209 = vmatpush2.msra.mxu0 0.0
    %210 = vmatprep.subr.mxu0 0.0
    %211 = vmatpush2.msra.mxu0 0.0
    %212 = vmatprep.subr.mxu0 0.0
    %213 = vmatpush2.msra.mxu0 0.0
    %214 = vmatprep.subr.mxu0 0.0
    %215 = vmatpush2.msra.mxu0 0.0
    %216 = vmatprep.subr.mxu0 0.0
    %217 = vmatpush2.msra.mxu0 0.0
    %218 = vmatprep.subr.mxu0 0.0
    %219 = vmatpush2.msra.mxu0 0.0
    %220 = vmatprep.subr.mxu0 0.0
    %221 = vmatpush2.msra.mxu0 0.0
    %222 = vmatprep.subr.mxu0 0.0
    %223 = vmatpush2.msra.mxu0 0.0
    %224 = vmatprep.subr.mxu0 0.0
    %225 = vmatpush2.msra.mxu0 0.0
    %226 = vmatprep.subr.mxu0 0.0
    %227 = vmatpush2.msra.mxu0 0.0
    %228 = vmatprep.mubr.f32.mxu0 0.0
    %229 = vmatmul.mubr.f32.gmra.mxu0 %v81
    %v230 = vpop.f32.mrf.mxu0
    %v231 = vadd.f32 %v78, %v230
    %v232 = vpop.f32.mrf.mxu0
    %233 = vmatprep.mubr.f32.mxu0 0.0
    %234 = vmatmul.mubr.f32.gmra.mxu0 %v84
    %v235 = vpop.f32.mrf.mxu0
    %v236 = vadd.f32 %v78, %v235
    %v237 = vpop.f32.mrf.mxu0
    %238 = vmatprep.mubr.f32.mxu0 0.0
    %239 = vmatmul.mubr.f32.gmra.mxu0 %v87
    %v240 = vpop.f32.mrf.mxu0
    %v241 = vadd.f32 %v78, %v240
    %v242 = vpop.f32.mrf.mxu0
    %243 = vmatprep.mubr.f32.mxu0 0.0
    %244 = vmatmul.mubr.f32.gmra.mxu0 %v90
    %v245 = vpop.f32.mrf.mxu0
    %v246 = vadd.f32 %v78, %v245
    %v247 = vpop.f32.mrf.mxu0
    %248 = vmatprep.mubr.f32.mxu0 0.0
    %249 = vmatmul.mubr.f32.gmra.mxu0 %v93
    %v250 = vpop.f32.mrf.mxu0
    %v251 = vadd.f32 %v78, %v250
    %v252 = vpop.f32.mrf.mxu0
    %253 = vmatprep.mubr.f32.mxu0 0.0
    %254 = vmatmul.mubr.f32.gmra.mxu0 %v96
    %v255 = vpop.f32.mrf.mxu0
    %v256 = vadd.f32 %v78, %v255
    %v257 = vpop.f32.mrf.mxu0
    %258 = vmatprep.mubr.f32.mxu0 0.0
    %259 = vmatmul.mubr.f32.gmra.mxu0 %v99
    %v260 = vpop.f32.mrf.mxu0
    %v261 = vadd.f32 %v78, %v260
    %v262 = vpop.f32.mrf.mxu0
    %263 = vmatprep.mubr.f32.mxu0 0.0
    %264 = vmatmul.mubr.f32.gmra.mxu0 %v102
    %v265 = vpop.f32.mrf.mxu0
    %v266 = vadd.f32 %v78, %v265
    %v267 = vpop.f32.mrf.mxu0
    %268 = vmatprep.mubr.f32.mxu0 0.0
    %269 = vmatmul.mubr.f32.gmra.mxu0 %v105
    %v270 = vpop.f32.mrf.mxu0
    %v271 = vadd.f32 %v78, %v270
    %v272 = vpop.f32.mrf.mxu0
    %273 = vmatprep.mubr.f32.mxu0 0.0
    %274 = vmatmul.mubr.f32.gmra.mxu0 %v108
    %v275 = vpop.f32.mrf.mxu0
    %v276 = vadd.f32 %v78, %v275
    %v277 = vpop.f32.mrf.mxu0
    %278 = vmatprep.mubr.f32.mxu0 0.0
    %279 = vmatmul.mubr.f32.gmra.mxu0 %v111
    %v280 = vpop.f32.mrf.mxu0
    %v281 = vadd.f32 %v78, %v280
    %v282 = vpop.f32.mrf.mxu0
    %283 = vmatprep.mubr.f32.mxu0 0.0
    %284 = vmatmul.mubr.f32.gmra.mxu0 %v114
    %v285 = vpop.f32.mrf.mxu0
    %v286 = vadd.f32 %v78, %v285
    %v287 = vpop.f32.mrf.mxu0
    %288 = vmatprep.mubr.f32.mxu0 0.0
    %289 = vmatmul.mubr.f32.gmra.mxu0 %v117
    %v290 = vpop.f32.mrf.mxu0
    %v291 = vadd.f32 %v78, %v290
    %v292 = vpop.f32.mrf.mxu0
    %293 = vmatprep.mubr.f32.mxu0 0.0
    %294 = vmatmul.mubr.f32.gmra.mxu0 %v120
    %v295 = vpop.f32.mrf.mxu0
    %v296 = vadd.f32 %v78, %v295
    %v297 = vpop.f32.mrf.mxu0
    %298 = vmatprep.mubr.f32.mxu0 0.0
    %299 = vmatmul.mubr.f32.gmra.mxu0 %v123
    %v300 = vpop.f32.mrf.mxu0
    %v301 = vadd.f32 %v78, %v300
    %v302 = vpop.f32.mrf.mxu0
    %303 = vmatprep.mubr.f32.mxu0 0.0
    %304 = vmatmul.mubr.f32.gmra.mxu0 %v126
    %v305 = vpop.f32.mrf.mxu0
    %v306 = vadd.f32 %v78, %v305
    %v307 = vpop.f32.mrf.mxu0
    %308 = vmatprep.mubr.f32.mxu0 0.0
    %309 = vmatmul.mubr.f32.gmra.mxu0 %v129
    %v310 = vpop.f32.mrf.mxu0
    %v311 = vadd.f32 %v78, %v310
    %v312 = vpop.f32.mrf.mxu0
    %313 = vmatprep.mubr.f32.mxu0 0.0
    %314 = vmatmul.mubr.f32.gmra.mxu0 %v132
    %v315 = vpop.f32.mrf.mxu0
    %v316 = vadd.f32 %v78, %v315
    %v317 = vpop.f32.mrf.mxu0
    %318 = vmatprep.mubr.f32.mxu0 0.0
    %319 = vmatmul.mubr.f32.gmra.mxu0 %v135
    %v320 = vpop.f32.mrf.mxu0
    %v321 = vadd.f32 %v78, %v320
    %v322 = vpop.f32.mrf.mxu0
    %323 = vmatprep.mubr.f32.mxu0 0.0
    %324 = vmatmul.mubr.f32.gmra.mxu0 %v138
    %v325 = vpop.f32.mrf.mxu0
    %v326 = vadd.f32 %v78, %v325
    %v327 = vpop.f32.mrf.mxu0
    %328 = vmatprep.mubr.f32.mxu0 0.0
    %329 = vmatmul.mubr.f32.gmra.mxu0 %v141
    %v330 = vpop.f32.mrf.mxu0
    %v331 = vadd.f32 %v78, %v330
    %v332 = vpop.f32.mrf.mxu0
    %333 = vmatprep.mubr.f32.mxu0 0.0
    %334 = vmatmul.mubr.f32.gmra.mxu0 %v144
    %v335 = vpop.f32.mrf.mxu0
    %v336 = vadd.f32 %v78, %v335
    %v337 = vpop.f32.mrf.mxu0
    %338 = vmatprep.mubr.f32.mxu0 0.0
    %339 = vmatmul.mubr.f32.gmra.mxu0 %v147
    %v340 = vpop.f32.mrf.mxu0
    %v341 = vadd.f32 %v78, %v340
    %v342 = vpop.f32.mrf.mxu0
    %343 = vmatprep.mubr.f32.mxu0 0.0
    %344 = vmatmul.mubr.f32.gmra.mxu0 %v150
    %v345 = vpop.f32.mrf.mxu0
    %v346 = vadd.f32 %v78, %v345
    %v347 = vpop.f32.mrf.mxu0
    %348 = vmatprep.mubr.f32.mxu0 0.0
    %349 = vmatmul.mubr.f32.gmra.mxu0 %v153
    %v350 = vpop.f32.mrf.mxu0
    %v351 = vadd.f32 %v78, %v350
    %v352 = vpop.f32.mrf.mxu0
    %353 = vmatprep.mubr.f32.mxu0 0.0
    %354 = vmatmul.mubr.f32.gmra.mxu0 %v156
    %v355 = vpop.f32.mrf.mxu0
    %v356 = vadd.f32 %v78, %v355
    %v357 = vpop.f32.mrf.mxu0
    %358 = vmatprep.mubr.f32.mxu0 0.0
    %359 = vmatmul.mubr.f32.gmra.mxu0 %v159
    %v360 = vpop.f32.mrf.mxu0
    %v361 = vadd.f32 %v78, %v360
    %v362 = vpop.f32.mrf.mxu0
    %363 = vmatprep.mubr.f32.mxu0 0.0
    %364 = vmatmul.mubr.f32.gmra.mxu0 %v162
    %v365 = vpop.f32.mrf.mxu0
    %v366 = vadd.f32 %v78, %v365
    %v367 = vpop.f32.mrf.mxu0
    %368 = vdwg.mxu0
    %v369 = vmax.f32 %v231, 0.0
    %v370 = vmax.f32 %v236, 0.0
    %v371 = vmax.f32 %v241, 0.0
    %v372 = vmax.f32 %v246, 0.0
    %v373 = vmax.f32 %v251, 0.0
    %v374 = vmax.f32 %v256, 0.0
    %v375 = vmax.f32 %v261, 0.0
    %v376 = vmax.f32 %v266, 0.0
    %v377 = vmax.f32 %v271, 0.0
    %v378 = vmax.f32 %v276, 0.0
    %v379 = vmax.f32 %v281, 0.0
    %v380 = vmax.f32 %v286, 0.0
    %v381 = vmax.f32 %v291, 0.0
    %v382 = vmax.f32 %v296, 0.0
    %v383 = vmax.f32 %v301, 0.0
    %v384 = vmax.f32 %v306, 0.0
    %v385 = vmax.f32 %v311, 0.0
    %v386 = vmax.f32 %v316, 0.0
    %v387 = vmax.f32 %v321, 0.0
    %v388 = vmax.f32 %v326, 0.0
    %v389 = vmax.f32 %v331, 0.0
    %v390 = vmax.f32 %v336, 0.0
    %v391 = vmax.f32 %v341, 0.0
    %v392 = vmax.f32 %v346, 0.0
    %v393 = vmax.f32 %v351, 0.0
    %v394 = vmax.f32 %v356, 0.0
    %v395 = vmax.f32 %v361, 0.0
    %v396 = vmax.f32 %v366, 0.0
    %v397 = vld [vmem:[%s6] sm:$0xff]
    %v398 = vld [vmem:[%s6 + $0x8] sm:$0xff]
    %v399 = vld [vmem:[%s6 + $0x10] sm:$0xff]
    %v400 = vld [vmem:[%s6 + $0x18] sm:$0xff]
    %v401 = vld [vmem:[%s6 + $0x20] sm:$0xff]
    %v402 = vld [vmem:[%s6 + $0x28] sm:$0xff]
    %v403 = vld [vmem:[%s6 + $0x30] sm:$0xff]
    %v404 = vld [vmem:[%s6 + $0x38] sm:$0xff]
    %v405 = vld [vmem:[%s6 + $0x40] sm:$0xff]
    %v406 = vld [vmem:[%s6 + $0x48] sm:$0xff]
    %v407 = vld [vmem:[%s6 + $0x50] sm:$0xff]
    %v408 = vld [vmem:[%s6 + $0x58] sm:$0xff]
    %v409 = vld [vmem:[%s5 + $0x1] sm:$0x1]
    %v410 = vlaneseq
    %v411 = vshrl.u32 %v410, 7
    %v412 = vsub.s32 0, %v411
    %v413 = vrot.slane %v409, %v412
    %vm414 = vcmask 785408
    %v416 = vsel %vm414, %v369, 0
    %v419 = vsel %vm414, %v370, 0
    %v422 = vsel %vm414, %v371, 0
    %v425 = vsel %vm414, %v372, 0
    %v428 = vsel %vm414, %v373, 0
    %v431 = vsel %vm414, %v374, 0
    %v434 = vsel %vm414, %v375, 0
    %v437 = vsel %vm414, %v376, 0
    %v440 = vsel %vm414, %v377, 0
    %v443 = vsel %vm414, %v378, 0
    %v446 = vsel %vm414, %v379, 0
    %v449 = vsel %vm414, %v380, 0
    %v452 = vsel %vm414, %v381, 0
    %v455 = vsel %vm414, %v382, 0
    %v458 = vsel %vm414, %v383, 0
    %v461 = vsel %vm414, %v384, 0
    %v464 = vsel %vm414, %v385, 0
    %v467 = vsel %vm414, %v386, 0
    %v470 = vsel %vm414, %v387, 0
    %v473 = vsel %vm414, %v388, 0
    %v476 = vsel %vm414, %v389, 0
    %v479 = vsel %vm414, %v390, 0
    %v482 = vsel %vm414, %v391, 0
    %v485 = vsel %vm414, %v392, 0
    %v488 = vsel %vm414, %v393, 0
    %v491 = vsel %vm414, %v394, 0
    %v494 = vsel %vm414, %v395, 0
    %v497 = vsel %vm414, %v396, 0
    %499 = vmatprep.subr.mxu0 0.0
    %500 = vmatpush1.msra.mxu0 0.0
    %501 = vmatprep.subr.mxu0 0.0
    %502 = vmatpush1.msra.mxu0 0.0
    %503 = vmatprep.subr.mxu0 0.0
    %504 = vmatpush1.msra.mxu0 0.0
    %505 = vmatprep.subr.mxu0 0.0
    %506 = vmatpush1.msra.mxu0 0.0
    %507 = vmatprep.subr.mxu0 0.0
    %508 = vmatpush1.msra.mxu0 %v408
    %509 = vmatprep.subr.mxu0 0.0
    %510 = vmatpush1.msra.mxu0 %v407
    %511 = vmatprep.subr.mxu0 0.0
    %512 = vmatpush1.msra.mxu0 %v406
    %513 = vmatprep.subr.mxu0 0.0
    %514 = vmatpush1.msra.mxu0 %v405
    %515 = vmatprep.subr.mxu0 0.0
    %516 = vmatpush1.msra.mxu0 %v404
    %517 = vmatprep.subr.mxu0 0.0
    %518 = vmatpush1.msra.mxu0 %v403
    %519 = vmatprep.subr.mxu0 0.0
    %520 = vmatpush1.msra.mxu0 %v402
    %521 = vmatprep.subr.mxu0 0.0
    %522 = vmatpush1.msra.mxu0 %v401
    %523 = vmatprep.subr.mxu0 0.0
    %524 = vmatpush1.msra.mxu0 %v400
    %525 = vmatprep.subr.mxu0 0.0
    %526 = vmatpush1.msra.mxu0 %v399
    %527 = vmatprep.subr.mxu0 0.0
    %528 = vmatpush1.msra.mxu0 %v398
    %529 = vmatprep.subr.mxu0 0.0
    %530 = vmatpush1.msra.mxu0 %v397
    %531 = vmatprep.subr.mxu0 0.0
    %532 = vmatpush2.msra.mxu0 0.0
    %533 = vmatprep.subr.mxu0 0.0
    %534 = vmatpush2.msra.mxu0 0.0
    %535 = vmatprep.subr.mxu0 0.0
    %536 = vmatpush2.msra.mxu0 0.0
    %537 = vmatprep.subr.mxu0 0.0
    %538 = vmatpush2.msra.mxu0 0.0
    %539 = vmatprep.subr.mxu0 0.0
    %540 = vmatpush2.msra.mxu0 0.0
    %541 = vmatprep.subr.mxu0 0.0
    %542 = vmatpush2.msra.mxu0 0.0
    %543 = vmatprep.subr.mxu0 0.0
    %544 = vmatpush2.msra.mxu0 0.0
    %545 = vmatprep.subr.mxu0 0.0
    %546 = vmatpush2.msra.mxu0 0.0
    %547 = vmatprep.subr.mxu0 0.0
    %548 = vmatpush2.msra.mxu0 0.0
    %549 = vmatprep.subr.mxu0 0.0
    %550 = vmatpush2.msra.mxu0 0.0
    %551 = vmatprep.subr.mxu0 0.0
    %552 = vmatpush2.msra.mxu0 0.0
    %553 = vmatprep.subr.mxu0 0.0
    %554 = vmatpush2.msra.mxu0 0.0
    %555 = vmatprep.subr.mxu0 0.0
    %556 = vmatpush2.msra.mxu0 0.0
    %557 = vmatprep.subr.mxu0 0.0
    %558 = vmatpush2.msra.mxu0 0.0
    %559 = vmatprep.subr.mxu0 0.0
    %560 = vmatpush2.msra.mxu0 0.0
    %561 = vmatprep.subr.mxu0 0.0
    %562 = vmatpush2.msra.mxu0 0.0
    %563 = vmatprep.mubr.f32.mxu0 0.0
    %564 = vmatmul.mubr.f32.gmra.mxu0 %v416
    %v565 = vpop.f32.mrf.mxu0
    %v566 = vadd.f32 %v413, %v565
    %v567 = vpop.f32.mrf.mxu0
    %568 = vmatprep.mubr.f32.mxu0 0.0
    %569 = vmatmul.mubr.f32.gmra.mxu0 %v419
    %v570 = vpop.f32.mrf.mxu0
    %v571 = vadd.f32 %v413, %v570
    %v572 = vpop.f32.mrf.mxu0
    %573 = vmatprep.mubr.f32.mxu0 0.0
    %574 = vmatmul.mubr.f32.gmra.mxu0 %v422
    %v575 = vpop.f32.mrf.mxu0
    %v576 = vadd.f32 %v413, %v575
    %v577 = vpop.f32.mrf.mxu0
    %578 = vmatprep.mubr.f32.mxu0 0.0
    %579 = vmatmul.mubr.f32.gmra.mxu0 %v425
    %v580 = vpop.f32.mrf.mxu0
    %v581 = vadd.f32 %v413, %v580
    %v582 = vpop.f32.mrf.mxu0
    %583 = vmatprep.mubr.f32.mxu0 0.0
    %584 = vmatmul.mubr.f32.gmra.mxu0 %v428
    %v585 = vpop.f32.mrf.mxu0
    %v586 = vadd.f32 %v413, %v585
    %v587 = vpop.f32.mrf.mxu0
    %588 = vmatprep.mubr.f32.mxu0 0.0
    %589 = vmatmul.mubr.f32.gmra.mxu0 %v431
    %v590 = vpop.f32.mrf.mxu0
    %v591 = vadd.f32 %v413, %v590
    %v592 = vpop.f32.mrf.mxu0
    %593 = vmatprep.mubr.f32.mxu0 0.0
    %594 = vmatmul.mubr.f32.gmra.mxu0 %v434
    %v595 = vpop.f32.mrf.mxu0
    %v596 = vadd.f32 %v413, %v595
    %v597 = vpop.f32.mrf.mxu0
    %598 = vmatprep.mubr.f32.mxu0 0.0
    %599 = vmatmul.mubr.f32.gmra.mxu0 %v437
    %v600 = vpop.f32.mrf.mxu0
    %v601 = vadd.f32 %v413, %v600
    %v602 = vpop.f32.mrf.mxu0
    %603 = vmatprep.mubr.f32.mxu0 0.0
    %604 = vmatmul.mubr.f32.gmra.mxu0 %v440
    %v605 = vpop.f32.mrf.mxu0
    %v606 = vadd.f32 %v413, %v605
    %v607 = vpop.f32.mrf.mxu0
    %608 = vmatprep.mubr.f32.mxu0 0.0
    %609 = vmatmul.mubr.f32.gmra.mxu0 %v443
    %v610 = vpop.f32.mrf.mxu0
    %v611 = vadd.f32 %v413, %v610
    %v612 = vpop.f32.mrf.mxu0
    %613 = vmatprep.mubr.f32.mxu0 0.0
    %614 = vmatmul.mubr.f32.gmra.mxu0 %v446
    %v615 = vpop.f32.mrf.mxu0
    %v616 = vadd.f32 %v413, %v615
    %v617 = vpop.f32.mrf.mxu0
    %618 = vmatprep.mubr.f32.mxu0 0.0
    %619 = vmatmul.mubr.f32.gmra.mxu0 %v449
    %v620 = vpop.f32.mrf.mxu0
    %v621 = vadd.f32 %v413, %v620
    %v622 = vpop.f32.mrf.mxu0
    %623 = vmatprep.mubr.f32.mxu0 0.0
    %624 = vmatmul.mubr.f32.gmra.mxu0 %v452
    %v625 = vpop.f32.mrf.mxu0
    %v626 = vadd.f32 %v413, %v625
    %v627 = vpop.f32.mrf.mxu0
    %628 = vmatprep.mubr.f32.mxu0 0.0
    %629 = vmatmul.mubr.f32.gmra.mxu0 %v455
    %v630 = vpop.f32.mrf.mxu0
    %v631 = vadd.f32 %v413, %v630
    %v632 = vpop.f32.mrf.mxu0
    %633 = vmatprep.mubr.f32.mxu0 0.0
    %634 = vmatmul.mubr.f32.gmra.mxu0 %v458
    %v635 = vpop.f32.mrf.mxu0
    %v636 = vadd.f32 %v413, %v635
    %v637 = vpop.f32.mrf.mxu0
    %638 = vmatprep.mubr.f32.mxu0 0.0
    %639 = vmatmul.mubr.f32.gmra.mxu0 %v461
    %v640 = vpop.f32.mrf.mxu0
    %v641 = vadd.f32 %v413, %v640
    %v642 = vpop.f32.mrf.mxu0
    %643 = vmatprep.mubr.f32.mxu0 0.0
    %644 = vmatmul.mubr.f32.gmra.mxu0 %v464
    %v645 = vpop.f32.mrf.mxu0
    %v646 = vadd.f32 %v413, %v645
    %v647 = vpop.f32.mrf.mxu0
    %648 = vmatprep.mubr.f32.mxu0 0.0
    %649 = vmatmul.mubr.f32.gmra.mxu0 %v467
    %v650 = vpop.f32.mrf.mxu0
    %v651 = vadd.f32 %v413, %v650
    %v652 = vpop.f32.mrf.mxu0
    %653 = vmatprep.mubr.f32.mxu0 0.0
    %654 = vmatmul.mubr.f32.gmra.mxu0 %v470
    %v655 = vpop.f32.mrf.mxu0
    %v656 = vadd.f32 %v413, %v655
    %v657 = vpop.f32.mrf.mxu0
    %658 = vmatprep.mubr.f32.mxu0 0.0
    %659 = vmatmul.mubr.f32.gmra.mxu0 %v473
    %v660 = vpop.f32.mrf.mxu0
    %v661 = vadd.f32 %v413, %v660
    %v662 = vpop.f32.mrf.mxu0
    %663 = vmatprep.mubr.f32.mxu0 0.0
    %664 = vmatmul.mubr.f32.gmra.mxu0 %v476
    %v665 = vpop.f32.mrf.mxu0
    %v666 = vadd.f32 %v413, %v665
    %v667 = vpop.f32.mrf.mxu0
    %668 = vmatprep.mubr.f32.mxu0 0.0
    %669 = vmatmul.mubr.f32.gmra.mxu0 %v479
    %v670 = vpop.f32.mrf.mxu0
    %v671 = vadd.f32 %v413, %v670
    %v672 = vpop.f32.mrf.mxu0
    %673 = vmatprep.mubr.f32.mxu0 0.0
    %674 = vmatmul.mubr.f32.gmra.mxu0 %v482
    %v675 = vpop.f32.mrf.mxu0
    %v676 = vadd.f32 %v413, %v675
    %v677 = vpop.f32.mrf.mxu0
    %678 = vmatprep.mubr.f32.mxu0 0.0
    %679 = vmatmul.mubr.f32.gmra.mxu0 %v485
    %v680 = vpop.f32.mrf.mxu0
    %v681 = vadd.f32 %v413, %v680
    %v682 = vpop.f32.mrf.mxu0
    %683 = vmatprep.mubr.f32.mxu0 0.0
    %684 = vmatmul.mubr.f32.gmra.mxu0 %v488
    %v685 = vpop.f32.mrf.mxu0
    %v686 = vadd.f32 %v413, %v685
    %v687 = vpop.f32.mrf.mxu0
    %688 = vmatprep.mubr.f32.mxu0 0.0
    %689 = vmatmul.mubr.f32.gmra.mxu0 %v491
    %v690 = vpop.f32.mrf.mxu0
    %v691 = vadd.f32 %v413, %v690
    %v692 = vpop.f32.mrf.mxu0
    %693 = vmatprep.mubr.f32.mxu0 0.0
    %694 = vmatmul.mubr.f32.gmra.mxu0 %v494
    %v695 = vpop.f32.mrf.mxu0
    %v696 = vadd.f32 %v413, %v695
    %v697 = vpop.f32.mrf.mxu0
    %698 = vmatprep.mubr.f32.mxu0 0.0
    %699 = vmatmul.mubr.f32.gmra.mxu0 %v497
    %v700 = vpop.f32.mrf.mxu0
    %v701 = vadd.f32 %v413, %v700
    %v702 = vpop.f32.mrf.mxu0
    %703 = vdwg.mxu0
    %v704 = vld [vmem:[%s1] sm:$0xff]
    %v705 = vld [vmem:[%s1 + $0x8] sm:$0xff]
    %v706 = vld [vmem:[%s1 + $0x10] sm:$0xff]
    %v707 = vld [vmem:[%s1 + $0x18] sm:$0xff]
    %v708 = vld [vmem:[%s1 + $0x20] sm:$0xff]
    %v709 = vld [vmem:[%s1 + $0x28] sm:$0xff]
    %v710 = vld [vmem:[%s1 + $0x30] sm:$0xff]
    %v711 = vld [vmem:[%s1 + $0x38] sm:$0xff]
    %v712 = vld [vmem:[%s1 + $0x40] sm:$0xff]
    %v713 = vld [vmem:[%s1 + $0x48] sm:$0xff]
    %v714 = vld [vmem:[%s1 + $0x50] sm:$0xff]
    %v715 = vld [vmem:[%s1 + $0x58] sm:$0xff]
    %v716 = vadd.f32 %v566, %v704
    %v717 = vadd.f32 %v571, %v705
    %v718 = vadd.f32 %v576, %v706
    %v719 = vadd.f32 %v581, %v707
    %v720 = vadd.f32 %v586, %v708
    %v721 = vadd.f32 %v591, %v709
    %v722 = vadd.f32 %v596, %v710
    %v723 = vadd.f32 %v601, %v711
    %v724 = vadd.f32 %v606, %v712
    %v725 = vadd.f32 %v611, %v713
    %v726 = vadd.f32 %v616, %v714
    %v727 = vadd.f32 %v621, %v715
    %vm728 = vcmask 261120
    %729 = vst.msk [vmem:[#allocation2] sm:$0xff] %vm728, %v716
    %730 = vst.msk [vmem:[#allocation2 + $0x8] sm:$0xff] %vm728, %v717
    %731 = vst.msk [vmem:[#allocation2 + $0x10] sm:$0xff] %vm728, %v718
    %732 = vst.msk [vmem:[#allocation2 + $0x18] sm:$0xff] %vm728, %v719
    %733 = vst.msk [vmem:[#allocation2 + $0x20] sm:$0xff] %vm728, %v720
    %734 = vst.msk [vmem:[#allocation2 + $0x28] sm:$0xff] %vm728, %v721
    %735 = vst.msk [vmem:[#allocation2 + $0x30] sm:$0xff] %vm728, %v722
    %736 = vst.msk [vmem:[#allocation2 + $0x38] sm:$0xff] %vm728, %v723
    %737 = vst.msk [vmem:[#allocation2 + $0x40] sm:$0xff] %vm728, %v724
    %738 = vst.msk [vmem:[#allocation2 + $0x48] sm:$0xff] %vm728, %v725
    %739 = vst.msk [vmem:[#allocation2 + $0x50] sm:$0xff] %vm728, %v726
    %740 = vst.msk [vmem:[#allocation2 + $0x58] sm:$0xff] %vm728, %v727
    %753 = vrot.lane.b32.xlu0 %v704, 32
    %v754 = vpop.permute.xlu0 %753
    %755 = vrot.lane.b32.xlu0 %v705, 32
    %v756 = vpop.permute.xlu0 %755
    %757 = vrot.lane.b32.xlu0 %v706, 32
    %v758 = vpop.permute.xlu0 %757
    %759 = vrot.lane.b32.xlu0 %v707, 32
    %v760 = vpop.permute.xlu0 %759
    %761 = vrot.lane.b32.xlu0 %v708, 32
    %v762 = vpop.permute.xlu0 %761
    %763 = vrot.lane.b32.xlu0 %v709, 32
    %v764 = vpop.permute.xlu0 %763
    %765 = vrot.lane.b32.xlu0 %v710, 32
    %v766 = vpop.permute.xlu0 %765
    %767 = vrot.lane.b32.xlu0 %v711, 32
    %v768 = vpop.permute.xlu0 %767
    %769 = vrot.lane.b32.xlu0 %v712, 32
    %v770 = vpop.permute.xlu0 %769
    %771 = vrot.lane.b32.xlu0 %v713, 32
    %v772 = vpop.permute.xlu0 %771
    %773 = vrot.lane.b32.xlu0 %v714, 32
    %v774 = vpop.permute.xlu0 %773
    %775 = vrot.lane.b32.xlu0 %v715, 32
    %v776 = vpop.permute.xlu0 %775
    %v789 = vadd.f32 %v566, %v754
    %v790 = vadd.f32 %v571, %v756
    %v791 = vadd.f32 %v576, %v758
    %v792 = vadd.f32 %v581, %v760
    %v793 = vadd.f32 %v586, %v762
    %v794 = vadd.f32 %v591, %v764
    %v795 = vadd.f32 %v596, %v766
    %v796 = vadd.f32 %v601, %v768
    %v797 = vadd.f32 %v606, %v770
    %v798 = vadd.f32 %v611, %v772
    %v799 = vadd.f32 %v616, %v774
    %v800 = vadd.f32 %v621, %v776
    %813 = vrot.lane.b32.xlu0 %v789, 96
    %v814 = vpop.permute.xlu0 %813
    %815 = vrot.lane.b32.xlu0 %v790, 96
    %v816 = vpop.permute.xlu0 %815
    %817 = vrot.lane.b32.xlu0 %v791, 96
    %v818 = vpop.permute.xlu0 %817
    %819 = vrot.lane.b32.xlu0 %v792, 96
    %v820 = vpop.permute.xlu0 %819
    %821 = vrot.lane.b32.xlu0 %v793, 96
    %v822 = vpop.permute.xlu0 %821
    %823 = vrot.lane.b32.xlu0 %v794, 96
    %v824 = vpop.permute.xlu0 %823
    %825 = vrot.lane.b32.xlu0 %v795, 96
    %v826 = vpop.permute.xlu0 %825
    %827 = vrot.lane.b32.xlu0 %v796, 96
    %v828 = vpop.permute.xlu0 %827
    %829 = vrot.lane.b32.xlu0 %v797, 96
    %v830 = vpop.permute.xlu0 %829
    %831 = vrot.lane.b32.xlu0 %v798, 96
    %v832 = vpop.permute.xlu0 %831
    %833 = vrot.lane.b32.xlu0 %v799, 96
    %v834 = vpop.permute.xlu0 %833
    %835 = vrot.lane.b32.xlu0 %v800, 96
    %v836 = vpop.permute.xlu0 %835
    %849 = vst.msk [vmem:[#allocation2 + $0x60] sm:$0xff] %vm728, %v814
    %850 = vst.msk [vmem:[#allocation2 + $0x68] sm:$0xff] %vm728, %v816
    %851 = vst.msk [vmem:[#allocation2 + $0x70] sm:$0xff] %vm728, %v818
    %852 = vst.msk [vmem:[#allocation2 + $0x78] sm:$0xff] %vm728, %v820
    %853 = vst.msk [vmem:[#allocation2 + $0x80] sm:$0xff] %vm728, %v822
    %854 = vst.msk [vmem:[#allocation2 + $0x88] sm:$0xff] %vm728, %v824
    %855 = vst.msk [vmem:[#allocation2 + $0x90] sm:$0xff] %vm728, %v826
    %856 = vst.msk [vmem:[#allocation2 + $0x98] sm:$0xff] %vm728, %v828
    %857 = vst.msk [vmem:[#allocation2 + $0xa0] sm:$0xff] %vm728, %v830
    %858 = vst.msk [vmem:[#allocation2 + $0xa8] sm:$0xff] %vm728, %v832
    %859 = vst.msk [vmem:[#allocation2 + $0xb0] sm:$0xff] %vm728, %v834
    %860 = vst.msk [vmem:[#allocation2 + $0xb8] sm:$0xff] %vm728, %v836
    %863 = vrot.lane.b32.xlu0 %v686, 64
    %v864 = vpop.permute.xlu0 %863
    %865 = vrot.lane.b32.xlu0 %v691, 64
    %v866 = vpop.permute.xlu0 %865
    %869 = vst.msk [vmem:[#allocation2 + $0xc0] sm:$0xff] %vm728, %v864
    %870 = vst.msk [vmem:[#allocation2 + $0xc8] sm:$0xff] %vm728, %v866
    %v871 = vadd.f32 %v626, %v704
    %v872 = vadd.f32 %v631, %v705
    %v873 = vadd.f32 %v636, %v706
    %v874 = vadd.f32 %v641, %v707
    %v875 = vadd.f32 %v646, %v708
    %v876 = vadd.f32 %v651, %v709
    %v877 = vadd.f32 %v656, %v710
    %v878 = vadd.f32 %v661, %v711
    %v879 = vadd.f32 %v666, %v712
    %v880 = vadd.f32 %v671, %v713
    %v881 = vadd.f32 %v676, %v714
    %v882 = vadd.f32 %v681, %v715
    %883 = vst.msk [vmem:[#allocation2 + $0xd0] sm:$0xff] %vm728, %v871
    %884 = vst.msk [vmem:[#allocation2 + $0xd8] sm:$0xff] %vm728, %v872
    %885 = vst.msk [vmem:[#allocation2 + $0xe0] sm:$0xff] %vm728, %v873
    %886 = vst.msk [vmem:[#allocation2 + $0xe8] sm:$0xff] %vm728, %v874
    %887 = vst.msk [vmem:[#allocation2 + $0xf0] sm:$0xff] %vm728, %v875
    %888 = vst.msk [vmem:[#allocation2 + $0xf8] sm:$0xff] %vm728, %v876
    %889 = vst.msk [vmem:[#allocation2 + $0x100] sm:$0xff] %vm728, %v877
    %890 = vst.msk [vmem:[#allocation2 + $0x108] sm:$0xff] %vm728, %v878
    %891 = vst.msk [vmem:[#allocation2 + $0x110] sm:$0xff] %vm728, %v879
    %892 = vst.msk [vmem:[#allocation2 + $0x118] sm:$0xff] %vm728, %v880
    %893 = vst.msk [vmem:[#allocation2 + $0x120] sm:$0xff] %vm728, %v881
    %894 = vst.msk [vmem:[#allocation2 + $0x128] sm:$0xff] %vm728, %v882
    %v895 = vadd.f32 %v626, %v754
    %v896 = vadd.f32 %v631, %v756
    %v897 = vadd.f32 %v636, %v758
    %v898 = vadd.f32 %v641, %v760
    %v899 = vadd.f32 %v646, %v762
    %v900 = vadd.f32 %v651, %v764
    %v901 = vadd.f32 %v656, %v766
    %v902 = vadd.f32 %v661, %v768
    %v903 = vadd.f32 %v666, %v770
    %v904 = vadd.f32 %v671, %v772
    %v905 = vadd.f32 %v676, %v774
    %v906 = vadd.f32 %v681, %v776
    %919 = vrot.lane.b32.xlu0 %v895, 96
    %v920 = vpop.permute.xlu0 %919
    %921 = vrot.lane.b32.xlu0 %v896, 96
    %v922 = vpop.permute.xlu0 %921
    %923 = vrot.lane.b32.xlu0 %v897, 96
    %v924 = vpop.permute.xlu0 %923
    %925 = vrot.lane.b32.xlu0 %v898, 96
    %v926 = vpop.permute.xlu0 %925
    %927 = vrot.lane.b32.xlu0 %v899, 96
    %v928 = vpop.permute.xlu0 %927
    %929 = vrot.lane.b32.xlu0 %v900, 96
    %v930 = vpop.permute.xlu0 %929
    %931 = vrot.lane.b32.xlu0 %v901, 96
    %v932 = vpop.permute.xlu0 %931
    %933 = vrot.lane.b32.xlu0 %v902, 96
    %v934 = vpop.permute.xlu0 %933
    %935 = vrot.lane.b32.xlu0 %v903, 96
    %v936 = vpop.permute.xlu0 %935
    %937 = vrot.lane.b32.xlu0 %v904, 96
    %v938 = vpop.permute.xlu0 %937
    %939 = vrot.lane.b32.xlu0 %v905, 96
    %v940 = vpop.permute.xlu0 %939
    %941 = vrot.lane.b32.xlu0 %v906, 96
    %v942 = vpop.permute.xlu0 %941
    %955 = vst.msk [vmem:[#allocation2 + $0x130] sm:$0xff] %vm728, %v920
    %956 = vst.msk [vmem:[#allocation2 + $0x138] sm:$0xff] %vm728, %v922
    %957 = vst.msk [vmem:[#allocation2 + $0x140] sm:$0xff] %vm728, %v924
    %958 = vst.msk [vmem:[#allocation2 + $0x148] sm:$0xff] %vm728, %v926
    %959 = vst.msk [vmem:[#allocation2 + $0x150] sm:$0xff] %vm728, %v928
    %960 = vst.msk [vmem:[#allocation2 + $0x158] sm:$0xff] %vm728, %v930
    %961 = vst.msk [vmem:[#allocation2 + $0x160] sm:$0xff] %vm728, %v932
    %962 = vst.msk [vmem:[#allocation2 + $0x168] sm:$0xff] %vm728, %v934
    %963 = vst.msk [vmem:[#allocation2 + $0x170] sm:$0xff] %vm728, %v936
    %964 = vst.msk [vmem:[#allocation2 + $0x178] sm:$0xff] %vm728, %v938
    %965 = vst.msk [vmem:[#allocation2 + $0x180] sm:$0xff] %vm728, %v940
    %966 = vst.msk [vmem:[#allocation2 + $0x188] sm:$0xff] %vm728, %v942
    %969 = vrot.lane.b32.xlu0 %v696, 64
    %v970 = vpop.permute.xlu0 %969
    %971 = vrot.lane.b32.xlu0 %v701, 64
    %v972 = vpop.permute.xlu0 %971
    %975 = vst.msk [vmem:[#allocation2 + $0x190] sm:$0xff] %vm728, %v970
    %976 = vst.msk [vmem:[#allocation2 + $0x198] sm:$0xff] %vm728, %v972
    %v977 = vld [vmem:[#allocation2] sm:$0xff]
    %v978 = vld [vmem:[#allocation2 + $0x8] sm:$0xff]
    %v979 = vld [vmem:[#allocation2 + $0x10] sm:$0xff]
    %v980 = vld [vmem:[#allocation2 + $0x18] sm:$0xff]
    %v981 = vld [vmem:[#allocation2 + $0x20] sm:$0xff]
    %v982 = vld [vmem:[#allocation2 + $0x28] sm:$0xff]
    %v983 = vld [vmem:[#allocation2 + $0x30] sm:$0xff]
    %v984 = vld [vmem:[#allocation2 + $0x38] sm:$0xff]
    %v985 = vld [vmem:[#allocation2 + $0x40] sm:$0xff]
    %v986 = vld [vmem:[#allocation2 + $0x48] sm:$0xff]
    %v987 = vld [vmem:[#allocation2 + $0x50] sm:$0xff]
    %v988 = vld [vmem:[#allocation2 + $0x58] sm:$0xff]
    %v989 = vld [vmem:[#allocation2 + $0x60] sm:$0xff]
    %v990 = vld [vmem:[#allocation2 + $0x68] sm:$0xff]
    %v991 = vld [vmem:[#allocation2 + $0x70] sm:$0xff]
    %v992 = vld [vmem:[#allocation2 + $0x78] sm:$0xff]
    %v993 = vld [vmem:[#allocation2 + $0x80] sm:$0xff]
    %v994 = vld [vmem:[#allocation2 + $0x88] sm:$0xff]
    %v995 = vld [vmem:[#allocation2 + $0x90] sm:$0xff]
    %v996 = vld [vmem:[#allocation2 + $0x98] sm:$0xff]
    %v997 = vld [vmem:[#allocation2 + $0xa0] sm:$0xff]
    %v998 = vld [vmem:[#allocation2 + $0xa8] sm:$0xff]
    %v999 = vld [vmem:[#allocation2 + $0xb0] sm:$0xff]
    %v1000 = vld [vmem:[#allocation2 + $0xb8] sm:$0xff]
    %v1001 = vld [vmem:[#allocation2 + $0xc0] sm:$0xff]
    %v1002 = vld [vmem:[#allocation2 + $0xc8] sm:$0xff]
    %v1003 = vld [vmem:[#allocation2 + $0xd0] sm:$0xff]
    %v1004 = vld [vmem:[#allocation2 + $0xd8] sm:$0xff]
    %v1005 = vld [vmem:[#allocation2 + $0xe0] sm:$0xff]
    %v1006 = vld [vmem:[#allocation2 + $0xe8] sm:$0xff]
    %v1007 = vld [vmem:[#allocation2 + $0xf0] sm:$0xff]
    %v1008 = vld [vmem:[#allocation2 + $0xf8] sm:$0xff]
    %v1009 = vld [vmem:[#allocation2 + $0x100] sm:$0xff]
    %v1010 = vld [vmem:[#allocation2 + $0x108] sm:$0xff]
    %v1011 = vld [vmem:[#allocation2 + $0x110] sm:$0xff]
    %v1012 = vld [vmem:[#allocation2 + $0x118] sm:$0xff]
    %v1013 = vld [vmem:[#allocation2 + $0x120] sm:$0xff]
    %v1014 = vld [vmem:[#allocation2 + $0x128] sm:$0xff]
    %v1015 = vld [vmem:[#allocation2 + $0x130] sm:$0xff]
    %v1016 = vld [vmem:[#allocation2 + $0x138] sm:$0xff]
    %v1017 = vld [vmem:[#allocation2 + $0x140] sm:$0xff]
    %v1018 = vld [vmem:[#allocation2 + $0x148] sm:$0xff]
    %v1019 = vld [vmem:[#allocation2 + $0x150] sm:$0xff]
    %v1020 = vld [vmem:[#allocation2 + $0x158] sm:$0xff]
    %v1021 = vld [vmem:[#allocation2 + $0x160] sm:$0xff]
    %v1022 = vld [vmem:[#allocation2 + $0x168] sm:$0xff]
    %v1023 = vld [vmem:[#allocation2 + $0x170] sm:$0xff]
    %v1024 = vld [vmem:[#allocation2 + $0x178] sm:$0xff]
    %v1025 = vld [vmem:[#allocation2 + $0x180] sm:$0xff]
    %v1026 = vld [vmem:[#allocation2 + $0x188] sm:$0xff]
    %v1027 = vld [vmem:[#allocation2 + $0x190] sm:$0xff]
    %v1028 = vld [vmem:[#allocation2 + $0x198] sm:$0xff]
    %v1029 = vpack.c.bf16 %v978, %v977
    %v1030 = vpack.c.bf16 %v980, %v979
    %v1031 = vpack.c.bf16 %v982, %v981
    %v1032 = vpack.c.bf16 %v984, %v983
    %v1033 = vpack.c.bf16 %v986, %v985
    %v1034 = vpack.c.bf16 %v988, %v987
    %v1035 = vpack.c.bf16 %v990, %v989
    %v1036 = vpack.c.bf16 %v992, %v991
    %v1037 = vpack.c.bf16 %v994, %v993
    %v1038 = vpack.c.bf16 %v996, %v995
    %v1039 = vpack.c.bf16 %v998, %v997
    %v1040 = vpack.c.bf16 %v1000, %v999
    %v1041 = vpack.c.bf16 %v1002, %v1001
    %v1042 = vpack.c.bf16 %v1004, %v1003
    %v1043 = vpack.c.bf16 %v1006, %v1005
    %v1044 = vpack.c.bf16 %v1008, %v1007
    %v1045 = vpack.c.bf16 %v1010, %v1009
    %v1046 = vpack.c.bf16 %v1012, %v1011
    %v1047 = vpack.c.bf16 %v1014, %v1013
    %v1048 = vpack.c.bf16 %v1016, %v1015
    %v1049 = vpack.c.bf16 %v1018, %v1017
    %v1050 = vpack.c.bf16 %v1020, %v1019
    %v1051 = vpack.c.bf16 %v1022, %v1021
    %v1052 = vpack.c.bf16 %v1024, %v1023
    %v1053 = vpack.c.bf16 %v1026, %v1025
    %v1054 = vpack.c.bf16 %v1028, %v1027
    %v1055 = vld [vmem:[%s7] sm:$0xf]
    %v1056 = vld [vmem:[%s7 + $0x4] sm:$0xf]
    %v1057 = vld [vmem:[%s7 + $0x8] sm:$0xf]
    %v1058 = vld [vmem:[%s7 + $0xc] sm:$0xf]
    %v1063 = vunpack.c.l.b16 %v1055
    %v1064 = vunpack.c.l.b16 %v1056
    %v1065 = vunpack.c.l.b16 %v1057
    %v1066 = vunpack.c.l.b16 %v1058
    %v1067 = vpack.c.b16 %v1064, %v1063
    %v1068 = vpack.c.b16 %v1066, %v1065
    %v1072 = vsel %vm728, %v1029, 0
    %v1075 = vsel %vm728, %v1030, 0
    %v1078 = vsel %vm728, %v1031, 0
    %v1081 = vsel %vm728, %v1032, 0
    %v1084 = vsel %vm728, %v1033, 0
    %v1087 = vsel %vm728, %v1034, 0
    %v1090 = vsel %vm728, %v1035, 0
    %v1093 = vsel %vm728, %v1036, 0
    %v1096 = vsel %vm728, %v1037, 0
    %v1099 = vsel %vm728, %v1038, 0
    %v1102 = vsel %vm728, %v1039, 0
    %v1105 = vsel %vm728, %v1040, 0
    %v1108 = vsel %vm728, %v1041, 0
    %v1111 = vsel %vm728, %v1042, 0
    %v1114 = vsel %vm728, %v1043, 0
    %v1117 = vsel %vm728, %v1044, 0
    %v1120 = vsel %vm728, %v1045, 0
    %v1123 = vsel %vm728, %v1046, 0
    %v1126 = vsel %vm728, %v1047, 0
    %v1129 = vsel %vm728, %v1048, 0
    %v1132 = vsel %vm728, %v1049, 0
    %v1135 = vsel %vm728, %v1050, 0
    %v1138 = vsel %vm728, %v1051, 0
    %v1141 = vsel %vm728, %v1052, 0
    %v1144 = vsel %vm728, %v1053, 0
    %v1147 = vsel %vm728, %v1054, 0
    %1149 = vmatprep.subr.bf16.mxu0 0
    %1150 = vmatpush1.bf16.msra.mxu0 0
    %1151 = vmatprep.subr.bf16.mxu0 0
    %1152 = vmatpush1.bf16.msra.mxu0 0
    %1153 = vmatprep.subr.bf16.mxu0 0
    %1154 = vmatpush1.bf16.msra.mxu0 0
    %1155 = vmatprep.subr.bf16.mxu0 0
    %1156 = vmatpush1.bf16.msra.mxu0 0
    %1157 = vmatprep.subr.bf16.mxu0 0
    %1158 = vmatpush1.bf16.msra.mxu0 0
    %1159 = vmatprep.subr.bf16.mxu0 0
    %1160 = vmatpush1.bf16.msra.mxu0 0
    %1161 = vmatprep.subr.bf16.mxu0 0
    %1162 = vmatpush1.bf16.msra.mxu0 %v1068
    %1163 = vmatprep.subr.bf16.mxu0 0
    %1164 = vmatpush1.bf16.msra.mxu0 %v1067
    %1165 = vmatprep.subr.bf16.mxu0 0
    %1166 = vmatpush2.bf16.msra.mxu0 0
    %1167 = vmatprep.subr.bf16.mxu0 0
    %1168 = vmatpush2.bf16.msra.mxu0 0
    %1169 = vmatprep.subr.bf16.mxu0 0
    %1170 = vmatpush2.bf16.msra.mxu0 0
    %1171 = vmatprep.subr.bf16.mxu0 0
    %1172 = vmatpush2.bf16.msra.mxu0 0
    %1173 = vmatprep.subr.bf16.mxu0 0
    %1174 = vmatpush2.bf16.msra.mxu0 0
    %1175 = vmatprep.subr.bf16.mxu0 0
    %1176 = vmatpush2.bf16.msra.mxu0 0
    %1177 = vmatprep.subr.bf16.mxu0 0
    %1178 = vmatpush2.bf16.msra.mxu0 0
    %1179 = vmatprep.subr.bf16.mxu0 0
    %1180 = vmatpush2.bf16.msra.mxu0 0
    %1181 = vmatprep.mubr.bf16.mxu0 0
    %1182 = vmatmul.mubr.bf16.gmra.mxu0 %v1072
    %v1183 = vpop.f32.mrf.mxu0
    %v1184 = vadd.f32 0.0, %v1183
    %v1185 = vpop.f32.mrf.mxu0
    %v1186 = vpop.f32.mrf.mxu0
    %v1187 = vadd.f32 0.0, %v1186
    %v1188 = vpop.f32.mrf.mxu0
    %1189 = vmatprep.mubr.bf16.mxu0 0
    %1190 = vmatmul.mubr.bf16.gmra.mxu0 %v1075
    %v1191 = vpop.f32.mrf.mxu0
    %v1192 = vadd.f32 0.0, %v1191
    %v1193 = vpop.f32.mrf.mxu0
    %v1194 = vpop.f32.mrf.mxu0
    %v1195 = vadd.f32 0.0, %v1194
    %v1196 = vpop.f32.mrf.mxu0
    %1197 = vmatprep.mubr.bf16.mxu0 0
    %1198 = vmatmul.mubr.bf16.gmra.mxu0 %v1078
    %v1199 = vpop.f32.mrf.mxu0
    %v1200 = vadd.f32 0.0, %v1199
    %v1201 = vpop.f32.mrf.mxu0
    %v1202 = vpop.f32.mrf.mxu0
    %v1203 = vadd.f32 0.0, %v1202
    %v1204 = vpop.f32.mrf.mxu0
    %1205 = vmatprep.mubr.bf16.mxu0 0
    %1206 = vmatmul.mubr.bf16.gmra.mxu0 %v1081
    %v1207 = vpop.f32.mrf.mxu0
    %v1208 = vadd.f32 0.0, %v1207
    %v1209 = vpop.f32.mrf.mxu0
    %v1210 = vpop.f32.mrf.mxu0
    %v1211 = vadd.f32 0.0, %v1210
    %v1212 = vpop.f32.mrf.mxu0
    %1213 = vmatprep.mubr.bf16.mxu0 0
    %1214 = vmatmul.mubr.bf16.gmra.mxu0 %v1084
    %v1215 = vpop.f32.mrf.mxu0
    %v1216 = vadd.f32 0.0, %v1215
    %v1217 = vpop.f32.mrf.mxu0
    %v1218 = vpop.f32.mrf.mxu0
    %v1219 = vadd.f32 0.0, %v1218
    %v1220 = vpop.f32.mrf.mxu0
    %1221 = vmatprep.mubr.bf16.mxu0 0
    %1222 = vmatmul.mubr.bf16.gmra.mxu0 %v1087
    %v1223 = vpop.f32.mrf.mxu0
    %v1224 = vadd.f32 0.0, %v1223
    %v1225 = vpop.f32.mrf.mxu0
    %v1226 = vpop.f32.mrf.mxu0
    %v1227 = vadd.f32 0.0, %v1226
    %v1228 = vpop.f32.mrf.mxu0
    %1229 = vmatprep.mubr.bf16.mxu0 0
    %1230 = vmatmul.mubr.bf16.gmra.mxu0 %v1090
    %v1231 = vpop.f32.mrf.mxu0
    %v1232 = vadd.f32 0.0, %v1231
    %v1233 = vpop.f32.mrf.mxu0
    %v1234 = vpop.f32.mrf.mxu0
    %v1235 = vadd.f32 0.0, %v1234
    %v1236 = vpop.f32.mrf.mxu0
    %1237 = vmatprep.mubr.bf16.mxu0 0
    %1238 = vmatmul.mubr.bf16.gmra.mxu0 %v1093
    %v1239 = vpop.f32.mrf.mxu0
    %v1240 = vadd.f32 0.0, %v1239
    %v1241 = vpop.f32.mrf.mxu0
    %v1242 = vpop.f32.mrf.mxu0
    %v1243 = vadd.f32 0.0, %v1242
    %v1244 = vpop.f32.mrf.mxu0
    %1245 = vmatprep.mubr.bf16.mxu0 0
    %1246 = vmatmul.mubr.bf16.gmra.mxu0 %v1096
    %v1247 = vpop.f32.mrf.mxu0
    %v1248 = vadd.f32 0.0, %v1247
    %v1249 = vpop.f32.mrf.mxu0
    %v1250 = vpop.f32.mrf.mxu0
    %v1251 = vadd.f32 0.0, %v1250
    %v1252 = vpop.f32.mrf.mxu0
    %1253 = vmatprep.mubr.bf16.mxu0 0
    %1254 = vmatmul.mubr.bf16.gmra.mxu0 %v1099
    %v1255 = vpop.f32.mrf.mxu0
    %v1256 = vadd.f32 0.0, %v1255
    %v1257 = vpop.f32.mrf.mxu0
    %v1258 = vpop.f32.mrf.mxu0
    %v1259 = vadd.f32 0.0, %v1258
    %v1260 = vpop.f32.mrf.mxu0
    %1261 = vmatprep.mubr.bf16.mxu0 0
    %1262 = vmatmul.mubr.bf16.gmra.mxu0 %v1102
    %v1263 = vpop.f32.mrf.mxu0
    %v1264 = vadd.f32 0.0, %v1263
    %v1265 = vpop.f32.mrf.mxu0
    %v1266 = vpop.f32.mrf.mxu0
    %v1267 = vadd.f32 0.0, %v1266
    %v1268 = vpop.f32.mrf.mxu0
    %1269 = vmatprep.mubr.bf16.mxu0 0
    %1270 = vmatmul.mubr.bf16.gmra.mxu0 %v1105
    %v1271 = vpop.f32.mrf.mxu0
    %v1272 = vadd.f32 0.0, %v1271
    %v1273 = vpop.f32.mrf.mxu0
    %v1274 = vpop.f32.mrf.mxu0
    %v1275 = vadd.f32 0.0, %v1274
    %v1276 = vpop.f32.mrf.mxu0
    %1277 = vmatprep.mubr.bf16.mxu0 0
    %1278 = vmatmul.mubr.bf16.gmra.mxu0 %v1108
    %v1279 = vpop.f32.mrf.mxu0
    %v1280 = vadd.f32 0.0, %v1279
    %v1281 = vpop.f32.mrf.mxu0
    %v1282 = vpop.f32.mrf.mxu0
    %v1283 = vadd.f32 0.0, %v1282
    %v1284 = vpop.f32.mrf.mxu0
    %1285 = vmatprep.mubr.bf16.mxu0 0
    %1286 = vmatmul.mubr.bf16.gmra.mxu0 %v1111
    %v1287 = vpop.f32.mrf.mxu0
    %v1288 = vadd.f32 0.0, %v1287
    %v1289 = vpop.f32.mrf.mxu0
    %v1290 = vpop.f32.mrf.mxu0
    %v1291 = vadd.f32 0.0, %v1290
    %v1292 = vpop.f32.mrf.mxu0
    %1293 = vmatprep.mubr.bf16.mxu0 0
    %1294 = vmatmul.mubr.bf16.gmra.mxu0 %v1114
    %v1295 = vpop.f32.mrf.mxu0
    %v1296 = vadd.f32 0.0, %v1295
    %v1297 = vpop.f32.mrf.mxu0
    %v1298 = vpop.f32.mrf.mxu0
    %v1299 = vadd.f32 0.0, %v1298
    %v1300 = vpop.f32.mrf.mxu0
    %1301 = vmatprep.mubr.bf16.mxu0 0
    %1302 = vmatmul.mubr.bf16.gmra.mxu0 %v1117
    %v1303 = vpop.f32.mrf.mxu0
    %v1304 = vadd.f32 0.0, %v1303
    %v1305 = vpop.f32.mrf.mxu0
    %v1306 = vpop.f32.mrf.mxu0
    %v1307 = vadd.f32 0.0, %v1306
    %v1308 = vpop.f32.mrf.mxu0
    %1309 = vmatprep.mubr.bf16.mxu0 0
    %1310 = vmatmul.mubr.bf16.gmra.mxu0 %v1120
    %v1311 = vpop.f32.mrf.mxu0
    %v1312 = vadd.f32 0.0, %v1311
    %v1313 = vpop.f32.mrf.mxu0
    %v1314 = vpop.f32.mrf.mxu0
    %v1315 = vadd.f32 0.0, %v1314
    %v1316 = vpop.f32.mrf.mxu0
    %1317 = vmatprep.mubr.bf16.mxu0 0
    %1318 = vmatmul.mubr.bf16.gmra.mxu0 %v1123
    %v1319 = vpop.f32.mrf.mxu0
    %v1320 = vadd.f32 0.0, %v1319
    %v1321 = vpop.f32.mrf.mxu0
    %v1322 = vpop.f32.mrf.mxu0
    %v1323 = vadd.f32 0.0, %v1322
    %v1324 = vpop.f32.mrf.mxu0
    %1325 = vmatprep.mubr.bf16.mxu0 0
    %1326 = vmatmul.mubr.bf16.gmra.mxu0 %v1126
    %v1327 = vpop.f32.mrf.mxu0
    %v1328 = vadd.f32 0.0, %v1327
    %v1329 = vpop.f32.mrf.mxu0
    %v1330 = vpop.f32.mrf.mxu0
    %v1331 = vadd.f32 0.0, %v1330
    %v1332 = vpop.f32.mrf.mxu0
    %1333 = vmatprep.mubr.bf16.mxu0 0
    %1334 = vmatmul.mubr.bf16.gmra.mxu0 %v1129
    %v1335 = vpop.f32.mrf.mxu0
    %v1336 = vadd.f32 0.0, %v1335
    %v1337 = vpop.f32.mrf.mxu0
    %v1338 = vpop.f32.mrf.mxu0
    %v1339 = vadd.f32 0.0, %v1338
    %v1340 = vpop.f32.mrf.mxu0
    %1341 = vmatprep.mubr.bf16.mxu0 0
    %1342 = vmatmul.mubr.bf16.gmra.mxu0 %v1132
    %v1343 = vpop.f32.mrf.mxu0
    %v1344 = vadd.f32 0.0, %v1343
    %v1345 = vpop.f32.mrf.mxu0
    %v1346 = vpop.f32.mrf.mxu0
    %v1347 = vadd.f32 0.0, %v1346
    %v1348 = vpop.f32.mrf.mxu0
    %1349 = vmatprep.mubr.bf16.mxu0 0
    %1350 = vmatmul.mubr.bf16.gmra.mxu0 %v1135
    %v1351 = vpop.f32.mrf.mxu0
    %v1352 = vadd.f32 0.0, %v1351
    %v1353 = vpop.f32.mrf.mxu0
    %v1354 = vpop.f32.mrf.mxu0
    %v1355 = vadd.f32 0.0, %v1354
    %v1356 = vpop.f32.mrf.mxu0
    %1357 = vmatprep.mubr.bf16.mxu0 0
    %1358 = vmatmul.mubr.bf16.gmra.mxu0 %v1138
    %v1359 = vpop.f32.mrf.mxu0
    %v1360 = vadd.f32 0.0, %v1359
    %v1361 = vpop.f32.mrf.mxu0
    %v1362 = vpop.f32.mrf.mxu0
    %v1363 = vadd.f32 0.0, %v1362
    %v1364 = vpop.f32.mrf.mxu0
    %1365 = vmatprep.mubr.bf16.mxu0 0
    %1366 = vmatmul.mubr.bf16.gmra.mxu0 %v1141
    %v1367 = vpop.f32.mrf.mxu0
    %v1368 = vadd.f32 0.0, %v1367
    %v1369 = vpop.f32.mrf.mxu0
    %v1370 = vpop.f32.mrf.mxu0
    %v1371 = vadd.f32 0.0, %v1370
    %v1372 = vpop.f32.mrf.mxu0
    %1373 = vmatprep.mubr.bf16.mxu0 0
    %1374 = vmatmul.mubr.bf16.gmra.mxu0 %v1144
    %v1375 = vpop.f32.mrf.mxu0
    %v1376 = vadd.f32 0.0, %v1375
    %v1377 = vpop.f32.mrf.mxu0
    %v1378 = vpop.f32.mrf.mxu0
    %v1379 = vadd.f32 0.0, %v1378
    %v1380 = vpop.f32.mrf.mxu0
    %1381 = vmatprep.mubr.bf16.mxu0 0
    %1382 = vmatmul.mubr.bf16.gmra.mxu0 %v1147
    %v1383 = vpop.f32.mrf.mxu0
    %v1384 = vadd.f32 0.0, %v1383
    %v1385 = vpop.f32.mrf.mxu0
    %v1386 = vpop.f32.mrf.mxu0
    %v1387 = vadd.f32 0.0, %v1386
    %v1388 = vpop.f32.mrf.mxu0
    %1389 = vdwg.mxu0
    %v1390 = vpack.c.bf16 %v1187, %v1184
    %v1391 = vpack.c.bf16 %v1195, %v1192
    %v1392 = vpack.c.bf16 %v1203, %v1200
    %v1393 = vpack.c.bf16 %v1211, %v1208
    %v1394 = vpack.c.bf16 %v1219, %v1216
    %v1395 = vpack.c.bf16 %v1227, %v1224
    %v1396 = vpack.c.bf16 %v1235, %v1232
    %v1397 = vpack.c.bf16 %v1243, %v1240
    %v1398 = vpack.c.bf16 %v1251, %v1248
    %v1399 = vpack.c.bf16 %v1259, %v1256
    %v1400 = vpack.c.bf16 %v1267, %v1264
    %v1401 = vpack.c.bf16 %v1275, %v1272
    %v1402 = vpack.c.bf16 %v1283, %v1280
    %v1403 = vpack.c.bf16 %v1291, %v1288
    %v1404 = vpack.c.bf16 %v1299, %v1296
    %v1405 = vpack.c.bf16 %v1307, %v1304
    %v1406 = vpack.c.bf16 %v1315, %v1312
    %v1407 = vpack.c.bf16 %v1323, %v1320
    %v1408 = vpack.c.bf16 %v1331, %v1328
    %v1409 = vpack.c.bf16 %v1339, %v1336
    %v1410 = vpack.c.bf16 %v1347, %v1344
    %v1411 = vpack.c.bf16 %v1355, %v1352
    %v1412 = vpack.c.bf16 %v1363, %v1360
    %v1413 = vpack.c.bf16 %v1371, %v1368
    %v1414 = vpack.c.bf16 %v1379, %v1376
    %v1415 = vpack.c.bf16 %v1387, %v1384
    %v1442 = vunpack.c.l.b16 %v1390
    %v1443 = vunpack.c.h.b16 %v1390
    %v1444 = vunpack.c.l.b16 %v1391
    %v1445 = vunpack.c.h.b16 %v1391
    %v1446 = vunpack.c.l.b16 %v1392
    %v1447 = vunpack.c.h.b16 %v1392
    %v1448 = vunpack.c.l.b16 %v1393
    %v1449 = vunpack.c.h.b16 %v1393
    %v1450 = vunpack.c.l.b16 %v1394
    %v1451 = vunpack.c.h.b16 %v1394
    %v1452 = vunpack.c.l.b16 %v1395
    %v1453 = vunpack.c.h.b16 %v1395
    %v1454 = vunpack.c.l.b16 %v1396
    %v1455 = vunpack.c.h.b16 %v1396
    %v1456 = vunpack.c.l.b16 %v1397
    %v1457 = vunpack.c.h.b16 %v1397
    %v1458 = vunpack.c.l.b16 %v1398
    %v1459 = vunpack.c.h.b16 %v1398
    %v1460 = vunpack.c.l.b16 %v1399
    %v1461 = vunpack.c.h.b16 %v1399
    %v1462 = vunpack.c.l.b16 %v1400
    %v1463 = vunpack.c.h.b16 %v1400
    %v1464 = vunpack.c.l.b16 %v1401
    %v1465 = vunpack.c.h.b16 %v1401
    %v1466 = vunpack.c.l.b16 %v1402
    %v1467 = vunpack.c.h.b16 %v1402
    %v1468 = vunpack.c.l.b16 %v1403
    %v1469 = vunpack.c.h.b16 %v1403
    %v1470 = vunpack.c.l.b16 %v1404
    %v1471 = vunpack.c.h.b16 %v1404
    %v1472 = vunpack.c.l.b16 %v1405
    %v1473 = vunpack.c.h.b16 %v1405
    %v1474 = vunpack.c.l.b16 %v1406
    %v1475 = vunpack.c.h.b16 %v1406
    %v1476 = vunpack.c.l.b16 %v1407
    %v1477 = vunpack.c.h.b16 %v1407
    %v1478 = vunpack.c.l.b16 %v1408
    %v1479 = vunpack.c.h.b16 %v1408
    %v1480 = vunpack.c.l.b16 %v1409
    %v1481 = vunpack.c.h.b16 %v1409
    %v1482 = vunpack.c.l.b16 %v1410
    %v1483 = vunpack.c.h.b16 %v1410
    %v1484 = vunpack.c.l.b16 %v1411
    %v1485 = vunpack.c.h.b16 %v1411
    %v1486 = vunpack.c.l.b16 %v1412
    %v1487 = vunpack.c.h.b16 %v1412
    %v1488 = vunpack.c.l.b16 %v1413
    %v1489 = vunpack.c.h.b16 %v1413
    %v1490 = vunpack.c.l.b16 %v1414
    %v1491 = vunpack.c.h.b16 %v1414
    %v1492 = vunpack.c.l.b16 %v1415
    %v1493 = vunpack.c.h.b16 %v1415
    %v1494 = vpack.c.b16 %v1442, %v1442
    %v1495 = vpack.c.b16 %v1443, %v1443
    %v1496 = vpack.c.b16 %v1444, %v1444
    %v1497 = vpack.c.b16 %v1445, %v1445
    %v1498 = vpack.c.b16 %v1446, %v1446
    %v1499 = vpack.c.b16 %v1447, %v1447
    %v1500 = vpack.c.b16 %v1448, %v1448
    %v1501 = vpack.c.b16 %v1449, %v1449
    %v1502 = vpack.c.b16 %v1450, %v1450
    %v1503 = vpack.c.b16 %v1451, %v1451
    %v1504 = vpack.c.b16 %v1452, %v1452
    %v1505 = vpack.c.b16 %v1453, %v1453
    %v1506 = vpack.c.b16 %v1454, %v1454
    %v1507 = vpack.c.b16 %v1455, %v1455
    %v1508 = vpack.c.b16 %v1456, %v1456
    %v1509 = vpack.c.b16 %v1457, %v1457
    %v1510 = vpack.c.b16 %v1458, %v1458
    %v1511 = vpack.c.b16 %v1459, %v1459
    %v1512 = vpack.c.b16 %v1460, %v1460
    %v1513 = vpack.c.b16 %v1461, %v1461
    %v1514 = vpack.c.b16 %v1462, %v1462
    %v1515 = vpack.c.b16 %v1463, %v1463
    %v1516 = vpack.c.b16 %v1464, %v1464
    %v1517 = vpack.c.b16 %v1465, %v1465
    %v1518 = vpack.c.b16 %v1466, %v1466
    %v1519 = vpack.c.b16 %v1467, %v1467
    %v1520 = vpack.c.b16 %v1468, %v1468
    %v1521 = vpack.c.b16 %v1469, %v1469
    %v1522 = vpack.c.b16 %v1470, %v1470
    %v1523 = vpack.c.b16 %v1471, %v1471
    %v1524 = vpack.c.b16 %v1472, %v1472
    %v1525 = vpack.c.b16 %v1473, %v1473
    %v1526 = vpack.c.b16 %v1474, %v1474
    %v1527 = vpack.c.b16 %v1475, %v1475
    %v1528 = vpack.c.b16 %v1476, %v1476
    %v1529 = vpack.c.b16 %v1477, %v1477
    %v1530 = vpack.c.b16 %v1478, %v1478
    %v1531 = vpack.c.b16 %v1479, %v1479
    %v1532 = vpack.c.b16 %v1480, %v1480
    %v1533 = vpack.c.b16 %v1481, %v1481
    %v1534 = vpack.c.b16 %v1482, %v1482
    %v1535 = vpack.c.b16 %v1483, %v1483
    %v1536 = vpack.c.b16 %v1484, %v1484
    %v1537 = vpack.c.b16 %v1485, %v1485
    %v1538 = vpack.c.b16 %v1486, %v1486
    %v1539 = vpack.c.b16 %v1487, %v1487
    %v1540 = vpack.c.b16 %v1488, %v1488
    %v1541 = vpack.c.b16 %v1489, %v1489
    %v1542 = vpack.c.b16 %v1490, %v1490
    %v1543 = vpack.c.b16 %v1491, %v1491
    %v1544 = vpack.c.b16 %v1492, %v1492
    %v1545 = vpack.c.b16 %v1493, %v1493
    %vm1598 = vcmask 781312
    %1599 = vst.msk [vmem:[#allocation3] sm:$0xf] %vm1598, %v1494
    %1600 = vst.msk [vmem:[#allocation3 + $0x4] sm:$0xf] %vm1598, %v1495
    %1601 = vst.msk [vmem:[#allocation3 + $0x8] sm:$0xf] %vm1598, %v1496
    %1602 = vst.msk [vmem:[#allocation3 + $0xc] sm:$0xf] %vm1598, %v1497
    %1603 = vst.msk [vmem:[#allocation3 + $0x10] sm:$0xf] %vm1598, %v1498
    %1604 = vst.msk [vmem:[#allocation3 + $0x14] sm:$0xf] %vm1598, %v1499
    %1605 = vst.msk [vmem:[#allocation3 + $0x18] sm:$0xf] %vm1598, %v1500
    %1606 = vst.msk [vmem:[#allocation3 + $0x1c] sm:$0xf] %vm1598, %v1501
    %1607 = vst.msk [vmem:[#allocation3 + $0x20] sm:$0xf] %vm1598, %v1502
    %1608 = vst.msk [vmem:[#allocation3 + $0x24] sm:$0xf] %vm1598, %v1503
    %1609 = vst.msk [vmem:[#allocation3 + $0x28] sm:$0xf] %vm1598, %v1504
    %1610 = vst.msk [vmem:[#allocation3 + $0x2c] sm:$0xf] %vm1598, %v1505
    %1611 = vst.msk [vmem:[#allocation3 + $0x30] sm:$0xf] %vm1598, %v1506
    %1612 = vst.msk [vmem:[#allocation3 + $0x34] sm:$0xf] %vm1598, %v1507
    %1613 = vst.msk [vmem:[#allocation3 + $0x38] sm:$0xf] %vm1598, %v1508
    %1614 = vst.msk [vmem:[#allocation3 + $0x3c] sm:$0xf] %vm1598, %v1509
    %1615 = vst.msk [vmem:[#allocation3 + $0x40] sm:$0xf] %vm1598, %v1510
    %1616 = vst.msk [vmem:[#allocation3 + $0x44] sm:$0xf] %vm1598, %v1511
    %1617 = vst.msk [vmem:[#allocation3 + $0x48] sm:$0xf] %vm1598, %v1512
    %1618 = vst.msk [vmem:[#allocation3 + $0x4c] sm:$0xf] %vm1598, %v1513
    %1619 = vst.msk [vmem:[#allocation3 + $0x50] sm:$0xf] %vm1598, %v1514
    %1620 = vst.msk [vmem:[#allocation3 + $0x54] sm:$0xf] %vm1598, %v1515
    %1621 = vst.msk [vmem:[#allocation3 + $0x58] sm:$0xf] %vm1598, %v1516
    %1622 = vst.msk [vmem:[#allocation3 + $0x5c] sm:$0xf] %vm1598, %v1517
    %1623 = vst.msk [vmem:[#allocation3 + $0x60] sm:$0xf] %vm1598, %v1518
    %1624 = vst.msk [vmem:[#allocation3 + $0x64] sm:$0xf] %vm1598, %v1519
    %1625 = vst.msk [vmem:[#allocation3 + $0x68] sm:$0xf] %vm1598, %v1520
    %1626 = vst.msk [vmem:[#allocation3 + $0x6c] sm:$0xf] %vm1598, %v1521
    %1627 = vst.msk [vmem:[#allocation3 + $0x70] sm:$0xf] %vm1598, %v1522
    %1628 = vst.msk [vmem:[#allocation3 + $0x74] sm:$0xf] %vm1598, %v1523
    %1629 = vst.msk [vmem:[#allocation3 + $0x78] sm:$0xf] %vm1598, %v1524
    %1630 = vst.msk [vmem:[#allocation3 + $0x7c] sm:$0xf] %vm1598, %v1525
    %1631 = vst.msk [vmem:[#allocation3 + $0x80] sm:$0xf] %vm1598, %v1526
    %1632 = vst.msk [vmem:[#allocation3 + $0x84] sm:$0xf] %vm1598, %v1527
    %1633 = vst.msk [vmem:[#allocation3 + $0x88] sm:$0xf] %vm1598, %v1528
    %1634 = vst.msk [vmem:[#allocation3 + $0x8c] sm:$0xf] %vm1598, %v1529
    %1635 = vst.msk [vmem:[#allocation3 + $0x90] sm:$0xf] %vm1598, %v1530
    %1636 = vst.msk [vmem:[#allocation3 + $0x94] sm:$0xf] %vm1598, %v1531
    %1637 = vst.msk [vmem:[#allocation3 + $0x98] sm:$0xf] %vm1598, %v1532
    %1638 = vst.msk [vmem:[#allocation3 + $0x9c] sm:$0xf] %vm1598, %v1533
    %1639 = vst.msk [vmem:[#allocation3 + $0xa0] sm:$0xf] %vm1598, %v1534
    %1640 = vst.msk [vmem:[#allocation3 + $0xa4] sm:$0xf] %vm1598, %v1535
    %1641 = vst.msk [vmem:[#allocation3 + $0xa8] sm:$0xf] %vm1598, %v1536
    %1642 = vst.msk [vmem:[#allocation3 + $0xac] sm:$0xf] %vm1598, %v1537
    %1643 = vst.msk [vmem:[#allocation3 + $0xb0] sm:$0xf] %vm1598, %v1538
    %1644 = vst.msk [vmem:[#allocation3 + $0xb4] sm:$0xf] %vm1598, %v1539
    %1645 = vst.msk [vmem:[#allocation3 + $0xb8] sm:$0xf] %vm1598, %v1540
    %1646 = vst.msk [vmem:[#allocation3 + $0xbc] sm:$0xf] %vm1598, %v1541
    %1647 = vst.msk [vmem:[#allocation3 + $0xc0] sm:$0xf] %vm1598, %v1542
    %1648 = vst.msk [vmem:[#allocation3 + $0xc4] sm:$0xf] %vm1598, %v1543
    %1649 = vst.msk [vmem:[#allocation3 + $0xc8] sm:$0xf] %vm1598, %v1544
    %1650 = vst.msk [vmem:[#allocation3 + $0xcc] sm:$0xf] %vm1598, %v1545
    %v1651 = vld [vmem:[#allocation3] sm:$0xf]
    %v1652 = vld [vmem:[#allocation3 + $0x4] sm:$0xf]
    %v1653 = vld [vmem:[#allocation3 + $0x8] sm:$0xf]
    %v1654 = vld [vmem:[#allocation3 + $0xc] sm:$0xf]
    %v1655 = vld [vmem:[#allocation3 + $0x10] sm:$0xf]
    %v1656 = vld [vmem:[#allocation3 + $0x14] sm:$0xf]
    %v1657 = vld [vmem:[#allocation3 + $0x18] sm:$0xf]
    %v1658 = vld [vmem:[#allocation3 + $0x1c] sm:$0xf]
    %v1659 = vld [vmem:[#allocation3 + $0x20] sm:$0xf]
    %v1660 = vld [vmem:[#allocation3 + $0x24] sm:$0xf]
    %v1661 = vld [vmem:[#allocation3 + $0x28] sm:$0xf]
    %v1662 = vld [vmem:[#allocation3 + $0x2c] sm:$0xf]
    %v1663 = vld [vmem:[#allocation3 + $0x30] sm:$0xf]
    %v1664 = vld [vmem:[#allocation3 + $0x34] sm:$0xf]
    %v1665 = vld [vmem:[#allocation3 + $0x38] sm:$0xf]
    %v1666 = vld [vmem:[#allocation3 + $0x3c] sm:$0xf]
    %v1667 = vld [vmem:[#allocation3 + $0x40] sm:$0xf]
    %v1668 = vld [vmem:[#allocation3 + $0x44] sm:$0xf]
    %v1669 = vld [vmem:[#allocation3 + $0x48] sm:$0xf]
    %v1670 = vld [vmem:[#allocation3 + $0x4c] sm:$0xf]
    %v1671 = vld [vmem:[#allocation3 + $0x50] sm:$0xf]
    %v1672 = vld [vmem:[#allocation3 + $0x54] sm:$0xf]
    %v1673 = vld [vmem:[#allocation3 + $0x58] sm:$0xf]
    %v1674 = vld [vmem:[#allocation3 + $0x5c] sm:$0xf]
    %v1675 = vld [vmem:[#allocation3 + $0x60] sm:$0xf]
    %v1676 = vld [vmem:[#allocation3 + $0x64] sm:$0xf]
    %v1677 = vld [vmem:[%s2] ss:$2 sm:$0x3]
    %v1679 = vlaneseq
    %v1680 = vshrl.u32 %v1679, 7
    %v1681 = vsub.s32 0, %v1680
    %v1682 = vrot.slane %v1677, %v1681
    %v1683 = vlaneseq
    %v1684 = vshrl.u32 %v1683, 7
    %v1685 = vsub.s32 1, %v1684
    %v1686 = vrot.slane %v1677, %v1685
    %v1715 = vunpack.c.l.b16 %v1651
    %v1716 = vunpack.c.l.b16 %v1652
    %v1717 = vunpack.c.l.b16 %v1653
    %v1718 = vunpack.c.l.b16 %v1654
    %v1719 = vunpack.c.l.b16 %v1655
    %v1720 = vunpack.c.l.b16 %v1656
    %v1721 = vunpack.c.l.b16 %v1657
    %v1722 = vunpack.c.l.b16 %v1658
    %v1723 = vunpack.c.l.b16 %v1659
    %v1724 = vunpack.c.l.b16 %v1660
    %v1725 = vunpack.c.l.b16 %v1661
    %v1726 = vunpack.c.l.b16 %v1662
    %v1727 = vunpack.c.l.b16 %v1663
    %v1728 = vunpack.c.l.b16 %v1664
    %v1729 = vunpack.c.l.b16 %v1665
    %v1730 = vunpack.c.l.b16 %v1666
    %v1731 = vunpack.c.l.b16 %v1667
    %v1732 = vunpack.c.l.b16 %v1668
    %v1733 = vunpack.c.l.b16 %v1669
    %v1734 = vunpack.c.l.b16 %v1670
    %v1735 = vunpack.c.l.b16 %v1671
    %v1736 = vunpack.c.l.b16 %v1672
    %v1737 = vunpack.c.l.b16 %v1673
    %v1738 = vunpack.c.l.b16 %v1674
    %v1739 = vunpack.c.l.b16 %v1675
    %v1740 = vunpack.c.l.b16 %v1676
    %v1741 = vpack.c.b16 %v1716, %v1715
    %v1742 = vpack.c.b16 %v1718, %v1717
    %v1743 = vpack.c.b16 %v1720, %v1719
    %v1744 = vpack.c.b16 %v1722, %v1721
    %v1745 = vpack.c.b16 %v1724, %v1723
    %v1746 = vpack.c.b16 %v1726, %v1725
    %v1747 = vpack.c.b16 %v1728, %v1727
    %v1748 = vpack.c.b16 %v1730, %v1729
    %v1749 = vpack.c.b16 %v1732, %v1731
    %v1750 = vpack.c.b16 %v1734, %v1733
    %v1751 = vpack.c.b16 %v1736, %v1735
    %v1752 = vpack.c.b16 %v1738, %v1737
    %v1753 = vpack.c.b16 %v1740, %v1739
    %1754 = vrot.lane.b32.xlu0 %v1741, 96
    %v1755 = vpop.permute.xlu0 %1754
    %1756 = vrot.lane.b32.xlu0 %v1742, 96
    %v1757 = vpop.permute.xlu0 %1756
    %1758 = vrot.lane.b32.xlu0 %v1743, 96
    %v1759 = vpop.permute.xlu0 %1758
    %1760 = vrot.lane.b32.xlu0 %v1744, 96
    %v1761 = vpop.permute.xlu0 %1760
    %1762 = vrot.lane.b32.xlu0 %v1745, 96
    %v1763 = vpop.permute.xlu0 %1762
    %1764 = vrot.lane.b32.xlu0 %v1746, 96
    %v1765 = vpop.permute.xlu0 %1764
    %1766 = vrot.lane.b32.xlu0 %v1747, 96
    %v1767 = vpop.permute.xlu0 %1766
    %1768 = vrot.lane.b32.xlu0 %v1748, 96
    %v1769 = vpop.permute.xlu0 %1768
    %1770 = vrot.lane.b32.xlu0 %v1749, 96
    %v1771 = vpop.permute.xlu0 %1770
    %1772 = vrot.lane.b32.xlu0 %v1750, 96
    %v1773 = vpop.permute.xlu0 %1772
    %1774 = vrot.lane.b32.xlu0 %v1751, 96
    %v1775 = vpop.permute.xlu0 %1774
    %1776 = vrot.lane.b32.xlu0 %v1752, 96
    %v1777 = vpop.permute.xlu0 %1776
    %1778 = vrot.lane.b32.xlu0 %v1753, 96
    %v1779 = vpop.permute.xlu0 %1778
    %v1781 = vsel %vm728, %v1741, 0
    %v1784 = vsel %vm728, %v1742, 0
    %v1787 = vsel %vm728, %v1743, 0
    %v1790 = vsel %vm728, %v1744, 0
    %v1793 = vsel %vm728, %v1745, 0
    %v1796 = vsel %vm728, %v1746, 0
    %v1799 = vsel %vm728, %v1747, 0
    %v1802 = vsel %vm728, %v1748, 0
    %v1805 = vsel %vm728, %v1749, 0
    %v1808 = vsel %vm728, %v1750, 0
    %v1811 = vsel %vm728, %v1751, 0
    %v1814 = vsel %vm728, %v1752, 0
    %v1817 = vsel %vm728, %v1753, 0
    %v1820 = vsel %vm728, %v1755, 0
    %v1823 = vsel %vm728, %v1757, 0
    %v1826 = vsel %vm728, %v1759, 0
    %v1829 = vsel %vm728, %v1761, 0
    %v1832 = vsel %vm728, %v1763, 0
    %v1835 = vsel %vm728, %v1765, 0
    %v1838 = vsel %vm728, %v1767, 0
    %v1841 = vsel %vm728, %v1769, 0
    %v1844 = vsel %vm728, %v1771, 0
    %v1847 = vsel %vm728, %v1773, 0
    %v1850 = vsel %vm728, %v1775, 0
    %v1853 = vsel %vm728, %v1777, 0
    %v1856 = vsel %vm728, %v1779, 0
    %1858 = vmatprep.subr.bf16.mxu0 0
    %1859 = vmatpush1.bf16.xpose.msra.mxu0 %v1841
    %1860 = vmatprep.subr.bf16.mxu0 0
    %1861 = vmatpush1.bf16.xpose.msra.mxu0 %v1838
    %1862 = vmatprep.subr.bf16.mxu0 0
    %1863 = vmatpush1.bf16.xpose.msra.mxu0 %v1835
    %1864 = vmatprep.subr.bf16.mxu0 0
    %1865 = vmatpush1.bf16.xpose.msra.mxu0 %v1832
    %1866 = vmatprep.subr.bf16.mxu0 0
    %1867 = vmatpush1.bf16.xpose.msra.mxu0 %v1829
    %1868 = vmatprep.subr.bf16.mxu0 0
    %1869 = vmatpush1.bf16.xpose.msra.mxu0 %v1826
    %1870 = vmatprep.subr.bf16.mxu0 0
    %1871 = vmatpush1.bf16.xpose.msra.mxu0 %v1823
    %1872 = vmatprep.subr.bf16.mxu0 0
    %1873 = vmatpush1.bf16.xpose.msra.mxu0 %v1820
    %1874 = vmatprep.subr.bf16.mxu0 0
    %1875 = vmatpush2.bf16.xpose.msra.mxu0 0
    %1876 = vmatprep.subr.bf16.mxu0 0
    %1877 = vmatpush2.bf16.xpose.msra.mxu0 0
    %1878 = vmatprep.subr.bf16.mxu0 0
    %1879 = vmatpush2.bf16.xpose.msra.mxu0 0
    %1880 = vmatprep.subr.bf16.mxu0 0
    %1881 = vmatpush2.bf16.xpose.msra.mxu0 %v1856
    %1882 = vmatprep.subr.bf16.mxu0 0
    %1883 = vmatpush2.bf16.xpose.msra.mxu0 %v1853
    %1884 = vmatprep.subr.bf16.mxu0 0
    %1885 = vmatpush2.bf16.xpose.msra.mxu0 %v1850
    %1886 = vmatprep.subr.bf16.mxu0 0
    %1887 = vmatpush2.bf16.xpose.msra.mxu0 %v1847
    %1888 = vmatprep.subr.bf16.mxu0 0
    %1889 = vmatpush2.bf16.xpose.msra.mxu0 %v1844
    %1890 = vmatprep.mubr.bf16.mxu0 0
    %1891 = vmatmul.mubr.bf16.gmra.mxu0 %v1781
    %v1892 = vpop.f32.mrf.mxu0
    %v1893 = vadd.f32 %v1682, %v1892
    %v1894 = vpop.f32.mrf.mxu0
    %v1895 = vadd.f32 %v1686, %v1894
    %v1896 = vpop.f32.mrf.mxu0
    %v1897 = vadd.f32 %v1682, %v1896
    %v1898 = vpop.f32.mrf.mxu0
    %v1899 = vadd.f32 %v1686, %v1898
    %1900 = vmatprep.mubr.bf16.mxu0 0
    %1901 = vmatmul.mubr.bf16.gmra.mxu0 %v1784
    %v1902 = vpop.f32.mrf.mxu0
    %v1903 = vadd.f32 %v1682, %v1902
    %v1904 = vpop.f32.mrf.mxu0
    %v1905 = vadd.f32 %v1686, %v1904
    %v1906 = vpop.f32.mrf.mxu0
    %v1907 = vadd.f32 %v1682, %v1906
    %v1908 = vpop.f32.mrf.mxu0
    %v1909 = vadd.f32 %v1686, %v1908
    %1910 = vmatprep.mubr.bf16.mxu0 0
    %1911 = vmatmul.mubr.bf16.gmra.mxu0 %v1787
    %v1912 = vpop.f32.mrf.mxu0
    %v1913 = vadd.f32 %v1682, %v1912
    %v1914 = vpop.f32.mrf.mxu0
    %v1915 = vadd.f32 %v1686, %v1914
    %v1916 = vpop.f32.mrf.mxu0
    %v1917 = vadd.f32 %v1682, %v1916
    %v1918 = vpop.f32.mrf.mxu0
    %v1919 = vadd.f32 %v1686, %v1918
    %1920 = vmatprep.mubr.bf16.mxu0 0
    %1921 = vmatmul.mubr.bf16.gmra.mxu0 %v1790
    %v1922 = vpop.f32.mrf.mxu0
    %v1923 = vadd.f32 %v1682, %v1922
    %v1924 = vpop.f32.mrf.mxu0
    %v1925 = vadd.f32 %v1686, %v1924
    %v1926 = vpop.f32.mrf.mxu0
    %v1927 = vadd.f32 %v1682, %v1926
    %v1928 = vpop.f32.mrf.mxu0
    %v1929 = vadd.f32 %v1686, %v1928
    %1930 = vmatprep.mubr.bf16.mxu0 0
    %1931 = vmatmul.mubr.bf16.gmra.mxu0 %v1793
    %v1932 = vpop.f32.mrf.mxu0
    %v1933 = vadd.f32 %v1682, %v1932
    %v1934 = vpop.f32.mrf.mxu0
    %v1935 = vadd.f32 %v1686, %v1934
    %v1936 = vpop.f32.mrf.mxu0
    %v1937 = vadd.f32 %v1682, %v1936
    %v1938 = vpop.f32.mrf.mxu0
    %v1939 = vadd.f32 %v1686, %v1938
    %1940 = vmatprep.mubr.bf16.mxu0 0
    %1941 = vmatmul.mubr.bf16.gmra.mxu0 %v1796
    %v1942 = vpop.f32.mrf.mxu0
    %v1943 = vadd.f32 %v1682, %v1942
    %v1944 = vpop.f32.mrf.mxu0
    %v1945 = vadd.f32 %v1686, %v1944
    %v1946 = vpop.f32.mrf.mxu0
    %v1947 = vadd.f32 %v1682, %v1946
    %v1948 = vpop.f32.mrf.mxu0
    %v1949 = vadd.f32 %v1686, %v1948
    %1950 = vmatprep.mubr.bf16.mxu0 0
    %1951 = vmatmul.mubr.bf16.gmra.mxu0 %v1799
    %v1952 = vpop.f32.mrf.mxu0
    %v1953 = vadd.f32 %v1682, %v1952
    %v1954 = vpop.f32.mrf.mxu0
    %v1955 = vadd.f32 %v1686, %v1954
    %v1956 = vpop.f32.mrf.mxu0
    %v1957 = vadd.f32 %v1682, %v1956
    %v1958 = vpop.f32.mrf.mxu0
    %v1959 = vadd.f32 %v1686, %v1958
    %1960 = vmatprep.mubr.bf16.mxu0 0
    %1961 = vmatmul.mubr.bf16.gmra.mxu0 %v1802
    %v1962 = vpop.f32.mrf.mxu0
    %v1963 = vadd.f32 %v1682, %v1962
    %v1964 = vpop.f32.mrf.mxu0
    %v1965 = vadd.f32 %v1686, %v1964
    %v1966 = vpop.f32.mrf.mxu0
    %v1967 = vadd.f32 %v1682, %v1966
    %v1968 = vpop.f32.mrf.mxu0
    %v1969 = vadd.f32 %v1686, %v1968
    %1970 = vmatprep.mubr.bf16.mxu0 0
    %1971 = vmatmul.mubr.bf16.gmra.mxu0 %v1805
    %v1972 = vpop.f32.mrf.mxu0
    %v1973 = vadd.f32 %v1682, %v1972
    %v1974 = vpop.f32.mrf.mxu0
    %v1975 = vadd.f32 %v1686, %v1974
    %v1976 = vpop.f32.mrf.mxu0
    %v1977 = vadd.f32 %v1682, %v1976
    %v1978 = vpop.f32.mrf.mxu0
    %v1979 = vadd.f32 %v1686, %v1978
    %1980 = vmatprep.mubr.bf16.mxu0 0
    %1981 = vmatmul.mubr.bf16.gmra.mxu0 %v1808
    %v1982 = vpop.f32.mrf.mxu0
    %v1983 = vadd.f32 %v1682, %v1982
    %v1984 = vpop.f32.mrf.mxu0
    %v1985 = vadd.f32 %v1686, %v1984
    %v1986 = vpop.f32.mrf.mxu0
    %v1987 = vadd.f32 %v1682, %v1986
    %v1988 = vpop.f32.mrf.mxu0
    %v1989 = vadd.f32 %v1686, %v1988
    %1990 = vmatprep.mubr.bf16.mxu0 0
    %1991 = vmatmul.mubr.bf16.gmra.mxu0 %v1811
    %v1992 = vpop.f32.mrf.mxu0
    %v1993 = vadd.f32 %v1682, %v1992
    %v1994 = vpop.f32.mrf.mxu0
    %v1995 = vadd.f32 %v1686, %v1994
    %v1996 = vpop.f32.mrf.mxu0
    %v1997 = vadd.f32 %v1682, %v1996
    %v1998 = vpop.f32.mrf.mxu0
    %v1999 = vadd.f32 %v1686, %v1998
    %2000 = vmatprep.mubr.bf16.mxu0 0
    %2001 = vmatmul.mubr.bf16.gmra.mxu0 %v1814
    %v2002 = vpop.f32.mrf.mxu0
    %v2003 = vadd.f32 %v1682, %v2002
    %v2004 = vpop.f32.mrf.mxu0
    %v2005 = vadd.f32 %v1686, %v2004
    %v2006 = vpop.f32.mrf.mxu0
    %v2007 = vadd.f32 %v1682, %v2006
    %v2008 = vpop.f32.mrf.mxu0
    %v2009 = vadd.f32 %v1686, %v2008
    %2010 = vmatprep.mubr.bf16.mxu0 0
    %2011 = vmatmul.mubr.bf16.gmra.mxu0 %v1817
    %v2012 = vpop.f32.mrf.mxu0
    %v2013 = vadd.f32 %v1682, %v2012
    %v2014 = vpop.f32.mrf.mxu0
    %v2015 = vadd.f32 %v1686, %v2014
    %v2016 = vpop.f32.mrf.mxu0
    %v2017 = vadd.f32 %v1682, %v2016
    %v2018 = vpop.f32.mrf.mxu0
    %v2019 = vadd.f32 %v1686, %v2018
    %2020 = vdwg.mxu0
    %vm2021 = vcmask 654336
    %v2022 = vsel %vm2021, %v1895, -inf
    %v2023 = vmax.f32 %v1893, %v2022
    %2024 = vmax.xlane.f32.xlu0 %v2023
    %v2025 = vpop.xlane.xlu0 %2024
    %v2026 = vsel %vm2021, %v1899, -inf
    %v2027 = vmax.f32 %v1897, %v2026
    %2028 = vmax.xlane.f32.xlu0 %v2027
    %v2029 = vpop.xlane.xlu0 %2028
    %v2030 = vsel %vm2021, %v1905, -inf
    %v2031 = vmax.f32 %v1903, %v2030
    %2032 = vmax.xlane.f32.xlu0 %v2031
    %v2033 = vpop.xlane.xlu0 %2032
    %v2034 = vsel %vm2021, %v1909, -inf
    %v2035 = vmax.f32 %v1907, %v2034
    %2036 = vmax.xlane.f32.xlu0 %v2035
    %v2037 = vpop.xlane.xlu0 %2036
    %v2038 = vsel %vm2021, %v1915, -inf
    %v2039 = vmax.f32 %v1913, %v2038
    %2040 = vmax.xlane.f32.xlu0 %v2039
    %v2041 = vpop.xlane.xlu0 %2040
    %v2042 = vsel %vm2021, %v1919, -inf
    %v2043 = vmax.f32 %v1917, %v2042
    %2044 = vmax.xlane.f32.xlu0 %v2043
    %v2045 = vpop.xlane.xlu0 %2044
    %v2046 = vsel %vm2021, %v1925, -inf
    %v2047 = vmax.f32 %v1923, %v2046
    %2048 = vmax.xlane.f32.xlu0 %v2047
    %v2049 = vpop.xlane.xlu0 %2048
    %v2050 = vsel %vm2021, %v1929, -inf
    %v2051 = vmax.f32 %v1927, %v2050
    %2052 = vmax.xlane.f32.xlu0 %v2051
    %v2053 = vpop.xlane.xlu0 %2052
    %v2054 = vsel %vm2021, %v1935, -inf
    %v2055 = vmax.f32 %v1933, %v2054
    %2056 = vmax.xlane.f32.xlu0 %v2055
    %v2057 = vpop.xlane.xlu0 %2056
    %v2058 = vsel %vm2021, %v1939, -inf
    %v2059 = vmax.f32 %v1937, %v2058
    %2060 = vmax.xlane.f32.xlu0 %v2059
    %v2061 = vpop.xlane.xlu0 %2060
    %v2062 = vsel %vm2021, %v1945, -inf
    %v2063 = vmax.f32 %v1943, %v2062
    %2064 = vmax.xlane.f32.xlu0 %v2063
    %v2065 = vpop.xlane.xlu0 %2064
    %v2066 = vsel %vm2021, %v1949, -inf
    %v2067 = vmax.f32 %v1947, %v2066
    %2068 = vmax.xlane.f32.xlu0 %v2067
    %v2069 = vpop.xlane.xlu0 %2068
    %v2070 = vsel %vm2021, %v1955, -inf
    %v2071 = vmax.f32 %v1953, %v2070
    %2072 = vmax.xlane.f32.xlu0 %v2071
    %v2073 = vpop.xlane.xlu0 %2072
    %v2074 = vsel %vm2021, %v1959, -inf
    %v2075 = vmax.f32 %v1957, %v2074
    %2076 = vmax.xlane.f32.xlu0 %v2075
    %v2077 = vpop.xlane.xlu0 %2076
    %v2078 = vsel %vm2021, %v1965, -inf
    %v2079 = vmax.f32 %v1963, %v2078
    %2080 = vmax.xlane.f32.xlu0 %v2079
    %v2081 = vpop.xlane.xlu0 %2080
    %v2082 = vsel %vm2021, %v1969, -inf
    %v2083 = vmax.f32 %v1967, %v2082
    %2084 = vmax.xlane.f32.xlu0 %v2083
    %v2085 = vpop.xlane.xlu0 %2084
    %v2086 = vsel %vm2021, %v1975, -inf
    %v2087 = vmax.f32 %v1973, %v2086
    %2088 = vmax.xlane.f32.xlu0 %v2087
    %v2089 = vpop.xlane.xlu0 %2088
    %v2090 = vsel %vm2021, %v1979, -inf
    %v2091 = vmax.f32 %v1977, %v2090
    %2092 = vmax.xlane.f32.xlu0 %v2091
    %v2093 = vpop.xlane.xlu0 %2092
    %v2094 = vsel %vm2021, %v1985, -inf
    %v2095 = vmax.f32 %v1983, %v2094
    %2096 = vmax.xlane.f32.xlu0 %v2095
    %v2097 = vpop.xlane.xlu0 %2096
    %v2098 = vsel %vm2021, %v1989, -inf
    %v2099 = vmax.f32 %v1987, %v2098
    %2100 = vmax.xlane.f32.xlu0 %v2099
    %v2101 = vpop.xlane.xlu0 %2100
    %v2102 = vsel %vm2021, %v1995, -inf
    %v2103 = vmax.f32 %v1993, %v2102
    %2104 = vmax.xlane.f32.xlu0 %v2103
    %v2105 = vpop.xlane.xlu0 %2104
    %v2106 = vsel %vm2021, %v1999, -inf
    %v2107 = vmax.f32 %v1997, %v2106
    %2108 = vmax.xlane.f32.xlu0 %v2107
    %v2109 = vpop.xlane.xlu0 %2108
    %v2110 = vsel %vm2021, %v2005, -inf
    %v2111 = vmax.f32 %v2003, %v2110
    %2112 = vmax.xlane.f32.xlu0 %v2111
    %v2113 = vpop.xlane.xlu0 %2112
    %v2114 = vsel %vm2021, %v2009, -inf
    %v2115 = vmax.f32 %v2007, %v2114
    %2116 = vmax.xlane.f32.xlu0 %v2115
    %v2117 = vpop.xlane.xlu0 %2116
    %v2118 = vsel %vm2021, %v2015, -inf
    %v2119 = vmax.f32 %v2013, %v2118
    %2120 = vmax.xlane.f32.xlu0 %v2119
    %v2121 = vpop.xlane.xlu0 %2120
    %v2122 = vsel %vm2021, %v2019, -inf
    %v2123 = vmax.f32 %v2017, %v2122
    %2124 = vmax.xlane.f32.xlu0 %v2123
    %v2125 = vpop.xlane.xlu0 %2124
    %v2126 = vsub.f32 %v1893, %v2025
    %v2127 = vsub.f32 %v1895, %v2025
    %v2128 = vsub.f32 %v1897, %v2029
    %v2129 = vsub.f32 %v1899, %v2029
    %v2130 = vsub.f32 %v1903, %v2033
    %v2131 = vsub.f32 %v1905, %v2033
    %v2132 = vsub.f32 %v1907, %v2037
    %v2133 = vsub.f32 %v1909, %v2037
    %v2134 = vsub.f32 %v1913, %v2041
    %v2135 = vsub.f32 %v1915, %v2041
    %v2136 = vsub.f32 %v1917, %v2045
    %v2137 = vsub.f32 %v1919, %v2045
    %v2138 = vsub.f32 %v1923, %v2049
    %v2139 = vsub.f32 %v1925, %v2049
    %v2140 = vsub.f32 %v1927, %v2053
    %v2141 = vsub.f32 %v1929, %v2053
    %v2142 = vsub.f32 %v1933, %v2057
    %v2143 = vsub.f32 %v1935, %v2057
    %v2144 = vsub.f32 %v1937, %v2061
    %v2145 = vsub.f32 %v1939, %v2061
    %v2146 = vsub.f32 %v1943, %v2065
    %v2147 = vsub.f32 %v1945, %v2065
    %v2148 = vsub.f32 %v1947, %v2069
    %v2149 = vsub.f32 %v1949, %v2069
    %v2150 = vsub.f32 %v1953, %v2073
    %v2151 = vsub.f32 %v1955, %v2073
    %v2152 = vsub.f32 %v1957, %v2077
    %v2153 = vsub.f32 %v1959, %v2077
    %v2154 = vsub.f32 %v1963, %v2081
    %v2155 = vsub.f32 %v1965, %v2081
    %v2156 = vsub.f32 %v1967, %v2085
    %v2157 = vsub.f32 %v1969, %v2085
    %v2158 = vsub.f32 %v1973, %v2089
    %v2159 = vsub.f32 %v1975, %v2089
    %v2160 = vsub.f32 %v1977, %v2093
    %v2161 = vsub.f32 %v1979, %v2093
    %v2162 = vsub.f32 %v1983, %v2097
    %v2163 = vsub.f32 %v1985, %v2097
    %v2164 = vsub.f32 %v1987, %v2101
    %v2165 = vsub.f32 %v1989, %v2101
    %v2166 = vsub.f32 %v1993, %v2105
    %v2167 = vsub.f32 %v1995, %v2105
    %v2168 = vsub.f32 %v1997, %v2109
    %v2169 = vsub.f32 %v1999, %v2109
    %v2170 = vsub.f32 %v2003, %v2113
    %v2171 = vsub.f32 %v2005, %v2113
    %v2172 = vsub.f32 %v2007, %v2117
    %v2173 = vsub.f32 %v2009, %v2117
    %v2174 = vsub.f32 %v2013, %v2121
    %v2175 = vsub.f32 %v2015, %v2121
    %v2176 = vsub.f32 %v2017, %v2125
    %v2177 = vsub.f32 %v2019, %v2125
    %v2178 = vmul.f32 %v2126, 1.442695
    %v2179 = vpow.pop %v2178
    %v2180 = vmul.f32 %v2127, 1.442695
    %v2181 = vpow.pop %v2180
    %v2182 = vmul.f32 %v2128, 1.442695
    %v2183 = vpow.pop %v2182
    %v2184 = vmul.f32 %v2129, 1.442695
    %v2185 = vpow.pop %v2184
    %v2186 = vmul.f32 %v2130, 1.442695
    %v2187 = vpow.pop %v2186
    %v2188 = vmul.f32 %v2131, 1.442695
    %v2189 = vpow.pop %v2188
    %v2190 = vmul.f32 %v2132, 1.442695
    %v2191 = vpow.pop %v2190
    %v2192 = vmul.f32 %v2133, 1.442695
    %v2193 = vpow.pop %v2192
    %v2194 = vmul.f32 %v2134, 1.442695
    %v2195 = vpow.pop %v2194
    %v2196 = vmul.f32 %v2135, 1.442695
    %v2197 = vpow.pop %v2196
    %v2198 = vmul.f32 %v2136, 1.442695
    %v2199 = vpow.pop %v2198
    %v2200 = vmul.f32 %v2137, 1.442695
    %v2201 = vpow.pop %v2200
    %v2202 = vmul.f32 %v2138, 1.442695
    %v2203 = vpow.pop %v2202
    %v2204 = vmul.f32 %v2139, 1.442695
    %v2205 = vpow.pop %v2204
    %v2206 = vmul.f32 %v2140, 1.442695
    %v2207 = vpow.pop %v2206
    %v2208 = vmul.f32 %v2141, 1.442695
    %v2209 = vpow.pop %v2208
    %v2210 = vmul.f32 %v2142, 1.442695
    %v2211 = vpow.pop %v2210
    %v2212 = vmul.f32 %v2143, 1.442695
    %v2213 = vpow.pop %v2212
    %v2214 = vmul.f32 %v2144, 1.442695
    %v2215 = vpow.pop %v2214
    %v2216 = vmul.f32 %v2145, 1.442695
    %v2217 = vpow.pop %v2216
    %v2218 = vmul.f32 %v2146, 1.442695
    %v2219 = vpow.pop %v2218
    %v2220 = vmul.f32 %v2147, 1.442695
    %v2221 = vpow.pop %v2220
    %v2222 = vmul.f32 %v2148, 1.442695
    %v2223 = vpow.pop %v2222
    %v2224 = vmul.f32 %v2149, 1.442695
    %v2225 = vpow.pop %v2224
    %v2226 = vmul.f32 %v2150, 1.442695
    %v2227 = vpow.pop %v2226
    %v2228 = vmul.f32 %v2151, 1.442695
    %v2229 = vpow.pop %v2228
    %v2230 = vmul.f32 %v2152, 1.442695
    %v2231 = vpow.pop %v2230
    %v2232 = vmul.f32 %v2153, 1.442695
    %v2233 = vpow.pop %v2232
    %v2234 = vmul.f32 %v2154, 1.442695
    %v2235 = vpow.pop %v2234
    %v2236 = vmul.f32 %v2155, 1.442695
    %v2237 = vpow.pop %v2236
    %v2238 = vmul.f32 %v2156, 1.442695
    %v2239 = vpow.pop %v2238
    %v2240 = vmul.f32 %v2157, 1.442695
    %v2241 = vpow.pop %v2240
    %v2242 = vmul.f32 %v2158, 1.442695
    %v2243 = vpow.pop %v2242
    %v2244 = vmul.f32 %v2159, 1.442695
    %v2245 = vpow.pop %v2244
    %v2246 = vmul.f32 %v2160, 1.442695
    %v2247 = vpow.pop %v2246
    %v2248 = vmul.f32 %v2161, 1.442695
    %v2249 = vpow.pop %v2248
    %v2250 = vmul.f32 %v2162, 1.442695
    %v2251 = vpow.pop %v2250
    %v2252 = vmul.f32 %v2163, 1.442695
    %v2253 = vpow.pop %v2252
    %v2254 = vmul.f32 %v2164, 1.442695
    %v2255 = vpow.pop %v2254
    %v2256 = vmul.f32 %v2165, 1.442695
    %v2257 = vpow.pop %v2256
    %v2258 = vmul.f32 %v2166, 1.442695
    %v2259 = vpow.pop %v2258
    %v2260 = vmul.f32 %v2167, 1.442695
    %v2261 = vpow.pop %v2260
    %v2262 = vmul.f32 %v2168, 1.442695
    %v2263 = vpow.pop %v2262
    %v2264 = vmul.f32 %v2169, 1.442695
    %v2265 = vpow.pop %v2264
    %v2266 = vmul.f32 %v2170, 1.442695
    %v2267 = vpow.pop %v2266
    %v2268 = vmul.f32 %v2171, 1.442695
    %v2269 = vpow.pop %v2268
    %v2270 = vmul.f32 %v2172, 1.442695
    %v2271 = vpow.pop %v2270
    %v2272 = vmul.f32 %v2173, 1.442695
    %v2273 = vpow.pop %v2272
    %v2274 = vmul.f32 %v2174, 1.442695
    %v2275 = vpow.pop %v2274
    %v2276 = vmul.f32 %v2175, 1.442695
    %v2277 = vpow.pop %v2276
    %v2278 = vmul.f32 %v2176, 1.442695
    %v2279 = vpow.pop %v2278
    %v2280 = vmul.f32 %v2177, 1.442695
    %v2281 = vpow.pop %v2280
    %v2282 = vsel %vm2021, %v2181, 0.0
    %v2283 = vadd.f32 %v2179, %v2282
    %2284 = vadd.xlane.f32.xlu0 %v2283
    %v2285 = vpop.xlane.xlu0 %2284
    %v2286 = vsel %vm2021, %v2185, 0.0
    %v2287 = vadd.f32 %v2183, %v2286
    %2288 = vadd.xlane.f32.xlu0 %v2287
    %v2289 = vpop.xlane.xlu0 %2288
    %v2290 = vsel %vm2021, %v2189, 0.0
    %v2291 = vadd.f32 %v2187, %v2290
    %2292 = vadd.xlane.f32.xlu0 %v2291
    %v2293 = vpop.xlane.xlu0 %2292
    %v2294 = vsel %vm2021, %v2193, 0.0
    %v2295 = vadd.f32 %v2191, %v2294
    %2296 = vadd.xlane.f32.xlu0 %v2295
    %v2297 = vpop.xlane.xlu0 %2296
    %v2298 = vsel %vm2021, %v2197, 0.0
    %v2299 = vadd.f32 %v2195, %v2298
    %2300 = vadd.xlane.f32.xlu0 %v2299
    %v2301 = vpop.xlane.xlu0 %2300
    %v2302 = vsel %vm2021, %v2201, 0.0
    %v2303 = vadd.f32 %v2199, %v2302
    %2304 = vadd.xlane.f32.xlu0 %v2303
    %v2305 = vpop.xlane.xlu0 %2304
    %v2306 = vsel %vm2021, %v2205, 0.0
    %v2307 = vadd.f32 %v2203, %v2306
    %2308 = vadd.xlane.f32.xlu0 %v2307
    %v2309 = vpop.xlane.xlu0 %2308
    %v2310 = vsel %vm2021, %v2209, 0.0
    %v2311 = vadd.f32 %v2207, %v2310
    %2312 = vadd.xlane.f32.xlu0 %v2311
    %v2313 = vpop.xlane.xlu0 %2312
    %v2314 = vsel %vm2021, %v2213, 0.0
    %v2315 = vadd.f32 %v2211, %v2314
    %2316 = vadd.xlane.f32.xlu0 %v2315
    %v2317 = vpop.xlane.xlu0 %2316
    %v2318 = vsel %vm2021, %v2217, 0.0
    %v2319 = vadd.f32 %v2215, %v2318
    %2320 = vadd.xlane.f32.xlu0 %v2319
    %v2321 = vpop.xlane.xlu0 %2320
    %v2322 = vsel %vm2021, %v2221, 0.0
    %v2323 = vadd.f32 %v2219, %v2322
    %2324 = vadd.xlane.f32.xlu0 %v2323
    %v2325 = vpop.xlane.xlu0 %2324
    %v2326 = vsel %vm2021, %v2225, 0.0
    %v2327 = vadd.f32 %v2223, %v2326
    %2328 = vadd.xlane.f32.xlu0 %v2327
    %v2329 = vpop.xlane.xlu0 %2328
    %v2330 = vsel %vm2021, %v2229, 0.0
    %v2331 = vadd.f32 %v2227, %v2330
    %2332 = vadd.xlane.f32.xlu0 %v2331
    %v2333 = vpop.xlane.xlu0 %2332
    %v2334 = vsel %vm2021, %v2233, 0.0
    %v2335 = vadd.f32 %v2231, %v2334
    %2336 = vadd.xlane.f32.xlu0 %v2335
    %v2337 = vpop.xlane.xlu0 %2336
    %v2338 = vsel %vm2021, %v2237, 0.0
    %v2339 = vadd.f32 %v2235, %v2338
    %2340 = vadd.xlane.f32.xlu0 %v2339
    %v2341 = vpop.xlane.xlu0 %2340
    %v2342 = vsel %vm2021, %v2241, 0.0
    %v2343 = vadd.f32 %v2239, %v2342
    %2344 = vadd.xlane.f32.xlu0 %v2343
    %v2345 = vpop.xlane.xlu0 %2344
    %v2346 = vsel %vm2021, %v2245, 0.0
    %v2347 = vadd.f32 %v2243, %v2346
    %2348 = vadd.xlane.f32.xlu0 %v2347
    %v2349 = vpop.xlane.xlu0 %2348
    %v2350 = vsel %vm2021, %v2249, 0.0
    %v2351 = vadd.f32 %v2247, %v2350
    %2352 = vadd.xlane.f32.xlu0 %v2351
    %v2353 = vpop.xlane.xlu0 %2352
    %v2354 = vsel %vm2021, %v2253, 0.0
    %v2355 = vadd.f32 %v2251, %v2354
    %2356 = vadd.xlane.f32.xlu0 %v2355
    %v2357 = vpop.xlane.xlu0 %2356
    %v2358 = vsel %vm2021, %v2257, 0.0
    %v2359 = vadd.f32 %v2255, %v2358
    %2360 = vadd.xlane.f32.xlu0 %v2359
    %v2361 = vpop.xlane.xlu0 %2360
    %v2362 = vsel %vm2021, %v2261, 0.0
    %v2363 = vadd.f32 %v2259, %v2362
    %2364 = vadd.xlane.f32.xlu0 %v2363
    %v2365 = vpop.xlane.xlu0 %2364
    %v2366 = vsel %vm2021, %v2265, 0.0
    %v2367 = vadd.f32 %v2263, %v2366
    %2368 = vadd.xlane.f32.xlu0 %v2367
    %v2369 = vpop.xlane.xlu0 %2368
    %v2370 = vsel %vm2021, %v2269, 0.0
    %v2371 = vadd.f32 %v2267, %v2370
    %2372 = vadd.xlane.f32.xlu0 %v2371
    %v2373 = vpop.xlane.xlu0 %2372
    %v2374 = vsel %vm2021, %v2273, 0.0
    %v2375 = vadd.f32 %v2271, %v2374
    %2376 = vadd.xlane.f32.xlu0 %v2375
    %v2377 = vpop.xlane.xlu0 %2376
    %v2378 = vsel %vm2021, %v2277, 0.0
    %v2379 = vadd.f32 %v2275, %v2378
    %2380 = vadd.xlane.f32.xlu0 %v2379
    %v2381 = vpop.xlane.xlu0 %2380
    %v2382 = vsel %vm2021, %v2281, 0.0
    %v2383 = vadd.f32 %v2279, %v2382
    %2384 = vadd.xlane.f32.xlu0 %v2383
    %v2385 = vpop.xlane.xlu0 %2384
    %v2386 = vrcp.pop %v2285
    %v2387 = vrcp.pop %v2289
    %v2388 = vrcp.pop %v2293
    %v2389 = vrcp.pop %v2297
    %v2390 = vrcp.pop %v2301
    %v2391 = vrcp.pop %v2305
    %v2392 = vrcp.pop %v2309
    %v2393 = vrcp.pop %v2313
    %v2394 = vrcp.pop %v2317
    %v2395 = vrcp.pop %v2321
    %v2396 = vrcp.pop %v2325
    %v2397 = vrcp.pop %v2329
    %v2398 = vrcp.pop %v2333
    %v2399 = vrcp.pop %v2337
    %v2400 = vrcp.pop %v2341
    %v2401 = vrcp.pop %v2345
    %v2402 = vrcp.pop %v2349
    %v2403 = vrcp.pop %v2353
    %v2404 = vrcp.pop %v2357
    %v2405 = vrcp.pop %v2361
    %v2406 = vrcp.pop %v2365
    %v2407 = vrcp.pop %v2369
    %v2408 = vrcp.pop %v2373
    %v2409 = vrcp.pop %v2377
    %v2410 = vrcp.pop %v2381
    %v2411 = vrcp.pop %v2385
    %v2412 = vmul.f32 %v2179, %v2386
    %v2413 = vmul.f32 %v2181, %v2386
    %v2414 = vmul.f32 %v2183, %v2387
    %v2415 = vmul.f32 %v2185, %v2387
    %v2416 = vmul.f32 %v2187, %v2388
    %v2417 = vmul.f32 %v2189, %v2388
    %v2418 = vmul.f32 %v2191, %v2389
    %v2419 = vmul.f32 %v2193, %v2389
    %v2420 = vmul.f32 %v2195, %v2390
    %v2421 = vmul.f32 %v2197, %v2390
    %v2422 = vmul.f32 %v2199, %v2391
    %v2423 = vmul.f32 %v2201, %v2391
    %v2424 = vmul.f32 %v2203, %v2392
    %v2425 = vmul.f32 %v2205, %v2392
    %v2426 = vmul.f32 %v2207, %v2393
    %v2427 = vmul.f32 %v2209, %v2393
    %v2428 = vmul.f32 %v2211, %v2394
    %v2429 = vmul.f32 %v2213, %v2394
    %v2430 = vmul.f32 %v2215, %v2395
    %v2431 = vmul.f32 %v2217, %v2395
    %v2432 = vmul.f32 %v2219, %v2396
    %v2433 = vmul.f32 %v2221, %v2396
    %v2434 = vmul.f32 %v2223, %v2397
    %v2435 = vmul.f32 %v2225, %v2397
    %v2436 = vmul.f32 %v2227, %v2398
    %v2437 = vmul.f32 %v2229, %v2398
    %v2438 = vmul.f32 %v2231, %v2399
    %v2439 = vmul.f32 %v2233, %v2399
    %v2440 = vmul.f32 %v2235, %v2400
    %v2441 = vmul.f32 %v2237, %v2400
    %v2442 = vmul.f32 %v2239, %v2401
    %v2443 = vmul.f32 %v2241, %v2401
    %v2444 = vmul.f32 %v2243, %v2402
    %v2445 = vmul.f32 %v2245, %v2402
    %v2446 = vmul.f32 %v2247, %v2403
    %v2447 = vmul.f32 %v2249, %v2403
    %v2448 = vmul.f32 %v2251, %v2404
    %v2449 = vmul.f32 %v2253, %v2404
    %v2450 = vmul.f32 %v2255, %v2405
    %v2451 = vmul.f32 %v2257, %v2405
    %v2452 = vmul.f32 %v2259, %v2406
    %v2453 = vmul.f32 %v2261, %v2406
    %v2454 = vmul.f32 %v2263, %v2407
    %v2455 = vmul.f32 %v2265, %v2407
    %v2456 = vmul.f32 %v2267, %v2408
    %v2457 = vmul.f32 %v2269, %v2408
    %v2458 = vmul.f32 %v2271, %v2409
    %v2459 = vmul.f32 %v2273, %v2409
    %v2460 = vmul.f32 %v2275, %v2410
    %v2461 = vmul.f32 %v2277, %v2410
    %v2462 = vmul.f32 %v2279, %v2411
    %v2463 = vmul.f32 %v2281, %v2411
    %v2464 = vpack.c.bf16 %v2414, %v2412
    %v2465 = vpack.c.bf16 %v2415, %v2413
    %v2466 = vpack.c.bf16 %v2418, %v2416
    %v2467 = vpack.c.bf16 %v2419, %v2417
    %v2468 = vpack.c.bf16 %v2422, %v2420
    %v2469 = vpack.c.bf16 %v2423, %v2421
    %v2470 = vpack.c.bf16 %v2426, %v2424
    %v2471 = vpack.c.bf16 %v2427, %v2425
    %v2472 = vpack.c.bf16 %v2430, %v2428
    %v2473 = vpack.c.bf16 %v2431, %v2429
    %v2474 = vpack.c.bf16 %v2434, %v2432
    %v2475 = vpack.c.bf16 %v2435, %v2433
    %v2476 = vpack.c.bf16 %v2438, %v2436
    %v2477 = vpack.c.bf16 %v2439, %v2437
    %v2478 = vpack.c.bf16 %v2442, %v2440
    %v2479 = vpack.c.bf16 %v2443, %v2441
    %v2480 = vpack.c.bf16 %v2446, %v2444
    %v2481 = vpack.c.bf16 %v2447, %v2445
    %v2482 = vpack.c.bf16 %v2450, %v2448
    %v2483 = vpack.c.bf16 %v2451, %v2449
    %v2484 = vpack.c.bf16 %v2454, %v2452
    %v2485 = vpack.c.bf16 %v2455, %v2453
    %v2486 = vpack.c.bf16 %v2458, %v2456
    %v2487 = vpack.c.bf16 %v2459, %v2457
    %v2488 = vpack.c.bf16 %v2462, %v2460
    %v2489 = vpack.c.bf16 %v2463, %v2461
    %v2490 = vld [vmem:[#allocation2] sm:$0xff]
    %v2491 = vld [vmem:[#allocation2 + $0x8] sm:$0xff]
    %v2492 = vld [vmem:[#allocation2 + $0x10] sm:$0xff]
    %v2493 = vld [vmem:[#allocation2 + $0x18] sm:$0xff]
    %v2494 = vld [vmem:[#allocation2 + $0x20] sm:$0xff]
    %v2495 = vld [vmem:[#allocation2 + $0x28] sm:$0xff]
    %v2496 = vld [vmem:[#allocation2 + $0x30] sm:$0xff]
    %v2497 = vld [vmem:[#allocation2 + $0x38] sm:$0xff]
    %v2498 = vld [vmem:[#allocation2 + $0x40] sm:$0xff]
    %v2499 = vld [vmem:[#allocation2 + $0x48] sm:$0xff]
    %v2500 = vld [vmem:[#allocation2 + $0x50] sm:$0xff]
    %v2501 = vld [vmem:[#allocation2 + $0x58] sm:$0xff]
    %v2502 = vld [vmem:[#allocation2 + $0x60] sm:$0xff]
    %v2503 = vld [vmem:[#allocation2 + $0x68] sm:$0xff]
    %v2504 = vld [vmem:[#allocation2 + $0x70] sm:$0xff]
    %v2505 = vld [vmem:[#allocation2 + $0x78] sm:$0xff]
    %v2506 = vld [vmem:[#allocation2 + $0x80] sm:$0xff]
    %v2507 = vld [vmem:[#allocation2 + $0x88] sm:$0xff]
    %v2508 = vld [vmem:[#allocation2 + $0x90] sm:$0xff]
    %v2509 = vld [vmem:[#allocation2 + $0x98] sm:$0xff]
    %v2510 = vld [vmem:[#allocation2 + $0xa0] sm:$0xff]
    %v2511 = vld [vmem:[#allocation2 + $0xa8] sm:$0xff]
    %v2512 = vld [vmem:[#allocation2 + $0xb0] sm:$0xff]
    %v2513 = vld [vmem:[#allocation2 + $0xb8] sm:$0xff]
    %v2514 = vld [vmem:[#allocation2 + $0xc0] sm:$0xff]
    %v2515 = vld [vmem:[#allocation2 + $0xc8] sm:$0xff]
    %2516 = vrot.lane.b32.xlu0 %v1741, 64
    %v2517 = vpop.permute.xlu0 %2516
    %2518 = vrot.lane.b32.xlu0 %v1742, 64
    %v2519 = vpop.permute.xlu0 %2518
    %2520 = vrot.lane.b32.xlu0 %v1743, 64
    %v2521 = vpop.permute.xlu0 %2520
    %2522 = vrot.lane.b32.xlu0 %v1744, 64
    %v2523 = vpop.permute.xlu0 %2522
    %2524 = vrot.lane.b32.xlu0 %v1745, 64
    %v2525 = vpop.permute.xlu0 %2524
    %2526 = vrot.lane.b32.xlu0 %v1746, 64
    %v2527 = vpop.permute.xlu0 %2526
    %2528 = vrot.lane.b32.xlu0 %v1747, 64
    %v2529 = vpop.permute.xlu0 %2528
    %2530 = vrot.lane.b32.xlu0 %v1748, 64
    %v2531 = vpop.permute.xlu0 %2530
    %2532 = vrot.lane.b32.xlu0 %v1749, 64
    %v2533 = vpop.permute.xlu0 %2532
    %2534 = vrot.lane.b32.xlu0 %v1750, 64
    %v2535 = vpop.permute.xlu0 %2534
    %2536 = vrot.lane.b32.xlu0 %v1751, 64
    %v2537 = vpop.permute.xlu0 %2536
    %2538 = vrot.lane.b32.xlu0 %v1752, 64
    %v2539 = vpop.permute.xlu0 %2538
    %2540 = vrot.lane.b32.xlu0 %v1753, 64
    %v2541 = vpop.permute.xlu0 %2540
    %v2556 = vsel %vm2021, %v2465, 0
    %v2559 = vsel %vm2021, %v2467, 0
    %v2562 = vsel %vm2021, %v2469, 0
    %v2565 = vsel %vm2021, %v2471, 0
    %v2568 = vsel %vm2021, %v2473, 0
    %v2571 = vsel %vm2021, %v2475, 0
    %v2574 = vsel %vm2021, %v2477, 0
    %v2577 = vsel %vm2021, %v2479, 0
    %v2580 = vsel %vm2021, %v2481, 0
    %v2583 = vsel %vm2021, %v2483, 0
    %v2586 = vsel %vm2021, %v2485, 0
    %v2589 = vsel %vm2021, %v2487, 0
    %v2592 = vsel %vm2021, %v2489, 0
    %2594 = vmatprep.subr.bf16.mxu0 0
    %2595 = vmatpush1.bf16.msra.mxu0 %v2531
    %2596 = vmatprep.subr.bf16.mxu0 0
    %2597 = vmatpush1.bf16.msra.mxu0 %v2529
    %2598 = vmatprep.subr.bf16.mxu0 0
    %2599 = vmatpush1.bf16.msra.mxu0 %v2527
    %2600 = vmatprep.subr.bf16.mxu0 0
    %2601 = vmatpush1.bf16.msra.mxu0 %v2525
    %2602 = vmatprep.subr.bf16.mxu0 0
    %2603 = vmatpush1.bf16.msra.mxu0 %v2523
    %2604 = vmatprep.subr.bf16.mxu0 0
    %2605 = vmatpush1.bf16.msra.mxu0 %v2521
    %2606 = vmatprep.subr.bf16.mxu0 0
    %2607 = vmatpush1.bf16.msra.mxu0 %v2519
    %2608 = vmatprep.subr.bf16.mxu0 0
    %2609 = vmatpush1.bf16.msra.mxu0 %v2517
    %2610 = vmatprep.subr.bf16.mxu0 0
    %2611 = vmatpush2.bf16.msra.mxu0 0
    %2612 = vmatprep.subr.bf16.mxu0 0
    %2613 = vmatpush2.bf16.msra.mxu0 0
    %2614 = vmatprep.subr.bf16.mxu0 0
    %2615 = vmatpush2.bf16.msra.mxu0 0
    %2616 = vmatprep.subr.bf16.mxu0 0
    %2617 = vmatpush2.bf16.msra.mxu0 %v2541
    %2618 = vmatprep.subr.bf16.mxu0 0
    %2619 = vmatpush2.bf16.msra.mxu0 %v2539
    %2620 = vmatprep.subr.bf16.mxu0 0
    %2621 = vmatpush2.bf16.msra.mxu0 %v2537
    %2622 = vmatprep.subr.bf16.mxu0 0
    %2623 = vmatpush2.bf16.msra.mxu0 %v2535
    %2624 = vmatprep.subr.bf16.mxu0 0
    %2625 = vmatpush2.bf16.msra.mxu0 %v2533
    %2626 = vmatprep.mubr.bf16.mxu0 %v2556
    %2627 = vmatmul.mubr.bf16.gmra.mxu0 %v2464
    %v2628 = vpop.f32.mrf.mxu0
    %v2629 = vadd.f32 %v2490, %v2628
    %v2630 = vpop.f32.mrf.mxu0
    %v2631 = vpop.f32.mrf.mxu0
    %v2632 = vadd.f32 %v2491, %v2631
    %v2633 = vpop.f32.mrf.mxu0
    %2634 = vmatprep.mubr.bf16.mxu0 %v2559
    %2635 = vmatmul.mubr.bf16.gmra.mxu0 %v2466
    %v2636 = vpop.f32.mrf.mxu0
    %v2637 = vadd.f32 %v2492, %v2636
    %v2638 = vpop.f32.mrf.mxu0
    %v2639 = vpop.f32.mrf.mxu0
    %v2640 = vadd.f32 %v2493, %v2639
    %v2641 = vpop.f32.mrf.mxu0
    %2642 = vmatprep.mubr.bf16.mxu0 %v2562
    %2643 = vmatmul.mubr.bf16.gmra.mxu0 %v2468
    %v2644 = vpop.f32.mrf.mxu0
    %v2645 = vadd.f32 %v2494, %v2644
    %v2646 = vpop.f32.mrf.mxu0
    %v2647 = vpop.f32.mrf.mxu0
    %v2648 = vadd.f32 %v2495, %v2647
    %v2649 = vpop.f32.mrf.mxu0
    %2650 = vmatprep.mubr.bf16.mxu0 %v2565
    %2651 = vmatmul.mubr.bf16.gmra.mxu0 %v2470
    %v2652 = vpop.f32.mrf.mxu0
    %v2653 = vadd.f32 %v2496, %v2652
    %v2654 = vpop.f32.mrf.mxu0
    %v2655 = vpop.f32.mrf.mxu0
    %v2656 = vadd.f32 %v2497, %v2655
    %v2657 = vpop.f32.mrf.mxu0
    %2658 = vmatprep.mubr.bf16.mxu0 %v2568
    %2659 = vmatmul.mubr.bf16.gmra.mxu0 %v2472
    %v2660 = vpop.f32.mrf.mxu0
    %v2661 = vadd.f32 %v2498, %v2660
    %v2662 = vpop.f32.mrf.mxu0
    %v2663 = vpop.f32.mrf.mxu0
    %v2664 = vadd.f32 %v2499, %v2663
    %v2665 = vpop.f32.mrf.mxu0
    %2666 = vmatprep.mubr.bf16.mxu0 %v2571
    %2667 = vmatmul.mubr.bf16.gmra.mxu0 %v2474
    %v2668 = vpop.f32.mrf.mxu0
    %v2669 = vadd.f32 %v2500, %v2668
    %v2670 = vpop.f32.mrf.mxu0
    %v2671 = vpop.f32.mrf.mxu0
    %v2672 = vadd.f32 %v2501, %v2671
    %v2673 = vpop.f32.mrf.mxu0
    %2674 = vmatprep.mubr.bf16.mxu0 %v2574
    %2675 = vmatmul.mubr.bf16.gmra.mxu0 %v2476
    %v2676 = vpop.f32.mrf.mxu0
    %v2677 = vadd.f32 %v2502, %v2676
    %v2678 = vpop.f32.mrf.mxu0
    %v2679 = vpop.f32.mrf.mxu0
    %v2680 = vadd.f32 %v2503, %v2679
    %v2681 = vpop.f32.mrf.mxu0
    %2682 = vmatprep.mubr.bf16.mxu0 %v2577
    %2683 = vmatmul.mubr.bf16.gmra.mxu0 %v2478
    %v2684 = vpop.f32.mrf.mxu0
    %v2685 = vadd.f32 %v2504, %v2684
    %v2686 = vpop.f32.mrf.mxu0
    %v2687 = vpop.f32.mrf.mxu0
    %v2688 = vadd.f32 %v2505, %v2687
    %v2689 = vpop.f32.mrf.mxu0
    %2690 = vmatprep.mubr.bf16.mxu0 %v2580
    %2691 = vmatmul.mubr.bf16.gmra.mxu0 %v2480
    %v2692 = vpop.f32.mrf.mxu0
    %v2693 = vadd.f32 %v2506, %v2692
    %v2694 = vpop.f32.mrf.mxu0
    %v2695 = vpop.f32.mrf.mxu0
    %v2696 = vadd.f32 %v2507, %v2695
    %v2697 = vpop.f32.mrf.mxu0
    %2698 = vmatprep.mubr.bf16.mxu0 %v2583
    %2699 = vmatmul.mubr.bf16.gmra.mxu0 %v2482
    %v2700 = vpop.f32.mrf.mxu0
    %v2701 = vadd.f32 %v2508, %v2700
    %v2702 = vpop.f32.mrf.mxu0
    %v2703 = vpop.f32.mrf.mxu0
    %v2704 = vadd.f32 %v2509, %v2703
    %v2705 = vpop.f32.mrf.mxu0
    %2706 = vmatprep.mubr.bf16.mxu0 %v2586
    %2707 = vmatmul.mubr.bf16.gmra.mxu0 %v2484
    %v2708 = vpop.f32.mrf.mxu0
    %v2709 = vadd.f32 %v2510, %v2708
    %v2710 = vpop.f32.mrf.mxu0
    %v2711 = vpop.f32.mrf.mxu0
    %v2712 = vadd.f32 %v2511, %v2711
    %v2713 = vpop.f32.mrf.mxu0
    %2714 = vmatprep.mubr.bf16.mxu0 %v2589
    %2715 = vmatmul.mubr.bf16.gmra.mxu0 %v2486
    %v2716 = vpop.f32.mrf.mxu0
    %v2717 = vadd.f32 %v2512, %v2716
    %v2718 = vpop.f32.mrf.mxu0
    %v2719 = vpop.f32.mrf.mxu0
    %v2720 = vadd.f32 %v2513, %v2719
    %v2721 = vpop.f32.mrf.mxu0
    %2722 = vmatprep.mubr.bf16.mxu0 %v2592
    %2723 = vmatmul.mubr.bf16.gmra.mxu0 %v2488
    %v2724 = vpop.f32.mrf.mxu0
    %v2725 = vadd.f32 %v2514, %v2724
    %v2726 = vpop.f32.mrf.mxu0
    %v2727 = vpop.f32.mrf.mxu0
    %v2728 = vadd.f32 %v2515, %v2727
    %v2729 = vpop.f32.mrf.mxu0
    %2730 = vdwg.mxu0
    %v2731 = vsel %vm728, %v2629, 0.0
    %2732 = vadd.xlane.f32.xlu0 %v2731
    %v2733 = vpop.xlane.xlu0 %2732
    %v2734 = vsel %vm728, %v2632, 0.0
    %2735 = vadd.xlane.f32.xlu0 %v2734
    %v2736 = vpop.xlane.xlu0 %2735
    %v2737 = vsel %vm728, %v2637, 0.0
    %2738 = vadd.xlane.f32.xlu0 %v2737
    %v2739 = vpop.xlane.xlu0 %2738
    %v2740 = vsel %vm728, %v2640, 0.0
    %2741 = vadd.xlane.f32.xlu0 %v2740
    %v2742 = vpop.xlane.xlu0 %2741
    %v2743 = vsel %vm728, %v2645, 0.0
    %2744 = vadd.xlane.f32.xlu0 %v2743
    %v2745 = vpop.xlane.xlu0 %2744
    %v2746 = vsel %vm728, %v2648, 0.0
    %2747 = vadd.xlane.f32.xlu0 %v2746
    %v2748 = vpop.xlane.xlu0 %2747
    %v2749 = vsel %vm728, %v2653, 0.0
    %2750 = vadd.xlane.f32.xlu0 %v2749
    %v2751 = vpop.xlane.xlu0 %2750
    %v2752 = vsel %vm728, %v2656, 0.0
    %2753 = vadd.xlane.f32.xlu0 %v2752
    %v2754 = vpop.xlane.xlu0 %2753
    %v2755 = vsel %vm728, %v2661, 0.0
    %2756 = vadd.xlane.f32.xlu0 %v2755
    %v2757 = vpop.xlane.xlu0 %2756
    %v2758 = vsel %vm728, %v2664, 0.0
    %2759 = vadd.xlane.f32.xlu0 %v2758
    %v2760 = vpop.xlane.xlu0 %2759
    %v2761 = vsel %vm728, %v2669, 0.0
    %2762 = vadd.xlane.f32.xlu0 %v2761
    %v2763 = vpop.xlane.xlu0 %2762
    %v2764 = vsel %vm728, %v2672, 0.0
    %2765 = vadd.xlane.f32.xlu0 %v2764
    %v2766 = vpop.xlane.xlu0 %2765
    %v2767 = vsel %vm728, %v2677, 0.0
    %2768 = vadd.xlane.f32.xlu0 %v2767
    %v2769 = vpop.xlane.xlu0 %2768
    %v2770 = vsel %vm728, %v2680, 0.0
    %2771 = vadd.xlane.f32.xlu0 %v2770
    %v2772 = vpop.xlane.xlu0 %2771
    %v2773 = vsel %vm728, %v2685, 0.0
    %2774 = vadd.xlane.f32.xlu0 %v2773
    %v2775 = vpop.xlane.xlu0 %2774
    %v2776 = vsel %vm728, %v2688, 0.0
    %2777 = vadd.xlane.f32.xlu0 %v2776
    %v2778 = vpop.xlane.xlu0 %2777
    %v2779 = vsel %vm728, %v2693, 0.0
    %2780 = vadd.xlane.f32.xlu0 %v2779
    %v2781 = vpop.xlane.xlu0 %2780
    %v2782 = vsel %vm728, %v2696, 0.0
    %2783 = vadd.xlane.f32.xlu0 %v2782
    %v2784 = vpop.xlane.xlu0 %2783
    %v2785 = vsel %vm728, %v2701, 0.0
    %2786 = vadd.xlane.f32.xlu0 %v2785
    %v2787 = vpop.xlane.xlu0 %2786
    %v2788 = vsel %vm728, %v2704, 0.0
    %2789 = vadd.xlane.f32.xlu0 %v2788
    %v2790 = vpop.xlane.xlu0 %2789
    %v2791 = vsel %vm728, %v2709, 0.0
    %2792 = vadd.xlane.f32.xlu0 %v2791
    %v2793 = vpop.xlane.xlu0 %2792
    %v2794 = vsel %vm728, %v2712, 0.0
    %2795 = vadd.xlane.f32.xlu0 %v2794
    %v2796 = vpop.xlane.xlu0 %2795
    %v2797 = vsel %vm728, %v2717, 0.0
    %2798 = vadd.xlane.f32.xlu0 %v2797
    %v2799 = vpop.xlane.xlu0 %2798
    %v2800 = vsel %vm728, %v2720, 0.0
    %2801 = vadd.xlane.f32.xlu0 %v2800
    %v2802 = vpop.xlane.xlu0 %2801
    %v2803 = vsel %vm728, %v2725, 0.0
    %2804 = vadd.xlane.f32.xlu0 %v2803
    %v2805 = vpop.xlane.xlu0 %2804
    %v2806 = vsel %vm728, %v2728, 0.0
    %2807 = vadd.xlane.f32.xlu0 %v2806
    %v2808 = vpop.xlane.xlu0 %2807
    %v2809 = vrcp.pop 32.0
    %v2810 = vmul.f32 %v2733, %v2809
    %v2811 = vmul.f32 %v2736, %v2809
    %v2812 = vmul.f32 %v2739, %v2809
    %v2813 = vmul.f32 %v2742, %v2809
    %v2814 = vmul.f32 %v2745, %v2809
    %v2815 = vmul.f32 %v2748, %v2809
    %v2816 = vmul.f32 %v2751, %v2809
    %v2817 = vmul.f32 %v2754, %v2809
    %v2818 = vmul.f32 %v2757, %v2809
    %v2819 = vmul.f32 %v2760, %v2809
    %v2820 = vmul.f32 %v2763, %v2809
    %v2821 = vmul.f32 %v2766, %v2809
    %v2822 = vmul.f32 %v2769, %v2809
    %v2823 = vmul.f32 %v2772, %v2809
    %v2824 = vmul.f32 %v2775, %v2809
    %v2825 = vmul.f32 %v2778, %v2809
    %v2826 = vmul.f32 %v2781, %v2809
    %v2827 = vmul.f32 %v2784, %v2809
    %v2828 = vmul.f32 %v2787, %v2809
    %v2829 = vmul.f32 %v2790, %v2809
    %v2830 = vmul.f32 %v2793, %v2809
    %v2831 = vmul.f32 %v2796, %v2809
    %v2832 = vmul.f32 %v2799, %v2809
    %v2833 = vmul.f32 %v2802, %v2809
    %v2834 = vmul.f32 %v2805, %v2809
    %v2835 = vmul.f32 %v2808, %v2809
    %v2836 = vsub.f32 %v2629, %v2810
    %v2837 = vsub.f32 %v2632, %v2811
    %v2838 = vsub.f32 %v2637, %v2812
    %v2839 = vsub.f32 %v2640, %v2813
    %v2840 = vsub.f32 %v2645, %v2814
    %v2841 = vsub.f32 %v2648, %v2815
    %v2842 = vsub.f32 %v2653, %v2816
    %v2843 = vsub.f32 %v2656, %v2817
    %v2844 = vsub.f32 %v2661, %v2818
    %v2845 = vsub.f32 %v2664, %v2819
    %v2846 = vsub.f32 %v2669, %v2820
    %v2847 = vsub.f32 %v2672, %v2821
    %v2848 = vsub.f32 %v2677, %v2822
    %v2849 = vsub.f32 %v2680, %v2823
    %v2850 = vsub.f32 %v2685, %v2824
    %v2851 = vsub.f32 %v2688, %v2825
    %v2852 = vsub.f32 %v2693, %v2826
    %v2853 = vsub.f32 %v2696, %v2827
    %v2854 = vsub.f32 %v2701, %v2828
    %v2855 = vsub.f32 %v2704, %v2829
    %v2856 = vsub.f32 %v2709, %v2830
    %v2857 = vsub.f32 %v2712, %v2831
    %v2858 = vsub.f32 %v2717, %v2832
    %v2859 = vsub.f32 %v2720, %v2833
    %v2860 = vsub.f32 %v2725, %v2834
    %v2861 = vsub.f32 %v2728, %v2835
    %v2862 = vmul.f32 %v2836, %v2836
    %v2863 = vmul.f32 %v2837, %v2837
    %v2864 = vmul.f32 %v2838, %v2838
    %v2865 = vmul.f32 %v2839, %v2839
    %v2866 = vmul.f32 %v2840, %v2840
    %v2867 = vmul.f32 %v2841, %v2841
    %v2868 = vmul.f32 %v2842, %v2842
    %v2869 = vmul.f32 %v2843, %v2843
    %v2870 = vmul.f32 %v2844, %v2844
    %v2871 = vmul.f32 %v2845, %v2845
    %v2872 = vmul.f32 %v2846, %v2846
    %v2873 = vmul.f32 %v2847, %v2847
    %v2874 = vmul.f32 %v2848, %v2848
    %v2875 = vmul.f32 %v2849, %v2849
    %v2876 = vmul.f32 %v2850, %v2850
    %v2877 = vmul.f32 %v2851, %v2851
    %v2878 = vmul.f32 %v2852, %v2852
    %v2879 = vmul.f32 %v2853, %v2853
    %v2880 = vmul.f32 %v2854, %v2854
    %v2881 = vmul.f32 %v2855, %v2855
    %v2882 = vmul.f32 %v2856, %v2856
    %v2883 = vmul.f32 %v2857, %v2857
    %v2884 = vmul.f32 %v2858, %v2858
    %v2885 = vmul.f32 %v2859, %v2859
    %v2886 = vmul.f32 %v2860, %v2860
    %v2887 = vmul.f32 %v2861, %v2861
    %v2888 = vsel %vm728, %v2862, 0.0
    %2889 = vadd.xlane.f32.xlu0 %v2888
    %v2890 = vpop.xlane.xlu0 %2889
    %v2891 = vsel %vm728, %v2863, 0.0
    %2892 = vadd.xlane.f32.xlu0 %v2891
    %v2893 = vpop.xlane.xlu0 %2892
    %v2894 = vsel %vm728, %v2864, 0.0
    %2895 = vadd.xlane.f32.xlu0 %v2894
    %v2896 = vpop.xlane.xlu0 %2895
    %v2897 = vsel %vm728, %v2865, 0.0
    %2898 = vadd.xlane.f32.xlu0 %v2897
    %v2899 = vpop.xlane.xlu0 %2898
    %v2900 = vsel %vm728, %v2866, 0.0
    %2901 = vadd.xlane.f32.xlu0 %v2900
    %v2902 = vpop.xlane.xlu0 %2901
    %v2903 = vsel %vm728, %v2867, 0.0
    %2904 = vadd.xlane.f32.xlu0 %v2903
    %v2905 = vpop.xlane.xlu0 %2904
    %v2906 = vsel %vm728, %v2868, 0.0
    %2907 = vadd.xlane.f32.xlu0 %v2906
    %v2908 = vpop.xlane.xlu0 %2907
    %v2909 = vsel %vm728, %v2869, 0.0
    %2910 = vadd.xlane.f32.xlu0 %v2909
    %v2911 = vpop.xlane.xlu0 %2910
    %v2912 = vsel %vm728, %v2870, 0.0
    %2913 = vadd.xlane.f32.xlu0 %v2912
    %v2914 = vpop.xlane.xlu0 %2913
    %v2915 = vsel %vm728, %v2871, 0.0
    %2916 = vadd.xlane.f32.xlu0 %v2915
    %v2917 = vpop.xlane.xlu0 %2916
    %v2918 = vsel %vm728, %v2872, 0.0
    %2919 = vadd.xlane.f32.xlu0 %v2918
    %v2920 = vpop.xlane.xlu0 %2919
    %v2921 = vsel %vm728, %v2873, 0.0
    %2922 = vadd.xlane.f32.xlu0 %v2921
    %v2923 = vpop.xlane.xlu0 %2922
    %v2924 = vsel %vm728, %v2874, 0.0
    %2925 = vadd.xlane.f32.xlu0 %v2924
    %v2926 = vpop.xlane.xlu0 %2925
    %v2927 = vsel %vm728, %v2875, 0.0
    %2928 = vadd.xlane.f32.xlu0 %v2927
    %v2929 = vpop.xlane.xlu0 %2928
    %v2930 = vsel %vm728, %v2876, 0.0
    %2931 = vadd.xlane.f32.xlu0 %v2930
    %v2932 = vpop.xlane.xlu0 %2931
    %v2933 = vsel %vm728, %v2877, 0.0
    %2934 = vadd.xlane.f32.xlu0 %v2933
    %v2935 = vpop.xlane.xlu0 %2934
    %v2936 = vsel %vm728, %v2878, 0.0
    %2937 = vadd.xlane.f32.xlu0 %v2936
    %v2938 = vpop.xlane.xlu0 %2937
    %v2939 = vsel %vm728, %v2879, 0.0
    %2940 = vadd.xlane.f32.xlu0 %v2939
    %v2941 = vpop.xlane.xlu0 %2940
    %v2942 = vsel %vm728, %v2880, 0.0
    %2943 = vadd.xlane.f32.xlu0 %v2942
    %v2944 = vpop.xlane.xlu0 %2943
    %v2945 = vsel %vm728, %v2881, 0.0
    %2946 = vadd.xlane.f32.xlu0 %v2945
    %v2947 = vpop.xlane.xlu0 %2946
    %v2948 = vsel %vm728, %v2882, 0.0
    %2949 = vadd.xlane.f32.xlu0 %v2948
    %v2950 = vpop.xlane.xlu0 %2949
    %v2951 = vsel %vm728, %v2883, 0.0
    %2952 = vadd.xlane.f32.xlu0 %v2951
    %v2953 = vpop.xlane.xlu0 %2952
    %v2954 = vsel %vm728, %v2884, 0.0
    %2955 = vadd.xlane.f32.xlu0 %v2954
    %v2956 = vpop.xlane.xlu0 %2955
    %v2957 = vsel %vm728, %v2885, 0.0
    %2958 = vadd.xlane.f32.xlu0 %v2957
    %v2959 = vpop.xlane.xlu0 %2958
    %v2960 = vsel %vm728, %v2886, 0.0
    %2961 = vadd.xlane.f32.xlu0 %v2960
    %v2962 = vpop.xlane.xlu0 %2961
    %v2963 = vsel %vm728, %v2887, 0.0
    %2964 = vadd.xlane.f32.xlu0 %v2963
    %v2965 = vpop.xlane.xlu0 %2964
    %v2966 = vmul.f32 %v2890, %v2809
    %v2967 = vmul.f32 %v2893, %v2809
    %v2968 = vmul.f32 %v2896, %v2809
    %v2969 = vmul.f32 %v2899, %v2809
    %v2970 = vmul.f32 %v2902, %v2809
    %v2971 = vmul.f32 %v2905, %v2809
    %v2972 = vmul.f32 %v2908, %v2809
    %v2973 = vmul.f32 %v2911, %v2809
    %v2974 = vmul.f32 %v2914, %v2809
    %v2975 = vmul.f32 %v2917, %v2809
    %v2976 = vmul.f32 %v2920, %v2809
    %v2977 = vmul.f32 %v2923, %v2809
    %v2978 = vmul.f32 %v2926, %v2809
    %v2979 = vmul.f32 %v2929, %v2809
    %v2980 = vmul.f32 %v2932, %v2809
    %v2981 = vmul.f32 %v2935, %v2809
    %v2982 = vmul.f32 %v2938, %v2809
    %v2983 = vmul.f32 %v2941, %v2809
    %v2984 = vmul.f32 %v2944, %v2809
    %v2985 = vmul.f32 %v2947, %v2809
    %v2986 = vmul.f32 %v2950, %v2809
    %v2987 = vmul.f32 %v2953, %v2809
    %v2988 = vmul.f32 %v2956, %v2809
    %v2989 = vmul.f32 %v2959, %v2809
    %v2990 = vmul.f32 %v2962, %v2809
    %v2991 = vmul.f32 %v2965, %v2809
    %v2992 = vadd.f32 %v2966, 1e-05
    %v2993 = vadd.f32 %v2967, 1e-05
    %v2994 = vadd.f32 %v2968, 1e-05
    %v2995 = vadd.f32 %v2969, 1e-05
    %v2996 = vadd.f32 %v2970, 1e-05
    %v2997 = vadd.f32 %v2971, 1e-05
    %v2998 = vadd.f32 %v2972, 1e-05
    %v2999 = vadd.f32 %v2973, 1e-05
    %v3000 = vadd.f32 %v2974, 1e-05
    %v3001 = vadd.f32 %v2975, 1e-05
    %v3002 = vadd.f32 %v2976, 1e-05
    %v3003 = vadd.f32 %v2977, 1e-05
    %v3004 = vadd.f32 %v2978, 1e-05
    %v3005 = vadd.f32 %v2979, 1e-05
    %v3006 = vadd.f32 %v2980, 1e-05
    %v3007 = vadd.f32 %v2981, 1e-05
    %v3008 = vadd.f32 %v2982, 1e-05
    %v3009 = vadd.f32 %v2983, 1e-05
    %v3010 = vadd.f32 %v2984, 1e-05
    %v3011 = vadd.f32 %v2985, 1e-05
    %v3012 = vadd.f32 %v2986, 1e-05
    %v3013 = vadd.f32 %v2987, 1e-05
    %v3014 = vadd.f32 %v2988, 1e-05
    %v3015 = vadd.f32 %v2989, 1e-05
    %v3016 = vadd.f32 %v2990, 1e-05
    %v3017 = vadd.f32 %v2991, 1e-05
    %v3018 = vrsqrt.pop %v2992
    %v3019 = vrsqrt.pop %v2993
    %v3020 = vrsqrt.pop %v2994
    %v3021 = vrsqrt.pop %v2995
    %v3022 = vrsqrt.pop %v2996
    %v3023 = vrsqrt.pop %v2997
    %v3024 = vrsqrt.pop %v2998
    %v3025 = vrsqrt.pop %v2999
    %v3026 = vrsqrt.pop %v3000
    %v3027 = vrsqrt.pop %v3001
    %v3028 = vrsqrt.pop %v3002
    %v3029 = vrsqrt.pop %v3003
    %v3030 = vrsqrt.pop %v3004
    %v3031 = vrsqrt.pop %v3005
    %v3032 = vrsqrt.pop %v3006
    %v3033 = vrsqrt.pop %v3007
    %v3034 = vrsqrt.pop %v3008
    %v3035 = vrsqrt.pop %v3009
    %v3036 = vrsqrt.pop %v3010
    %v3037 = vrsqrt.pop %v3011
    %v3038 = vrsqrt.pop %v3012
    %v3039 = vrsqrt.pop %v3013
    %v3040 = vrsqrt.pop %v3014
    %v3041 = vrsqrt.pop %v3015
    %v3042 = vrsqrt.pop %v3016
    %v3043 = vrsqrt.pop %v3017
    %v3044 = vmul.f32 %v2836, %v3018
    %v3045 = vmul.f32 %v2837, %v3019
    %v3046 = vmul.f32 %v2838, %v3020
    %v3047 = vmul.f32 %v2839, %v3021
    %v3048 = vmul.f32 %v2840, %v3022
    %v3049 = vmul.f32 %v2841, %v3023
    %v3050 = vmul.f32 %v2842, %v3024
    %v3051 = vmul.f32 %v2843, %v3025
    %v3052 = vmul.f32 %v2844, %v3026
    %v3053 = vmul.f32 %v2845, %v3027
    %v3054 = vmul.f32 %v2846, %v3028
    %v3055 = vmul.f32 %v2847, %v3029
    %v3056 = vmul.f32 %v2848, %v3030
    %v3057 = vmul.f32 %v2849, %v3031
    %v3058 = vmul.f32 %v2850, %v3032
    %v3059 = vmul.f32 %v2851, %v3033
    %v3060 = vmul.f32 %v2852, %v3034
    %v3061 = vmul.f32 %v2853, %v3035
    %v3062 = vmul.f32 %v2854, %v3036
    %v3063 = vmul.f32 %v2855, %v3037
    %v3064 = vmul.f32 %v2856, %v3038
    %v3065 = vmul.f32 %v2857, %v3039
    %v3066 = vmul.f32 %v2858, %v3040
    %v3067 = vmul.f32 %v2859, %v3041
    %v3068 = vmul.f32 %v2860, %v3042
    %v3069 = vmul.f32 %v2861, %v3043
    %v3070 = vld [vmem:[%s11] sm:$0x1]
    %v3071 = vlaneseq
    %v3072 = vshrl.u32 %v3071, 7
    %v3073 = vsub.s32 0, %v3072
    %v3074 = vrot.slane %v3070, %v3073
    %v3075 = vmul.f32 %v3044, %v3074
    %v3076 = vmul.f32 %v3045, %v3074
    %v3077 = vmul.f32 %v3046, %v3074
    %v3078 = vmul.f32 %v3047, %v3074
    %v3079 = vmul.f32 %v3048, %v3074
    %v3080 = vmul.f32 %v3049, %v3074
    %v3081 = vmul.f32 %v3050, %v3074
    %v3082 = vmul.f32 %v3051, %v3074
    %v3083 = vmul.f32 %v3052, %v3074
    %v3084 = vmul.f32 %v3053, %v3074
    %v3085 = vmul.f32 %v3054, %v3074
    %v3086 = vmul.f32 %v3055, %v3074
    %v3087 = vmul.f32 %v3056, %v3074
    %v3088 = vmul.f32 %v3057, %v3074
    %v3089 = vmul.f32 %v3058, %v3074
    %v3090 = vmul.f32 %v3059, %v3074
    %v3091 = vmul.f32 %v3060, %v3074
    %v3092 = vmul.f32 %v3061, %v3074
    %v3093 = vmul.f32 %v3062, %v3074
    %v3094 = vmul.f32 %v3063, %v3074
    %v3095 = vmul.f32 %v3064, %v3074
    %v3096 = vmul.f32 %v3065, %v3074
    %v3097 = vmul.f32 %v3066, %v3074
    %v3098 = vmul.f32 %v3067, %v3074
    %v3099 = vmul.f32 %v3068, %v3074
    %v3100 = vmul.f32 %v3069, %v3074
    %v3101 = vld [vmem:[%s11 + $0x1] sm:$0x1]
    %v3102 = vlaneseq
    %v3103 = vshrl.u32 %v3102, 7
    %v3104 = vsub.s32 0, %v3103
    %v3105 = vrot.slane %v3101, %v3104
    %v3106 = vadd.f32 %v3075, %v3105
    %v3107 = vadd.f32 %v3076, %v3105
    %v3108 = vadd.f32 %v3077, %v3105
    %v3109 = vadd.f32 %v3078, %v3105
    %v3110 = vadd.f32 %v3079, %v3105
    %v3111 = vadd.f32 %v3080, %v3105
    %v3112 = vadd.f32 %v3081, %v3105
    %v3113 = vadd.f32 %v3082, %v3105
    %v3114 = vadd.f32 %v3083, %v3105
    %v3115 = vadd.f32 %v3084, %v3105
    %v3116 = vadd.f32 %v3085, %v3105
    %v3117 = vadd.f32 %v3086, %v3105
    %v3118 = vadd.f32 %v3087, %v3105
    %v3119 = vadd.f32 %v3088, %v3105
    %v3120 = vadd.f32 %v3089, %v3105
    %v3121 = vadd.f32 %v3090, %v3105
    %v3122 = vadd.f32 %v3091, %v3105
    %v3123 = vadd.f32 %v3092, %v3105
    %v3124 = vadd.f32 %v3093, %v3105
    %v3125 = vadd.f32 %v3094, %v3105
    %v3126 = vadd.f32 %v3095, %v3105
    %v3127 = vadd.f32 %v3096, %v3105
    %v3128 = vadd.f32 %v3097, %v3105
    %v3129 = vadd.f32 %v3098, %v3105
    %v3130 = vadd.f32 %v3099, %v3105
    %v3131 = vadd.f32 %v3100, %v3105
    %v3132 = vld [vmem:[%s8] sm:$0xff]
    %v3133 = vld [vmem:[%s8 + $0x8] sm:$0xff]
    %v3134 = vld [vmem:[%s8 + $0x10] sm:$0xff]
    %v3135 = vld [vmem:[%s8 + $0x18] sm:$0xff]
    %v3136 = vld [vmem:[%s11 + $0x2] sm:$0x1]
    %v3137 = vlaneseq
    %v3138 = vshrl.u32 %v3137, 7
    %v3139 = vsub.s32 0, %v3138
    %v3140 = vrot.slane %v3136, %v3139
    %v3142 = vsel %vm728, %v3106, 0
    %v3145 = vsel %vm728, %v3107, 0
    %v3148 = vsel %vm728, %v3108, 0
    %v3151 = vsel %vm728, %v3109, 0
    %v3154 = vsel %vm728, %v3110, 0
    %v3157 = vsel %vm728, %v3111, 0
    %v3160 = vsel %vm728, %v3112, 0
    %v3163 = vsel %vm728, %v3113, 0
    %v3166 = vsel %vm728, %v3114, 0
    %v3169 = vsel %vm728, %v3115, 0
    %v3172 = vsel %vm728, %v3116, 0
    %v3175 = vsel %vm728, %v3117, 0
    %v3178 = vsel %vm728, %v3118, 0
    %v3181 = vsel %vm728, %v3119, 0
    %v3184 = vsel %vm728, %v3120, 0
    %v3187 = vsel %vm728, %v3121, 0
    %v3190 = vsel %vm728, %v3122, 0
    %v3193 = vsel %vm728, %v3123, 0
    %v3196 = vsel %vm728, %v3124, 0
    %v3199 = vsel %vm728, %v3125, 0
    %v3202 = vsel %vm728, %v3126, 0
    %v3205 = vsel %vm728, %v3127, 0
    %v3208 = vsel %vm728, %v3128, 0
    %v3211 = vsel %vm728, %v3129, 0
    %v3214 = vsel %vm728, %v3130, 0
    %v3217 = vsel %vm728, %v3131, 0
    %3219 = vmatprep.subr.mxu0 0.0
    %3220 = vmatpush1.msra.mxu0 0.0
    %3221 = vmatprep.subr.mxu0 0.0
    %3222 = vmatpush1.msra.mxu0 0.0
    %3223 = vmatprep.subr.mxu0 0.0
    %3224 = vmatpush1.msra.mxu0 0.0
    %3225 = vmatprep.subr.mxu0 0.0
    %3226 = vmatpush1.msra.mxu0 0.0
    %3227 = vmatprep.subr.mxu0 0.0
    %3228 = vmatpush1.msra.mxu0 0.0
    %3229 = vmatprep.subr.mxu0 0.0
    %3230 = vmatpush1.msra.mxu0 0.0
    %3231 = vmatprep.subr.mxu0 0.0
    %3232 = vmatpush1.msra.mxu0 0.0
    %3233 = vmatprep.subr.mxu0 0.0
    %3234 = vmatpush1.msra.mxu0 0.0
    %3235 = vmatprep.subr.mxu0 0.0
    %3236 = vmatpush1.msra.mxu0 0.0
    %3237 = vmatprep.subr.mxu0 0.0
    %3238 = vmatpush1.msra.mxu0 0.0
    %3239 = vmatprep.subr.mxu0 0.0
    %3240 = vmatpush1.msra.mxu0 0.0
    %3241 = vmatprep.subr.mxu0 0.0
    %3242 = vmatpush1.msra.mxu0 0.0
    %3243 = vmatprep.subr.mxu0 0.0
    %3244 = vmatpush1.msra.mxu0 %v3135
    %3245 = vmatprep.subr.mxu0 0.0
    %3246 = vmatpush1.msra.mxu0 %v3134
    %3247 = vmatprep.subr.mxu0 0.0
    %3248 = vmatpush1.msra.mxu0 %v3133
    %3249 = vmatprep.subr.mxu0 0.0
    %3250 = vmatpush1.msra.mxu0 %v3132
    %3251 = vmatprep.subr.mxu0 0.0
    %3252 = vmatpush2.msra.mxu0 0.0
    %3253 = vmatprep.subr.mxu0 0.0
    %3254 = vmatpush2.msra.mxu0 0.0
    %3255 = vmatprep.subr.mxu0 0.0
    %3256 = vmatpush2.msra.mxu0 0.0
    %3257 = vmatprep.subr.mxu0 0.0
    %3258 = vmatpush2.msra.mxu0 0.0
    %3259 = vmatprep.subr.mxu0 0.0
    %3260 = vmatpush2.msra.mxu0 0.0
    %3261 = vmatprep.subr.mxu0 0.0
    %3262 = vmatpush2.msra.mxu0 0.0
    %3263 = vmatprep.subr.mxu0 0.0
    %3264 = vmatpush2.msra.mxu0 0.0
    %3265 = vmatprep.subr.mxu0 0.0
    %3266 = vmatpush2.msra.mxu0 0.0
    %3267 = vmatprep.subr.mxu0 0.0
    %3268 = vmatpush2.msra.mxu0 0.0
    %3269 = vmatprep.subr.mxu0 0.0
    %3270 = vmatpush2.msra.mxu0 0.0
    %3271 = vmatprep.subr.mxu0 0.0
    %3272 = vmatpush2.msra.mxu0 0.0
    %3273 = vmatprep.subr.mxu0 0.0
    %3274 = vmatpush2.msra.mxu0 0.0
    %3275 = vmatprep.subr.mxu0 0.0
    %3276 = vmatpush2.msra.mxu0 0.0
    %3277 = vmatprep.subr.mxu0 0.0
    %3278 = vmatpush2.msra.mxu0 0.0
    %3279 = vmatprep.subr.mxu0 0.0
    %3280 = vmatpush2.msra.mxu0 0.0
    %3281 = vmatprep.subr.mxu0 0.0
    %3282 = vmatpush2.msra.mxu0 0.0
    %3283 = vmatprep.mubr.f32.mxu0 0.0
    %3284 = vmatmul.mubr.f32.gmra.mxu0 %v3142
    %v3285 = vpop.f32.mrf.mxu0
    %v3286 = vadd.f32 %v3140, %v3285
    %v3287 = vpop.f32.mrf.mxu0
    %3288 = vmatprep.mubr.f32.mxu0 0.0
    %3289 = vmatmul.mubr.f32.gmra.mxu0 %v3145
    %v3290 = vpop.f32.mrf.mxu0
    %v3291 = vadd.f32 %v3140, %v3290
    %v3292 = vpop.f32.mrf.mxu0
    %3293 = vmatprep.mubr.f32.mxu0 0.0
    %3294 = vmatmul.mubr.f32.gmra.mxu0 %v3148
    %v3295 = vpop.f32.mrf.mxu0
    %v3296 = vadd.f32 %v3140, %v3295
    %v3297 = vpop.f32.mrf.mxu0
    %3298 = vmatprep.mubr.f32.mxu0 0.0
    %3299 = vmatmul.mubr.f32.gmra.mxu0 %v3151
    %v3300 = vpop.f32.mrf.mxu0
    %v3301 = vadd.f32 %v3140, %v3300
    %v3302 = vpop.f32.mrf.mxu0
    %3303 = vmatprep.mubr.f32.mxu0 0.0
    %3304 = vmatmul.mubr.f32.gmra.mxu0 %v3154
    %v3305 = vpop.f32.mrf.mxu0
    %v3306 = vadd.f32 %v3140, %v3305
    %v3307 = vpop.f32.mrf.mxu0
    %3308 = vmatprep.mubr.f32.mxu0 0.0
    %3309 = vmatmul.mubr.f32.gmra.mxu0 %v3157
    %v3310 = vpop.f32.mrf.mxu0
    %v3311 = vadd.f32 %v3140, %v3310
    %v3312 = vpop.f32.mrf.mxu0
    %3313 = vmatprep.mubr.f32.mxu0 0.0
    %3314 = vmatmul.mubr.f32.gmra.mxu0 %v3160
    %v3315 = vpop.f32.mrf.mxu0
    %v3316 = vadd.f32 %v3140, %v3315
    %v3317 = vpop.f32.mrf.mxu0
    %3318 = vmatprep.mubr.f32.mxu0 0.0
    %3319 = vmatmul.mubr.f32.gmra.mxu0 %v3163
    %v3320 = vpop.f32.mrf.mxu0
    %v3321 = vadd.f32 %v3140, %v3320
    %v3322 = vpop.f32.mrf.mxu0
    %3323 = vmatprep.mubr.f32.mxu0 0.0
    %3324 = vmatmul.mubr.f32.gmra.mxu0 %v3166
    %v3325 = vpop.f32.mrf.mxu0
    %v3326 = vadd.f32 %v3140, %v3325
    %v3327 = vpop.f32.mrf.mxu0
    %3328 = vmatprep.mubr.f32.mxu0 0.0
    %3329 = vmatmul.mubr.f32.gmra.mxu0 %v3169
    %v3330 = vpop.f32.mrf.mxu0
    %v3331 = vadd.f32 %v3140, %v3330
    %v3332 = vpop.f32.mrf.mxu0
    %3333 = vmatprep.mubr.f32.mxu0 0.0
    %3334 = vmatmul.mubr.f32.gmra.mxu0 %v3172
    %v3335 = vpop.f32.mrf.mxu0
    %v3336 = vadd.f32 %v3140, %v3335
    %v3337 = vpop.f32.mrf.mxu0
    %3338 = vmatprep.mubr.f32.mxu0 0.0
    %3339 = vmatmul.mubr.f32.gmra.mxu0 %v3175
    %v3340 = vpop.f32.mrf.mxu0
    %v3341 = vadd.f32 %v3140, %v3340
    %v3342 = vpop.f32.mrf.mxu0
    %3343 = vmatprep.mubr.f32.mxu0 0.0
    %3344 = vmatmul.mubr.f32.gmra.mxu0 %v3178
    %v3345 = vpop.f32.mrf.mxu0
    %v3346 = vadd.f32 %v3140, %v3345
    %v3347 = vpop.f32.mrf.mxu0
    %3348 = vmatprep.mubr.f32.mxu0 0.0
    %3349 = vmatmul.mubr.f32.gmra.mxu0 %v3181
    %v3350 = vpop.f32.mrf.mxu0
    %v3351 = vadd.f32 %v3140, %v3350
    %v3352 = vpop.f32.mrf.mxu0
    %3353 = vmatprep.mubr.f32.mxu0 0.0
    %3354 = vmatmul.mubr.f32.gmra.mxu0 %v3184
    %v3355 = vpop.f32.mrf.mxu0
    %v3356 = vadd.f32 %v3140, %v3355
    %v3357 = vpop.f32.mrf.mxu0
    %3358 = vmatprep.mubr.f32.mxu0 0.0
    %3359 = vmatmul.mubr.f32.gmra.mxu0 %v3187
    %v3360 = vpop.f32.mrf.mxu0
    %v3361 = vadd.f32 %v3140, %v3360
    %v3362 = vpop.f32.mrf.mxu0
    %3363 = vmatprep.mubr.f32.mxu0 0.0
    %3364 = vmatmul.mubr.f32.gmra.mxu0 %v3190
    %v3365 = vpop.f32.mrf.mxu0
    %v3366 = vadd.f32 %v3140, %v3365
    %v3367 = vpop.f32.mrf.mxu0
    %3368 = vmatprep.mubr.f32.mxu0 0.0
    %3369 = vmatmul.mubr.f32.gmra.mxu0 %v3193
    %v3370 = vpop.f32.mrf.mxu0
    %v3371 = vadd.f32 %v3140, %v3370
    %v3372 = vpop.f32.mrf.mxu0
    %3373 = vmatprep.mubr.f32.mxu0 0.0
    %3374 = vmatmul.mubr.f32.gmra.mxu0 %v3196
    %v3375 = vpop.f32.mrf.mxu0
    %v3376 = vadd.f32 %v3140, %v3375
    %v3377 = vpop.f32.mrf.mxu0
    %3378 = vmatprep.mubr.f32.mxu0 0.0
    %3379 = vmatmul.mubr.f32.gmra.mxu0 %v3199
    %v3380 = vpop.f32.mrf.mxu0
    %v3381 = vadd.f32 %v3140, %v3380
    %v3382 = vpop.f32.mrf.mxu0
    %3383 = vmatprep.mubr.f32.mxu0 0.0
    %3384 = vmatmul.mubr.f32.gmra.mxu0 %v3202
    %v3385 = vpop.f32.mrf.mxu0
    %v3386 = vadd.f32 %v3140, %v3385
    %v3387 = vpop.f32.mrf.mxu0
    %3388 = vmatprep.mubr.f32.mxu0 0.0
    %3389 = vmatmul.mubr.f32.gmra.mxu0 %v3205
    %v3390 = vpop.f32.mrf.mxu0
    %v3391 = vadd.f32 %v3140, %v3390
    %v3392 = vpop.f32.mrf.mxu0
    %3393 = vmatprep.mubr.f32.mxu0 0.0
    %3394 = vmatmul.mubr.f32.gmra.mxu0 %v3208
    %v3395 = vpop.f32.mrf.mxu0
    %v3396 = vadd.f32 %v3140, %v3395
    %v3397 = vpop.f32.mrf.mxu0
    %3398 = vmatprep.mubr.f32.mxu0 0.0
    %3399 = vmatmul.mubr.f32.gmra.mxu0 %v3211
    %v3400 = vpop.f32.mrf.mxu0
    %v3401 = vadd.f32 %v3140, %v3400
    %v3402 = vpop.f32.mrf.mxu0
    %3403 = vmatprep.mubr.f32.mxu0 0.0
    %3404 = vmatmul.mubr.f32.gmra.mxu0 %v3214
    %v3405 = vpop.f32.mrf.mxu0
    %v3406 = vadd.f32 %v3140, %v3405
    %v3407 = vpop.f32.mrf.mxu0
    %3408 = vmatprep.mubr.f32.mxu0 0.0
    %3409 = vmatmul.mubr.f32.gmra.mxu0 %v3217
    %v3410 = vpop.f32.mrf.mxu0
    %v3411 = vadd.f32 %v3140, %v3410
    %v3412 = vpop.f32.mrf.mxu0
    %3413 = vdwg.mxu0
    %v3414 = vmax.f32 %v3286, 0.0
    %v3415 = vmax.f32 %v3291, 0.0
    %v3416 = vmax.f32 %v3296, 0.0
    %v3417 = vmax.f32 %v3301, 0.0
    %v3418 = vmax.f32 %v3306, 0.0
    %v3419 = vmax.f32 %v3311, 0.0
    %v3420 = vmax.f32 %v3316, 0.0
    %v3421 = vmax.f32 %v3321, 0.0
    %v3422 = vmax.f32 %v3326, 0.0
    %v3423 = vmax.f32 %v3331, 0.0
    %v3424 = vmax.f32 %v3336, 0.0
    %v3425 = vmax.f32 %v3341, 0.0
    %v3426 = vmax.f32 %v3346, 0.0
    %v3427 = vmax.f32 %v3351, 0.0
    %v3428 = vmax.f32 %v3356, 0.0
    %v3429 = vmax.f32 %v3361, 0.0
    %v3430 = vmax.f32 %v3366, 0.0
    %v3431 = vmax.f32 %v3371, 0.0
    %v3432 = vmax.f32 %v3376, 0.0
    %v3433 = vmax.f32 %v3381, 0.0
    %v3434 = vmax.f32 %v3386, 0.0
    %v3435 = vmax.f32 %v3391, 0.0
    %v3436 = vmax.f32 %v3396, 0.0
    %v3437 = vmax.f32 %v3401, 0.0
    %v3438 = vmax.f32 %v3406, 0.0
    %v3439 = vmax.f32 %v3411, 0.0
    %v3440 = vld [vmem:[%s9] sm:$0xff]
    %v3441 = vld [vmem:[%s9 + $0x8] sm:$0xff]
    %v3442 = vld [vmem:[%s9 + $0x10] sm:$0xff]
    %v3443 = vld [vmem:[%s9 + $0x18] sm:$0xff]
    %v3444 = vld [vmem:[%s11 + $0x3] sm:$0x1]
    %v3445 = vlaneseq
    %v3446 = vshrl.u32 %v3445, 7
    %v3447 = vsub.s32 0, %v3446
    %v3448 = vrot.slane %v3444, %v3447
    %v3450 = vsel %vm728, %v3414, 0
    %v3453 = vsel %vm728, %v3415, 0
    %v3456 = vsel %vm728, %v3416, 0
    %v3459 = vsel %vm728, %v3417, 0
    %v3462 = vsel %vm728, %v3418, 0
    %v3465 = vsel %vm728, %v3419, 0
    %v3468 = vsel %vm728, %v3420, 0
    %v3471 = vsel %vm728, %v3421, 0
    %v3474 = vsel %vm728, %v3422, 0
    %v3477 = vsel %vm728, %v3423, 0
    %v3480 = vsel %vm728, %v3424, 0
    %v3483 = vsel %vm728, %v3425, 0
    %v3486 = vsel %vm728, %v3426, 0
    %v3489 = vsel %vm728, %v3427, 0
    %v3492 = vsel %vm728, %v3428, 0
    %v3495 = vsel %vm728, %v3429, 0
    %v3498 = vsel %vm728, %v3430, 0
    %v3501 = vsel %vm728, %v3431, 0
    %v3504 = vsel %vm728, %v3432, 0
    %v3507 = vsel %vm728, %v3433, 0
    %v3510 = vsel %vm728, %v3434, 0
    %v3513 = vsel %vm728, %v3435, 0
    %v3516 = vsel %vm728, %v3436, 0
    %v3519 = vsel %vm728, %v3437, 0
    %v3522 = vsel %vm728, %v3438, 0
    %v3525 = vsel %vm728, %v3439, 0
    %3527 = vmatprep.subr.mxu0 0.0
    %3528 = vmatpush1.msra.mxu0 0.0
    %3529 = vmatprep.subr.mxu0 0.0
    %3530 = vmatpush1.msra.mxu0 0.0
    %3531 = vmatprep.subr.mxu0 0.0
    %3532 = vmatpush1.msra.mxu0 0.0
    %3533 = vmatprep.subr.mxu0 0.0
    %3534 = vmatpush1.msra.mxu0 0.0
    %3535 = vmatprep.subr.mxu0 0.0
    %3536 = vmatpush1.msra.mxu0 0.0
    %3537 = vmatprep.subr.mxu0 0.0
    %3538 = vmatpush1.msra.mxu0 0.0
    %3539 = vmatprep.subr.mxu0 0.0
    %3540 = vmatpush1.msra.mxu0 0.0
    %3541 = vmatprep.subr.mxu0 0.0
    %3542 = vmatpush1.msra.mxu0 0.0
    %3543 = vmatprep.subr.mxu0 0.0
    %3544 = vmatpush1.msra.mxu0 0.0
    %3545 = vmatprep.subr.mxu0 0.0
    %3546 = vmatpush1.msra.mxu0 0.0
    %3547 = vmatprep.subr.mxu0 0.0
    %3548 = vmatpush1.msra.mxu0 0.0
    %3549 = vmatprep.subr.mxu0 0.0
    %3550 = vmatpush1.msra.mxu0 0.0
    %3551 = vmatprep.subr.mxu0 0.0
    %3552 = vmatpush1.msra.mxu0 %v3443
    %3553 = vmatprep.subr.mxu0 0.0
    %3554 = vmatpush1.msra.mxu0 %v3442
    %3555 = vmatprep.subr.mxu0 0.0
    %3556 = vmatpush1.msra.mxu0 %v3441
    %3557 = vmatprep.subr.mxu0 0.0
    %3558 = vmatpush1.msra.mxu0 %v3440
    %3559 = vmatprep.subr.mxu0 0.0
    %3560 = vmatpush2.msra.mxu0 0.0
    %3561 = vmatprep.subr.mxu0 0.0
    %3562 = vmatpush2.msra.mxu0 0.0
    %3563 = vmatprep.subr.mxu0 0.0
    %3564 = vmatpush2.msra.mxu0 0.0
    %3565 = vmatprep.subr.mxu0 0.0
    %3566 = vmatpush2.msra.mxu0 0.0
    %3567 = vmatprep.subr.mxu0 0.0
    %3568 = vmatpush2.msra.mxu0 0.0
    %3569 = vmatprep.subr.mxu0 0.0
    %3570 = vmatpush2.msra.mxu0 0.0
    %3571 = vmatprep.subr.mxu0 0.0
    %3572 = vmatpush2.msra.mxu0 0.0
    %3573 = vmatprep.subr.mxu0 0.0
    %3574 = vmatpush2.msra.mxu0 0.0
    %3575 = vmatprep.subr.mxu0 0.0
    %3576 = vmatpush2.msra.mxu0 0.0
    %3577 = vmatprep.subr.mxu0 0.0
    %3578 = vmatpush2.msra.mxu0 0.0
    %3579 = vmatprep.subr.mxu0 0.0
    %3580 = vmatpush2.msra.mxu0 0.0
    %3581 = vmatprep.subr.mxu0 0.0
    %3582 = vmatpush2.msra.mxu0 0.0
    %3583 = vmatprep.subr.mxu0 0.0
    %3584 = vmatpush2.msra.mxu0 0.0
    %3585 = vmatprep.subr.mxu0 0.0
    %3586 = vmatpush2.msra.mxu0 0.0
    %3587 = vmatprep.subr.mxu0 0.0
    %3588 = vmatpush2.msra.mxu0 0.0
    %3589 = vmatprep.subr.mxu0 0.0
    %3590 = vmatpush2.msra.mxu0 0.0
    %3591 = vmatprep.mubr.f32.mxu0 0.0
    %3592 = vmatmul.mubr.f32.gmra.mxu0 %v3450
    %v3593 = vpop.f32.mrf.mxu0
    %v3594 = vadd.f32 %v3448, %v3593
    %v3595 = vpop.f32.mrf.mxu0
    %3596 = vmatprep.mubr.f32.mxu0 0.0
    %3597 = vmatmul.mubr.f32.gmra.mxu0 %v3453
    %v3598 = vpop.f32.mrf.mxu0
    %v3599 = vadd.f32 %v3448, %v3598
    %v3600 = vpop.f32.mrf.mxu0
    %3601 = vmatprep.mubr.f32.mxu0 0.0
    %3602 = vmatmul.mubr.f32.gmra.mxu0 %v3456
    %v3603 = vpop.f32.mrf.mxu0
    %v3604 = vadd.f32 %v3448, %v3603
    %v3605 = vpop.f32.mrf.mxu0
    %3606 = vmatprep.mubr.f32.mxu0 0.0
    %3607 = vmatmul.mubr.f32.gmra.mxu0 %v3459
    %v3608 = vpop.f32.mrf.mxu0
    %v3609 = vadd.f32 %v3448, %v3608
    %v3610 = vpop.f32.mrf.mxu0
    %3611 = vmatprep.mubr.f32.mxu0 0.0
    %3612 = vmatmul.mubr.f32.gmra.mxu0 %v3462
    %v3613 = vpop.f32.mrf.mxu0
    %v3614 = vadd.f32 %v3448, %v3613
    %v3615 = vpop.f32.mrf.mxu0
    %3616 = vmatprep.mubr.f32.mxu0 0.0
    %3617 = vmatmul.mubr.f32.gmra.mxu0 %v3465
    %v3618 = vpop.f32.mrf.mxu0
    %v3619 = vadd.f32 %v3448, %v3618
    %v3620 = vpop.f32.mrf.mxu0
    %3621 = vmatprep.mubr.f32.mxu0 0.0
    %3622 = vmatmul.mubr.f32.gmra.mxu0 %v3468
    %v3623 = vpop.f32.mrf.mxu0
    %v3624 = vadd.f32 %v3448, %v3623
    %v3625 = vpop.f32.mrf.mxu0
    %3626 = vmatprep.mubr.f32.mxu0 0.0
    %3627 = vmatmul.mubr.f32.gmra.mxu0 %v3471
    %v3628 = vpop.f32.mrf.mxu0
    %v3629 = vadd.f32 %v3448, %v3628
    %v3630 = vpop.f32.mrf.mxu0
    %3631 = vmatprep.mubr.f32.mxu0 0.0
    %3632 = vmatmul.mubr.f32.gmra.mxu0 %v3474
    %v3633 = vpop.f32.mrf.mxu0
    %v3634 = vadd.f32 %v3448, %v3633
    %v3635 = vpop.f32.mrf.mxu0
    %3636 = vmatprep.mubr.f32.mxu0 0.0
    %3637 = vmatmul.mubr.f32.gmra.mxu0 %v3477
    %v3638 = vpop.f32.mrf.mxu0
    %v3639 = vadd.f32 %v3448, %v3638
    %v3640 = vpop.f32.mrf.mxu0
    %3641 = vmatprep.mubr.f32.mxu0 0.0
    %3642 = vmatmul.mubr.f32.gmra.mxu0 %v3480
    %v3643 = vpop.f32.mrf.mxu0
    %v3644 = vadd.f32 %v3448, %v3643
    %v3645 = vpop.f32.mrf.mxu0
    %3646 = vmatprep.mubr.f32.mxu0 0.0
    %3647 = vmatmul.mubr.f32.gmra.mxu0 %v3483
    %v3648 = vpop.f32.mrf.mxu0
    %v3649 = vadd.f32 %v3448, %v3648
    %v3650 = vpop.f32.mrf.mxu0
    %3651 = vmatprep.mubr.f32.mxu0 0.0
    %3652 = vmatmul.mubr.f32.gmra.mxu0 %v3486
    %v3653 = vpop.f32.mrf.mxu0
    %v3654 = vadd.f32 %v3448, %v3653
    %v3655 = vpop.f32.mrf.mxu0
    %3656 = vmatprep.mubr.f32.mxu0 0.0
    %3657 = vmatmul.mubr.f32.gmra.mxu0 %v3489
    %v3658 = vpop.f32.mrf.mxu0
    %v3659 = vadd.f32 %v3448, %v3658
    %v3660 = vpop.f32.mrf.mxu0
    %3661 = vmatprep.mubr.f32.mxu0 0.0
    %3662 = vmatmul.mubr.f32.gmra.mxu0 %v3492
    %v3663 = vpop.f32.mrf.mxu0
    %v3664 = vadd.f32 %v3448, %v3663
    %v3665 = vpop.f32.mrf.mxu0
    %3666 = vmatprep.mubr.f32.mxu0 0.0
    %3667 = vmatmul.mubr.f32.gmra.mxu0 %v3495
    %v3668 = vpop.f32.mrf.mxu0
    %v3669 = vadd.f32 %v3448, %v3668
    %v3670 = vpop.f32.mrf.mxu0
    %3671 = vmatprep.mubr.f32.mxu0 0.0
    %3672 = vmatmul.mubr.f32.gmra.mxu0 %v3498
    %v3673 = vpop.f32.mrf.mxu0
    %v3674 = vadd.f32 %v3448, %v3673
    %v3675 = vpop.f32.mrf.mxu0
    %3676 = vmatprep.mubr.f32.mxu0 0.0
    %3677 = vmatmul.mubr.f32.gmra.mxu0 %v3501
    %v3678 = vpop.f32.mrf.mxu0
    %v3679 = vadd.f32 %v3448, %v3678
    %v3680 = vpop.f32.mrf.mxu0
    %3681 = vmatprep.mubr.f32.mxu0 0.0
    %3682 = vmatmul.mubr.f32.gmra.mxu0 %v3504
    %v3683 = vpop.f32.mrf.mxu0
    %v3684 = vadd.f32 %v3448, %v3683
    %v3685 = vpop.f32.mrf.mxu0
    %3686 = vmatprep.mubr.f32.mxu0 0.0
    %3687 = vmatmul.mubr.f32.gmra.mxu0 %v3507
    %v3688 = vpop.f32.mrf.mxu0
    %v3689 = vadd.f32 %v3448, %v3688
    %v3690 = vpop.f32.mrf.mxu0
    %3691 = vmatprep.mubr.f32.mxu0 0.0
    %3692 = vmatmul.mubr.f32.gmra.mxu0 %v3510
    %v3693 = vpop.f32.mrf.mxu0
    %v3694 = vadd.f32 %v3448, %v3693
    %v3695 = vpop.f32.mrf.mxu0
    %3696 = vmatprep.mubr.f32.mxu0 0.0
    %3697 = vmatmul.mubr.f32.gmra.mxu0 %v3513
    %v3698 = vpop.f32.mrf.mxu0
    %v3699 = vadd.f32 %v3448, %v3698
    %v3700 = vpop.f32.mrf.mxu0
    %3701 = vmatprep.mubr.f32.mxu0 0.0
    %3702 = vmatmul.mubr.f32.gmra.mxu0 %v3516
    %v3703 = vpop.f32.mrf.mxu0
    %v3704 = vadd.f32 %v3448, %v3703
    %v3705 = vpop.f32.mrf.mxu0
    %3706 = vmatprep.mubr.f32.mxu0 0.0
    %3707 = vmatmul.mubr.f32.gmra.mxu0 %v3519
    %v3708 = vpop.f32.mrf.mxu0
    %v3709 = vadd.f32 %v3448, %v3708
    %v3710 = vpop.f32.mrf.mxu0
    %3711 = vmatprep.mubr.f32.mxu0 0.0
    %3712 = vmatmul.mubr.f32.gmra.mxu0 %v3522
    %v3713 = vpop.f32.mrf.mxu0
    %v3714 = vadd.f32 %v3448, %v3713
    %v3715 = vpop.f32.mrf.mxu0
    %3716 = vmatprep.mubr.f32.mxu0 0.0
    %3717 = vmatmul.mubr.f32.gmra.mxu0 %v3525
    %v3718 = vpop.f32.mrf.mxu0
    %v3719 = vadd.f32 %v3448, %v3718
    %v3720 = vpop.f32.mrf.mxu0
    %3721 = vdwg.mxu0
    %v3722 = vadd.f32 %v3594, %v2490
    %v3723 = vadd.f32 %v3599, %v2491
    %v3724 = vadd.f32 %v3604, %v2492
    %v3725 = vadd.f32 %v3609, %v2493
    %v3726 = vadd.f32 %v3614, %v2494
    %v3727 = vadd.f32 %v3619, %v2495
    %v3728 = vadd.f32 %v3624, %v2496
    %v3729 = vadd.f32 %v3629, %v2497
    %v3730 = vadd.f32 %v3634, %v2498
    %v3731 = vadd.f32 %v3639, %v2499
    %v3732 = vadd.f32 %v3644, %v2500
    %v3733 = vadd.f32 %v3649, %v2501
    %v3734 = vadd.f32 %v3654, %v2502
    %v3735 = vadd.f32 %v3659, %v2503
    %v3736 = vadd.f32 %v3664, %v2504
    %v3737 = vadd.f32 %v3669, %v2505
    %v3738 = vadd.f32 %v3674, %v2506
    %v3739 = vadd.f32 %v3679, %v2507
    %v3740 = vadd.f32 %v3684, %v2508
    %v3741 = vadd.f32 %v3689, %v2509
    %v3742 = vadd.f32 %v3694, %v2510
    %v3743 = vadd.f32 %v3699, %v2511
    %v3744 = vadd.f32 %v3704, %v2512
    %v3745 = vadd.f32 %v3709, %v2513
    %v3746 = vadd.f32 %v3714, %v2514
    %v3747 = vadd.f32 %v3719, %v2515
    %v3748 = vsel %vm728, %v3722, 0.0
    %3749 = vadd.xlane.f32.xlu0 %v3748
    %v3750 = vpop.xlane.xlu0 %3749
    %v3751 = vsel %vm728, %v3723, 0.0
    %3752 = vadd.xlane.f32.xlu0 %v3751
    %v3753 = vpop.xlane.xlu0 %3752
    %v3754 = vsel %vm728, %v3724, 0.0
    %3755 = vadd.xlane.f32.xlu0 %v3754
    %v3756 = vpop.xlane.xlu0 %3755
    %v3757 = vsel %vm728, %v3725, 0.0
    %3758 = vadd.xlane.f32.xlu0 %v3757
    %v3759 = vpop.xlane.xlu0 %3758
    %v3760 = vsel %vm728, %v3726, 0.0
    %3761 = vadd.xlane.f32.xlu0 %v3760
    %v3762 = vpop.xlane.xlu0 %3761
    %v3763 = vsel %vm728, %v3727, 0.0
    %3764 = vadd.xlane.f32.xlu0 %v3763
    %v3765 = vpop.xlane.xlu0 %3764
    %v3766 = vsel %vm728, %v3728, 0.0
    %3767 = vadd.xlane.f32.xlu0 %v3766
    %v3768 = vpop.xlane.xlu0 %3767
    %v3769 = vsel %vm728, %v3729, 0.0
    %3770 = vadd.xlane.f32.xlu0 %v3769
    %v3771 = vpop.xlane.xlu0 %3770
    %v3772 = vsel %vm728, %v3730, 0.0
    %3773 = vadd.xlane.f32.xlu0 %v3772
    %v3774 = vpop.xlane.xlu0 %3773
    %v3775 = vsel %vm728, %v3731, 0.0
    %3776 = vadd.xlane.f32.xlu0 %v3775
    %v3777 = vpop.xlane.xlu0 %3776
    %v3778 = vsel %vm728, %v3732, 0.0
    %3779 = vadd.xlane.f32.xlu0 %v3778
    %v3780 = vpop.xlane.xlu0 %3779
    %v3781 = vsel %vm728, %v3733, 0.0
    %3782 = vadd.xlane.f32.xlu0 %v3781
    %v3783 = vpop.xlane.xlu0 %3782
    %v3784 = vsel %vm728, %v3734, 0.0
    %3785 = vadd.xlane.f32.xlu0 %v3784
    %v3786 = vpop.xlane.xlu0 %3785
    %v3787 = vsel %vm728, %v3735, 0.0
    %3788 = vadd.xlane.f32.xlu0 %v3787
    %v3789 = vpop.xlane.xlu0 %3788
    %v3790 = vsel %vm728, %v3736, 0.0
    %3791 = vadd.xlane.f32.xlu0 %v3790
    %v3792 = vpop.xlane.xlu0 %3791
    %v3793 = vsel %vm728, %v3737, 0.0
    %3794 = vadd.xlane.f32.xlu0 %v3793
    %v3795 = vpop.xlane.xlu0 %3794
    %v3796 = vsel %vm728, %v3738, 0.0
    %3797 = vadd.xlane.f32.xlu0 %v3796
    %v3798 = vpop.xlane.xlu0 %3797
    %v3799 = vsel %vm728, %v3739, 0.0
    %3800 = vadd.xlane.f32.xlu0 %v3799
    %v3801 = vpop.xlane.xlu0 %3800
    %v3802 = vsel %vm728, %v3740, 0.0
    %3803 = vadd.xlane.f32.xlu0 %v3802
    %v3804 = vpop.xlane.xlu0 %3803
    %v3805 = vsel %vm728, %v3741, 0.0
    %3806 = vadd.xlane.f32.xlu0 %v3805
    %v3807 = vpop.xlane.xlu0 %3806
    %v3808 = vsel %vm728, %v3742, 0.0
    %3809 = vadd.xlane.f32.xlu0 %v3808
    %v3810 = vpop.xlane.xlu0 %3809
    %v3811 = vsel %vm728, %v3743, 0.0
    %3812 = vadd.xlane.f32.xlu0 %v3811
    %v3813 = vpop.xlane.xlu0 %3812
    %v3814 = vsel %vm728, %v3744, 0.0
    %3815 = vadd.xlane.f32.xlu0 %v3814
    %v3816 = vpop.xlane.xlu0 %3815
    %v3817 = vsel %vm728, %v3745, 0.0
    %3818 = vadd.xlane.f32.xlu0 %v3817
    %v3819 = vpop.xlane.xlu0 %3818
    %v3820 = vsel %vm728, %v3746, 0.0
    %3821 = vadd.xlane.f32.xlu0 %v3820
    %v3822 = vpop.xlane.xlu0 %3821
    %v3823 = vsel %vm728, %v3747, 0.0
    %3824 = vadd.xlane.f32.xlu0 %v3823
    %v3825 = vpop.xlane.xlu0 %3824
    %v3826 = vmul.f32 %v3750, %v2809
    %v3827 = vmul.f32 %v3753, %v2809
    %v3828 = vmul.f32 %v3756, %v2809
    %v3829 = vmul.f32 %v3759, %v2809
    %v3830 = vmul.f32 %v3762, %v2809
    %v3831 = vmul.f32 %v3765, %v2809
    %v3832 = vmul.f32 %v3768, %v2809
    %v3833 = vmul.f32 %v3771, %v2809
    %v3834 = vmul.f32 %v3774, %v2809
    %v3835 = vmul.f32 %v3777, %v2809
    %v3836 = vmul.f32 %v3780, %v2809
    %v3837 = vmul.f32 %v3783, %v2809
    %v3838 = vmul.f32 %v3786, %v2809
    %v3839 = vmul.f32 %v3789, %v2809
    %v3840 = vmul.f32 %v3792, %v2809
    %v3841 = vmul.f32 %v3795, %v2809
    %v3842 = vmul.f32 %v3798, %v2809
    %v3843 = vmul.f32 %v3801, %v2809
    %v3844 = vmul.f32 %v3804, %v2809
    %v3845 = vmul.f32 %v3807, %v2809
    %v3846 = vmul.f32 %v3810, %v2809
    %v3847 = vmul.f32 %v3813, %v2809
    %v3848 = vmul.f32 %v3816, %v2809
    %v3849 = vmul.f32 %v3819, %v2809
    %v3850 = vmul.f32 %v3822, %v2809
    %v3851 = vmul.f32 %v3825, %v2809
    %v3852 = vsub.f32 %v3722, %v3826
    %v3853 = vsub.f32 %v3723, %v3827
    %v3854 = vsub.f32 %v3724, %v3828
    %v3855 = vsub.f32 %v3725, %v3829
    %v3856 = vsub.f32 %v3726, %v3830
    %v3857 = vsub.f32 %v3727, %v3831
    %v3858 = vsub.f32 %v3728, %v3832
    %v3859 = vsub.f32 %v3729, %v3833
    %v3860 = vsub.f32 %v3730, %v3834
    %v3861 = vsub.f32 %v3731, %v3835
    %v3862 = vsub.f32 %v3732, %v3836
    %v3863 = vsub.f32 %v3733, %v3837
    %v3864 = vsub.f32 %v3734, %v3838
    %v3865 = vsub.f32 %v3735, %v3839
    %v3866 = vsub.f32 %v3736, %v3840
    %v3867 = vsub.f32 %v3737, %v3841
    %v3868 = vsub.f32 %v3738, %v3842
    %v3869 = vsub.f32 %v3739, %v3843
    %v3870 = vsub.f32 %v3740, %v3844
    %v3871 = vsub.f32 %v3741, %v3845
    %v3872 = vsub.f32 %v3742, %v3846
    %v3873 = vsub.f32 %v3743, %v3847
    %v3874 = vsub.f32 %v3744, %v3848
    %v3875 = vsub.f32 %v3745, %v3849
    %v3876 = vsub.f32 %v3746, %v3850
    %v3877 = vsub.f32 %v3747, %v3851
    %v3878 = vmul.f32 %v3852, %v3852
    %v3879 = vmul.f32 %v3853, %v3853
    %v3880 = vmul.f32 %v3854, %v3854
    %v3881 = vmul.f32 %v3855, %v3855
    %v3882 = vmul.f32 %v3856, %v3856
    %v3883 = vmul.f32 %v3857, %v3857
    %v3884 = vmul.f32 %v3858, %v3858
    %v3885 = vmul.f32 %v3859, %v3859
    %v3886 = vmul.f32 %v3860, %v3860
    %v3887 = vmul.f32 %v3861, %v3861
    %v3888 = vmul.f32 %v3862, %v3862
    %v3889 = vmul.f32 %v3863, %v3863
    %v3890 = vmul.f32 %v3864, %v3864
    %v3891 = vmul.f32 %v3865, %v3865
    %v3892 = vmul.f32 %v3866, %v3866
    %v3893 = vmul.f32 %v3867, %v3867
    %v3894 = vmul.f32 %v3868, %v3868
    %v3895 = vmul.f32 %v3869, %v3869
    %v3896 = vmul.f32 %v3870, %v3870
    %v3897 = vmul.f32 %v3871, %v3871
    %v3898 = vmul.f32 %v3872, %v3872
    %v3899 = vmul.f32 %v3873, %v3873
    %v3900 = vmul.f32 %v3874, %v3874
    %v3901 = vmul.f32 %v3875, %v3875
    %v3902 = vmul.f32 %v3876, %v3876
    %v3903 = vmul.f32 %v3877, %v3877
    %v3904 = vsel %vm728, %v3878, 0.0
    %3905 = vadd.xlane.f32.xlu0 %v3904
    %v3906 = vpop.xlane.xlu0 %3905
    %v3907 = vsel %vm728, %v3879, 0.0
    %3908 = vadd.xlane.f32.xlu0 %v3907
    %v3909 = vpop.xlane.xlu0 %3908
    %v3910 = vsel %vm728, %v3880, 0.0
    %3911 = vadd.xlane.f32.xlu0 %v3910
    %v3912 = vpop.xlane.xlu0 %3911
    %v3913 = vsel %vm728, %v3881, 0.0
    %3914 = vadd.xlane.f32.xlu0 %v3913
    %v3915 = vpop.xlane.xlu0 %3914
    %v3916 = vsel %vm728, %v3882, 0.0
    %3917 = vadd.xlane.f32.xlu0 %v3916
    %v3918 = vpop.xlane.xlu0 %3917
    %v3919 = vsel %vm728, %v3883, 0.0
    %3920 = vadd.xlane.f32.xlu0 %v3919
    %v3921 = vpop.xlane.xlu0 %3920
    %v3922 = vsel %vm728, %v3884, 0.0
    %3923 = vadd.xlane.f32.xlu0 %v3922
    %v3924 = vpop.xlane.xlu0 %3923
    %v3925 = vsel %vm728, %v3885, 0.0
    %3926 = vadd.xlane.f32.xlu0 %v3925
    %v3927 = vpop.xlane.xlu0 %3926
    %v3928 = vsel %vm728, %v3886, 0.0
    %3929 = vadd.xlane.f32.xlu0 %v3928
    %v3930 = vpop.xlane.xlu0 %3929
    %v3931 = vsel %vm728, %v3887, 0.0
    %3932 = vadd.xlane.f32.xlu0 %v3931
    %v3933 = vpop.xlane.xlu0 %3932
    %v3934 = vsel %vm728, %v3888, 0.0
    %3935 = vadd.xlane.f32.xlu0 %v3934
    %v3936 = vpop.xlane.xlu0 %3935
    %v3937 = vsel %vm728, %v3889, 0.0
    %3938 = vadd.xlane.f32.xlu0 %v3937
    %v3939 = vpop.xlane.xlu0 %3938
    %v3940 = vsel %vm728, %v3890, 0.0
    %3941 = vadd.xlane.f32.xlu0 %v3940
    %v3942 = vpop.xlane.xlu0 %3941
    %v3943 = vsel %vm728, %v3891, 0.0
    %3944 = vadd.xlane.f32.xlu0 %v3943
    %v3945 = vpop.xlane.xlu0 %3944
    %v3946 = vsel %vm728, %v3892, 0.0
    %3947 = vadd.xlane.f32.xlu0 %v3946
    %v3948 = vpop.xlane.xlu0 %3947
    %v3949 = vsel %vm728, %v3893, 0.0
    %3950 = vadd.xlane.f32.xlu0 %v3949
    %v3951 = vpop.xlane.xlu0 %3950
    %v3952 = vsel %vm728, %v3894, 0.0
    %3953 = vadd.xlane.f32.xlu0 %v3952
    %v3954 = vpop.xlane.xlu0 %3953
    %v3955 = vsel %vm728, %v3895, 0.0
    %3956 = vadd.xlane.f32.xlu0 %v3955
    %v3957 = vpop.xlane.xlu0 %3956
    %v3958 = vsel %vm728, %v3896, 0.0
    %3959 = vadd.xlane.f32.xlu0 %v3958
    %v3960 = vpop.xlane.xlu0 %3959
    %v3961 = vsel %vm728, %v3897, 0.0
    %3962 = vadd.xlane.f32.xlu0 %v3961
    %v3963 = vpop.xlane.xlu0 %3962
    %v3964 = vsel %vm728, %v3898, 0.0
    %3965 = vadd.xlane.f32.xlu0 %v3964
    %v3966 = vpop.xlane.xlu0 %3965
    %v3967 = vsel %vm728, %v3899, 0.0
    %3968 = vadd.xlane.f32.xlu0 %v3967
    %v3969 = vpop.xlane.xlu0 %3968
    %v3970 = vsel %vm728, %v3900, 0.0
    %3971 = vadd.xlane.f32.xlu0 %v3970
    %v3972 = vpop.xlane.xlu0 %3971
    %v3973 = vsel %vm728, %v3901, 0.0
    %3974 = vadd.xlane.f32.xlu0 %v3973
    %v3975 = vpop.xlane.xlu0 %3974
    %v3976 = vsel %vm728, %v3902, 0.0
    %3977 = vadd.xlane.f32.xlu0 %v3976
    %v3978 = vpop.xlane.xlu0 %3977
    %v3979 = vsel %vm728, %v3903, 0.0
    %3980 = vadd.xlane.f32.xlu0 %v3979
    %v3981 = vpop.xlane.xlu0 %3980
    %v3982 = vmul.f32 %v3906, %v2809
    %v3983 = vmul.f32 %v3909, %v2809
    %v3984 = vmul.f32 %v3912, %v2809
    %v3985 = vmul.f32 %v3915, %v2809
    %v3986 = vmul.f32 %v3918, %v2809
    %v3987 = vmul.f32 %v3921, %v2809
    %v3988 = vmul.f32 %v3924, %v2809
    %v3989 = vmul.f32 %v3927, %v2809
    %v3990 = vmul.f32 %v3930, %v2809
    %v3991 = vmul.f32 %v3933, %v2809
    %v3992 = vmul.f32 %v3936, %v2809
    %v3993 = vmul.f32 %v3939, %v2809
    %v3994 = vmul.f32 %v3942, %v2809
    %v3995 = vmul.f32 %v3945, %v2809
    %v3996 = vmul.f32 %v3948, %v2809
    %v3997 = vmul.f32 %v3951, %v2809
    %v3998 = vmul.f32 %v3954, %v2809
    %v3999 = vmul.f32 %v3957, %v2809
    %v4000 = vmul.f32 %v3960, %v2809
    %v4001 = vmul.f32 %v3963, %v2809
    %v4002 = vmul.f32 %v3966, %v2809
    %v4003 = vmul.f32 %v3969, %v2809
    %v4004 = vmul.f32 %v3972, %v2809
    %v4005 = vmul.f32 %v3975, %v2809
    %v4006 = vmul.f32 %v3978, %v2809
    %v4007 = vmul.f32 %v3981, %v2809
    %v4008 = vadd.f32 %v3982, 1e-05
    %v4009 = vadd.f32 %v3983, 1e-05
    %v4010 = vadd.f32 %v3984, 1e-05
    %v4011 = vadd.f32 %v3985, 1e-05
    %v4012 = vadd.f32 %v3986, 1e-05
    %v4013 = vadd.f32 %v3987, 1e-05
    %v4014 = vadd.f32 %v3988, 1e-05
    %v4015 = vadd.f32 %v3989, 1e-05
    %v4016 = vadd.f32 %v3990, 1e-05
    %v4017 = vadd.f32 %v3991, 1e-05
    %v4018 = vadd.f32 %v3992, 1e-05
    %v4019 = vadd.f32 %v3993, 1e-05
    %v4020 = vadd.f32 %v3994, 1e-05
    %v4021 = vadd.f32 %v3995, 1e-05
    %v4022 = vadd.f32 %v3996, 1e-05
    %v4023 = vadd.f32 %v3997, 1e-05
    %v4024 = vadd.f32 %v3998, 1e-05
    %v4025 = vadd.f32 %v3999, 1e-05
    %v4026 = vadd.f32 %v4000, 1e-05
    %v4027 = vadd.f32 %v4001, 1e-05
    %v4028 = vadd.f32 %v4002, 1e-05
    %v4029 = vadd.f32 %v4003, 1e-05
    %v4030 = vadd.f32 %v4004, 1e-05
    %v4031 = vadd.f32 %v4005, 1e-05
    %v4032 = vadd.f32 %v4006, 1e-05
    %v4033 = vadd.f32 %v4007, 1e-05
    %v4034 = vrsqrt.pop %v4008
    %v4035 = vrsqrt.pop %v4009
    %v4036 = vrsqrt.pop %v4010
    %v4037 = vrsqrt.pop %v4011
    %v4038 = vrsqrt.pop %v4012
    %v4039 = vrsqrt.pop %v4013
    %v4040 = vrsqrt.pop %v4014
    %v4041 = vrsqrt.pop %v4015
    %v4042 = vrsqrt.pop %v4016
    %v4043 = vrsqrt.pop %v4017
    %v4044 = vrsqrt.pop %v4018
    %v4045 = vrsqrt.pop %v4019
    %v4046 = vrsqrt.pop %v4020
    %v4047 = vrsqrt.pop %v4021
    %v4048 = vrsqrt.pop %v4022
    %v4049 = vrsqrt.pop %v4023
    %v4050 = vrsqrt.pop %v4024
    %v4051 = vrsqrt.pop %v4025
    %v4052 = vrsqrt.pop %v4026
    %v4053 = vrsqrt.pop %v4027
    %v4054 = vrsqrt.pop %v4028
    %v4055 = vrsqrt.pop %v4029
    %v4056 = vrsqrt.pop %v4030
    %v4057 = vrsqrt.pop %v4031
    %v4058 = vrsqrt.pop %v4032
    %v4059 = vrsqrt.pop %v4033
    %v4060 = vmul.f32 %v3852, %v4034
    %v4061 = vmul.f32 %v3853, %v4035
    %v4062 = vmul.f32 %v3854, %v4036
    %v4063 = vmul.f32 %v3855, %v4037
    %v4064 = vmul.f32 %v3856, %v4038
    %v4065 = vmul.f32 %v3857, %v4039
    %v4066 = vmul.f32 %v3858, %v4040
    %v4067 = vmul.f32 %v3859, %v4041
    %v4068 = vmul.f32 %v3860, %v4042
    %v4069 = vmul.f32 %v3861, %v4043
    %v4070 = vmul.f32 %v3862, %v4044
    %v4071 = vmul.f32 %v3863, %v4045
    %v4072 = vmul.f32 %v3864, %v4046
    %v4073 = vmul.f32 %v3865, %v4047
    %v4074 = vmul.f32 %v3866, %v4048
    %v4075 = vmul.f32 %v3867, %v4049
    %v4076 = vmul.f32 %v3868, %v4050
    %v4077 = vmul.f32 %v3869, %v4051
    %v4078 = vmul.f32 %v3870, %v4052
    %v4079 = vmul.f32 %v3871, %v4053
    %v4080 = vmul.f32 %v3872, %v4054
    %v4081 = vmul.f32 %v3873, %v4055
    %v4082 = vmul.f32 %v3874, %v4056
    %v4083 = vmul.f32 %v3875, %v4057
    %v4084 = vmul.f32 %v3876, %v4058
    %v4085 = vmul.f32 %v3877, %v4059
    %v4086 = vld [vmem:[%s11 + $0x4] sm:$0x1]
    %v4087 = vlaneseq
    %v4088 = vshrl.u32 %v4087, 7
    %v4089 = vsub.s32 0, %v4088
    %v4090 = vrot.slane %v4086, %v4089
    %v4091 = vmul.f32 %v4060, %v4090
    %v4092 = vmul.f32 %v4061, %v4090
    %v4093 = vmul.f32 %v4062, %v4090
    %v4094 = vmul.f32 %v4063, %v4090
    %v4095 = vmul.f32 %v4064, %v4090
    %v4096 = vmul.f32 %v4065, %v4090
    %v4097 = vmul.f32 %v4066, %v4090
    %v4098 = vmul.f32 %v4067, %v4090
    %v4099 = vmul.f32 %v4068, %v4090
    %v4100 = vmul.f32 %v4069, %v4090
    %v4101 = vmul.f32 %v4070, %v4090
    %v4102 = vmul.f32 %v4071, %v4090
    %v4103 = vmul.f32 %v4072, %v4090
    %v4104 = vmul.f32 %v4073, %v4090
    %v4105 = vmul.f32 %v4074, %v4090
    %v4106 = vmul.f32 %v4075, %v4090
    %v4107 = vmul.f32 %v4076, %v4090
    %v4108 = vmul.f32 %v4077, %v4090
    %v4109 = vmul.f32 %v4078, %v4090
    %v4110 = vmul.f32 %v4079, %v4090
    %v4111 = vmul.f32 %v4080, %v4090
    %v4112 = vmul.f32 %v4081, %v4090
    %v4113 = vmul.f32 %v4082, %v4090
    %v4114 = vmul.f32 %v4083, %v4090
    %v4115 = vmul.f32 %v4084, %v4090
    %v4116 = vmul.f32 %v4085, %v4090
    %v4117 = vld [vmem:[%s11 + $0x5] sm:$0x1]
    %v4118 = vlaneseq
    %v4119 = vshrl.u32 %v4118, 7
    %v4120 = vsub.s32 0, %v4119
    %v4121 = vrot.slane %v4117, %v4120
    %v4122 = vadd.f32 %v4091, %v4121
    %v4123 = vadd.f32 %v4092, %v4121
    %v4124 = vadd.f32 %v4093, %v4121
    %v4125 = vadd.f32 %v4094, %v4121
    %v4126 = vadd.f32 %v4095, %v4121
    %v4127 = vadd.f32 %v4096, %v4121
    %v4128 = vadd.f32 %v4097, %v4121
    %v4129 = vadd.f32 %v4098, %v4121
    %v4130 = vadd.f32 %v4099, %v4121
    %v4131 = vadd.f32 %v4100, %v4121
    %v4132 = vadd.f32 %v4101, %v4121
    %v4133 = vadd.f32 %v4102, %v4121
    %v4134 = vadd.f32 %v4103, %v4121
    %v4135 = vadd.f32 %v4104, %v4121
    %v4136 = vadd.f32 %v4105, %v4121
    %v4137 = vadd.f32 %v4106, %v4121
    %v4138 = vadd.f32 %v4107, %v4121
    %v4139 = vadd.f32 %v4108, %v4121
    %v4140 = vadd.f32 %v4109, %v4121
    %v4141 = vadd.f32 %v4110, %v4121
    %v4142 = vadd.f32 %v4111, %v4121
    %v4143 = vadd.f32 %v4112, %v4121
    %v4144 = vadd.f32 %v4113, %v4121
    %v4145 = vadd.f32 %v4114, %v4121
    %v4146 = vadd.f32 %v4115, %v4121
    %v4147 = vadd.f32 %v4116, %v4121
    %v4148 = vld [vmem:[%s10] sm:$0xff]
    %v4149 = vld [vmem:[%s10 + $0x8] sm:$0xff]
    %v4150 = vld [vmem:[%s10 + $0x10] sm:$0xff]
    %v4151 = vld [vmem:[%s10 + $0x18] sm:$0xff]
    %v4152 = vld [vmem:[%s11 + $0x6] sm:$0x1]
    %v4153 = vlaneseq
    %v4154 = vshrl.u32 %v4153, 7
    %v4155 = vsub.s32 0, %v4154
    %v4156 = vrot.slane %v4152, %v4155
    %v4158 = vsel %vm728, %v4122, 0
    %v4161 = vsel %vm728, %v4123, 0
    %v4164 = vsel %vm728, %v4124, 0
    %v4167 = vsel %vm728, %v4125, 0
    %v4170 = vsel %vm728, %v4126, 0
    %v4173 = vsel %vm728, %v4127, 0
    %v4176 = vsel %vm728, %v4128, 0
    %v4179 = vsel %vm728, %v4129, 0
    %v4182 = vsel %vm728, %v4130, 0
    %v4185 = vsel %vm728, %v4131, 0
    %v4188 = vsel %vm728, %v4132, 0
    %v4191 = vsel %vm728, %v4133, 0
    %v4194 = vsel %vm728, %v4134, 0
    %v4197 = vsel %vm728, %v4135, 0
    %v4200 = vsel %vm728, %v4136, 0
    %v4203 = vsel %vm728, %v4137, 0
    %v4206 = vsel %vm728, %v4138, 0
    %v4209 = vsel %vm728, %v4139, 0
    %v4212 = vsel %vm728, %v4140, 0
    %v4215 = vsel %vm728, %v4141, 0
    %v4218 = vsel %vm728, %v4142, 0
    %v4221 = vsel %vm728, %v4143, 0
    %v4224 = vsel %vm728, %v4144, 0
    %v4227 = vsel %vm728, %v4145, 0
    %v4230 = vsel %vm728, %v4146, 0
    %v4233 = vsel %vm728, %v4147, 0
    %4235 = vmatprep.subr.mxu0 0.0
    %4236 = vmatpush1.msra.mxu0 0.0
    %4237 = vmatprep.subr.mxu0 0.0
    %4238 = vmatpush1.msra.mxu0 0.0
    %4239 = vmatprep.subr.mxu0 0.0
    %4240 = vmatpush1.msra.mxu0 0.0
    %4241 = vmatprep.subr.mxu0 0.0
    %4242 = vmatpush1.msra.mxu0 0.0
    %4243 = vmatprep.subr.mxu0 0.0
    %4244 = vmatpush1.msra.mxu0 0.0
    %4245 = vmatprep.subr.mxu0 0.0
    %4246 = vmatpush1.msra.mxu0 0.0
    %4247 = vmatprep.subr.mxu0 0.0
    %4248 = vmatpush1.msra.mxu0 0.0
    %4249 = vmatprep.subr.mxu0 0.0
    %4250 = vmatpush1.msra.mxu0 0.0
    %4251 = vmatprep.subr.mxu0 0.0
    %4252 = vmatpush1.msra.mxu0 0.0
    %4253 = vmatprep.subr.mxu0 0.0
    %4254 = vmatpush1.msra.mxu0 0.0
    %4255 = vmatprep.subr.mxu0 0.0
    %4256 = vmatpush1.msra.mxu0 0.0
    %4257 = vmatprep.subr.mxu0 0.0
    %4258 = vmatpush1.msra.mxu0 0.0
    %4259 = vmatprep.subr.mxu0 0.0
    %4260 = vmatpush1.msra.mxu0 %v4151
    %4261 = vmatprep.subr.mxu0 0.0
    %4262 = vmatpush1.msra.mxu0 %v4150
    %4263 = vmatprep.subr.mxu0 0.0
    %4264 = vmatpush1.msra.mxu0 %v4149
    %4265 = vmatprep.subr.mxu0 0.0
    %4266 = vmatpush1.msra.mxu0 %v4148
    %4267 = vmatprep.subr.mxu0 0.0
    %4268 = vmatpush2.msra.mxu0 0.0
    %4269 = vmatprep.subr.mxu0 0.0
    %4270 = vmatpush2.msra.mxu0 0.0
    %4271 = vmatprep.subr.mxu0 0.0
    %4272 = vmatpush2.msra.mxu0 0.0
    %4273 = vmatprep.subr.mxu0 0.0
    %4274 = vmatpush2.msra.mxu0 0.0
    %4275 = vmatprep.subr.mxu0 0.0
    %4276 = vmatpush2.msra.mxu0 0.0
    %4277 = vmatprep.subr.mxu0 0.0
    %4278 = vmatpush2.msra.mxu0 0.0
    %4279 = vmatprep.subr.mxu0 0.0
    %4280 = vmatpush2.msra.mxu0 0.0
    %4281 = vmatprep.subr.mxu0 0.0
    %4282 = vmatpush2.msra.mxu0 0.0
    %4283 = vmatprep.subr.mxu0 0.0
    %4284 = vmatpush2.msra.mxu0 0.0
    %4285 = vmatprep.subr.mxu0 0.0
    %4286 = vmatpush2.msra.mxu0 0.0
    %4287 = vmatprep.subr.mxu0 0.0
    %4288 = vmatpush2.msra.mxu0 0.0
    %4289 = vmatprep.subr.mxu0 0.0
    %4290 = vmatpush2.msra.mxu0 0.0
    %4291 = vmatprep.subr.mxu0 0.0
    %4292 = vmatpush2.msra.mxu0 0.0
    %4293 = vmatprep.subr.mxu0 0.0
    %4294 = vmatpush2.msra.mxu0 0.0
    %4295 = vmatprep.subr.mxu0 0.0
    %4296 = vmatpush2.msra.mxu0 0.0
    %4297 = vmatprep.subr.mxu0 0.0
    %4298 = vmatpush2.msra.mxu0 0.0
    %4299 = vmatprep.mubr.f32.mxu0 0.0
    %4300 = vmatmul.mubr.f32.gmra.mxu0 %v4158
    %v4301 = vpop.f32.mrf.mxu0
    %v4302 = vadd.f32 %v4156, %v4301
    %v4303 = vpop.f32.mrf.mxu0
    %4304 = vmatprep.mubr.f32.mxu0 0.0
    %4305 = vmatmul.mubr.f32.gmra.mxu0 %v4161
    %v4306 = vpop.f32.mrf.mxu0
    %v4307 = vadd.f32 %v4156, %v4306
    %v4308 = vpop.f32.mrf.mxu0
    %4309 = vmatprep.mubr.f32.mxu0 0.0
    %4310 = vmatmul.mubr.f32.gmra.mxu0 %v4164
    %v4311 = vpop.f32.mrf.mxu0
    %v4312 = vadd.f32 %v4156, %v4311
    %v4313 = vpop.f32.mrf.mxu0
    %4314 = vmatprep.mubr.f32.mxu0 0.0
    %4315 = vmatmul.mubr.f32.gmra.mxu0 %v4167
    %v4316 = vpop.f32.mrf.mxu0
    %v4317 = vadd.f32 %v4156, %v4316
    %v4318 = vpop.f32.mrf.mxu0
    %4319 = vmatprep.mubr.f32.mxu0 0.0
    %4320 = vmatmul.mubr.f32.gmra.mxu0 %v4170
    %v4321 = vpop.f32.mrf.mxu0
    %v4322 = vadd.f32 %v4156, %v4321
    %v4323 = vpop.f32.mrf.mxu0
    %4324 = vmatprep.mubr.f32.mxu0 0.0
    %4325 = vmatmul.mubr.f32.gmra.mxu0 %v4173
    %v4326 = vpop.f32.mrf.mxu0
    %v4327 = vadd.f32 %v4156, %v4326
    %v4328 = vpop.f32.mrf.mxu0
    %4329 = vmatprep.mubr.f32.mxu0 0.0
    %4330 = vmatmul.mubr.f32.gmra.mxu0 %v4176
    %v4331 = vpop.f32.mrf.mxu0
    %v4332 = vadd.f32 %v4156, %v4331
    %v4333 = vpop.f32.mrf.mxu0
    %4334 = vmatprep.mubr.f32.mxu0 0.0
    %4335 = vmatmul.mubr.f32.gmra.mxu0 %v4179
    %v4336 = vpop.f32.mrf.mxu0
    %v4337 = vadd.f32 %v4156, %v4336
    %v4338 = vpop.f32.mrf.mxu0
    %4339 = vmatprep.mubr.f32.mxu0 0.0
    %4340 = vmatmul.mubr.f32.gmra.mxu0 %v4182
    %v4341 = vpop.f32.mrf.mxu0
    %v4342 = vadd.f32 %v4156, %v4341
    %v4343 = vpop.f32.mrf.mxu0
    %4344 = vmatprep.mubr.f32.mxu0 0.0
    %4345 = vmatmul.mubr.f32.gmra.mxu0 %v4185
    %v4346 = vpop.f32.mrf.mxu0
    %v4347 = vadd.f32 %v4156, %v4346
    %v4348 = vpop.f32.mrf.mxu0
    %4349 = vmatprep.mubr.f32.mxu0 0.0
    %4350 = vmatmul.mubr.f32.gmra.mxu0 %v4188
    %v4351 = vpop.f32.mrf.mxu0
    %v4352 = vadd.f32 %v4156, %v4351
    %v4353 = vpop.f32.mrf.mxu0
    %4354 = vmatprep.mubr.f32.mxu0 0.0
    %4355 = vmatmul.mubr.f32.gmra.mxu0 %v4191
    %v4356 = vpop.f32.mrf.mxu0
    %v4357 = vadd.f32 %v4156, %v4356
    %v4358 = vpop.f32.mrf.mxu0
    %4359 = vmatprep.mubr.f32.mxu0 0.0
    %4360 = vmatmul.mubr.f32.gmra.mxu0 %v4194
    %v4361 = vpop.f32.mrf.mxu0
    %v4362 = vadd.f32 %v4156, %v4361
    %v4363 = vpop.f32.mrf.mxu0
    %4364 = vmatprep.mubr.f32.mxu0 0.0
    %4365 = vmatmul.mubr.f32.gmra.mxu0 %v4197
    %v4366 = vpop.f32.mrf.mxu0
    %v4367 = vadd.f32 %v4156, %v4366
    %v4368 = vpop.f32.mrf.mxu0
    %4369 = vmatprep.mubr.f32.mxu0 0.0
    %4370 = vmatmul.mubr.f32.gmra.mxu0 %v4200
    %v4371 = vpop.f32.mrf.mxu0
    %v4372 = vadd.f32 %v4156, %v4371
    %v4373 = vpop.f32.mrf.mxu0
    %4374 = vmatprep.mubr.f32.mxu0 0.0
    %4375 = vmatmul.mubr.f32.gmra.mxu0 %v4203
    %v4376 = vpop.f32.mrf.mxu0
    %v4377 = vadd.f32 %v4156, %v4376
    %v4378 = vpop.f32.mrf.mxu0
    %4379 = vmatprep.mubr.f32.mxu0 0.0
    %4380 = vmatmul.mubr.f32.gmra.mxu0 %v4206
    %v4381 = vpop.f32.mrf.mxu0
    %v4382 = vadd.f32 %v4156, %v4381
    %v4383 = vpop.f32.mrf.mxu0
    %4384 = vmatprep.mubr.f32.mxu0 0.0
    %4385 = vmatmul.mubr.f32.gmra.mxu0 %v4209
    %v4386 = vpop.f32.mrf.mxu0
    %v4387 = vadd.f32 %v4156, %v4386
    %v4388 = vpop.f32.mrf.mxu0
    %4389 = vmatprep.mubr.f32.mxu0 0.0
    %4390 = vmatmul.mubr.f32.gmra.mxu0 %v4212
    %v4391 = vpop.f32.mrf.mxu0
    %v4392 = vadd.f32 %v4156, %v4391
    %v4393 = vpop.f32.mrf.mxu0
    %4394 = vmatprep.mubr.f32.mxu0 0.0
    %4395 = vmatmul.mubr.f32.gmra.mxu0 %v4215
    %v4396 = vpop.f32.mrf.mxu0
    %v4397 = vadd.f32 %v4156, %v4396
    %v4398 = vpop.f32.mrf.mxu0
    %4399 = vmatprep.mubr.f32.mxu0 0.0
    %4400 = vmatmul.mubr.f32.gmra.mxu0 %v4218
    %v4401 = vpop.f32.mrf.mxu0
    %v4402 = vadd.f32 %v4156, %v4401
    %v4403 = vpop.f32.mrf.mxu0
    %4404 = vmatprep.mubr.f32.mxu0 0.0
    %4405 = vmatmul.mubr.f32.gmra.mxu0 %v4221
    %v4406 = vpop.f32.mrf.mxu0
    %v4407 = vadd.f32 %v4156, %v4406
    %v4408 = vpop.f32.mrf.mxu0
    %4409 = vmatprep.mubr.f32.mxu0 0.0
    %4410 = vmatmul.mubr.f32.gmra.mxu0 %v4224
    %v4411 = vpop.f32.mrf.mxu0
    %v4412 = vadd.f32 %v4156, %v4411
    %v4413 = vpop.f32.mrf.mxu0
    %4414 = vmatprep.mubr.f32.mxu0 0.0
    %4415 = vmatmul.mubr.f32.gmra.mxu0 %v4227
    %v4416 = vpop.f32.mrf.mxu0
    %v4417 = vadd.f32 %v4156, %v4416
    %v4418 = vpop.f32.mrf.mxu0
    %4419 = vmatprep.mubr.f32.mxu0 0.0
    %4420 = vmatmul.mubr.f32.gmra.mxu0 %v4230
    %v4421 = vpop.f32.mrf.mxu0
    %v4422 = vadd.f32 %v4156, %v4421
    %v4423 = vpop.f32.mrf.mxu0
    %4424 = vmatprep.mubr.f32.mxu0 0.0
    %4425 = vmatmul.mubr.f32.gmra.mxu0 %v4233
    %v4426 = vpop.f32.mrf.mxu0
    %v4427 = vadd.f32 %v4156, %v4426
    %v4428 = vpop.f32.mrf.mxu0
    %4429 = vdwg.mxu0
    %v4430 = vmax.f32 %v4302, 0.0
    %v4431 = vmax.f32 %v4307, 0.0
    %v4432 = vmax.f32 %v4312, 0.0
    %v4433 = vmax.f32 %v4317, 0.0
    %v4434 = vmax.f32 %v4322, 0.0
    %v4435 = vmax.f32 %v4327, 0.0
    %v4436 = vmax.f32 %v4332, 0.0
    %v4437 = vmax.f32 %v4337, 0.0
    %v4438 = vmax.f32 %v4342, 0.0
    %v4439 = vmax.f32 %v4347, 0.0
    %v4440 = vmax.f32 %v4352, 0.0
    %v4441 = vmax.f32 %v4357, 0.0
    %v4442 = vmax.f32 %v4362, 0.0
    %v4443 = vmax.f32 %v4367, 0.0
    %v4444 = vmax.f32 %v4372, 0.0
    %v4445 = vmax.f32 %v4377, 0.0
    %v4446 = vmax.f32 %v4382, 0.0
    %v4447 = vmax.f32 %v4387, 0.0
    %v4448 = vmax.f32 %v4392, 0.0
    %v4449 = vmax.f32 %v4397, 0.0
    %v4450 = vmax.f32 %v4402, 0.0
    %v4451 = vmax.f32 %v4407, 0.0
    %v4452 = vmax.f32 %v4412, 0.0
    %v4453 = vmax.f32 %v4417, 0.0
    %v4454 = vmax.f32 %v4422, 0.0
    %v4455 = vmax.f32 %v4427, 0.0
    %v4456 = vld [vmem:[%s3] sm:$0x3]
    %v4458 = vlaneseq
    %v4459 = vshrl.u32 %v4458, 7
    %v4460 = vsub.s32 0, %v4459
    %v4461 = vrot.slane %v4456, %v4460
    %v4462 = vlaneseq
    %v4463 = vshrl.u32 %v4462, 7
    %v4464 = vsub.s32 1, %v4463
    %v4465 = vrot.slane %v4456, %v4464
    %v4467 = vsel %vm2021, %v4465, 0
    %4469 = vmatprep.subr.mxu0 0.0
    %4470 = vmatpush1.msra.mxu0 %v4445
    %4471 = vmatprep.subr.mxu0 0.0
    %4472 = vmatpush1.msra.mxu0 %v4444
    %4473 = vmatprep.subr.mxu0 0.0
    %4474 = vmatpush1.msra.mxu0 %v4443
    %4475 = vmatprep.subr.mxu0 0.0
    %4476 = vmatpush1.msra.mxu0 %v4442
    %4477 = vmatprep.subr.mxu0 0.0
    %4478 = vmatpush1.msra.mxu0 %v4441
    %4479 = vmatprep.subr.mxu0 0.0
    %4480 = vmatpush1.msra.mxu0 %v4440
    %4481 = vmatprep.subr.mxu0 0.0
    %4482 = vmatpush1.msra.mxu0 %v4439
    %4483 = vmatprep.subr.mxu0 0.0
    %4484 = vmatpush1.msra.mxu0 %v4438
    %4485 = vmatprep.subr.mxu0 0.0
    %4486 = vmatpush1.msra.mxu0 %v4437
    %4487 = vmatprep.subr.mxu0 0.0
    %4488 = vmatpush1.msra.mxu0 %v4436
    %4489 = vmatprep.subr.mxu0 0.0
    %4490 = vmatpush1.msra.mxu0 %v4435
    %4491 = vmatprep.subr.mxu0 0.0
    %4492 = vmatpush1.msra.mxu0 %v4434
    %4493 = vmatprep.subr.mxu0 0.0
    %4494 = vmatpush1.msra.mxu0 %v4433
    %4495 = vmatprep.subr.mxu0 0.0
    %4496 = vmatpush1.msra.mxu0 %v4432
    %4497 = vmatprep.subr.mxu0 0.0
    %4498 = vmatpush1.msra.mxu0 %v4431
    %4499 = vmatprep.subr.mxu0 0.0
    %4500 = vmatpush1.msra.mxu0 %v4430
    %4501 = vmatprep.subr.mxu0 0.0
    %4502 = vmatpush2.msra.mxu0 0.0
    %4503 = vmatprep.subr.mxu0 0.0
    %4504 = vmatpush2.msra.mxu0 0.0
    %4505 = vmatprep.subr.mxu0 0.0
    %4506 = vmatpush2.msra.mxu0 0.0
    %4507 = vmatprep.subr.mxu0 0.0
    %4508 = vmatpush2.msra.mxu0 0.0
    %4509 = vmatprep.subr.mxu0 0.0
    %4510 = vmatpush2.msra.mxu0 0.0
    %4511 = vmatprep.subr.mxu0 0.0
    %4512 = vmatpush2.msra.mxu0 0.0
    %4513 = vmatprep.subr.mxu0 0.0
    %4514 = vmatpush2.msra.mxu0 %v4455
    %4515 = vmatprep.subr.mxu0 0.0
    %4516 = vmatpush2.msra.mxu0 %v4454
    %4517 = vmatprep.subr.mxu0 0.0
    %4518 = vmatpush2.msra.mxu0 %v4453
    %4519 = vmatprep.subr.mxu0 0.0
    %4520 = vmatpush2.msra.mxu0 %v4452
    %4521 = vmatprep.subr.mxu0 0.0
    %4522 = vmatpush2.msra.mxu0 %v4451
    %4523 = vmatprep.subr.mxu0 0.0
    %4524 = vmatpush2.msra.mxu0 %v4450
    %4525 = vmatprep.subr.mxu0 0.0
    %4526 = vmatpush2.msra.mxu0 %v4449
    %4527 = vmatprep.subr.mxu0 0.0
    %4528 = vmatpush2.msra.mxu0 %v4448
    %4529 = vmatprep.subr.mxu0 0.0
    %4530 = vmatpush2.msra.mxu0 %v4447
    %4531 = vmatprep.subr.mxu0 0.0
    %4532 = vmatpush2.msra.mxu0 %v4446
    %4533 = vmatprep.mubr.f32.mxu0 %v4467
    %4534 = vmatmul.mubr.f32.gmra.mxu0 %v4461
    %v4535 = vpop.f32.mrf.mxu0
    %v4536 = vadd.f32 0.0, %v4535
    %v4537 = vpop.f32.mrf.mxu0
    %4538 = vdwg.mxu0
    %vm4539 = vcmask 253952
    %4540 = vst.msk [vmem:[#allocation4] sm:$0x1] %vm4539, %v4536
    %v4541 = vld [vmem:[#allocation3 + $0x68] sm:$0xf]
    %v4542 = vld [vmem:[#allocation3 + $0x6c] sm:$0xf]
    %v4543 = vld [vmem:[#allocation3 + $0x70] sm:$0xf]
    %v4544 = vld [vmem:[#allocation3 + $0x74] sm:$0xf]
    %v4545 = vld [vmem:[#allocation3 + $0x78] sm:$0xf]
    %v4546 = vld [vmem:[#allocation3 + $0x7c] sm:$0xf]
    %v4547 = vld [vmem:[#allocation3 + $0x80] sm:$0xf]
    %v4548 = vld [vmem:[#allocation3 + $0x84] sm:$0xf]
    %v4549 = vld [vmem:[#allocation3 + $0x88] sm:$0xf]
    %v4550 = vld [vmem:[#allocation3 + $0x8c] sm:$0xf]
    %v4551 = vld [vmem:[#allocation3 + $0x90] sm:$0xf]
    %v4552 = vld [vmem:[#allocation3 + $0x94] sm:$0xf]
    %v4553 = vld [vmem:[#allocation3 + $0x98] sm:$0xf]
    %v4554 = vld [vmem:[#allocation3 + $0x9c] sm:$0xf]
    %v4555 = vld [vmem:[#allocation3 + $0xa0] sm:$0xf]
    %v4556 = vld [vmem:[#allocation3 + $0xa4] sm:$0xf]
    %v4557 = vld [vmem:[#allocation3 + $0xa8] sm:$0xf]
    %v4558 = vld [vmem:[#allocation3 + $0xac] sm:$0xf]
    %v4559 = vld [vmem:[#allocation3 + $0xb0] sm:$0xf]
    %v4560 = vld [vmem:[#allocation3 + $0xb4] sm:$0xf]
    %v4561 = vld [vmem:[#allocation3 + $0xb8] sm:$0xf]
    %v4562 = vld [vmem:[#allocation3 + $0xbc] sm:$0xf]
    %v4563 = vld [vmem:[#allocation3 + $0xc0] sm:$0xf]
    %v4564 = vld [vmem:[#allocation3 + $0xc4] sm:$0xf]
    %v4565 = vld [vmem:[#allocation3 + $0xc8] sm:$0xf]
    %v4566 = vld [vmem:[#allocation3 + $0xcc] sm:$0xf]
    %s4567 = scalar_lea.vmem %s2, 1
    %v4568 = vld [vmem:[%s4567] ss:$2 sm:$0x3]
    %v4570 = vlaneseq
    %v4571 = vshrl.u32 %v4570, 7
    %v4572 = vsub.s32 0, %v4571
    %v4573 = vrot.slane %v4568, %v4572
    %v4574 = vlaneseq
    %v4575 = vshrl.u32 %v4574, 7
    %v4576 = vsub.s32 1, %v4575
    %v4577 = vrot.slane %v4568, %v4576
    %v4606 = vunpack.c.l.b16 %v4541
    %v4607 = vunpack.c.l.b16 %v4542
    %v4608 = vunpack.c.l.b16 %v4543
    %v4609 = vunpack.c.l.b16 %v4544
    %v4610 = vunpack.c.l.b16 %v4545
    %v4611 = vunpack.c.l.b16 %v4546
    %v4612 = vunpack.c.l.b16 %v4547
    %v4613 = vunpack.c.l.b16 %v4548
    %v4614 = vunpack.c.l.b16 %v4549
    %v4615 = vunpack.c.l.b16 %v4550
    %v4616 = vunpack.c.l.b16 %v4551
    %v4617 = vunpack.c.l.b16 %v4552
    %v4618 = vunpack.c.l.b16 %v4553
    %v4619 = vunpack.c.l.b16 %v4554
    %v4620 = vunpack.c.l.b16 %v4555
    %v4621 = vunpack.c.l.b16 %v4556
    %v4622 = vunpack.c.l.b16 %v4557
    %v4623 = vunpack.c.l.b16 %v4558
    %v4624 = vunpack.c.l.b16 %v4559
    %v4625 = vunpack.c.l.b16 %v4560
    %v4626 = vunpack.c.l.b16 %v4561
    %v4627 = vunpack.c.l.b16 %v4562
    %v4628 = vunpack.c.l.b16 %v4563
    %v4629 = vunpack.c.l.b16 %v4564
    %v4630 = vunpack.c.l.b16 %v4565
    %v4631 = vunpack.c.l.b16 %v4566
    %v4632 = vpack.c.b16 %v4607, %v4606
    %v4633 = vpack.c.b16 %v4609, %v4608
    %v4634 = vpack.c.b16 %v4611, %v4610
    %v4635 = vpack.c.b16 %v4613, %v4612
    %v4636 = vpack.c.b16 %v4615, %v4614
    %v4637 = vpack.c.b16 %v4617, %v4616
    %v4638 = vpack.c.b16 %v4619, %v4618
    %v4639 = vpack.c.b16 %v4621, %v4620
    %v4640 = vpack.c.b16 %v4623, %v4622
    %v4641 = vpack.c.b16 %v4625, %v4624
    %v4642 = vpack.c.b16 %v4627, %v4626
    %v4643 = vpack.c.b16 %v4629, %v4628
    %v4644 = vpack.c.b16 %v4631, %v4630
    %4645 = vrot.lane.b32.xlu0 %v4632, 96
    %v4646 = vpop.permute.xlu0 %4645
    %4647 = vrot.lane.b32.xlu0 %v4633, 96
    %v4648 = vpop.permute.xlu0 %4647
    %4649 = vrot.lane.b32.xlu0 %v4634, 96
    %v4650 = vpop.permute.xlu0 %4649
    %4651 = vrot.lane.b32.xlu0 %v4635, 96
    %v4652 = vpop.permute.xlu0 %4651
    %4653 = vrot.lane.b32.xlu0 %v4636, 96
    %v4654 = vpop.permute.xlu0 %4653
    %4655 = vrot.lane.b32.xlu0 %v4637, 96
    %v4656 = vpop.permute.xlu0 %4655
    %4657 = vrot.lane.b32.xlu0 %v4638, 96
    %v4658 = vpop.permute.xlu0 %4657
    %4659 = vrot.lane.b32.xlu0 %v4639, 96
    %v4660 = vpop.permute.xlu0 %4659
    %4661 = vrot.lane.b32.xlu0 %v4640, 96
    %v4662 = vpop.permute.xlu0 %4661
    %4663 = vrot.lane.b32.xlu0 %v4641, 96
    %v4664 = vpop.permute.xlu0 %4663
    %4665 = vrot.lane.b32.xlu0 %v4642, 96
    %v4666 = vpop.permute.xlu0 %4665
    %4667 = vrot.lane.b32.xlu0 %v4643, 96
    %v4668 = vpop.permute.xlu0 %4667
    %4669 = vrot.lane.b32.xlu0 %v4644, 96
    %v4670 = vpop.permute.xlu0 %4669
    %v4672 = vsel %vm728, %v4632, 0
    %v4675 = vsel %vm728, %v4633, 0
    %v4678 = vsel %vm728, %v4634, 0
    %v4681 = vsel %vm728, %v4635, 0
    %v4684 = vsel %vm728, %v4636, 0
    %v4687 = vsel %vm728, %v4637, 0
    %v4690 = vsel %vm728, %v4638, 0
    %v4693 = vsel %vm728, %v4639, 0
    %v4696 = vsel %vm728, %v4640, 0
    %v4699 = vsel %vm728, %v4641, 0
    %v4702 = vsel %vm728, %v4642, 0
    %v4705 = vsel %vm728, %v4643, 0
    %v4708 = vsel %vm728, %v4644, 0
    %v4711 = vsel %vm728, %v4646, 0
    %v4714 = vsel %vm728, %v4648, 0
    %v4717 = vsel %vm728, %v4650, 0
    %v4720 = vsel %vm728, %v4652, 0
    %v4723 = vsel %vm728, %v4654, 0
    %v4726 = vsel %vm728, %v4656, 0
    %v4729 = vsel %vm728, %v4658, 0
    %v4732 = vsel %vm728, %v4660, 0
    %v4735 = vsel %vm728, %v4662, 0
    %v4738 = vsel %vm728, %v4664, 0
    %v4741 = vsel %vm728, %v4666, 0
    %v4744 = vsel %vm728, %v4668, 0
    %v4747 = vsel %vm728, %v4670, 0
    %4749 = vmatprep.subr.bf16.mxu0 0
    %4750 = vmatpush1.bf16.xpose.msra.mxu0 %v4732
    %4751 = vmatprep.subr.bf16.mxu0 0
    %4752 = vmatpush1.bf16.xpose.msra.mxu0 %v4729
    %4753 = vmatprep.subr.bf16.mxu0 0
    %4754 = vmatpush1.bf16.xpose.msra.mxu0 %v4726
    %4755 = vmatprep.subr.bf16.mxu0 0
    %4756 = vmatpush1.bf16.xpose.msra.mxu0 %v4723
    %4757 = vmatprep.subr.bf16.mxu0 0
    %4758 = vmatpush1.bf16.xpose.msra.mxu0 %v4720
    %4759 = vmatprep.subr.bf16.mxu0 0
    %4760 = vmatpush1.bf16.xpose.msra.mxu0 %v4717
    %4761 = vmatprep.subr.bf16.mxu0 0
    %4762 = vmatpush1.bf16.xpose.msra.mxu0 %v4714
    %4763 = vmatprep.subr.bf16.mxu0 0
    %4764 = vmatpush1.bf16.xpose.msra.mxu0 %v4711
    %4765 = vmatprep.subr.bf16.mxu0 0
    %4766 = vmatpush2.bf16.xpose.msra.mxu0 0
    %4767 = vmatprep.subr.bf16.mxu0 0
    %4768 = vmatpush2.bf16.xpose.msra.mxu0 0
    %4769 = vmatprep.subr.bf16.mxu0 0
    %4770 = vmatpush2.bf16.xpose.msra.mxu0 0
    %4771 = vmatprep.subr.bf16.mxu0 0
    %4772 = vmatpush2.bf16.xpose.msra.mxu0 %v4747
    %4773 = vmatprep.subr.bf16.mxu0 0
    %4774 = vmatpush2.bf16.xpose.msra.mxu0 %v4744
    %4775 = vmatprep.subr.bf16.mxu0 0
    %4776 = vmatpush2.bf16.xpose.msra.mxu0 %v4741
    %4777 = vmatprep.subr.bf16.mxu0 0
    %4778 = vmatpush2.bf16.xpose.msra.mxu0 %v4738
    %4779 = vmatprep.subr.bf16.mxu0 0
    %4780 = vmatpush2.bf16.xpose.msra.mxu0 %v4735
    %4781 = vmatprep.mubr.bf16.mxu0 0
    %4782 = vmatmul.mubr.bf16.gmra.mxu0 %v4672
    %v4783 = vpop.f32.mrf.mxu0
    %v4784 = vadd.f32 %v4573, %v4783
    %v4785 = vpop.f32.mrf.mxu0
    %v4786 = vadd.f32 %v4577, %v4785
    %v4787 = vpop.f32.mrf.mxu0
    %v4788 = vadd.f32 %v4573, %v4787
    %v4789 = vpop.f32.mrf.mxu0
    %v4790 = vadd.f32 %v4577, %v4789
    %4791 = vmatprep.mubr.bf16.mxu0 0
    %4792 = vmatmul.mubr.bf16.gmra.mxu0 %v4675
    %v4793 = vpop.f32.mrf.mxu0
    %v4794 = vadd.f32 %v4573, %v4793
    %v4795 = vpop.f32.mrf.mxu0
    %v4796 = vadd.f32 %v4577, %v4795
    %v4797 = vpop.f32.mrf.mxu0
    %v4798 = vadd.f32 %v4573, %v4797
    %v4799 = vpop.f32.mrf.mxu0
    %v4800 = vadd.f32 %v4577, %v4799
    %4801 = vmatprep.mubr.bf16.mxu0 0
    %4802 = vmatmul.mubr.bf16.gmra.mxu0 %v4678
    %v4803 = vpop.f32.mrf.mxu0
    %v4804 = vadd.f32 %v4573, %v4803
    %v4805 = vpop.f32.mrf.mxu0
    %v4806 = vadd.f32 %v4577, %v4805
    %v4807 = vpop.f32.mrf.mxu0
    %v4808 = vadd.f32 %v4573, %v4807
    %v4809 = vpop.f32.mrf.mxu0
    %v4810 = vadd.f32 %v4577, %v4809
    %4811 = vmatprep.mubr.bf16.mxu0 0
    %4812 = vmatmul.mubr.bf16.gmra.mxu0 %v4681
    %v4813 = vpop.f32.mrf.mxu0
    %v4814 = vadd.f32 %v4573, %v4813
    %v4815 = vpop.f32.mrf.mxu0
    %v4816 = vadd.f32 %v4577, %v4815
    %v4817 = vpop.f32.mrf.mxu0
    %v4818 = vadd.f32 %v4573, %v4817
    %v4819 = vpop.f32.mrf.mxu0
    %v4820 = vadd.f32 %v4577, %v4819
    %4821 = vmatprep.mubr.bf16.mxu0 0
    %4822 = vmatmul.mubr.bf16.gmra.mxu0 %v4684
    %v4823 = vpop.f32.mrf.mxu0
    %v4824 = vadd.f32 %v4573, %v4823
    %v4825 = vpop.f32.mrf.mxu0
    %v4826 = vadd.f32 %v4577, %v4825
    %v4827 = vpop.f32.mrf.mxu0
    %v4828 = vadd.f32 %v4573, %v4827
    %v4829 = vpop.f32.mrf.mxu0
    %v4830 = vadd.f32 %v4577, %v4829
    %4831 = vmatprep.mubr.bf16.mxu0 0
    %4832 = vmatmul.mubr.bf16.gmra.mxu0 %v4687
    %v4833 = vpop.f32.mrf.mxu0
    %v4834 = vadd.f32 %v4573, %v4833
    %v4835 = vpop.f32.mrf.mxu0
    %v4836 = vadd.f32 %v4577, %v4835
    %v4837 = vpop.f32.mrf.mxu0
    %v4838 = vadd.f32 %v4573, %v4837
    %v4839 = vpop.f32.mrf.mxu0
    %v4840 = vadd.f32 %v4577, %v4839
    %4841 = vmatprep.mubr.bf16.mxu0 0
    %4842 = vmatmul.mubr.bf16.gmra.mxu0 %v4690
    %v4843 = vpop.f32.mrf.mxu0
    %v4844 = vadd.f32 %v4573, %v4843
    %v4845 = vpop.f32.mrf.mxu0
    %v4846 = vadd.f32 %v4577, %v4845
    %v4847 = vpop.f32.mrf.mxu0
    %v4848 = vadd.f32 %v4573, %v4847
    %v4849 = vpop.f32.mrf.mxu0
    %v4850 = vadd.f32 %v4577, %v4849
    %4851 = vmatprep.mubr.bf16.mxu0 0
    %4852 = vmatmul.mubr.bf16.gmra.mxu0 %v4693
    %v4853 = vpop.f32.mrf.mxu0
    %v4854 = vadd.f32 %v4573, %v4853
    %v4855 = vpop.f32.mrf.mxu0
    %v4856 = vadd.f32 %v4577, %v4855
    %v4857 = vpop.f32.mrf.mxu0
    %v4858 = vadd.f32 %v4573, %v4857
    %v4859 = vpop.f32.mrf.mxu0
    %v4860 = vadd.f32 %v4577, %v4859
    %4861 = vmatprep.mubr.bf16.mxu0 0
    %4862 = vmatmul.mubr.bf16.gmra.mxu0 %v4696
    %v4863 = vpop.f32.mrf.mxu0
    %v4864 = vadd.f32 %v4573, %v4863
    %v4865 = vpop.f32.mrf.mxu0
    %v4866 = vadd.f32 %v4577, %v4865
    %v4867 = vpop.f32.mrf.mxu0
    %v4868 = vadd.f32 %v4573, %v4867
    %v4869 = vpop.f32.mrf.mxu0
    %v4870 = vadd.f32 %v4577, %v4869
    %4871 = vmatprep.mubr.bf16.mxu0 0
    %4872 = vmatmul.mubr.bf16.gmra.mxu0 %v4699
    %v4873 = vpop.f32.mrf.mxu0
    %v4874 = vadd.f32 %v4573, %v4873
    %v4875 = vpop.f32.mrf.mxu0
    %v4876 = vadd.f32 %v4577, %v4875
    %v4877 = vpop.f32.mrf.mxu0
    %v4878 = vadd.f32 %v4573, %v4877
    %v4879 = vpop.f32.mrf.mxu0
    %v4880 = vadd.f32 %v4577, %v4879
    %4881 = vmatprep.mubr.bf16.mxu0 0
    %4882 = vmatmul.mubr.bf16.gmra.mxu0 %v4702
    %v4883 = vpop.f32.mrf.mxu0
    %v4884 = vadd.f32 %v4573, %v4883
    %v4885 = vpop.f32.mrf.mxu0
    %v4886 = vadd.f32 %v4577, %v4885
    %v4887 = vpop.f32.mrf.mxu0
    %v4888 = vadd.f32 %v4573, %v4887
    %v4889 = vpop.f32.mrf.mxu0
    %v4890 = vadd.f32 %v4577, %v4889
    %4891 = vmatprep.mubr.bf16.mxu0 0
    %4892 = vmatmul.mubr.bf16.gmra.mxu0 %v4705
    %v4893 = vpop.f32.mrf.mxu0
    %v4894 = vadd.f32 %v4573, %v4893
    %v4895 = vpop.f32.mrf.mxu0
    %v4896 = vadd.f32 %v4577, %v4895
    %v4897 = vpop.f32.mrf.mxu0
    %v4898 = vadd.f32 %v4573, %v4897
    %v4899 = vpop.f32.mrf.mxu0
    %v4900 = vadd.f32 %v4577, %v4899
    %4901 = vmatprep.mubr.bf16.mxu0 0
    %4902 = vmatmul.mubr.bf16.gmra.mxu0 %v4708
    %v4903 = vpop.f32.mrf.mxu0
    %v4904 = vadd.f32 %v4573, %v4903
    %v4905 = vpop.f32.mrf.mxu0
    %v4906 = vadd.f32 %v4577, %v4905
    %v4907 = vpop.f32.mrf.mxu0
    %v4908 = vadd.f32 %v4573, %v4907
    %v4909 = vpop.f32.mrf.mxu0
    %v4910 = vadd.f32 %v4577, %v4909
    %4911 = vdwg.mxu0
    %v4912 = vsel %vm2021, %v4786, -inf
    %v4913 = vmax.f32 %v4784, %v4912
    %4914 = vmax.xlane.f32.xlu0 %v4913
    %v4915 = vpop.xlane.xlu0 %4914
    %v4916 = vsel %vm2021, %v4790, -inf
    %v4917 = vmax.f32 %v4788, %v4916
    %4918 = vmax.xlane.f32.xlu0 %v4917
    %v4919 = vpop.xlane.xlu0 %4918
    %v4920 = vsel %vm2021, %v4796, -inf
    %v4921 = vmax.f32 %v4794, %v4920
    %4922 = vmax.xlane.f32.xlu0 %v4921
    %v4923 = vpop.xlane.xlu0 %4922
    %v4924 = vsel %vm2021, %v4800, -inf
    %v4925 = vmax.f32 %v4798, %v4924
    %4926 = vmax.xlane.f32.xlu0 %v4925
    %v4927 = vpop.xlane.xlu0 %4926
    %v4928 = vsel %vm2021, %v4806, -inf
    %v4929 = vmax.f32 %v4804, %v4928
    %4930 = vmax.xlane.f32.xlu0 %v4929
    %v4931 = vpop.xlane.xlu0 %4930
    %v4932 = vsel %vm2021, %v4810, -inf
    %v4933 = vmax.f32 %v4808, %v4932
    %4934 = vmax.xlane.f32.xlu0 %v4933
    %v4935 = vpop.xlane.xlu0 %4934
    %v4936 = vsel %vm2021, %v4816, -inf
    %v4937 = vmax.f32 %v4814, %v4936
    %4938 = vmax.xlane.f32.xlu0 %v4937
    %v4939 = vpop.xlane.xlu0 %4938
    %v4940 = vsel %vm2021, %v4820, -inf
    %v4941 = vmax.f32 %v4818, %v4940
    %4942 = vmax.xlane.f32.xlu0 %v4941
    %v4943 = vpop.xlane.xlu0 %4942
    %v4944 = vsel %vm2021, %v4826, -inf
    %v4945 = vmax.f32 %v4824, %v4944
    %4946 = vmax.xlane.f32.xlu0 %v4945
    %v4947 = vpop.xlane.xlu0 %4946
    %v4948 = vsel %vm2021, %v4830, -inf
    %v4949 = vmax.f32 %v4828, %v4948
    %4950 = vmax.xlane.f32.xlu0 %v4949
    %v4951 = vpop.xlane.xlu0 %4950
    %v4952 = vsel %vm2021, %v4836, -inf
    %v4953 = vmax.f32 %v4834, %v4952
    %4954 = vmax.xlane.f32.xlu0 %v4953
    %v4955 = vpop.xlane.xlu0 %4954
    %v4956 = vsel %vm2021, %v4840, -inf
    %v4957 = vmax.f32 %v4838, %v4956
    %4958 = vmax.xlane.f32.xlu0 %v4957
    %v4959 = vpop.xlane.xlu0 %4958
    %v4960 = vsel %vm2021, %v4846, -inf
    %v4961 = vmax.f32 %v4844, %v4960
    %4962 = vmax.xlane.f32.xlu0 %v4961
    %v4963 = vpop.xlane.xlu0 %4962
    %v4964 = vsel %vm2021, %v4850, -inf
    %v4965 = vmax.f32 %v4848, %v4964
    %4966 = vmax.xlane.f32.xlu0 %v4965
    %v4967 = vpop.xlane.xlu0 %4966
    %v4968 = vsel %vm2021, %v4856, -inf
    %v4969 = vmax.f32 %v4854, %v4968
    %4970 = vmax.xlane.f32.xlu0 %v4969
    %v4971 = vpop.xlane.xlu0 %4970
    %v4972 = vsel %vm2021, %v4860, -inf
    %v4973 = vmax.f32 %v4858, %v4972
    %4974 = vmax.xlane.f32.xlu0 %v4973
    %v4975 = vpop.xlane.xlu0 %4974
    %v4976 = vsel %vm2021, %v4866, -inf
    %v4977 = vmax.f32 %v4864, %v4976
    %4978 = vmax.xlane.f32.xlu0 %v4977
    %v4979 = vpop.xlane.xlu0 %4978
    %v4980 = vsel %vm2021, %v4870, -inf
    %v4981 = vmax.f32 %v4868, %v4980
    %4982 = vmax.xlane.f32.xlu0 %v4981
    %v4983 = vpop.xlane.xlu0 %4982
    %v4984 = vsel %vm2021, %v4876, -inf
    %v4985 = vmax.f32 %v4874, %v4984
    %4986 = vmax.xlane.f32.xlu0 %v4985
    %v4987 = vpop.xlane.xlu0 %4986
    %v4988 = vsel %vm2021, %v4880, -inf
    %v4989 = vmax.f32 %v4878, %v4988
    %4990 = vmax.xlane.f32.xlu0 %v4989
    %v4991 = vpop.xlane.xlu0 %4990
    %v4992 = vsel %vm2021, %v4886, -inf
    %v4993 = vmax.f32 %v4884, %v4992
    %4994 = vmax.xlane.f32.xlu0 %v4993
    %v4995 = vpop.xlane.xlu0 %4994
    %v4996 = vsel %vm2021, %v4890, -inf
    %v4997 = vmax.f32 %v4888, %v4996
    %4998 = vmax.xlane.f32.xlu0 %v4997
    %v4999 = vpop.xlane.xlu0 %4998
    %v5000 = vsel %vm2021, %v4896, -inf
    %v5001 = vmax.f32 %v4894, %v5000
    %5002 = vmax.xlane.f32.xlu0 %v5001
    %v5003 = vpop.xlane.xlu0 %5002
    %v5004 = vsel %vm2021, %v4900, -inf
    %v5005 = vmax.f32 %v4898, %v5004
    %5006 = vmax.xlane.f32.xlu0 %v5005
    %v5007 = vpop.xlane.xlu0 %5006
    %v5008 = vsel %vm2021, %v4906, -inf
    %v5009 = vmax.f32 %v4904, %v5008
    %5010 = vmax.xlane.f32.xlu0 %v5009
    %v5011 = vpop.xlane.xlu0 %5010
    %v5012 = vsel %vm2021, %v4910, -inf
    %v5013 = vmax.f32 %v4908, %v5012
    %5014 = vmax.xlane.f32.xlu0 %v5013
    %v5015 = vpop.xlane.xlu0 %5014
    %v5016 = vsub.f32 %v4784, %v4915
    %v5017 = vsub.f32 %v4786, %v4915
    %v5018 = vsub.f32 %v4788, %v4919
    %v5019 = vsub.f32 %v4790, %v4919
    %v5020 = vsub.f32 %v4794, %v4923
    %v5021 = vsub.f32 %v4796, %v4923
    %v5022 = vsub.f32 %v4798, %v4927
    %v5023 = vsub.f32 %v4800, %v4927
    %v5024 = vsub.f32 %v4804, %v4931
    %v5025 = vsub.f32 %v4806, %v4931
    %v5026 = vsub.f32 %v4808, %v4935
    %v5027 = vsub.f32 %v4810, %v4935
    %v5028 = vsub.f32 %v4814, %v4939
    %v5029 = vsub.f32 %v4816, %v4939
    %v5030 = vsub.f32 %v4818, %v4943
    %v5031 = vsub.f32 %v4820, %v4943
    %v5032 = vsub.f32 %v4824, %v4947
    %v5033 = vsub.f32 %v4826, %v4947
    %v5034 = vsub.f32 %v4828, %v4951
    %v5035 = vsub.f32 %v4830, %v4951
    %v5036 = vsub.f32 %v4834, %v4955
    %v5037 = vsub.f32 %v4836, %v4955
    %v5038 = vsub.f32 %v4838, %v4959
    %v5039 = vsub.f32 %v4840, %v4959
    %v5040 = vsub.f32 %v4844, %v4963
    %v5041 = vsub.f32 %v4846, %v4963
    %v5042 = vsub.f32 %v4848, %v4967
    %v5043 = vsub.f32 %v4850, %v4967
    %v5044 = vsub.f32 %v4854, %v4971
    %v5045 = vsub.f32 %v4856, %v4971
    %v5046 = vsub.f32 %v4858, %v4975
    %v5047 = vsub.f32 %v4860, %v4975
    %v5048 = vsub.f32 %v4864, %v4979
    %v5049 = vsub.f32 %v4866, %v4979
    %v5050 = vsub.f32 %v4868, %v4983
    %v5051 = vsub.f32 %v4870, %v4983
    %v5052 = vsub.f32 %v4874, %v4987
    %v5053 = vsub.f32 %v4876, %v4987
    %v5054 = vsub.f32 %v4878, %v4991
    %v5055 = vsub.f32 %v4880, %v4991
    %v5056 = vsub.f32 %v4884, %v4995
    %v5057 = vsub.f32 %v4886, %v4995
    %v5058 = vsub.f32 %v4888, %v4999
    %v5059 = vsub.f32 %v4890, %v4999
    %v5060 = vsub.f32 %v4894, %v5003
    %v5061 = vsub.f32 %v4896, %v5003
    %v5062 = vsub.f32 %v4898, %v5007
    %v5063 = vsub.f32 %v4900, %v5007
    %v5064 = vsub.f32 %v4904, %v5011
    %v5065 = vsub.f32 %v4906, %v5011
    %v5066 = vsub.f32 %v4908, %v5015
    %v5067 = vsub.f32 %v4910, %v5015
    %v5068 = vmul.f32 %v5016, 1.442695
    %v5069 = vpow.pop %v5068
    %v5070 = vmul.f32 %v5017, 1.442695
    %v5071 = vpow.pop %v5070
    %v5072 = vmul.f32 %v5018, 1.442695
    %v5073 = vpow.pop %v5072
    %v5074 = vmul.f32 %v5019, 1.442695
    %v5075 = vpow.pop %v5074
    %v5076 = vmul.f32 %v5020, 1.442695
    %v5077 = vpow.pop %v5076
    %v5078 = vmul.f32 %v5021, 1.442695
    %v5079 = vpow.pop %v5078
    %v5080 = vmul.f32 %v5022, 1.442695
    %v5081 = vpow.pop %v5080
    %v5082 = vmul.f32 %v5023, 1.442695
    %v5083 = vpow.pop %v5082
    %v5084 = vmul.f32 %v5024, 1.442695
    %v5085 = vpow.pop %v5084
    %v5086 = vmul.f32 %v5025, 1.442695
    %v5087 = vpow.pop %v5086
    %v5088 = vmul.f32 %v5026, 1.442695
    %v5089 = vpow.pop %v5088
    %v5090 = vmul.f32 %v5027, 1.442695
    %v5091 = vpow.pop %v5090
    %v5092 = vmul.f32 %v5028, 1.442695
    %v5093 = vpow.pop %v5092
    %v5094 = vmul.f32 %v5029, 1.442695
    %v5095 = vpow.pop %v5094
    %v5096 = vmul.f32 %v5030, 1.442695
    %v5097 = vpow.pop %v5096
    %v5098 = vmul.f32 %v5031, 1.442695
    %v5099 = vpow.pop %v5098
    %v5100 = vmul.f32 %v5032, 1.442695
    %v5101 = vpow.pop %v5100
    %v5102 = vmul.f32 %v5033, 1.442695
    %v5103 = vpow.pop %v5102
    %v5104 = vmul.f32 %v5034, 1.442695
    %v5105 = vpow.pop %v5104
    %v5106 = vmul.f32 %v5035, 1.442695
    %v5107 = vpow.pop %v5106
    %v5108 = vmul.f32 %v5036, 1.442695
    %v5109 = vpow.pop %v5108
    %v5110 = vmul.f32 %v5037, 1.442695
    %v5111 = vpow.pop %v5110
    %v5112 = vmul.f32 %v5038, 1.442695
    %v5113 = vpow.pop %v5112
    %v5114 = vmul.f32 %v5039, 1.442695
    %v5115 = vpow.pop %v5114
    %v5116 = vmul.f32 %v5040, 1.442695
    %v5117 = vpow.pop %v5116
    %v5118 = vmul.f32 %v5041, 1.442695
    %v5119 = vpow.pop %v5118
    %v5120 = vmul.f32 %v5042, 1.442695
    %v5121 = vpow.pop %v5120
    %v5122 = vmul.f32 %v5043, 1.442695
    %v5123 = vpow.pop %v5122
    %v5124 = vmul.f32 %v5044, 1.442695
    %v5125 = vpow.pop %v5124
    %v5126 = vmul.f32 %v5045, 1.442695
    %v5127 = vpow.pop %v5126
    %v5128 = vmul.f32 %v5046, 1.442695
    %v5129 = vpow.pop %v5128
    %v5130 = vmul.f32 %v5047, 1.442695
    %v5131 = vpow.pop %v5130
    %v5132 = vmul.f32 %v5048, 1.442695
    %v5133 = vpow.pop %v5132
    %v5134 = vmul.f32 %v5049, 1.442695
    %v5135 = vpow.pop %v5134
    %v5136 = vmul.f32 %v5050, 1.442695
    %v5137 = vpow.pop %v5136
    %v5138 = vmul.f32 %v5051, 1.442695
    %v5139 = vpow.pop %v5138
    %v5140 = vmul.f32 %v5052, 1.442695
    %v5141 = vpow.pop %v5140
    %v5142 = vmul.f32 %v5053, 1.442695
    %v5143 = vpow.pop %v5142
    %v5144 = vmul.f32 %v5054, 1.442695
    %v5145 = vpow.pop %v5144
    %v5146 = vmul.f32 %v5055, 1.442695
    %v5147 = vpow.pop %v5146
    %v5148 = vmul.f32 %v5056, 1.442695
    %v5149 = vpow.pop %v5148
    %v5150 = vmul.f32 %v5057, 1.442695
    %v5151 = vpow.pop %v5150
    %v5152 = vmul.f32 %v5058, 1.442695
    %v5153 = vpow.pop %v5152
    %v5154 = vmul.f32 %v5059, 1.442695
    %v5155 = vpow.pop %v5154
    %v5156 = vmul.f32 %v5060, 1.442695
    %v5157 = vpow.pop %v5156
    %v5158 = vmul.f32 %v5061, 1.442695
    %v5159 = vpow.pop %v5158
    %v5160 = vmul.f32 %v5062, 1.442695
    %v5161 = vpow.pop %v5160
    %v5162 = vmul.f32 %v5063, 1.442695
    %v5163 = vpow.pop %v5162
    %v5164 = vmul.f32 %v5064, 1.442695
    %v5165 = vpow.pop %v5164
    %v5166 = vmul.f32 %v5065, 1.442695
    %v5167 = vpow.pop %v5166
    %v5168 = vmul.f32 %v5066, 1.442695
    %v5169 = vpow.pop %v5168
    %v5170 = vmul.f32 %v5067, 1.442695
    %v5171 = vpow.pop %v5170
    %v5172 = vsel %vm2021, %v5071, 0.0
    %v5173 = vadd.f32 %v5069, %v5172
    %5174 = vadd.xlane.f32.xlu0 %v5173
    %v5175 = vpop.xlane.xlu0 %5174
    %v5176 = vsel %vm2021, %v5075, 0.0
    %v5177 = vadd.f32 %v5073, %v5176
    %5178 = vadd.xlane.f32.xlu0 %v5177
    %v5179 = vpop.xlane.xlu0 %5178
    %v5180 = vsel %vm2021, %v5079, 0.0
    %v5181 = vadd.f32 %v5077, %v5180
    %5182 = vadd.xlane.f32.xlu0 %v5181
    %v5183 = vpop.xlane.xlu0 %5182
    %v5184 = vsel %vm2021, %v5083, 0.0
    %v5185 = vadd.f32 %v5081, %v5184
    %5186 = vadd.xlane.f32.xlu0 %v5185
    %v5187 = vpop.xlane.xlu0 %5186
    %v5188 = vsel %vm2021, %v5087, 0.0
    %v5189 = vadd.f32 %v5085, %v5188
    %5190 = vadd.xlane.f32.xlu0 %v5189
    %v5191 = vpop.xlane.xlu0 %5190
    %v5192 = vsel %vm2021, %v5091, 0.0
    %v5193 = vadd.f32 %v5089, %v5192
    %5194 = vadd.xlane.f32.xlu0 %v5193
    %v5195 = vpop.xlane.xlu0 %5194
    %v5196 = vsel %vm2021, %v5095, 0.0
    %v5197 = vadd.f32 %v5093, %v5196
    %5198 = vadd.xlane.f32.xlu0 %v5197
    %v5199 = vpop.xlane.xlu0 %5198
    %v5200 = vsel %vm2021, %v5099, 0.0
    %v5201 = vadd.f32 %v5097, %v5200
    %5202 = vadd.xlane.f32.xlu0 %v5201
    %v5203 = vpop.xlane.xlu0 %5202
    %v5204 = vsel %vm2021, %v5103, 0.0
    %v5205 = vadd.f32 %v5101, %v5204
    %5206 = vadd.xlane.f32.xlu0 %v5205
    %v5207 = vpop.xlane.xlu0 %5206
    %v5208 = vsel %vm2021, %v5107, 0.0
    %v5209 = vadd.f32 %v5105, %v5208
    %5210 = vadd.xlane.f32.xlu0 %v5209
    %v5211 = vpop.xlane.xlu0 %5210
    %v5212 = vsel %vm2021, %v5111, 0.0
    %v5213 = vadd.f32 %v5109, %v5212
    %5214 = vadd.xlane.f32.xlu0 %v5213
    %v5215 = vpop.xlane.xlu0 %5214
    %v5216 = vsel %vm2021, %v5115, 0.0
    %v5217 = vadd.f32 %v5113, %v5216
    %5218 = vadd.xlane.f32.xlu0 %v5217
    %v5219 = vpop.xlane.xlu0 %5218
    %v5220 = vsel %vm2021, %v5119, 0.0
    %v5221 = vadd.f32 %v5117, %v5220
    %5222 = vadd.xlane.f32.xlu0 %v5221
    %v5223 = vpop.xlane.xlu0 %5222
    %v5224 = vsel %vm2021, %v5123, 0.0
    %v5225 = vadd.f32 %v5121, %v5224
    %5226 = vadd.xlane.f32.xlu0 %v5225
    %v5227 = vpop.xlane.xlu0 %5226
    %v5228 = vsel %vm2021, %v5127, 0.0
    %v5229 = vadd.f32 %v5125, %v5228
    %5230 = vadd.xlane.f32.xlu0 %v5229
    %v5231 = vpop.xlane.xlu0 %5230
    %v5232 = vsel %vm2021, %v5131, 0.0
    %v5233 = vadd.f32 %v5129, %v5232
    %5234 = vadd.xlane.f32.xlu0 %v5233
    %v5235 = vpop.xlane.xlu0 %5234
    %v5236 = vsel %vm2021, %v5135, 0.0
    %v5237 = vadd.f32 %v5133, %v5236
    %5238 = vadd.xlane.f32.xlu0 %v5237
    %v5239 = vpop.xlane.xlu0 %5238
    %v5240 = vsel %vm2021, %v5139, 0.0
    %v5241 = vadd.f32 %v5137, %v5240
    %5242 = vadd.xlane.f32.xlu0 %v5241
    %v5243 = vpop.xlane.xlu0 %5242
    %v5244 = vsel %vm2021, %v5143, 0.0
    %v5245 = vadd.f32 %v5141, %v5244
    %5246 = vadd.xlane.f32.xlu0 %v5245
    %v5247 = vpop.xlane.xlu0 %5246
    %v5248 = vsel %vm2021, %v5147, 0.0
    %v5249 = vadd.f32 %v5145, %v5248
    %5250 = vadd.xlane.f32.xlu0 %v5249
    %v5251 = vpop.xlane.xlu0 %5250
    %v5252 = vsel %vm2021, %v5151, 0.0
    %v5253 = vadd.f32 %v5149, %v5252
    %5254 = vadd.xlane.f32.xlu0 %v5253
    %v5255 = vpop.xlane.xlu0 %5254
    %v5256 = vsel %vm2021, %v5155, 0.0
    %v5257 = vadd.f32 %v5153, %v5256
    %5258 = vadd.xlane.f32.xlu0 %v5257
    %v5259 = vpop.xlane.xlu0 %5258
    %v5260 = vsel %vm2021, %v5159, 0.0
    %v5261 = vadd.f32 %v5157, %v5260
    %5262 = vadd.xlane.f32.xlu0 %v5261
    %v5263 = vpop.xlane.xlu0 %5262
    %v5264 = vsel %vm2021, %v5163, 0.0
    %v5265 = vadd.f32 %v5161, %v5264
    %5266 = vadd.xlane.f32.xlu0 %v5265
    %v5267 = vpop.xlane.xlu0 %5266
    %v5268 = vsel %vm2021, %v5167, 0.0
    %v5269 = vadd.f32 %v5165, %v5268
    %5270 = vadd.xlane.f32.xlu0 %v5269
    %v5271 = vpop.xlane.xlu0 %5270
    %v5272 = vsel %vm2021, %v5171, 0.0
    %v5273 = vadd.f32 %v5169, %v5272
    %5274 = vadd.xlane.f32.xlu0 %v5273
    %v5275 = vpop.xlane.xlu0 %5274
    %v5276 = vrcp.pop %v5175
    %v5277 = vrcp.pop %v5179
    %v5278 = vrcp.pop %v5183
    %v5279 = vrcp.pop %v5187
    %v5280 = vrcp.pop %v5191
    %v5281 = vrcp.pop %v5195
    %v5282 = vrcp.pop %v5199
    %v5283 = vrcp.pop %v5203
    %v5284 = vrcp.pop %v5207
    %v5285 = vrcp.pop %v5211
    %v5286 = vrcp.pop %v5215
    %v5287 = vrcp.pop %v5219
    %v5288 = vrcp.pop %v5223
    %v5289 = vrcp.pop %v5227
    %v5290 = vrcp.pop %v5231
    %v5291 = vrcp.pop %v5235
    %v5292 = vrcp.pop %v5239
    %v5293 = vrcp.pop %v5243
    %v5294 = vrcp.pop %v5247
    %v5295 = vrcp.pop %v5251
    %v5296 = vrcp.pop %v5255
    %v5297 = vrcp.pop %v5259
    %v5298 = vrcp.pop %v5263
    %v5299 = vrcp.pop %v5267
    %v5300 = vrcp.pop %v5271
    %v5301 = vrcp.pop %v5275
    %v5302 = vmul.f32 %v5069, %v5276
    %v5303 = vmul.f32 %v5071, %v5276
    %v5304 = vmul.f32 %v5073, %v5277
    %v5305 = vmul.f32 %v5075, %v5277
    %v5306 = vmul.f32 %v5077, %v5278
    %v5307 = vmul.f32 %v5079, %v5278
    %v5308 = vmul.f32 %v5081, %v5279
    %v5309 = vmul.f32 %v5083, %v5279
    %v5310 = vmul.f32 %v5085, %v5280
    %v5311 = vmul.f32 %v5087, %v5280
    %v5312 = vmul.f32 %v5089, %v5281
    %v5313 = vmul.f32 %v5091, %v5281
    %v5314 = vmul.f32 %v5093, %v5282
    %v5315 = vmul.f32 %v5095, %v5282
    %v5316 = vmul.f32 %v5097, %v5283
    %v5317 = vmul.f32 %v5099, %v5283
    %v5318 = vmul.f32 %v5101, %v5284
    %v5319 = vmul.f32 %v5103, %v5284
    %v5320 = vmul.f32 %v5105, %v5285
    %v5321 = vmul.f32 %v5107, %v5285
    %v5322 = vmul.f32 %v5109, %v5286
    %v5323 = vmul.f32 %v5111, %v5286
    %v5324 = vmul.f32 %v5113, %v5287
    %v5325 = vmul.f32 %v5115, %v5287
    %v5326 = vmul.f32 %v5117, %v5288
    %v5327 = vmul.f32 %v5119, %v5288
    %v5328 = vmul.f32 %v5121, %v5289
    %v5329 = vmul.f32 %v5123, %v5289
    %v5330 = vmul.f32 %v5125, %v5290
    %v5331 = vmul.f32 %v5127, %v5290
    %v5332 = vmul.f32 %v5129, %v5291
    %v5333 = vmul.f32 %v5131, %v5291
    %v5334 = vmul.f32 %v5133, %v5292
    %v5335 = vmul.f32 %v5135, %v5292
    %v5336 = vmul.f32 %v5137, %v5293
    %v5337 = vmul.f32 %v5139, %v5293
    %v5338 = vmul.f32 %v5141, %v5294
    %v5339 = vmul.f32 %v5143, %v5294
    %v5340 = vmul.f32 %v5145, %v5295
    %v5341 = vmul.f32 %v5147, %v5295
    %v5342 = vmul.f32 %v5149, %v5296
    %v5343 = vmul.f32 %v5151, %v5296
    %v5344 = vmul.f32 %v5153, %v5297
    %v5345 = vmul.f32 %v5155, %v5297
    %v5346 = vmul.f32 %v5157, %v5298
    %v5347 = vmul.f32 %v5159, %v5298
    %v5348 = vmul.f32 %v5161, %v5299
    %v5349 = vmul.f32 %v5163, %v5299
    %v5350 = vmul.f32 %v5165, %v5300
    %v5351 = vmul.f32 %v5167, %v5300
    %v5352 = vmul.f32 %v5169, %v5301
    %v5353 = vmul.f32 %v5171, %v5301
    %v5354 = vpack.c.bf16 %v5304, %v5302
    %v5355 = vpack.c.bf16 %v5305, %v5303
    %v5356 = vpack.c.bf16 %v5308, %v5306
    %v5357 = vpack.c.bf16 %v5309, %v5307
    %v5358 = vpack.c.bf16 %v5312, %v5310
    %v5359 = vpack.c.bf16 %v5313, %v5311
    %v5360 = vpack.c.bf16 %v5316, %v5314
    %v5361 = vpack.c.bf16 %v5317, %v5315
    %v5362 = vpack.c.bf16 %v5320, %v5318
    %v5363 = vpack.c.bf16 %v5321, %v5319
    %v5364 = vpack.c.bf16 %v5324, %v5322
    %v5365 = vpack.c.bf16 %v5325, %v5323
    %v5366 = vpack.c.bf16 %v5328, %v5326
    %v5367 = vpack.c.bf16 %v5329, %v5327
    %v5368 = vpack.c.bf16 %v5332, %v5330
    %v5369 = vpack.c.bf16 %v5333, %v5331
    %v5370 = vpack.c.bf16 %v5336, %v5334
    %v5371 = vpack.c.bf16 %v5337, %v5335
    %v5372 = vpack.c.bf16 %v5340, %v5338
    %v5373 = vpack.c.bf16 %v5341, %v5339
    %v5374 = vpack.c.bf16 %v5344, %v5342
    %v5375 = vpack.c.bf16 %v5345, %v5343
    %v5376 = vpack.c.bf16 %v5348, %v5346
    %v5377 = vpack.c.bf16 %v5349, %v5347
    %v5378 = vpack.c.bf16 %v5352, %v5350
    %v5379 = vpack.c.bf16 %v5353, %v5351
    %v5380 = vld [vmem:[#allocation2 + $0xd0] sm:$0xff]
    %v5381 = vld [vmem:[#allocation2 + $0xd8] sm:$0xff]
    %v5382 = vld [vmem:[#allocation2 + $0xe0] sm:$0xff]
    %v5383 = vld [vmem:[#allocation2 + $0xe8] sm:$0xff]
    %v5384 = vld [vmem:[#allocation2 + $0xf0] sm:$0xff]
    %v5385 = vld [vmem:[#allocation2 + $0xf8] sm:$0xff]
    %v5386 = vld [vmem:[#allocation2 + $0x100] sm:$0xff]
    %v5387 = vld [vmem:[#allocation2 + $0x108] sm:$0xff]
    %v5388 = vld [vmem:[#allocation2 + $0x110] sm:$0xff]
    %v5389 = vld [vmem:[#allocation2 + $0x118] sm:$0xff]
    %v5390 = vld [vmem:[#allocation2 + $0x120] sm:$0xff]
    %v5391 = vld [vmem:[#allocation2 + $0x128] sm:$0xff]
    %v5392 = vld [vmem:[#allocation2 + $0x130] sm:$0xff]
    %v5393 = vld [vmem:[#allocation2 + $0x138] sm:$0xff]
    %v5394 = vld [vmem:[#allocation2 + $0x140] sm:$0xff]
    %v5395 = vld [vmem:[#allocation2 + $0x148] sm:$0xff]
    %v5396 = vld [vmem:[#allocation2 + $0x150] sm:$0xff]
    %v5397 = vld [vmem:[#allocation2 + $0x158] sm:$0xff]
    %v5398 = vld [vmem:[#allocation2 + $0x160] sm:$0xff]
    %v5399 = vld [vmem:[#allocation2 + $0x168] sm:$0xff]
    %v5400 = vld [vmem:[#allocation2 + $0x170] sm:$0xff]
    %v5401 = vld [vmem:[#allocation2 + $0x178] sm:$0xff]
    %v5402 = vld [vmem:[#allocation2 + $0x180] sm:$0xff]
    %v5403 = vld [vmem:[#allocation2 + $0x188] sm:$0xff]
    %v5404 = vld [vmem:[#allocation2 + $0x190] sm:$0xff]
    %v5405 = vld [vmem:[#allocation2 + $0x198] sm:$0xff]
    %5406 = vrot.lane.b32.xlu0 %v4632, 64
    %v5407 = vpop.permute.xlu0 %5406
    %5408 = vrot.lane.b32.xlu0 %v4633, 64
    %v5409 = vpop.permute.xlu0 %5408
    %5410 = vrot.lane.b32.xlu0 %v4634, 64
    %v5411 = vpop.permute.xlu0 %5410
    %5412 = vrot.lane.b32.xlu0 %v4635, 64
    %v5413 = vpop.permute.xlu0 %5412
    %5414 = vrot.lane.b32.xlu0 %v4636, 64
    %v5415 = vpop.permute.xlu0 %5414
    %5416 = vrot.lane.b32.xlu0 %v4637, 64
    %v5417 = vpop.permute.xlu0 %5416
    %5418 = vrot.lane.b32.xlu0 %v4638, 64
    %v5419 = vpop.permute.xlu0 %5418
    %5420 = vrot.lane.b32.xlu0 %v4639, 64
    %v5421 = vpop.permute.xlu0 %5420
    %5422 = vrot.lane.b32.xlu0 %v4640, 64
    %v5423 = vpop.permute.xlu0 %5422
    %5424 = vrot.lane.b32.xlu0 %v4641, 64
    %v5425 = vpop.permute.xlu0 %5424
    %5426 = vrot.lane.b32.xlu0 %v4642, 64
    %v5427 = vpop.permute.xlu0 %5426
    %5428 = vrot.lane.b32.xlu0 %v4643, 64
    %v5429 = vpop.permute.xlu0 %5428
    %5430 = vrot.lane.b32.xlu0 %v4644, 64
    %v5431 = vpop.permute.xlu0 %5430
    %v5446 = vsel %vm2021, %v5355, 0
    %v5449 = vsel %vm2021, %v5357, 0
    %v5452 = vsel %vm2021, %v5359, 0
    %v5455 = vsel %vm2021, %v5361, 0
    %v5458 = vsel %vm2021, %v5363, 0
    %v5461 = vsel %vm2021, %v5365, 0
    %v5464 = vsel %vm2021, %v5367, 0
    %v5467 = vsel %vm2021, %v5369, 0
    %v5470 = vsel %vm2021, %v5371, 0
    %v5473 = vsel %vm2021, %v5373, 0
    %v5476 = vsel %vm2021, %v5375, 0
    %v5479 = vsel %vm2021, %v5377, 0
    %v5482 = vsel %vm2021, %v5379, 0
    %5484 = vmatprep.subr.bf16.mxu0 0
    %5485 = vmatpush1.bf16.msra.mxu0 %v5421
    %5486 = vmatprep.subr.bf16.mxu0 0
    %5487 = vmatpush1.bf16.msra.mxu0 %v5419
    %5488 = vmatprep.subr.bf16.mxu0 0
    %5489 = vmatpush1.bf16.msra.mxu0 %v5417
    %5490 = vmatprep.subr.bf16.mxu0 0
    %5491 = vmatpush1.bf16.msra.mxu0 %v5415
    %5492 = vmatprep.subr.bf16.mxu0 0
    %5493 = vmatpush1.bf16.msra.mxu0 %v5413
    %5494 = vmatprep.subr.bf16.mxu0 0
    %5495 = vmatpush1.bf16.msra.mxu0 %v5411
    %5496 = vmatprep.subr.bf16.mxu0 0
    %5497 = vmatpush1.bf16.msra.mxu0 %v5409
    %5498 = vmatprep.subr.bf16.mxu0 0
    %5499 = vmatpush1.bf16.msra.mxu0 %v5407
    %5500 = vmatprep.subr.bf16.mxu0 0
    %5501 = vmatpush2.bf16.msra.mxu0 0
    %5502 = vmatprep.subr.bf16.mxu0 0
    %5503 = vmatpush2.bf16.msra.mxu0 0
    %5504 = vmatprep.subr.bf16.mxu0 0
    %5505 = vmatpush2.bf16.msra.mxu0 0
    %5506 = vmatprep.subr.bf16.mxu0 0
    %5507 = vmatpush2.bf16.msra.mxu0 %v5431
    %5508 = vmatprep.subr.bf16.mxu0 0
    %5509 = vmatpush2.bf16.msra.mxu0 %v5429
    %5510 = vmatprep.subr.bf16.mxu0 0
    %5511 = vmatpush2.bf16.msra.mxu0 %v5427
    %5512 = vmatprep.subr.bf16.mxu0 0
    %5513 = vmatpush2.bf16.msra.mxu0 %v5425
    %5514 = vmatprep.subr.bf16.mxu0 0
    %5515 = vmatpush2.bf16.msra.mxu0 %v5423
    %5516 = vmatprep.mubr.bf16.mxu0 %v5446
    %5517 = vmatmul.mubr.bf16.gmra.mxu0 %v5354
    %v5518 = vpop.f32.mrf.mxu0
    %v5519 = vadd.f32 %v5380, %v5518
    %v5520 = vpop.f32.mrf.mxu0
    %v5521 = vpop.f32.mrf.mxu0
    %v5522 = vadd.f32 %v5381, %v5521
    %v5523 = vpop.f32.mrf.mxu0
    %5524 = vmatprep.mubr.bf16.mxu0 %v5449
    %5525 = vmatmul.mubr.bf16.gmra.mxu0 %v5356
    %v5526 = vpop.f32.mrf.mxu0
    %v5527 = vadd.f32 %v5382, %v5526
    %v5528 = vpop.f32.mrf.mxu0
    %v5529 = vpop.f32.mrf.mxu0
    %v5530 = vadd.f32 %v5383, %v5529
    %v5531 = vpop.f32.mrf.mxu0
    %5532 = vmatprep.mubr.bf16.mxu0 %v5452
    %5533 = vmatmul.mubr.bf16.gmra.mxu0 %v5358
    %v5534 = vpop.f32.mrf.mxu0
    %v5535 = vadd.f32 %v5384, %v5534
    %v5536 = vpop.f32.mrf.mxu0
    %v5537 = vpop.f32.mrf.mxu0
    %v5538 = vadd.f32 %v5385, %v5537
    %v5539 = vpop.f32.mrf.mxu0
    %5540 = vmatprep.mubr.bf16.mxu0 %v5455
    %5541 = vmatmul.mubr.bf16.gmra.mxu0 %v5360
    %v5542 = vpop.f32.mrf.mxu0
    %v5543 = vadd.f32 %v5386, %v5542
    %v5544 = vpop.f32.mrf.mxu0
    %v5545 = vpop.f32.mrf.mxu0
    %v5546 = vadd.f32 %v5387, %v5545
    %v5547 = vpop.f32.mrf.mxu0
    %5548 = vmatprep.mubr.bf16.mxu0 %v5458
    %5549 = vmatmul.mubr.bf16.gmra.mxu0 %v5362
    %v5550 = vpop.f32.mrf.mxu0
    %v5551 = vadd.f32 %v5388, %v5550
    %v5552 = vpop.f32.mrf.mxu0
    %v5553 = vpop.f32.mrf.mxu0
    %v5554 = vadd.f32 %v5389, %v5553
    %v5555 = vpop.f32.mrf.mxu0
    %5556 = vmatprep.mubr.bf16.mxu0 %v5461
    %5557 = vmatmul.mubr.bf16.gmra.mxu0 %v5364
    %v5558 = vpop.f32.mrf.mxu0
    %v5559 = vadd.f32 %v5390, %v5558
    %v5560 = vpop.f32.mrf.mxu0
    %v5561 = vpop.f32.mrf.mxu0
    %v5562 = vadd.f32 %v5391, %v5561
    %v5563 = vpop.f32.mrf.mxu0
    %5564 = vmatprep.mubr.bf16.mxu0 %v5464
    %5565 = vmatmul.mubr.bf16.gmra.mxu0 %v5366
    %v5566 = vpop.f32.mrf.mxu0
    %v5567 = vadd.f32 %v5392, %v5566
    %v5568 = vpop.f32.mrf.mxu0
    %v5569 = vpop.f32.mrf.mxu0
    %v5570 = vadd.f32 %v5393, %v5569
    %v5571 = vpop.f32.mrf.mxu0
    %5572 = vmatprep.mubr.bf16.mxu0 %v5467
    %5573 = vmatmul.mubr.bf16.gmra.mxu0 %v5368
    %v5574 = vpop.f32.mrf.mxu0
    %v5575 = vadd.f32 %v5394, %v5574
    %v5576 = vpop.f32.mrf.mxu0
    %v5577 = vpop.f32.mrf.mxu0
    %v5578 = vadd.f32 %v5395, %v5577
    %v5579 = vpop.f32.mrf.mxu0
    %5580 = vmatprep.mubr.bf16.mxu0 %v5470
    %5581 = vmatmul.mubr.bf16.gmra.mxu0 %v5370
    %v5582 = vpop.f32.mrf.mxu0
    %v5583 = vadd.f32 %v5396, %v5582
    %v5584 = vpop.f32.mrf.mxu0
    %v5585 = vpop.f32.mrf.mxu0
    %v5586 = vadd.f32 %v5397, %v5585
    %v5587 = vpop.f32.mrf.mxu0
    %5588 = vmatprep.mubr.bf16.mxu0 %v5473
    %5589 = vmatmul.mubr.bf16.gmra.mxu0 %v5372
    %v5590 = vpop.f32.mrf.mxu0
    %v5591 = vadd.f32 %v5398, %v5590
    %v5592 = vpop.f32.mrf.mxu0
    %v5593 = vpop.f32.mrf.mxu0
    %v5594 = vadd.f32 %v5399, %v5593
    %v5595 = vpop.f32.mrf.mxu0
    %5596 = vmatprep.mubr.bf16.mxu0 %v5476
    %5597 = vmatmul.mubr.bf16.gmra.mxu0 %v5374
    %v5598 = vpop.f32.mrf.mxu0
    %v5599 = vadd.f32 %v5400, %v5598
    %v5600 = vpop.f32.mrf.mxu0
    %v5601 = vpop.f32.mrf.mxu0
    %v5602 = vadd.f32 %v5401, %v5601
    %v5603 = vpop.f32.mrf.mxu0
    %5604 = vmatprep.mubr.bf16.mxu0 %v5479
    %5605 = vmatmul.mubr.bf16.gmra.mxu0 %v5376
    %v5606 = vpop.f32.mrf.mxu0
    %v5607 = vadd.f32 %v5402, %v5606
    %v5608 = vpop.f32.mrf.mxu0
    %v5609 = vpop.f32.mrf.mxu0
    %v5610 = vadd.f32 %v5403, %v5609
    %v5611 = vpop.f32.mrf.mxu0
    %5612 = vmatprep.mubr.bf16.mxu0 %v5482
    %5613 = vmatmul.mubr.bf16.gmra.mxu0 %v5378
    %v5614 = vpop.f32.mrf.mxu0
    %v5615 = vadd.f32 %v5404, %v5614
    %v5616 = vpop.f32.mrf.mxu0
    %v5617 = vpop.f32.mrf.mxu0
    %v5618 = vadd.f32 %v5405, %v5617
    %v5619 = vpop.f32.mrf.mxu0
    %5620 = vdwg.mxu0
    %v5621 = vsel %vm728, %v5519, 0.0
    %5622 = vadd.xlane.f32.xlu0 %v5621
    %v5623 = vpop.xlane.xlu0 %5622
    %v5624 = vsel %vm728, %v5522, 0.0
    %5625 = vadd.xlane.f32.xlu0 %v5624
    %v5626 = vpop.xlane.xlu0 %5625
    %v5627 = vsel %vm728, %v5527, 0.0
    %5628 = vadd.xlane.f32.xlu0 %v5627
    %v5629 = vpop.xlane.xlu0 %5628
    %v5630 = vsel %vm728, %v5530, 0.0
    %5631 = vadd.xlane.f32.xlu0 %v5630
    %v5632 = vpop.xlane.xlu0 %5631
    %v5633 = vsel %vm728, %v5535, 0.0
    %5634 = vadd.xlane.f32.xlu0 %v5633
    %v5635 = vpop.xlane.xlu0 %5634
    %v5636 = vsel %vm728, %v5538, 0.0
    %5637 = vadd.xlane.f32.xlu0 %v5636
    %v5638 = vpop.xlane.xlu0 %5637
    %v5639 = vsel %vm728, %v5543, 0.0
    %5640 = vadd.xlane.f32.xlu0 %v5639
    %v5641 = vpop.xlane.xlu0 %5640
    %v5642 = vsel %vm728, %v5546, 0.0
    %5643 = vadd.xlane.f32.xlu0 %v5642
    %v5644 = vpop.xlane.xlu0 %5643
    %v5645 = vsel %vm728, %v5551, 0.0
    %5646 = vadd.xlane.f32.xlu0 %v5645
    %v5647 = vpop.xlane.xlu0 %5646
    %v5648 = vsel %vm728, %v5554, 0.0
    %5649 = vadd.xlane.f32.xlu0 %v5648
    %v5650 = vpop.xlane.xlu0 %5649
    %v5651 = vsel %vm728, %v5559, 0.0
    %5652 = vadd.xlane.f32.xlu0 %v5651
    %v5653 = vpop.xlane.xlu0 %5652
    %v5654 = vsel %vm728, %v5562, 0.0
    %5655 = vadd.xlane.f32.xlu0 %v5654
    %v5656 = vpop.xlane.xlu0 %5655
    %v5657 = vsel %vm728, %v5567, 0.0
    %5658 = vadd.xlane.f32.xlu0 %v5657
    %v5659 = vpop.xlane.xlu0 %5658
    %v5660 = vsel %vm728, %v5570, 0.0
    %5661 = vadd.xlane.f32.xlu0 %v5660
    %v5662 = vpop.xlane.xlu0 %5661
    %v5663 = vsel %vm728, %v5575, 0.0
    %5664 = vadd.xlane.f32.xlu0 %v5663
    %v5665 = vpop.xlane.xlu0 %5664
    %v5666 = vsel %vm728, %v5578, 0.0
    %5667 = vadd.xlane.f32.xlu0 %v5666
    %v5668 = vpop.xlane.xlu0 %5667
    %v5669 = vsel %vm728, %v5583, 0.0
    %5670 = vadd.xlane.f32.xlu0 %v5669
    %v5671 = vpop.xlane.xlu0 %5670
    %v5672 = vsel %vm728, %v5586, 0.0
    %5673 = vadd.xlane.f32.xlu0 %v5672
    %v5674 = vpop.xlane.xlu0 %5673
    %v5675 = vsel %vm728, %v5591, 0.0
    %5676 = vadd.xlane.f32.xlu0 %v5675
    %v5677 = vpop.xlane.xlu0 %5676
    %v5678 = vsel %vm728, %v5594, 0.0
    %5679 = vadd.xlane.f32.xlu0 %v5678
    %v5680 = vpop.xlane.xlu0 %5679
    %v5681 = vsel %vm728, %v5599, 0.0
    %5682 = vadd.xlane.f32.xlu0 %v5681
    %v5683 = vpop.xlane.xlu0 %5682
    %v5684 = vsel %vm728, %v5602, 0.0
    %5685 = vadd.xlane.f32.xlu0 %v5684
    %v5686 = vpop.xlane.xlu0 %5685
    %v5687 = vsel %vm728, %v5607, 0.0
    %5688 = vadd.xlane.f32.xlu0 %v5687
    %v5689 = vpop.xlane.xlu0 %5688
    %v5690 = vsel %vm728, %v5610, 0.0
    %5691 = vadd.xlane.f32.xlu0 %v5690
    %v5692 = vpop.xlane.xlu0 %5691
    %v5693 = vsel %vm728, %v5615, 0.0
    %5694 = vadd.xlane.f32.xlu0 %v5693
    %v5695 = vpop.xlane.xlu0 %5694
    %v5696 = vsel %vm728, %v5618, 0.0
    %5697 = vadd.xlane.f32.xlu0 %v5696
    %v5698 = vpop.xlane.xlu0 %5697
    %v5699 = vmul.f32 %v5623, %v2809
    %v5700 = vmul.f32 %v5626, %v2809
    %v5701 = vmul.f32 %v5629, %v2809
    %v5702 = vmul.f32 %v5632, %v2809
    %v5703 = vmul.f32 %v5635, %v2809
    %v5704 = vmul.f32 %v5638, %v2809
    %v5705 = vmul.f32 %v5641, %v2809
    %v5706 = vmul.f32 %v5644, %v2809
    %v5707 = vmul.f32 %v5647, %v2809
    %v5708 = vmul.f32 %v5650, %v2809
    %v5709 = vmul.f32 %v5653, %v2809
    %v5710 = vmul.f32 %v5656, %v2809
    %v5711 = vmul.f32 %v5659, %v2809
    %v5712 = vmul.f32 %v5662, %v2809
    %v5713 = vmul.f32 %v5665, %v2809
    %v5714 = vmul.f32 %v5668, %v2809
    %v5715 = vmul.f32 %v5671, %v2809
    %v5716 = vmul.f32 %v5674, %v2809
    %v5717 = vmul.f32 %v5677, %v2809
    %v5718 = vmul.f32 %v5680, %v2809
    %v5719 = vmul.f32 %v5683, %v2809
    %v5720 = vmul.f32 %v5686, %v2809
    %v5721 = vmul.f32 %v5689, %v2809
    %v5722 = vmul.f32 %v5692, %v2809
    %v5723 = vmul.f32 %v5695, %v2809
    %v5724 = vmul.f32 %v5698, %v2809
    %v5725 = vsub.f32 %v5519, %v5699
    %v5726 = vsub.f32 %v5522, %v5700
    %v5727 = vsub.f32 %v5527, %v5701
    %v5728 = vsub.f32 %v5530, %v5702
    %v5729 = vsub.f32 %v5535, %v5703
    %v5730 = vsub.f32 %v5538, %v5704
    %v5731 = vsub.f32 %v5543, %v5705
    %v5732 = vsub.f32 %v5546, %v5706
    %v5733 = vsub.f32 %v5551, %v5707
    %v5734 = vsub.f32 %v5554, %v5708
    %v5735 = vsub.f32 %v5559, %v5709
    %v5736 = vsub.f32 %v5562, %v5710
    %v5737 = vsub.f32 %v5567, %v5711
    %v5738 = vsub.f32 %v5570, %v5712
    %v5739 = vsub.f32 %v5575, %v5713
    %v5740 = vsub.f32 %v5578, %v5714
    %v5741 = vsub.f32 %v5583, %v5715
    %v5742 = vsub.f32 %v5586, %v5716
    %v5743 = vsub.f32 %v5591, %v5717
    %v5744 = vsub.f32 %v5594, %v5718
    %v5745 = vsub.f32 %v5599, %v5719
    %v5746 = vsub.f32 %v5602, %v5720
    %v5747 = vsub.f32 %v5607, %v5721
    %v5748 = vsub.f32 %v5610, %v5722
    %v5749 = vsub.f32 %v5615, %v5723
    %v5750 = vsub.f32 %v5618, %v5724
    %v5751 = vmul.f32 %v5725, %v5725
    %v5752 = vmul.f32 %v5726, %v5726
    %v5753 = vmul.f32 %v5727, %v5727
    %v5754 = vmul.f32 %v5728, %v5728
    %v5755 = vmul.f32 %v5729, %v5729
    %v5756 = vmul.f32 %v5730, %v5730
    %v5757 = vmul.f32 %v5731, %v5731
    %v5758 = vmul.f32 %v5732, %v5732
    %v5759 = vmul.f32 %v5733, %v5733
    %v5760 = vmul.f32 %v5734, %v5734
    %v5761 = vmul.f32 %v5735, %v5735
    %v5762 = vmul.f32 %v5736, %v5736
    %v5763 = vmul.f32 %v5737, %v5737
    %v5764 = vmul.f32 %v5738, %v5738
    %v5765 = vmul.f32 %v5739, %v5739
    %v5766 = vmul.f32 %v5740, %v5740
    %v5767 = vmul.f32 %v5741, %v5741
    %v5768 = vmul.f32 %v5742, %v5742
    %v5769 = vmul.f32 %v5743, %v5743
    %v5770 = vmul.f32 %v5744, %v5744
    %v5771 = vmul.f32 %v5745, %v5745
    %v5772 = vmul.f32 %v5746, %v5746
    %v5773 = vmul.f32 %v5747, %v5747
    %v5774 = vmul.f32 %v5748, %v5748
    %v5775 = vmul.f32 %v5749, %v5749
    %v5776 = vmul.f32 %v5750, %v5750
    %v5777 = vsel %vm728, %v5751, 0.0
    %5778 = vadd.xlane.f32.xlu0 %v5777
    %v5779 = vpop.xlane.xlu0 %5778
    %v5780 = vsel %vm728, %v5752, 0.0
    %5781 = vadd.xlane.f32.xlu0 %v5780
    %v5782 = vpop.xlane.xlu0 %5781
    %v5783 = vsel %vm728, %v5753, 0.0
    %5784 = vadd.xlane.f32.xlu0 %v5783
    %v5785 = vpop.xlane.xlu0 %5784
    %v5786 = vsel %vm728, %v5754, 0.0
    %5787 = vadd.xlane.f32.xlu0 %v5786
    %v5788 = vpop.xlane.xlu0 %5787
    %v5789 = vsel %vm728, %v5755, 0.0
    %5790 = vadd.xlane.f32.xlu0 %v5789
    %v5791 = vpop.xlane.xlu0 %5790
    %v5792 = vsel %vm728, %v5756, 0.0
    %5793 = vadd.xlane.f32.xlu0 %v5792
    %v5794 = vpop.xlane.xlu0 %5793
    %v5795 = vsel %vm728, %v5757, 0.0
    %5796 = vadd.xlane.f32.xlu0 %v5795
    %v5797 = vpop.xlane.xlu0 %5796
    %v5798 = vsel %vm728, %v5758, 0.0
    %5799 = vadd.xlane.f32.xlu0 %v5798
    %v5800 = vpop.xlane.xlu0 %5799
    %v5801 = vsel %vm728, %v5759, 0.0
    %5802 = vadd.xlane.f32.xlu0 %v5801
    %v5803 = vpop.xlane.xlu0 %5802
    %v5804 = vsel %vm728, %v5760, 0.0
    %5805 = vadd.xlane.f32.xlu0 %v5804
    %v5806 = vpop.xlane.xlu0 %5805
    %v5807 = vsel %vm728, %v5761, 0.0
    %5808 = vadd.xlane.f32.xlu0 %v5807
    %v5809 = vpop.xlane.xlu0 %5808
    %v5810 = vsel %vm728, %v5762, 0.0
    %5811 = vadd.xlane.f32.xlu0 %v5810
    %v5812 = vpop.xlane.xlu0 %5811
    %v5813 = vsel %vm728, %v5763, 0.0
    %5814 = vadd.xlane.f32.xlu0 %v5813
    %v5815 = vpop.xlane.xlu0 %5814
    %v5816 = vsel %vm728, %v5764, 0.0
    %5817 = vadd.xlane.f32.xlu0 %v5816
    %v5818 = vpop.xlane.xlu0 %5817
    %v5819 = vsel %vm728, %v5765, 0.0
    %5820 = vadd.xlane.f32.xlu0 %v5819
    %v5821 = vpop.xlane.xlu0 %5820
    %v5822 = vsel %vm728, %v5766, 0.0
    %5823 = vadd.xlane.f32.xlu0 %v5822
    %v5824 = vpop.xlane.xlu0 %5823
    %v5825 = vsel %vm728, %v5767, 0.0
    %5826 = vadd.xlane.f32.xlu0 %v5825
    %v5827 = vpop.xlane.xlu0 %5826
    %v5828 = vsel %vm728, %v5768, 0.0
    %5829 = vadd.xlane.f32.xlu0 %v5828
    %v5830 = vpop.xlane.xlu0 %5829
    %v5831 = vsel %vm728, %v5769, 0.0
    %5832 = vadd.xlane.f32.xlu0 %v5831
    %v5833 = vpop.xlane.xlu0 %5832
    %v5834 = vsel %vm728, %v5770, 0.0
    %5835 = vadd.xlane.f32.xlu0 %v5834
    %v5836 = vpop.xlane.xlu0 %5835
    %v5837 = vsel %vm728, %v5771, 0.0
    %5838 = vadd.xlane.f32.xlu0 %v5837
    %v5839 = vpop.xlane.xlu0 %5838
    %v5840 = vsel %vm728, %v5772, 0.0
    %5841 = vadd.xlane.f32.xlu0 %v5840
    %v5842 = vpop.xlane.xlu0 %5841
    %v5843 = vsel %vm728, %v5773, 0.0
    %5844 = vadd.xlane.f32.xlu0 %v5843
    %v5845 = vpop.xlane.xlu0 %5844
    %v5846 = vsel %vm728, %v5774, 0.0
    %5847 = vadd.xlane.f32.xlu0 %v5846
    %v5848 = vpop.xlane.xlu0 %5847
    %v5849 = vsel %vm728, %v5775, 0.0
    %5850 = vadd.xlane.f32.xlu0 %v5849
    %v5851 = vpop.xlane.xlu0 %5850
    %v5852 = vsel %vm728, %v5776, 0.0
    %5853 = vadd.xlane.f32.xlu0 %v5852
    %v5854 = vpop.xlane.xlu0 %5853
    %v5855 = vmul.f32 %v5779, %v2809
    %v5856 = vmul.f32 %v5782, %v2809
    %v5857 = vmul.f32 %v5785, %v2809
    %v5858 = vmul.f32 %v5788, %v2809
    %v5859 = vmul.f32 %v5791, %v2809
    %v5860 = vmul.f32 %v5794, %v2809
    %v5861 = vmul.f32 %v5797, %v2809
    %v5862 = vmul.f32 %v5800, %v2809
    %v5863 = vmul.f32 %v5803, %v2809
    %v5864 = vmul.f32 %v5806, %v2809
    %v5865 = vmul.f32 %v5809, %v2809
    %v5866 = vmul.f32 %v5812, %v2809
    %v5867 = vmul.f32 %v5815, %v2809
    %v5868 = vmul.f32 %v5818, %v2809
    %v5869 = vmul.f32 %v5821, %v2809
    %v5870 = vmul.f32 %v5824, %v2809
    %v5871 = vmul.f32 %v5827, %v2809
    %v5872 = vmul.f32 %v5830, %v2809
    %v5873 = vmul.f32 %v5833, %v2809
    %v5874 = vmul.f32 %v5836, %v2809
    %v5875 = vmul.f32 %v5839, %v2809
    %v5876 = vmul.f32 %v5842, %v2809
    %v5877 = vmul.f32 %v5845, %v2809
    %v5878 = vmul.f32 %v5848, %v2809
    %v5879 = vmul.f32 %v5851, %v2809
    %v5880 = vmul.f32 %v5854, %v2809
    %v5881 = vadd.f32 %v5855, 1e-05
    %v5882 = vadd.f32 %v5856, 1e-05
    %v5883 = vadd.f32 %v5857, 1e-05
    %v5884 = vadd.f32 %v5858, 1e-05
    %v5885 = vadd.f32 %v5859, 1e-05
    %v5886 = vadd.f32 %v5860, 1e-05
    %v5887 = vadd.f32 %v5861, 1e-05
    %v5888 = vadd.f32 %v5862, 1e-05
    %v5889 = vadd.f32 %v5863, 1e-05
    %v5890 = vadd.f32 %v5864, 1e-05
    %v5891 = vadd.f32 %v5865, 1e-05
    %v5892 = vadd.f32 %v5866, 1e-05
    %v5893 = vadd.f32 %v5867, 1e-05
    %v5894 = vadd.f32 %v5868, 1e-05
    %v5895 = vadd.f32 %v5869, 1e-05
    %v5896 = vadd.f32 %v5870, 1e-05
    %v5897 = vadd.f32 %v5871, 1e-05
    %v5898 = vadd.f32 %v5872, 1e-05
    %v5899 = vadd.f32 %v5873, 1e-05
    %v5900 = vadd.f32 %v5874, 1e-05
    %v5901 = vadd.f32 %v5875, 1e-05
    %v5902 = vadd.f32 %v5876, 1e-05
    %v5903 = vadd.f32 %v5877, 1e-05
    %v5904 = vadd.f32 %v5878, 1e-05
    %v5905 = vadd.f32 %v5879, 1e-05
    %v5906 = vadd.f32 %v5880, 1e-05
    %v5907 = vrsqrt.pop %v5881
    %v5908 = vrsqrt.pop %v5882
    %v5909 = vrsqrt.pop %v5883
    %v5910 = vrsqrt.pop %v5884
    %v5911 = vrsqrt.pop %v5885
    %v5912 = vrsqrt.pop %v5886
    %v5913 = vrsqrt.pop %v5887
    %v5914 = vrsqrt.pop %v5888
    %v5915 = vrsqrt.pop %v5889
    %v5916 = vrsqrt.pop %v5890
    %v5917 = vrsqrt.pop %v5891
    %v5918 = vrsqrt.pop %v5892
    %v5919 = vrsqrt.pop %v5893
    %v5920 = vrsqrt.pop %v5894
    %v5921 = vrsqrt.pop %v5895
    %v5922 = vrsqrt.pop %v5896
    %v5923 = vrsqrt.pop %v5897
    %v5924 = vrsqrt.pop %v5898
    %v5925 = vrsqrt.pop %v5899
    %v5926 = vrsqrt.pop %v5900
    %v5927 = vrsqrt.pop %v5901
    %v5928 = vrsqrt.pop %v5902
    %v5929 = vrsqrt.pop %v5903
    %v5930 = vrsqrt.pop %v5904
    %v5931 = vrsqrt.pop %v5905
    %v5932 = vrsqrt.pop %v5906
    %v5933 = vmul.f32 %v5725, %v5907
    %v5934 = vmul.f32 %v5726, %v5908
    %v5935 = vmul.f32 %v5727, %v5909
    %v5936 = vmul.f32 %v5728, %v5910
    %v5937 = vmul.f32 %v5729, %v5911
    %v5938 = vmul.f32 %v5730, %v5912
    %v5939 = vmul.f32 %v5731, %v5913
    %v5940 = vmul.f32 %v5732, %v5914
    %v5941 = vmul.f32 %v5733, %v5915
    %v5942 = vmul.f32 %v5734, %v5916
    %v5943 = vmul.f32 %v5735, %v5917
    %v5944 = vmul.f32 %v5736, %v5918
    %v5945 = vmul.f32 %v5737, %v5919
    %v5946 = vmul.f32 %v5738, %v5920
    %v5947 = vmul.f32 %v5739, %v5921
    %v5948 = vmul.f32 %v5740, %v5922
    %v5949 = vmul.f32 %v5741, %v5923
    %v5950 = vmul.f32 %v5742, %v5924
    %v5951 = vmul.f32 %v5743, %v5925
    %v5952 = vmul.f32 %v5744, %v5926
    %v5953 = vmul.f32 %v5745, %v5927
    %v5954 = vmul.f32 %v5746, %v5928
    %v5955 = vmul.f32 %v5747, %v5929
    %v5956 = vmul.f32 %v5748, %v5930
    %v5957 = vmul.f32 %v5749, %v5931
    %v5958 = vmul.f32 %v5750, %v5932
    %v5959 = vld [vmem:[%s11] sm:$0x1]
    %v5960 = vlaneseq
    %v5961 = vshrl.u32 %v5960, 7
    %v5962 = vsub.s32 0, %v5961
    %v5963 = vrot.slane %v5959, %v5962
    %v5964 = vmul.f32 %v5933, %v5963
    %v5965 = vmul.f32 %v5934, %v5963
    %v5966 = vmul.f32 %v5935, %v5963
    %v5967 = vmul.f32 %v5936, %v5963
    %v5968 = vmul.f32 %v5937, %v5963
    %v5969 = vmul.f32 %v5938, %v5963
    %v5970 = vmul.f32 %v5939, %v5963
    %v5971 = vmul.f32 %v5940, %v5963
    %v5972 = vmul.f32 %v5941, %v5963
    %v5973 = vmul.f32 %v5942, %v5963
    %v5974 = vmul.f32 %v5943, %v5963
    %v5975 = vmul.f32 %v5944, %v5963
    %v5976 = vmul.f32 %v5945, %v5963
    %v5977 = vmul.f32 %v5946, %v5963
    %v5978 = vmul.f32 %v5947, %v5963
    %v5979 = vmul.f32 %v5948, %v5963
    %v5980 = vmul.f32 %v5949, %v5963
    %v5981 = vmul.f32 %v5950, %v5963
    %v5982 = vmul.f32 %v5951, %v5963
    %v5983 = vmul.f32 %v5952, %v5963
    %v5984 = vmul.f32 %v5953, %v5963
    %v5985 = vmul.f32 %v5954, %v5963
    %v5986 = vmul.f32 %v5955, %v5963
    %v5987 = vmul.f32 %v5956, %v5963
    %v5988 = vmul.f32 %v5957, %v5963
    %v5989 = vmul.f32 %v5958, %v5963
    %v5990 = vld [vmem:[%s11 + $0x1] sm:$0x1]
    %v5991 = vlaneseq
    %v5992 = vshrl.u32 %v5991, 7
    %v5993 = vsub.s32 0, %v5992
    %v5994 = vrot.slane %v5990, %v5993
    %v5995 = vadd.f32 %v5964, %v5994
    %v5996 = vadd.f32 %v5965, %v5994
    %v5997 = vadd.f32 %v5966, %v5994
    %v5998 = vadd.f32 %v5967, %v5994
    %v5999 = vadd.f32 %v5968, %v5994
    %v6000 = vadd.f32 %v5969, %v5994
    %v6001 = vadd.f32 %v5970, %v5994
    %v6002 = vadd.f32 %v5971, %v5994
    %v6003 = vadd.f32 %v5972, %v5994
    %v6004 = vadd.f32 %v5973, %v5994
    %v6005 = vadd.f32 %v5974, %v5994
    %v6006 = vadd.f32 %v5975, %v5994
    %v6007 = vadd.f32 %v5976, %v5994
    %v6008 = vadd.f32 %v5977, %v5994
    %v6009 = vadd.f32 %v5978, %v5994
    %v6010 = vadd.f32 %v5979, %v5994
    %v6011 = vadd.f32 %v5980, %v5994
    %v6012 = vadd.f32 %v5981, %v5994
    %v6013 = vadd.f32 %v5982, %v5994
    %v6014 = vadd.f32 %v5983, %v5994
    %v6015 = vadd.f32 %v5984, %v5994
    %v6016 = vadd.f32 %v5985, %v5994
    %v6017 = vadd.f32 %v5986, %v5994
    %v6018 = vadd.f32 %v5987, %v5994
    %v6019 = vadd.f32 %v5988, %v5994
    %v6020 = vadd.f32 %v5989, %v5994
    %v6021 = vld [vmem:[%s8] sm:$0xff]
    %v6022 = vld [vmem:[%s8 + $0x8] sm:$0xff]
    %v6023 = vld [vmem:[%s8 + $0x10] sm:$0xff]
    %v6024 = vld [vmem:[%s8 + $0x18] sm:$0xff]
    %v6025 = vld [vmem:[%s11 + $0x2] sm:$0x1]
    %v6026 = vlaneseq
    %v6027 = vshrl.u32 %v6026, 7
    %v6028 = vsub.s32 0, %v6027
    %v6029 = vrot.slane %v6025, %v6028
    %v6031 = vsel %vm728, %v5995, 0
    %v6034 = vsel %vm728, %v5996, 0
    %v6037 = vsel %vm728, %v5997, 0
    %v6040 = vsel %vm728, %v5998, 0
    %v6043 = vsel %vm728, %v5999, 0
    %v6046 = vsel %vm728, %v6000, 0
    %v6049 = vsel %vm728, %v6001, 0
    %v6052 = vsel %vm728, %v6002, 0
    %v6055 = vsel %vm728, %v6003, 0
    %v6058 = vsel %vm728, %v6004, 0
    %v6061 = vsel %vm728, %v6005, 0
    %v6064 = vsel %vm728, %v6006, 0
    %v6067 = vsel %vm728, %v6007, 0
    %v6070 = vsel %vm728, %v6008, 0
    %v6073 = vsel %vm728, %v6009, 0
    %v6076 = vsel %vm728, %v6010, 0
    %v6079 = vsel %vm728, %v6011, 0
    %v6082 = vsel %vm728, %v6012, 0
    %v6085 = vsel %vm728, %v6013, 0
    %v6088 = vsel %vm728, %v6014, 0
    %v6091 = vsel %vm728, %v6015, 0
    %v6094 = vsel %vm728, %v6016, 0
    %v6097 = vsel %vm728, %v6017, 0
    %v6100 = vsel %vm728, %v6018, 0
    %v6103 = vsel %vm728, %v6019, 0
    %v6106 = vsel %vm728, %v6020, 0
    %6108 = vmatprep.subr.mxu0 0.0
    %6109 = vmatpush1.msra.mxu0 0.0
    %6110 = vmatprep.subr.mxu0 0.0
    %6111 = vmatpush1.msra.mxu0 0.0
    %6112 = vmatprep.subr.mxu0 0.0
    %6113 = vmatpush1.msra.mxu0 0.0
    %6114 = vmatprep.subr.mxu0 0.0
    %6115 = vmatpush1.msra.mxu0 0.0
    %6116 = vmatprep.subr.mxu0 0.0
    %6117 = vmatpush1.msra.mxu0 0.0
    %6118 = vmatprep.subr.mxu0 0.0
    %6119 = vmatpush1.msra.mxu0 0.0
    %6120 = vmatprep.subr.mxu0 0.0
    %6121 = vmatpush1.msra.mxu0 0.0
    %6122 = vmatprep.subr.mxu0 0.0
    %6123 = vmatpush1.msra.mxu0 0.0
    %6124 = vmatprep.subr.mxu0 0.0
    %6125 = vmatpush1.msra.mxu0 0.0
    %6126 = vmatprep.subr.mxu0 0.0
    %6127 = vmatpush1.msra.mxu0 0.0
    %6128 = vmatprep.subr.mxu0 0.0
    %6129 = vmatpush1.msra.mxu0 0.0
    %6130 = vmatprep.subr.mxu0 0.0
    %6131 = vmatpush1.msra.mxu0 0.0
    %6132 = vmatprep.subr.mxu0 0.0
    %6133 = vmatpush1.msra.mxu0 %v6024
    %6134 = vmatprep.subr.mxu0 0.0
    %6135 = vmatpush1.msra.mxu0 %v6023
    %6136 = vmatprep.subr.mxu0 0.0
    %6137 = vmatpush1.msra.mxu0 %v6022
    %6138 = vmatprep.subr.mxu0 0.0
    %6139 = vmatpush1.msra.mxu0 %v6021
    %6140 = vmatprep.subr.mxu0 0.0
    %6141 = vmatpush2.msra.mxu0 0.0
    %6142 = vmatprep.subr.mxu0 0.0
    %6143 = vmatpush2.msra.mxu0 0.0
    %6144 = vmatprep.subr.mxu0 0.0
    %6145 = vmatpush2.msra.mxu0 0.0
    %6146 = vmatprep.subr.mxu0 0.0
    %6147 = vmatpush2.msra.mxu0 0.0
    %6148 = vmatprep.subr.mxu0 0.0
    %6149 = vmatpush2.msra.mxu0 0.0
    %6150 = vmatprep.subr.mxu0 0.0
    %6151 = vmatpush2.msra.mxu0 0.0
    %6152 = vmatprep.subr.mxu0 0.0
    %6153 = vmatpush2.msra.mxu0 0.0
    %6154 = vmatprep.subr.mxu0 0.0
    %6155 = vmatpush2.msra.mxu0 0.0
    %6156 = vmatprep.subr.mxu0 0.0
    %6157 = vmatpush2.msra.mxu0 0.0
    %6158 = vmatprep.subr.mxu0 0.0
    %6159 = vmatpush2.msra.mxu0 0.0
    %6160 = vmatprep.subr.mxu0 0.0
    %6161 = vmatpush2.msra.mxu0 0.0
    %6162 = vmatprep.subr.mxu0 0.0
    %6163 = vmatpush2.msra.mxu0 0.0
    %6164 = vmatprep.subr.mxu0 0.0
    %6165 = vmatpush2.msra.mxu0 0.0
    %6166 = vmatprep.subr.mxu0 0.0
    %6167 = vmatpush2.msra.mxu0 0.0
    %6168 = vmatprep.subr.mxu0 0.0
    %6169 = vmatpush2.msra.mxu0 0.0
    %6170 = vmatprep.subr.mxu0 0.0
    %6171 = vmatpush2.msra.mxu0 0.0
    %6172 = vmatprep.mubr.f32.mxu0 0.0
    %6173 = vmatmul.mubr.f32.gmra.mxu0 %v6031
    %v6174 = vpop.f32.mrf.mxu0
    %v6175 = vadd.f32 %v6029, %v6174
    %v6176 = vpop.f32.mrf.mxu0
    %6177 = vmatprep.mubr.f32.mxu0 0.0
    %6178 = vmatmul.mubr.f32.gmra.mxu0 %v6034
    %v6179 = vpop.f32.mrf.mxu0
    %v6180 = vadd.f32 %v6029, %v6179
    %v6181 = vpop.f32.mrf.mxu0
    %6182 = vmatprep.mubr.f32.mxu0 0.0
    %6183 = vmatmul.mubr.f32.gmra.mxu0 %v6037
    %v6184 = vpop.f32.mrf.mxu0
    %v6185 = vadd.f32 %v6029, %v6184
    %v6186 = vpop.f32.mrf.mxu0
    %6187 = vmatprep.mubr.f32.mxu0 0.0
    %6188 = vmatmul.mubr.f32.gmra.mxu0 %v6040
    %v6189 = vpop.f32.mrf.mxu0
    %v6190 = vadd.f32 %v6029, %v6189
    %v6191 = vpop.f32.mrf.mxu0
    %6192 = vmatprep.mubr.f32.mxu0 0.0
    %6193 = vmatmul.mubr.f32.gmra.mxu0 %v6043
    %v6194 = vpop.f32.mrf.mxu0
    %v6195 = vadd.f32 %v6029, %v6194
    %v6196 = vpop.f32.mrf.mxu0
    %6197 = vmatprep.mubr.f32.mxu0 0.0
    %6198 = vmatmul.mubr.f32.gmra.mxu0 %v6046
    %v6199 = vpop.f32.mrf.mxu0
    %v6200 = vadd.f32 %v6029, %v6199
    %v6201 = vpop.f32.mrf.mxu0
    %6202 = vmatprep.mubr.f32.mxu0 0.0
    %6203 = vmatmul.mubr.f32.gmra.mxu0 %v6049
    %v6204 = vpop.f32.mrf.mxu0
    %v6205 = vadd.f32 %v6029, %v6204
    %v6206 = vpop.f32.mrf.mxu0
    %6207 = vmatprep.mubr.f32.mxu0 0.0
    %6208 = vmatmul.mubr.f32.gmra.mxu0 %v6052
    %v6209 = vpop.f32.mrf.mxu0
    %v6210 = vadd.f32 %v6029, %v6209
    %v6211 = vpop.f32.mrf.mxu0
    %6212 = vmatprep.mubr.f32.mxu0 0.0
    %6213 = vmatmul.mubr.f32.gmra.mxu0 %v6055
    %v6214 = vpop.f32.mrf.mxu0
    %v6215 = vadd.f32 %v6029, %v6214
    %v6216 = vpop.f32.mrf.mxu0
    %6217 = vmatprep.mubr.f32.mxu0 0.0
    %6218 = vmatmul.mubr.f32.gmra.mxu0 %v6058
    %v6219 = vpop.f32.mrf.mxu0
    %v6220 = vadd.f32 %v6029, %v6219
    %v6221 = vpop.f32.mrf.mxu0
    %6222 = vmatprep.mubr.f32.mxu0 0.0
    %6223 = vmatmul.mubr.f32.gmra.mxu0 %v6061
    %v6224 = vpop.f32.mrf.mxu0
    %v6225 = vadd.f32 %v6029, %v6224
    %v6226 = vpop.f32.mrf.mxu0
    %6227 = vmatprep.mubr.f32.mxu0 0.0
    %6228 = vmatmul.mubr.f32.gmra.mxu0 %v6064
    %v6229 = vpop.f32.mrf.mxu0
    %v6230 = vadd.f32 %v6029, %v6229
    %v6231 = vpop.f32.mrf.mxu0
    %6232 = vmatprep.mubr.f32.mxu0 0.0
    %6233 = vmatmul.mubr.f32.gmra.mxu0 %v6067
    %v6234 = vpop.f32.mrf.mxu0
    %v6235 = vadd.f32 %v6029, %v6234
    %v6236 = vpop.f32.mrf.mxu0
    %6237 = vmatprep.mubr.f32.mxu0 0.0
    %6238 = vmatmul.mubr.f32.gmra.mxu0 %v6070
    %v6239 = vpop.f32.mrf.mxu0
    %v6240 = vadd.f32 %v6029, %v6239
    %v6241 = vpop.f32.mrf.mxu0
    %6242 = vmatprep.mubr.f32.mxu0 0.0
    %6243 = vmatmul.mubr.f32.gmra.mxu0 %v6073
    %v6244 = vpop.f32.mrf.mxu0
    %v6245 = vadd.f32 %v6029, %v6244
    %v6246 = vpop.f32.mrf.mxu0
    %6247 = vmatprep.mubr.f32.mxu0 0.0
    %6248 = vmatmul.mubr.f32.gmra.mxu0 %v6076
    %v6249 = vpop.f32.mrf.mxu0
    %v6250 = vadd.f32 %v6029, %v6249
    %v6251 = vpop.f32.mrf.mxu0
    %6252 = vmatprep.mubr.f32.mxu0 0.0
    %6253 = vmatmul.mubr.f32.gmra.mxu0 %v6079
    %v6254 = vpop.f32.mrf.mxu0
    %v6255 = vadd.f32 %v6029, %v6254
    %v6256 = vpop.f32.mrf.mxu0
    %6257 = vmatprep.mubr.f32.mxu0 0.0
    %6258 = vmatmul.mubr.f32.gmra.mxu0 %v6082
    %v6259 = vpop.f32.mrf.mxu0
    %v6260 = vadd.f32 %v6029, %v6259
    %v6261 = vpop.f32.mrf.mxu0
    %6262 = vmatprep.mubr.f32.mxu0 0.0
    %6263 = vmatmul.mubr.f32.gmra.mxu0 %v6085
    %v6264 = vpop.f32.mrf.mxu0
    %v6265 = vadd.f32 %v6029, %v6264
    %v6266 = vpop.f32.mrf.mxu0
    %6267 = vmatprep.mubr.f32.mxu0 0.0
    %6268 = vmatmul.mubr.f32.gmra.mxu0 %v6088
    %v6269 = vpop.f32.mrf.mxu0
    %v6270 = vadd.f32 %v6029, %v6269
    %v6271 = vpop.f32.mrf.mxu0
    %6272 = vmatprep.mubr.f32.mxu0 0.0
    %6273 = vmatmul.mubr.f32.gmra.mxu0 %v6091
    %v6274 = vpop.f32.mrf.mxu0
    %v6275 = vadd.f32 %v6029, %v6274
    %v6276 = vpop.f32.mrf.mxu0
    %6277 = vmatprep.mubr.f32.mxu0 0.0
    %6278 = vmatmul.mubr.f32.gmra.mxu0 %v6094
    %v6279 = vpop.f32.mrf.mxu0
    %v6280 = vadd.f32 %v6029, %v6279
    %v6281 = vpop.f32.mrf.mxu0
    %6282 = vmatprep.mubr.f32.mxu0 0.0
    %6283 = vmatmul.mubr.f32.gmra.mxu0 %v6097
    %v6284 = vpop.f32.mrf.mxu0
    %v6285 = vadd.f32 %v6029, %v6284
    %v6286 = vpop.f32.mrf.mxu0
    %6287 = vmatprep.mubr.f32.mxu0 0.0
    %6288 = vmatmul.mubr.f32.gmra.mxu0 %v6100
    %v6289 = vpop.f32.mrf.mxu0
    %v6290 = vadd.f32 %v6029, %v6289
    %v6291 = vpop.f32.mrf.mxu0
    %6292 = vmatprep.mubr.f32.mxu0 0.0
    %6293 = vmatmul.mubr.f32.gmra.mxu0 %v6103
    %v6294 = vpop.f32.mrf.mxu0
    %v6295 = vadd.f32 %v6029, %v6294
    %v6296 = vpop.f32.mrf.mxu0
    %6297 = vmatprep.mubr.f32.mxu0 0.0
    %6298 = vmatmul.mubr.f32.gmra.mxu0 %v6106
    %v6299 = vpop.f32.mrf.mxu0
    %v6300 = vadd.f32 %v6029, %v6299
    %v6301 = vpop.f32.mrf.mxu0
    %6302 = vdwg.mxu0
    %v6303 = vmax.f32 %v6175, 0.0
    %v6304 = vmax.f32 %v6180, 0.0
    %v6305 = vmax.f32 %v6185, 0.0
    %v6306 = vmax.f32 %v6190, 0.0
    %v6307 = vmax.f32 %v6195, 0.0
    %v6308 = vmax.f32 %v6200, 0.0
    %v6309 = vmax.f32 %v6205, 0.0
    %v6310 = vmax.f32 %v6210, 0.0
    %v6311 = vmax.f32 %v6215, 0.0
    %v6312 = vmax.f32 %v6220, 0.0
    %v6313 = vmax.f32 %v6225, 0.0
    %v6314 = vmax.f32 %v6230, 0.0
    %v6315 = vmax.f32 %v6235, 0.0
    %v6316 = vmax.f32 %v6240, 0.0
    %v6317 = vmax.f32 %v6245, 0.0
    %v6318 = vmax.f32 %v6250, 0.0
    %v6319 = vmax.f32 %v6255, 0.0
    %v6320 = vmax.f32 %v6260, 0.0
    %v6321 = vmax.f32 %v6265, 0.0
    %v6322 = vmax.f32 %v6270, 0.0
    %v6323 = vmax.f32 %v6275, 0.0
    %v6324 = vmax.f32 %v6280, 0.0
    %v6325 = vmax.f32 %v6285, 0.0
    %v6326 = vmax.f32 %v6290, 0.0
    %v6327 = vmax.f32 %v6295, 0.0
    %v6328 = vmax.f32 %v6300, 0.0
    %v6329 = vld [vmem:[%s9] sm:$0xff]
    %v6330 = vld [vmem:[%s9 + $0x8] sm:$0xff]
    %v6331 = vld [vmem:[%s9 + $0x10] sm:$0xff]
    %v6332 = vld [vmem:[%s9 + $0x18] sm:$0xff]
    %v6333 = vld [vmem:[%s11 + $0x3] sm:$0x1]
    %v6334 = vlaneseq
    %v6335 = vshrl.u32 %v6334, 7
    %v6336 = vsub.s32 0, %v6335
    %v6337 = vrot.slane %v6333, %v6336
    %v6339 = vsel %vm728, %v6303, 0
    %v6342 = vsel %vm728, %v6304, 0
    %v6345 = vsel %vm728, %v6305, 0
    %v6348 = vsel %vm728, %v6306, 0
    %v6351 = vsel %vm728, %v6307, 0
    %v6354 = vsel %vm728, %v6308, 0
    %v6357 = vsel %vm728, %v6309, 0
    %v6360 = vsel %vm728, %v6310, 0
    %v6363 = vsel %vm728, %v6311, 0
    %v6366 = vsel %vm728, %v6312, 0
    %v6369 = vsel %vm728, %v6313, 0
    %v6372 = vsel %vm728, %v6314, 0
    %v6375 = vsel %vm728, %v6315, 0
    %v6378 = vsel %vm728, %v6316, 0
    %v6381 = vsel %vm728, %v6317, 0
    %v6384 = vsel %vm728, %v6318, 0
    %v6387 = vsel %vm728, %v6319, 0
    %v6390 = vsel %vm728, %v6320, 0
    %v6393 = vsel %vm728, %v6321, 0
    %v6396 = vsel %vm728, %v6322, 0
    %v6399 = vsel %vm728, %v6323, 0
    %v6402 = vsel %vm728, %v6324, 0
    %v6405 = vsel %vm728, %v6325, 0
    %v6408 = vsel %vm728, %v6326, 0
    %v6411 = vsel %vm728, %v6327, 0
    %v6414 = vsel %vm728, %v6328, 0
    %6416 = vmatprep.subr.mxu0 0.0
    %6417 = vmatpush1.msra.mxu0 0.0
    %6418 = vmatprep.subr.mxu0 0.0
    %6419 = vmatpush1.msra.mxu0 0.0
    %6420 = vmatprep.subr.mxu0 0.0
    %6421 = vmatpush1.msra.mxu0 0.0
    %6422 = vmatprep.subr.mxu0 0.0
    %6423 = vmatpush1.msra.mxu0 0.0
    %6424 = vmatprep.subr.mxu0 0.0
    %6425 = vmatpush1.msra.mxu0 0.0
    %6426 = vmatprep.subr.mxu0 0.0
    %6427 = vmatpush1.msra.mxu0 0.0
    %6428 = vmatprep.subr.mxu0 0.0
    %6429 = vmatpush1.msra.mxu0 0.0
    %6430 = vmatprep.subr.mxu0 0.0
    %6431 = vmatpush1.msra.mxu0 0.0
    %6432 = vmatprep.subr.mxu0 0.0
    %6433 = vmatpush1.msra.mxu0 0.0
    %6434 = vmatprep.subr.mxu0 0.0
    %6435 = vmatpush1.msra.mxu0 0.0
    %6436 = vmatprep.subr.mxu0 0.0
    %6437 = vmatpush1.msra.mxu0 0.0
    %6438 = vmatprep.subr.mxu0 0.0
    %6439 = vmatpush1.msra.mxu0 0.0
    %6440 = vmatprep.subr.mxu0 0.0
    %6441 = vmatpush1.msra.mxu0 %v6332
    %6442 = vmatprep.subr.mxu0 0.0
    %6443 = vmatpush1.msra.mxu0 %v6331
    %6444 = vmatprep.subr.mxu0 0.0
    %6445 = vmatpush1.msra.mxu0 %v6330
    %6446 = vmatprep.subr.mxu0 0.0
    %6447 = vmatpush1.msra.mxu0 %v6329
    %6448 = vmatprep.subr.mxu0 0.0
    %6449 = vmatpush2.msra.mxu0 0.0
    %6450 = vmatprep.subr.mxu0 0.0
    %6451 = vmatpush2.msra.mxu0 0.0
    %6452 = vmatprep.subr.mxu0 0.0
    %6453 = vmatpush2.msra.mxu0 0.0
    %6454 = vmatprep.subr.mxu0 0.0
    %6455 = vmatpush2.msra.mxu0 0.0
    %6456 = vmatprep.subr.mxu0 0.0
    %6457 = vmatpush2.msra.mxu0 0.0
    %6458 = vmatprep.subr.mxu0 0.0
    %6459 = vmatpush2.msra.mxu0 0.0
    %6460 = vmatprep.subr.mxu0 0.0
    %6461 = vmatpush2.msra.mxu0 0.0
    %6462 = vmatprep.subr.mxu0 0.0
    %6463 = vmatpush2.msra.mxu0 0.0
    %6464 = vmatprep.subr.mxu0 0.0
    %6465 = vmatpush2.msra.mxu0 0.0
    %6466 = vmatprep.subr.mxu0 0.0
    %6467 = vmatpush2.msra.mxu0 0.0
    %6468 = vmatprep.subr.mxu0 0.0
    %6469 = vmatpush2.msra.mxu0 0.0
    %6470 = vmatprep.subr.mxu0 0.0
    %6471 = vmatpush2.msra.mxu0 0.0
    %6472 = vmatprep.subr.mxu0 0.0
    %6473 = vmatpush2.msra.mxu0 0.0
    %6474 = vmatprep.subr.mxu0 0.0
    %6475 = vmatpush2.msra.mxu0 0.0
    %6476 = vmatprep.subr.mxu0 0.0
    %6477 = vmatpush2.msra.mxu0 0.0
    %6478 = vmatprep.subr.mxu0 0.0
    %6479 = vmatpush2.msra.mxu0 0.0
    %6480 = vmatprep.mubr.f32.mxu0 0.0
    %6481 = vmatmul.mubr.f32.gmra.mxu0 %v6339
    %v6482 = vpop.f32.mrf.mxu0
    %v6483 = vadd.f32 %v6337, %v6482
    %v6484 = vpop.f32.mrf.mxu0
    %6485 = vmatprep.mubr.f32.mxu0 0.0
    %6486 = vmatmul.mubr.f32.gmra.mxu0 %v6342
    %v6487 = vpop.f32.mrf.mxu0
    %v6488 = vadd.f32 %v6337, %v6487
    %v6489 = vpop.f32.mrf.mxu0
    %6490 = vmatprep.mubr.f32.mxu0 0.0
    %6491 = vmatmul.mubr.f32.gmra.mxu0 %v6345
    %v6492 = vpop.f32.mrf.mxu0
    %v6493 = vadd.f32 %v6337, %v6492
    %v6494 = vpop.f32.mrf.mxu0
    %6495 = vmatprep.mubr.f32.mxu0 0.0
    %6496 = vmatmul.mubr.f32.gmra.mxu0 %v6348
    %v6497 = vpop.f32.mrf.mxu0
    %v6498 = vadd.f32 %v6337, %v6497
    %v6499 = vpop.f32.mrf.mxu0
    %6500 = vmatprep.mubr.f32.mxu0 0.0
    %6501 = vmatmul.mubr.f32.gmra.mxu0 %v6351
    %v6502 = vpop.f32.mrf.mxu0
    %v6503 = vadd.f32 %v6337, %v6502
    %v6504 = vpop.f32.mrf.mxu0
    %6505 = vmatprep.mubr.f32.mxu0 0.0
    %6506 = vmatmul.mubr.f32.gmra.mxu0 %v6354
    %v6507 = vpop.f32.mrf.mxu0
    %v6508 = vadd.f32 %v6337, %v6507
    %v6509 = vpop.f32.mrf.mxu0
    %6510 = vmatprep.mubr.f32.mxu0 0.0
    %6511 = vmatmul.mubr.f32.gmra.mxu0 %v6357
    %v6512 = vpop.f32.mrf.mxu0
    %v6513 = vadd.f32 %v6337, %v6512
    %v6514 = vpop.f32.mrf.mxu0
    %6515 = vmatprep.mubr.f32.mxu0 0.0
    %6516 = vmatmul.mubr.f32.gmra.mxu0 %v6360
    %v6517 = vpop.f32.mrf.mxu0
    %v6518 = vadd.f32 %v6337, %v6517
    %v6519 = vpop.f32.mrf.mxu0
    %6520 = vmatprep.mubr.f32.mxu0 0.0
    %6521 = vmatmul.mubr.f32.gmra.mxu0 %v6363
    %v6522 = vpop.f32.mrf.mxu0
    %v6523 = vadd.f32 %v6337, %v6522
    %v6524 = vpop.f32.mrf.mxu0
    %6525 = vmatprep.mubr.f32.mxu0 0.0
    %6526 = vmatmul.mubr.f32.gmra.mxu0 %v6366
    %v6527 = vpop.f32.mrf.mxu0
    %v6528 = vadd.f32 %v6337, %v6527
    %v6529 = vpop.f32.mrf.mxu0
    %6530 = vmatprep.mubr.f32.mxu0 0.0
    %6531 = vmatmul.mubr.f32.gmra.mxu0 %v6369
    %v6532 = vpop.f32.mrf.mxu0
    %v6533 = vadd.f32 %v6337, %v6532
    %v6534 = vpop.f32.mrf.mxu0
    %6535 = vmatprep.mubr.f32.mxu0 0.0
    %6536 = vmatmul.mubr.f32.gmra.mxu0 %v6372
    %v6537 = vpop.f32.mrf.mxu0
    %v6538 = vadd.f32 %v6337, %v6537
    %v6539 = vpop.f32.mrf.mxu0
    %6540 = vmatprep.mubr.f32.mxu0 0.0
    %6541 = vmatmul.mubr.f32.gmra.mxu0 %v6375
    %v6542 = vpop.f32.mrf.mxu0
    %v6543 = vadd.f32 %v6337, %v6542
    %v6544 = vpop.f32.mrf.mxu0
    %6545 = vmatprep.mubr.f32.mxu0 0.0
    %6546 = vmatmul.mubr.f32.gmra.mxu0 %v6378
    %v6547 = vpop.f32.mrf.mxu0
    %v6548 = vadd.f32 %v6337, %v6547
    %v6549 = vpop.f32.mrf.mxu0
    %6550 = vmatprep.mubr.f32.mxu0 0.0
    %6551 = vmatmul.mubr.f32.gmra.mxu0 %v6381
    %v6552 = vpop.f32.mrf.mxu0
    %v6553 = vadd.f32 %v6337, %v6552
    %v6554 = vpop.f32.mrf.mxu0
    %6555 = vmatprep.mubr.f32.mxu0 0.0
    %6556 = vmatmul.mubr.f32.gmra.mxu0 %v6384
    %v6557 = vpop.f32.mrf.mxu0
    %v6558 = vadd.f32 %v6337, %v6557
    %v6559 = vpop.f32.mrf.mxu0
    %6560 = vmatprep.mubr.f32.mxu0 0.0
    %6561 = vmatmul.mubr.f32.gmra.mxu0 %v6387
    %v6562 = vpop.f32.mrf.mxu0
    %v6563 = vadd.f32 %v6337, %v6562
    %v6564 = vpop.f32.mrf.mxu0
    %6565 = vmatprep.mubr.f32.mxu0 0.0
    %6566 = vmatmul.mubr.f32.gmra.mxu0 %v6390
    %v6567 = vpop.f32.mrf.mxu0
    %v6568 = vadd.f32 %v6337, %v6567
    %v6569 = vpop.f32.mrf.mxu0
    %6570 = vmatprep.mubr.f32.mxu0 0.0
    %6571 = vmatmul.mubr.f32.gmra.mxu0 %v6393
    %v6572 = vpop.f32.mrf.mxu0
    %v6573 = vadd.f32 %v6337, %v6572
    %v6574 = vpop.f32.mrf.mxu0
    %6575 = vmatprep.mubr.f32.mxu0 0.0
    %6576 = vmatmul.mubr.f32.gmra.mxu0 %v6396
    %v6577 = vpop.f32.mrf.mxu0
    %v6578 = vadd.f32 %v6337, %v6577
    %v6579 = vpop.f32.mrf.mxu0
    %6580 = vmatprep.mubr.f32.mxu0 0.0
    %6581 = vmatmul.mubr.f32.gmra.mxu0 %v6399
    %v6582 = vpop.f32.mrf.mxu0
    %v6583 = vadd.f32 %v6337, %v6582
    %v6584 = vpop.f32.mrf.mxu0
    %6585 = vmatprep.mubr.f32.mxu0 0.0
    %6586 = vmatmul.mubr.f32.gmra.mxu0 %v6402
    %v6587 = vpop.f32.mrf.mxu0
    %v6588 = vadd.f32 %v6337, %v6587
    %v6589 = vpop.f32.mrf.mxu0
    %6590 = vmatprep.mubr.f32.mxu0 0.0
    %6591 = vmatmul.mubr.f32.gmra.mxu0 %v6405
    %v6592 = vpop.f32.mrf.mxu0
    %v6593 = vadd.f32 %v6337, %v6592
    %v6594 = vpop.f32.mrf.mxu0
    %6595 = vmatprep.mubr.f32.mxu0 0.0
    %6596 = vmatmul.mubr.f32.gmra.mxu0 %v6408
    %v6597 = vpop.f32.mrf.mxu0
    %v6598 = vadd.f32 %v6337, %v6597
    %v6599 = vpop.f32.mrf.mxu0
    %6600 = vmatprep.mubr.f32.mxu0 0.0
    %6601 = vmatmul.mubr.f32.gmra.mxu0 %v6411
    %v6602 = vpop.f32.mrf.mxu0
    %v6603 = vadd.f32 %v6337, %v6602
    %v6604 = vpop.f32.mrf.mxu0
    %6605 = vmatprep.mubr.f32.mxu0 0.0
    %6606 = vmatmul.mubr.f32.gmra.mxu0 %v6414
    %v6607 = vpop.f32.mrf.mxu0
    %v6608 = vadd.f32 %v6337, %v6607
    %v6609 = vpop.f32.mrf.mxu0
    %6610 = vdwg.mxu0
    %v6611 = vadd.f32 %v6483, %v5380
    %v6612 = vadd.f32 %v6488, %v5381
    %v6613 = vadd.f32 %v6493, %v5382
    %v6614 = vadd.f32 %v6498, %v5383
    %v6615 = vadd.f32 %v6503, %v5384
    %v6616 = vadd.f32 %v6508, %v5385
    %v6617 = vadd.f32 %v6513, %v5386
    %v6618 = vadd.f32 %v6518, %v5387
    %v6619 = vadd.f32 %v6523, %v5388
    %v6620 = vadd.f32 %v6528, %v5389
    %v6621 = vadd.f32 %v6533, %v5390
    %v6622 = vadd.f32 %v6538, %v5391
    %v6623 = vadd.f32 %v6543, %v5392
    %v6624 = vadd.f32 %v6548, %v5393
    %v6625 = vadd.f32 %v6553, %v5394
    %v6626 = vadd.f32 %v6558, %v5395
    %v6627 = vadd.f32 %v6563, %v5396
    %v6628 = vadd.f32 %v6568, %v5397
    %v6629 = vadd.f32 %v6573, %v5398
    %v6630 = vadd.f32 %v6578, %v5399
    %v6631 = vadd.f32 %v6583, %v5400
    %v6632 = vadd.f32 %v6588, %v5401
    %v6633 = vadd.f32 %v6593, %v5402
    %v6634 = vadd.f32 %v6598, %v5403
    %v6635 = vadd.f32 %v6603, %v5404
    %v6636 = vadd.f32 %v6608, %v5405
    %v6637 = vsel %vm728, %v6611, 0.0
    %6638 = vadd.xlane.f32.xlu0 %v6637
    %v6639 = vpop.xlane.xlu0 %6638
    %v6640 = vsel %vm728, %v6612, 0.0
    %6641 = vadd.xlane.f32.xlu0 %v6640
    %v6642 = vpop.xlane.xlu0 %6641
    %v6643 = vsel %vm728, %v6613, 0.0
    %6644 = vadd.xlane.f32.xlu0 %v6643
    %v6645 = vpop.xlane.xlu0 %6644
    %v6646 = vsel %vm728, %v6614, 0.0
    %6647 = vadd.xlane.f32.xlu0 %v6646
    %v6648 = vpop.xlane.xlu0 %6647
    %v6649 = vsel %vm728, %v6615, 0.0
    %6650 = vadd.xlane.f32.xlu0 %v6649
    %v6651 = vpop.xlane.xlu0 %6650
    %v6652 = vsel %vm728, %v6616, 0.0
    %6653 = vadd.xlane.f32.xlu0 %v6652
    %v6654 = vpop.xlane.xlu0 %6653
    %v6655 = vsel %vm728, %v6617, 0.0
    %6656 = vadd.xlane.f32.xlu0 %v6655
    %v6657 = vpop.xlane.xlu0 %6656
    %v6658 = vsel %vm728, %v6618, 0.0
    %6659 = vadd.xlane.f32.xlu0 %v6658
    %v6660 = vpop.xlane.xlu0 %6659
    %v6661 = vsel %vm728, %v6619, 0.0
    %6662 = vadd.xlane.f32.xlu0 %v6661
    %v6663 = vpop.xlane.xlu0 %6662
    %v6664 = vsel %vm728, %v6620, 0.0
    %6665 = vadd.xlane.f32.xlu0 %v6664
    %v6666 = vpop.xlane.xlu0 %6665
    %v6667 = vsel %vm728, %v6621, 0.0
    %6668 = vadd.xlane.f32.xlu0 %v6667
    %v6669 = vpop.xlane.xlu0 %6668
    %v6670 = vsel %vm728, %v6622, 0.0
    %6671 = vadd.xlane.f32.xlu0 %v6670
    %v6672 = vpop.xlane.xlu0 %6671
    %v6673 = vsel %vm728, %v6623, 0.0
    %6674 = vadd.xlane.f32.xlu0 %v6673
    %v6675 = vpop.xlane.xlu0 %6674
    %v6676 = vsel %vm728, %v6624, 0.0
    %6677 = vadd.xlane.f32.xlu0 %v6676
    %v6678 = vpop.xlane.xlu0 %6677
    %v6679 = vsel %vm728, %v6625, 0.0
    %6680 = vadd.xlane.f32.xlu0 %v6679
    %v6681 = vpop.xlane.xlu0 %6680
    %v6682 = vsel %vm728, %v6626, 0.0
    %6683 = vadd.xlane.f32.xlu0 %v6682
    %v6684 = vpop.xlane.xlu0 %6683
    %v6685 = vsel %vm728, %v6627, 0.0
    %6686 = vadd.xlane.f32.xlu0 %v6685
    %v6687 = vpop.xlane.xlu0 %6686
    %v6688 = vsel %vm728, %v6628, 0.0
    %6689 = vadd.xlane.f32.xlu0 %v6688
    %v6690 = vpop.xlane.xlu0 %6689
    %v6691 = vsel %vm728, %v6629, 0.0
    %6692 = vadd.xlane.f32.xlu0 %v6691
    %v6693 = vpop.xlane.xlu0 %6692
    %v6694 = vsel %vm728, %v6630, 0.0
    %6695 = vadd.xlane.f32.xlu0 %v6694
    %v6696 = vpop.xlane.xlu0 %6695
    %v6697 = vsel %vm728, %v6631, 0.0
    %6698 = vadd.xlane.f32.xlu0 %v6697
    %v6699 = vpop.xlane.xlu0 %6698
    %v6700 = vsel %vm728, %v6632, 0.0
    %6701 = vadd.xlane.f32.xlu0 %v6700
    %v6702 = vpop.xlane.xlu0 %6701
    %v6703 = vsel %vm728, %v6633, 0.0
    %6704 = vadd.xlane.f32.xlu0 %v6703
    %v6705 = vpop.xlane.xlu0 %6704
    %v6706 = vsel %vm728, %v6634, 0.0
    %6707 = vadd.xlane.f32.xlu0 %v6706
    %v6708 = vpop.xlane.xlu0 %6707
    %v6709 = vsel %vm728, %v6635, 0.0
    %6710 = vadd.xlane.f32.xlu0 %v6709
    %v6711 = vpop.xlane.xlu0 %6710
    %v6712 = vsel %vm728, %v6636, 0.0
    %6713 = vadd.xlane.f32.xlu0 %v6712
    %v6714 = vpop.xlane.xlu0 %6713
    %v6715 = vmul.f32 %v6639, %v2809
    %v6716 = vmul.f32 %v6642, %v2809
    %v6717 = vmul.f32 %v6645, %v2809
    %v6718 = vmul.f32 %v6648, %v2809
    %v6719 = vmul.f32 %v6651, %v2809
    %v6720 = vmul.f32 %v6654, %v2809
    %v6721 = vmul.f32 %v6657, %v2809
    %v6722 = vmul.f32 %v6660, %v2809
    %v6723 = vmul.f32 %v6663, %v2809
    %v6724 = vmul.f32 %v6666, %v2809
    %v6725 = vmul.f32 %v6669, %v2809
    %v6726 = vmul.f32 %v6672, %v2809
    %v6727 = vmul.f32 %v6675, %v2809
    %v6728 = vmul.f32 %v6678, %v2809
    %v6729 = vmul.f32 %v6681, %v2809
    %v6730 = vmul.f32 %v6684, %v2809
    %v6731 = vmul.f32 %v6687, %v2809
    %v6732 = vmul.f32 %v6690, %v2809
    %v6733 = vmul.f32 %v6693, %v2809
    %v6734 = vmul.f32 %v6696, %v2809
    %v6735 = vmul.f32 %v6699, %v2809
    %v6736 = vmul.f32 %v6702, %v2809
    %v6737 = vmul.f32 %v6705, %v2809
    %v6738 = vmul.f32 %v6708, %v2809
    %v6739 = vmul.f32 %v6711, %v2809
    %v6740 = vmul.f32 %v6714, %v2809
    %v6741 = vsub.f32 %v6611, %v6715
    %v6742 = vsub.f32 %v6612, %v6716
    %v6743 = vsub.f32 %v6613, %v6717
    %v6744 = vsub.f32 %v6614, %v6718
    %v6745 = vsub.f32 %v6615, %v6719
    %v6746 = vsub.f32 %v6616, %v6720
    %v6747 = vsub.f32 %v6617, %v6721
    %v6748 = vsub.f32 %v6618, %v6722
    %v6749 = vsub.f32 %v6619, %v6723
    %v6750 = vsub.f32 %v6620, %v6724
    %v6751 = vsub.f32 %v6621, %v6725
    %v6752 = vsub.f32 %v6622, %v6726
    %v6753 = vsub.f32 %v6623, %v6727
    %v6754 = vsub.f32 %v6624, %v6728
    %v6755 = vsub.f32 %v6625, %v6729
    %v6756 = vsub.f32 %v6626, %v6730
    %v6757 = vsub.f32 %v6627, %v6731
    %v6758 = vsub.f32 %v6628, %v6732
    %v6759 = vsub.f32 %v6629, %v6733
    %v6760 = vsub.f32 %v6630, %v6734
    %v6761 = vsub.f32 %v6631, %v6735
    %v6762 = vsub.f32 %v6632, %v6736
    %v6763 = vsub.f32 %v6633, %v6737
    %v6764 = vsub.f32 %v6634, %v6738
    %v6765 = vsub.f32 %v6635, %v6739
    %v6766 = vsub.f32 %v6636, %v6740
    %v6767 = vmul.f32 %v6741, %v6741
    %v6768 = vmul.f32 %v6742, %v6742
    %v6769 = vmul.f32 %v6743, %v6743
    %v6770 = vmul.f32 %v6744, %v6744
    %v6771 = vmul.f32 %v6745, %v6745
    %v6772 = vmul.f32 %v6746, %v6746
    %v6773 = vmul.f32 %v6747, %v6747
    %v6774 = vmul.f32 %v6748, %v6748
    %v6775 = vmul.f32 %v6749, %v6749
    %v6776 = vmul.f32 %v6750, %v6750
    %v6777 = vmul.f32 %v6751, %v6751
    %v6778 = vmul.f32 %v6752, %v6752
    %v6779 = vmul.f32 %v6753, %v6753
    %v6780 = vmul.f32 %v6754, %v6754
    %v6781 = vmul.f32 %v6755, %v6755
    %v6782 = vmul.f32 %v6756, %v6756
    %v6783 = vmul.f32 %v6757, %v6757
    %v6784 = vmul.f32 %v6758, %v6758
    %v6785 = vmul.f32 %v6759, %v6759
    %v6786 = vmul.f32 %v6760, %v6760
    %v6787 = vmul.f32 %v6761, %v6761
    %v6788 = vmul.f32 %v6762, %v6762
    %v6789 = vmul.f32 %v6763, %v6763
    %v6790 = vmul.f32 %v6764, %v6764
    %v6791 = vmul.f32 %v6765, %v6765
    %v6792 = vmul.f32 %v6766, %v6766
    %v6793 = vsel %vm728, %v6767, 0.0
    %6794 = vadd.xlane.f32.xlu0 %v6793
    %v6795 = vpop.xlane.xlu0 %6794
    %v6796 = vsel %vm728, %v6768, 0.0
    %6797 = vadd.xlane.f32.xlu0 %v6796
    %v6798 = vpop.xlane.xlu0 %6797
    %v6799 = vsel %vm728, %v6769, 0.0
    %6800 = vadd.xlane.f32.xlu0 %v6799
    %v6801 = vpop.xlane.xlu0 %6800
    %v6802 = vsel %vm728, %v6770, 0.0
    %6803 = vadd.xlane.f32.xlu0 %v6802
    %v6804 = vpop.xlane.xlu0 %6803
    %v6805 = vsel %vm728, %v6771, 0.0
    %6806 = vadd.xlane.f32.xlu0 %v6805
    %v6807 = vpop.xlane.xlu0 %6806
    %v6808 = vsel %vm728, %v6772, 0.0
    %6809 = vadd.xlane.f32.xlu0 %v6808
    %v6810 = vpop.xlane.xlu0 %6809
    %v6811 = vsel %vm728, %v6773, 0.0
    %6812 = vadd.xlane.f32.xlu0 %v6811
    %v6813 = vpop.xlane.xlu0 %6812
    %v6814 = vsel %vm728, %v6774, 0.0
    %6815 = vadd.xlane.f32.xlu0 %v6814
    %v6816 = vpop.xlane.xlu0 %6815
    %v6817 = vsel %vm728, %v6775, 0.0
    %6818 = vadd.xlane.f32.xlu0 %v6817
    %v6819 = vpop.xlane.xlu0 %6818
    %v6820 = vsel %vm728, %v6776, 0.0
    %6821 = vadd.xlane.f32.xlu0 %v6820
    %v6822 = vpop.xlane.xlu0 %6821
    %v6823 = vsel %vm728, %v6777, 0.0
    %6824 = vadd.xlane.f32.xlu0 %v6823
    %v6825 = vpop.xlane.xlu0 %6824
    %v6826 = vsel %vm728, %v6778, 0.0
    %6827 = vadd.xlane.f32.xlu0 %v6826
    %v6828 = vpop.xlane.xlu0 %6827
    %v6829 = vsel %vm728, %v6779, 0.0
    %6830 = vadd.xlane.f32.xlu0 %v6829
    %v6831 = vpop.xlane.xlu0 %6830
    %v6832 = vsel %vm728, %v6780, 0.0
    %6833 = vadd.xlane.f32.xlu0 %v6832
    %v6834 = vpop.xlane.xlu0 %6833
    %v6835 = vsel %vm728, %v6781, 0.0
    %6836 = vadd.xlane.f32.xlu0 %v6835
    %v6837 = vpop.xlane.xlu0 %6836
    %v6838 = vsel %vm728, %v6782, 0.0
    %6839 = vadd.xlane.f32.xlu0 %v6838
    %v6840 = vpop.xlane.xlu0 %6839
    %v6841 = vsel %vm728, %v6783, 0.0
    %6842 = vadd.xlane.f32.xlu0 %v6841
    %v6843 = vpop.xlane.xlu0 %6842
    %v6844 = vsel %vm728, %v6784, 0.0
    %6845 = vadd.xlane.f32.xlu0 %v6844
    %v6846 = vpop.xlane.xlu0 %6845
    %v6847 = vsel %vm728, %v6785, 0.0
    %6848 = vadd.xlane.f32.xlu0 %v6847
    %v6849 = vpop.xlane.xlu0 %6848
    %v6850 = vsel %vm728, %v6786, 0.0
    %6851 = vadd.xlane.f32.xlu0 %v6850
    %v6852 = vpop.xlane.xlu0 %6851
    %v6853 = vsel %vm728, %v6787, 0.0
    %6854 = vadd.xlane.f32.xlu0 %v6853
    %v6855 = vpop.xlane.xlu0 %6854
    %v6856 = vsel %vm728, %v6788, 0.0
    %6857 = vadd.xlane.f32.xlu0 %v6856
    %v6858 = vpop.xlane.xlu0 %6857
    %v6859 = vsel %vm728, %v6789, 0.0
    %6860 = vadd.xlane.f32.xlu0 %v6859
    %v6861 = vpop.xlane.xlu0 %6860
    %v6862 = vsel %vm728, %v6790, 0.0
    %6863 = vadd.xlane.f32.xlu0 %v6862
    %v6864 = vpop.xlane.xlu0 %6863
    %v6865 = vsel %vm728, %v6791, 0.0
    %6866 = vadd.xlane.f32.xlu0 %v6865
    %v6867 = vpop.xlane.xlu0 %6866
    %v6868 = vsel %vm728, %v6792, 0.0
    %6869 = vadd.xlane.f32.xlu0 %v6868
    %v6870 = vpop.xlane.xlu0 %6869
    %v6871 = vmul.f32 %v6795, %v2809
    %v6872 = vmul.f32 %v6798, %v2809
    %v6873 = vmul.f32 %v6801, %v2809
    %v6874 = vmul.f32 %v6804, %v2809
    %v6875 = vmul.f32 %v6807, %v2809
    %v6876 = vmul.f32 %v6810, %v2809
    %v6877 = vmul.f32 %v6813, %v2809
    %v6878 = vmul.f32 %v6816, %v2809
    %v6879 = vmul.f32 %v6819, %v2809
    %v6880 = vmul.f32 %v6822, %v2809
    %v6881 = vmul.f32 %v6825, %v2809
    %v6882 = vmul.f32 %v6828, %v2809
    %v6883 = vmul.f32 %v6831, %v2809
    %v6884 = vmul.f32 %v6834, %v2809
    %v6885 = vmul.f32 %v6837, %v2809
    %v6886 = vmul.f32 %v6840, %v2809
    %v6887 = vmul.f32 %v6843, %v2809
    %v6888 = vmul.f32 %v6846, %v2809
    %v6889 = vmul.f32 %v6849, %v2809
    %v6890 = vmul.f32 %v6852, %v2809
    %v6891 = vmul.f32 %v6855, %v2809
    %v6892 = vmul.f32 %v6858, %v2809
    %v6893 = vmul.f32 %v6861, %v2809
    %v6894 = vmul.f32 %v6864, %v2809
    %v6895 = vmul.f32 %v6867, %v2809
    %v6896 = vmul.f32 %v6870, %v2809
    %v6897 = vadd.f32 %v6871, 1e-05
    %v6898 = vadd.f32 %v6872, 1e-05
    %v6899 = vadd.f32 %v6873, 1e-05
    %v6900 = vadd.f32 %v6874, 1e-05
    %v6901 = vadd.f32 %v6875, 1e-05
    %v6902 = vadd.f32 %v6876, 1e-05
    %v6903 = vadd.f32 %v6877, 1e-05
    %v6904 = vadd.f32 %v6878, 1e-05
    %v6905 = vadd.f32 %v6879, 1e-05
    %v6906 = vadd.f32 %v6880, 1e-05
    %v6907 = vadd.f32 %v6881, 1e-05
    %v6908 = vadd.f32 %v6882, 1e-05
    %v6909 = vadd.f32 %v6883, 1e-05
    %v6910 = vadd.f32 %v6884, 1e-05
    %v6911 = vadd.f32 %v6885, 1e-05
    %v6912 = vadd.f32 %v6886, 1e-05
    %v6913 = vadd.f32 %v6887, 1e-05
    %v6914 = vadd.f32 %v6888, 1e-05
    %v6915 = vadd.f32 %v6889, 1e-05
    %v6916 = vadd.f32 %v6890, 1e-05
    %v6917 = vadd.f32 %v6891, 1e-05
    %v6918 = vadd.f32 %v6892, 1e-05
    %v6919 = vadd.f32 %v6893, 1e-05
    %v6920 = vadd.f32 %v6894, 1e-05
    %v6921 = vadd.f32 %v6895, 1e-05
    %v6922 = vadd.f32 %v6896, 1e-05
    %v6923 = vrsqrt.pop %v6897
    %v6924 = vrsqrt.pop %v6898
    %v6925 = vrsqrt.pop %v6899
    %v6926 = vrsqrt.pop %v6900
    %v6927 = vrsqrt.pop %v6901
    %v6928 = vrsqrt.pop %v6902
    %v6929 = vrsqrt.pop %v6903
    %v6930 = vrsqrt.pop %v6904
    %v6931 = vrsqrt.pop %v6905
    %v6932 = vrsqrt.pop %v6906
    %v6933 = vrsqrt.pop %v6907
    %v6934 = vrsqrt.pop %v6908
    %v6935 = vrsqrt.pop %v6909
    %v6936 = vrsqrt.pop %v6910
    %v6937 = vrsqrt.pop %v6911
    %v6938 = vrsqrt.pop %v6912
    %v6939 = vrsqrt.pop %v6913
    %v6940 = vrsqrt.pop %v6914
    %v6941 = vrsqrt.pop %v6915
    %v6942 = vrsqrt.pop %v6916
    %v6943 = vrsqrt.pop %v6917
    %v6944 = vrsqrt.pop %v6918
    %v6945 = vrsqrt.pop %v6919
    %v6946 = vrsqrt.pop %v6920
    %v6947 = vrsqrt.pop %v6921
    %v6948 = vrsqrt.pop %v6922
    %v6949 = vmul.f32 %v6741, %v6923
    %v6950 = vmul.f32 %v6742, %v6924
    %v6951 = vmul.f32 %v6743, %v6925
    %v6952 = vmul.f32 %v6744, %v6926
    %v6953 = vmul.f32 %v6745, %v6927
    %v6954 = vmul.f32 %v6746, %v6928
    %v6955 = vmul.f32 %v6747, %v6929
    %v6956 = vmul.f32 %v6748, %v6930
    %v6957 = vmul.f32 %v6749, %v6931
    %v6958 = vmul.f32 %v6750, %v6932
    %v6959 = vmul.f32 %v6751, %v6933
    %v6960 = vmul.f32 %v6752, %v6934
    %v6961 = vmul.f32 %v6753, %v6935
    %v6962 = vmul.f32 %v6754, %v6936
    %v6963 = vmul.f32 %v6755, %v6937
    %v6964 = vmul.f32 %v6756, %v6938
    %v6965 = vmul.f32 %v6757, %v6939
    %v6966 = vmul.f32 %v6758, %v6940
    %v6967 = vmul.f32 %v6759, %v6941
    %v6968 = vmul.f32 %v6760, %v6942
    %v6969 = vmul.f32 %v6761, %v6943
    %v6970 = vmul.f32 %v6762, %v6944
    %v6971 = vmul.f32 %v6763, %v6945
    %v6972 = vmul.f32 %v6764, %v6946
    %v6973 = vmul.f32 %v6765, %v6947
    %v6974 = vmul.f32 %v6766, %v6948
    %v6975 = vld [vmem:[%s11 + $0x4] sm:$0x1]
    %v6976 = vlaneseq
    %v6977 = vshrl.u32 %v6976, 7
    %v6978 = vsub.s32 0, %v6977
    %v6979 = vrot.slane %v6975, %v6978
    %v6980 = vmul.f32 %v6949, %v6979
    %v6981 = vmul.f32 %v6950, %v6979
    %v6982 = vmul.f32 %v6951, %v6979
    %v6983 = vmul.f32 %v6952, %v6979
    %v6984 = vmul.f32 %v6953, %v6979
    %v6985 = vmul.f32 %v6954, %v6979
    %v6986 = vmul.f32 %v6955, %v6979
    %v6987 = vmul.f32 %v6956, %v6979
    %v6988 = vmul.f32 %v6957, %v6979
    %v6989 = vmul.f32 %v6958, %v6979
    %v6990 = vmul.f32 %v6959, %v6979
    %v6991 = vmul.f32 %v6960, %v6979
    %v6992 = vmul.f32 %v6961, %v6979
    %v6993 = vmul.f32 %v6962, %v6979
    %v6994 = vmul.f32 %v6963, %v6979
    %v6995 = vmul.f32 %v6964, %v6979
    %v6996 = vmul.f32 %v6965, %v6979
    %v6997 = vmul.f32 %v6966, %v6979
    %v6998 = vmul.f32 %v6967, %v6979
    %v6999 = vmul.f32 %v6968, %v6979
    %v7000 = vmul.f32 %v6969, %v6979
    %v7001 = vmul.f32 %v6970, %v6979
    %v7002 = vmul.f32 %v6971, %v6979
    %v7003 = vmul.f32 %v6972, %v6979
    %v7004 = vmul.f32 %v6973, %v6979
    %v7005 = vmul.f32 %v6974, %v6979
    %v7006 = vld [vmem:[%s11 + $0x5] sm:$0x1]
    %v7007 = vlaneseq
    %v7008 = vshrl.u32 %v7007, 7
    %v7009 = vsub.s32 0, %v7008
    %v7010 = vrot.slane %v7006, %v7009
    %v7011 = vadd.f32 %v6980, %v7010
    %v7012 = vadd.f32 %v6981, %v7010
    %v7013 = vadd.f32 %v6982, %v7010
    %v7014 = vadd.f32 %v6983, %v7010
    %v7015 = vadd.f32 %v6984, %v7010
    %v7016 = vadd.f32 %v6985, %v7010
    %v7017 = vadd.f32 %v6986, %v7010
    %v7018 = vadd.f32 %v6987, %v7010
    %v7019 = vadd.f32 %v6988, %v7010
    %v7020 = vadd.f32 %v6989, %v7010
    %v7021 = vadd.f32 %v6990, %v7010
    %v7022 = vadd.f32 %v6991, %v7010
    %v7023 = vadd.f32 %v6992, %v7010
    %v7024 = vadd.f32 %v6993, %v7010
    %v7025 = vadd.f32 %v6994, %v7010
    %v7026 = vadd.f32 %v6995, %v7010
    %v7027 = vadd.f32 %v6996, %v7010
    %v7028 = vadd.f32 %v6997, %v7010
    %v7029 = vadd.f32 %v6998, %v7010
    %v7030 = vadd.f32 %v6999, %v7010
    %v7031 = vadd.f32 %v7000, %v7010
    %v7032 = vadd.f32 %v7001, %v7010
    %v7033 = vadd.f32 %v7002, %v7010
    %v7034 = vadd.f32 %v7003, %v7010
    %v7035 = vadd.f32 %v7004, %v7010
    %v7036 = vadd.f32 %v7005, %v7010
    %v7037 = vld [vmem:[%s10] sm:$0xff]
    %v7038 = vld [vmem:[%s10 + $0x8] sm:$0xff]
    %v7039 = vld [vmem:[%s10 + $0x10] sm:$0xff]
    %v7040 = vld [vmem:[%s10 + $0x18] sm:$0xff]
    %v7041 = vld [vmem:[%s11 + $0x6] sm:$0x1]
    %v7042 = vlaneseq
    %v7043 = vshrl.u32 %v7042, 7
    %v7044 = vsub.s32 0, %v7043
    %v7045 = vrot.slane %v7041, %v7044
    %v7047 = vsel %vm728, %v7011, 0
    %v7050 = vsel %vm728, %v7012, 0
    %v7053 = vsel %vm728, %v7013, 0
    %v7056 = vsel %vm728, %v7014, 0
    %v7059 = vsel %vm728, %v7015, 0
    %v7062 = vsel %vm728, %v7016, 0
    %v7065 = vsel %vm728, %v7017, 0
    %v7068 = vsel %vm728, %v7018, 0
    %v7071 = vsel %vm728, %v7019, 0
    %v7074 = vsel %vm728, %v7020, 0
    %v7077 = vsel %vm728, %v7021, 0
    %v7080 = vsel %vm728, %v7022, 0
    %v7083 = vsel %vm728, %v7023, 0
    %v7086 = vsel %vm728, %v7024, 0
    %v7089 = vsel %vm728, %v7025, 0
    %v7092 = vsel %vm728, %v7026, 0
    %v7095 = vsel %vm728, %v7027, 0
    %v7098 = vsel %vm728, %v7028, 0
    %v7101 = vsel %vm728, %v7029, 0
    %v7104 = vsel %vm728, %v7030, 0
    %v7107 = vsel %vm728, %v7031, 0
    %v7110 = vsel %vm728, %v7032, 0
    %v7113 = vsel %vm728, %v7033, 0
    %v7116 = vsel %vm728, %v7034, 0
    %v7119 = vsel %vm728, %v7035, 0
    %v7122 = vsel %vm728, %v7036, 0
    %7124 = vmatprep.subr.mxu0 0.0
    %7125 = vmatpush1.msra.mxu0 0.0
    %7126 = vmatprep.subr.mxu0 0.0
    %7127 = vmatpush1.msra.mxu0 0.0
    %7128 = vmatprep.subr.mxu0 0.0
    %7129 = vmatpush1.msra.mxu0 0.0
    %7130 = vmatprep.subr.mxu0 0.0
    %7131 = vmatpush1.msra.mxu0 0.0
    %7132 = vmatprep.subr.mxu0 0.0
    %7133 = vmatpush1.msra.mxu0 0.0
    %7134 = vmatprep.subr.mxu0 0.0
    %7135 = vmatpush1.msra.mxu0 0.0
    %7136 = vmatprep.subr.mxu0 0.0
    %7137 = vmatpush1.msra.mxu0 0.0
    %7138 = vmatprep.subr.mxu0 0.0
    %7139 = vmatpush1.msra.mxu0 0.0
    %7140 = vmatprep.subr.mxu0 0.0
    %7141 = vmatpush1.msra.mxu0 0.0
    %7142 = vmatprep.subr.mxu0 0.0
    %7143 = vmatpush1.msra.mxu0 0.0
    %7144 = vmatprep.subr.mxu0 0.0
    %7145 = vmatpush1.msra.mxu0 0.0
    %7146 = vmatprep.subr.mxu0 0.0
    %7147 = vmatpush1.msra.mxu0 0.0
    %7148 = vmatprep.subr.mxu0 0.0
    %7149 = vmatpush1.msra.mxu0 %v7040
    %7150 = vmatprep.subr.mxu0 0.0
    %7151 = vmatpush1.msra.mxu0 %v7039
    %7152 = vmatprep.subr.mxu0 0.0
    %7153 = vmatpush1.msra.mxu0 %v7038
    %7154 = vmatprep.subr.mxu0 0.0
    %7155 = vmatpush1.msra.mxu0 %v7037
    %7156 = vmatprep.subr.mxu0 0.0
    %7157 = vmatpush2.msra.mxu0 0.0
    %7158 = vmatprep.subr.mxu0 0.0
    %7159 = vmatpush2.msra.mxu0 0.0
    %7160 = vmatprep.subr.mxu0 0.0
    %7161 = vmatpush2.msra.mxu0 0.0
    %7162 = vmatprep.subr.mxu0 0.0
    %7163 = vmatpush2.msra.mxu0 0.0
    %7164 = vmatprep.subr.mxu0 0.0
    %7165 = vmatpush2.msra.mxu0 0.0
    %7166 = vmatprep.subr.mxu0 0.0
    %7167 = vmatpush2.msra.mxu0 0.0
    %7168 = vmatprep.subr.mxu0 0.0
    %7169 = vmatpush2.msra.mxu0 0.0
    %7170 = vmatprep.subr.mxu0 0.0
    %7171 = vmatpush2.msra.mxu0 0.0
    %7172 = vmatprep.subr.mxu0 0.0
    %7173 = vmatpush2.msra.mxu0 0.0
    %7174 = vmatprep.subr.mxu0 0.0
    %7175 = vmatpush2.msra.mxu0 0.0
    %7176 = vmatprep.subr.mxu0 0.0
    %7177 = vmatpush2.msra.mxu0 0.0
    %7178 = vmatprep.subr.mxu0 0.0
    %7179 = vmatpush2.msra.mxu0 0.0
    %7180 = vmatprep.subr.mxu0 0.0
    %7181 = vmatpush2.msra.mxu0 0.0
    %7182 = vmatprep.subr.mxu0 0.0
    %7183 = vmatpush2.msra.mxu0 0.0
    %7184 = vmatprep.subr.mxu0 0.0
    %7185 = vmatpush2.msra.mxu0 0.0
    %7186 = vmatprep.subr.mxu0 0.0
    %7187 = vmatpush2.msra.mxu0 0.0
    %7188 = vmatprep.mubr.f32.mxu0 0.0
    %7189 = vmatmul.mubr.f32.gmra.mxu0 %v7047
    %v7190 = vpop.f32.mrf.mxu0
    %v7191 = vadd.f32 %v7045, %v7190
    %v7192 = vpop.f32.mrf.mxu0
    %7193 = vmatprep.mubr.f32.mxu0 0.0
    %7194 = vmatmul.mubr.f32.gmra.mxu0 %v7050
    %v7195 = vpop.f32.mrf.mxu0
    %v7196 = vadd.f32 %v7045, %v7195
    %v7197 = vpop.f32.mrf.mxu0
    %7198 = vmatprep.mubr.f32.mxu0 0.0
    %7199 = vmatmul.mubr.f32.gmra.mxu0 %v7053
    %v7200 = vpop.f32.mrf.mxu0
    %v7201 = vadd.f32 %v7045, %v7200
    %v7202 = vpop.f32.mrf.mxu0
    %7203 = vmatprep.mubr.f32.mxu0 0.0
    %7204 = vmatmul.mubr.f32.gmra.mxu0 %v7056
    %v7205 = vpop.f32.mrf.mxu0
    %v7206 = vadd.f32 %v7045, %v7205
    %v7207 = vpop.f32.mrf.mxu0
    %7208 = vmatprep.mubr.f32.mxu0 0.0
    %7209 = vmatmul.mubr.f32.gmra.mxu0 %v7059
    %v7210 = vpop.f32.mrf.mxu0
    %v7211 = vadd.f32 %v7045, %v7210
    %v7212 = vpop.f32.mrf.mxu0
    %7213 = vmatprep.mubr.f32.mxu0 0.0
    %7214 = vmatmul.mubr.f32.gmra.mxu0 %v7062
    %v7215 = vpop.f32.mrf.mxu0
    %v7216 = vadd.f32 %v7045, %v7215
    %v7217 = vpop.f32.mrf.mxu0
    %7218 = vmatprep.mubr.f32.mxu0 0.0
    %7219 = vmatmul.mubr.f32.gmra.mxu0 %v7065
    %v7220 = vpop.f32.mrf.mxu0
    %v7221 = vadd.f32 %v7045, %v7220
    %v7222 = vpop.f32.mrf.mxu0
    %7223 = vmatprep.mubr.f32.mxu0 0.0
    %7224 = vmatmul.mubr.f32.gmra.mxu0 %v7068
    %v7225 = vpop.f32.mrf.mxu0
    %v7226 = vadd.f32 %v7045, %v7225
    %v7227 = vpop.f32.mrf.mxu0
    %7228 = vmatprep.mubr.f32.mxu0 0.0
    %7229 = vmatmul.mubr.f32.gmra.mxu0 %v7071
    %v7230 = vpop.f32.mrf.mxu0
    %v7231 = vadd.f32 %v7045, %v7230
    %v7232 = vpop.f32.mrf.mxu0
    %7233 = vmatprep.mubr.f32.mxu0 0.0
    %7234 = vmatmul.mubr.f32.gmra.mxu0 %v7074
    %v7235 = vpop.f32.mrf.mxu0
    %v7236 = vadd.f32 %v7045, %v7235
    %v7237 = vpop.f32.mrf.mxu0
    %7238 = vmatprep.mubr.f32.mxu0 0.0
    %7239 = vmatmul.mubr.f32.gmra.mxu0 %v7077
    %v7240 = vpop.f32.mrf.mxu0
    %v7241 = vadd.f32 %v7045, %v7240
    %v7242 = vpop.f32.mrf.mxu0
    %7243 = vmatprep.mubr.f32.mxu0 0.0
    %7244 = vmatmul.mubr.f32.gmra.mxu0 %v7080
    %v7245 = vpop.f32.mrf.mxu0
    %v7246 = vadd.f32 %v7045, %v7245
    %v7247 = vpop.f32.mrf.mxu0
    %7248 = vmatprep.mubr.f32.mxu0 0.0
    %7249 = vmatmul.mubr.f32.gmra.mxu0 %v7083
    %v7250 = vpop.f32.mrf.mxu0
    %v7251 = vadd.f32 %v7045, %v7250
    %v7252 = vpop.f32.mrf.mxu0
    %7253 = vmatprep.mubr.f32.mxu0 0.0
    %7254 = vmatmul.mubr.f32.gmra.mxu0 %v7086
    %v7255 = vpop.f32.mrf.mxu0
    %v7256 = vadd.f32 %v7045, %v7255
    %v7257 = vpop.f32.mrf.mxu0
    %7258 = vmatprep.mubr.f32.mxu0 0.0
    %7259 = vmatmul.mubr.f32.gmra.mxu0 %v7089
    %v7260 = vpop.f32.mrf.mxu0
    %v7261 = vadd.f32 %v7045, %v7260
    %v7262 = vpop.f32.mrf.mxu0
    %7263 = vmatprep.mubr.f32.mxu0 0.0
    %7264 = vmatmul.mubr.f32.gmra.mxu0 %v7092
    %v7265 = vpop.f32.mrf.mxu0
    %v7266 = vadd.f32 %v7045, %v7265
    %v7267 = vpop.f32.mrf.mxu0
    %7268 = vmatprep.mubr.f32.mxu0 0.0
    %7269 = vmatmul.mubr.f32.gmra.mxu0 %v7095
    %v7270 = vpop.f32.mrf.mxu0
    %v7271 = vadd.f32 %v7045, %v7270
    %v7272 = vpop.f32.mrf.mxu0
    %7273 = vmatprep.mubr.f32.mxu0 0.0
    %7274 = vmatmul.mubr.f32.gmra.mxu0 %v7098
    %v7275 = vpop.f32.mrf.mxu0
    %v7276 = vadd.f32 %v7045, %v7275
    %v7277 = vpop.f32.mrf.mxu0
    %7278 = vmatprep.mubr.f32.mxu0 0.0
    %7279 = vmatmul.mubr.f32.gmra.mxu0 %v7101
    %v7280 = vpop.f32.mrf.mxu0
    %v7281 = vadd.f32 %v7045, %v7280
    %v7282 = vpop.f32.mrf.mxu0
    %7283 = vmatprep.mubr.f32.mxu0 0.0
    %7284 = vmatmul.mubr.f32.gmra.mxu0 %v7104
    %v7285 = vpop.f32.mrf.mxu0
    %v7286 = vadd.f32 %v7045, %v7285
    %v7287 = vpop.f32.mrf.mxu0
    %7288 = vmatprep.mubr.f32.mxu0 0.0
    %7289 = vmatmul.mubr.f32.gmra.mxu0 %v7107
    %v7290 = vpop.f32.mrf.mxu0
    %v7291 = vadd.f32 %v7045, %v7290
    %v7292 = vpop.f32.mrf.mxu0
    %7293 = vmatprep.mubr.f32.mxu0 0.0
    %7294 = vmatmul.mubr.f32.gmra.mxu0 %v7110
    %v7295 = vpop.f32.mrf.mxu0
    %v7296 = vadd.f32 %v7045, %v7295
    %v7297 = vpop.f32.mrf.mxu0
    %7298 = vmatprep.mubr.f32.mxu0 0.0
    %7299 = vmatmul.mubr.f32.gmra.mxu0 %v7113
    %v7300 = vpop.f32.mrf.mxu0
    %v7301 = vadd.f32 %v7045, %v7300
    %v7302 = vpop.f32.mrf.mxu0
    %7303 = vmatprep.mubr.f32.mxu0 0.0
    %7304 = vmatmul.mubr.f32.gmra.mxu0 %v7116
    %v7305 = vpop.f32.mrf.mxu0
    %v7306 = vadd.f32 %v7045, %v7305
    %v7307 = vpop.f32.mrf.mxu0
    %7308 = vmatprep.mubr.f32.mxu0 0.0
    %7309 = vmatmul.mubr.f32.gmra.mxu0 %v7119
    %v7310 = vpop.f32.mrf.mxu0
    %v7311 = vadd.f32 %v7045, %v7310
    %v7312 = vpop.f32.mrf.mxu0
    %7313 = vmatprep.mubr.f32.mxu0 0.0
    %7314 = vmatmul.mubr.f32.gmra.mxu0 %v7122
    %v7315 = vpop.f32.mrf.mxu0
    %v7316 = vadd.f32 %v7045, %v7315
    %v7317 = vpop.f32.mrf.mxu0
    %7318 = vdwg.mxu0
    %v7319 = vmax.f32 %v7191, 0.0
    %v7320 = vmax.f32 %v7196, 0.0
    %v7321 = vmax.f32 %v7201, 0.0
    %v7322 = vmax.f32 %v7206, 0.0
    %v7323 = vmax.f32 %v7211, 0.0
    %v7324 = vmax.f32 %v7216, 0.0
    %v7325 = vmax.f32 %v7221, 0.0
    %v7326 = vmax.f32 %v7226, 0.0
    %v7327 = vmax.f32 %v7231, 0.0
    %v7328 = vmax.f32 %v7236, 0.0
    %v7329 = vmax.f32 %v7241, 0.0
    %v7330 = vmax.f32 %v7246, 0.0
    %v7331 = vmax.f32 %v7251, 0.0
    %v7332 = vmax.f32 %v7256, 0.0
    %v7333 = vmax.f32 %v7261, 0.0
    %v7334 = vmax.f32 %v7266, 0.0
    %v7335 = vmax.f32 %v7271, 0.0
    %v7336 = vmax.f32 %v7276, 0.0
    %v7337 = vmax.f32 %v7281, 0.0
    %v7338 = vmax.f32 %v7286, 0.0
    %v7339 = vmax.f32 %v7291, 0.0
    %v7340 = vmax.f32 %v7296, 0.0
    %v7341 = vmax.f32 %v7301, 0.0
    %v7342 = vmax.f32 %v7306, 0.0
    %v7343 = vmax.f32 %v7311, 0.0
    %v7344 = vmax.f32 %v7316, 0.0
    %v7345 = vld [vmem:[%s3] sm:$0x3]
    %v7347 = vlaneseq
    %v7348 = vshrl.u32 %v7347, 7
    %v7349 = vsub.s32 0, %v7348
    %v7350 = vrot.slane %v7345, %v7349
    %v7351 = vlaneseq
    %v7352 = vshrl.u32 %v7351, 7
    %v7353 = vsub.s32 1, %v7352
    %v7354 = vrot.slane %v7345, %v7353
    %v7356 = vsel %vm2021, %v7354, 0
    %7358 = vmatprep.subr.mxu0 0.0
    %7359 = vmatpush1.msra.mxu0 %v7334
    %7360 = vmatprep.subr.mxu0 0.0
    %7361 = vmatpush1.msra.mxu0 %v7333
    %7362 = vmatprep.subr.mxu0 0.0
    %7363 = vmatpush1.msra.mxu0 %v7332
    %7364 = vmatprep.subr.mxu0 0.0
    %7365 = vmatpush1.msra.mxu0 %v7331
    %7366 = vmatprep.subr.mxu0 0.0
    %7367 = vmatpush1.msra.mxu0 %v7330
    %7368 = vmatprep.subr.mxu0 0.0
    %7369 = vmatpush1.msra.mxu0 %v7329
    %7370 = vmatprep.subr.mxu0 0.0
    %7371 = vmatpush1.msra.mxu0 %v7328
    %7372 = vmatprep.subr.mxu0 0.0
    %7373 = vmatpush1.msra.mxu0 %v7327
    %7374 = vmatprep.subr.mxu0 0.0
    %7375 = vmatpush1.msra.mxu0 %v7326
    %7376 = vmatprep.subr.mxu0 0.0
    %7377 = vmatpush1.msra.mxu0 %v7325
    %7378 = vmatprep.subr.mxu0 0.0
    %7379 = vmatpush1.msra.mxu0 %v7324
    %7380 = vmatprep.subr.mxu0 0.0
    %7381 = vmatpush1.msra.mxu0 %v7323
    %7382 = vmatprep.subr.mxu0 0.0
    %7383 = vmatpush1.msra.mxu0 %v7322
    %7384 = vmatprep.subr.mxu0 0.0
    %7385 = vmatpush1.msra.mxu0 %v7321
    %7386 = vmatprep.subr.mxu0 0.0
    %7387 = vmatpush1.msra.mxu0 %v7320
    %7388 = vmatprep.subr.mxu0 0.0
    %7389 = vmatpush1.msra.mxu0 %v7319
    %7390 = vmatprep.subr.mxu0 0.0
    %7391 = vmatpush2.msra.mxu0 0.0
    %7392 = vmatprep.subr.mxu0 0.0
    %7393 = vmatpush2.msra.mxu0 0.0
    %7394 = vmatprep.subr.mxu0 0.0
    %7395 = vmatpush2.msra.mxu0 0.0
    %7396 = vmatprep.subr.mxu0 0.0
    %7397 = vmatpush2.msra.mxu0 0.0
    %7398 = vmatprep.subr.mxu0 0.0
    %7399 = vmatpush2.msra.mxu0 0.0
    %7400 = vmatprep.subr.mxu0 0.0
    %7401 = vmatpush2.msra.mxu0 0.0
    %7402 = vmatprep.subr.mxu0 0.0
    %7403 = vmatpush2.msra.mxu0 %v7344
    %7404 = vmatprep.subr.mxu0 0.0
    %7405 = vmatpush2.msra.mxu0 %v7343
    %7406 = vmatprep.subr.mxu0 0.0
    %7407 = vmatpush2.msra.mxu0 %v7342
    %7408 = vmatprep.subr.mxu0 0.0
    %7409 = vmatpush2.msra.mxu0 %v7341
    %7410 = vmatprep.subr.mxu0 0.0
    %7411 = vmatpush2.msra.mxu0 %v7340
    %7412 = vmatprep.subr.mxu0 0.0
    %7413 = vmatpush2.msra.mxu0 %v7339
    %7414 = vmatprep.subr.mxu0 0.0
    %7415 = vmatpush2.msra.mxu0 %v7338
    %7416 = vmatprep.subr.mxu0 0.0
    %7417 = vmatpush2.msra.mxu0 %v7337
    %7418 = vmatprep.subr.mxu0 0.0
    %7419 = vmatpush2.msra.mxu0 %v7336
    %7420 = vmatprep.subr.mxu0 0.0
    %7421 = vmatpush2.msra.mxu0 %v7335
    %7422 = vmatprep.mubr.f32.mxu0 %v7356
    %7423 = vmatmul.mubr.f32.gmra.mxu0 %v7350
    %v7424 = vpop.f32.mrf.mxu0
    %v7425 = vadd.f32 0.0, %v7424
    %v7426 = vpop.f32.mrf.mxu0
    %7427 = vdwg.mxu0
    %7428 = vst.msk [vmem:[#allocation4 + $0x1] sm:$0x1] %vm4539, %v7425
    // Predicated region
    $region50: #{tpu_custom_call.1} parent=1 // pred_check
      _
    $region51: #{tpu_custom_call.1} parent=1 // pred_check_branch
      %7430 = sbr.rel (0) target = $region53
    $region52: #{tpu_custom_call.1} parent=1 // pred_region
      %s7432 = ssub.s32 32, 32
      %7433 = vsyncadd [#allocation5], %s7432
      %s7435 = sshll.u32 [#allocation4], 4
      %s7436 = int_to_ptr.vmem [resolvable:$true] %s7435
      %7438 = dma.vmem_to_hbm [thread:$0]  %s7436, 32, %s12, [#allocation5]
    $region53: #{tpu_custom_call.1} parent=1 // pred_fallthru
      _
    // Predicated region
    $region54: #{tpu_custom_call.1} parent=1 // pred_check
      _
    $region55: #{tpu_custom_call.1} parent=1 // pred_check_branch
      %7440 = sbr.rel (0) target = $region57
    $region56: #{tpu_custom_call.1} parent=1 // pred_region
      %7441 = dma.done [#allocation5], 32
    $region57: #{tpu_custom_call.1} parent=1 // pred_fallthru
      _
    %7442 = vsyncpa [#allocation5], 1

</llo_original>
